<compile_context>
chip_gen: v6e
topology: v6e:2x2x1
jax: 0.10.0
libtpu: 0.0.40
codegen_flags: <defaults>
</compile_context>

<pallas_src>
import functools

import jax
import jax.numpy as jnp
from jax import lax
from jax.experimental import pallas as pl
from jax.experimental.pallas import tpu as pltpu

_LANES = 512            # lane-dense last dim (multiple of 128)
_MAX_TILE_ROWS = 1024   # (1024, 512) f32 block = 2 MiB per input
_SMALL_N = 64 * 1024    # below this, plain XLA reduction beats pallas_call


# ---------------- Pallas kernels ----------------

def _rowsum(v):
    """(tile_rows, _LANES) -> (1, _LANES): collapse only the sublane axis."""
    return jnp.sum(v, axis=0, keepdims=True)


def _bce_ones_kernel(x_ref, out_ref, *, valid_rows_last, ragged):
    """Per-block lane partials of sum BCEWithLogits(x, target=1)."""
    x = x_ref[...].astype(jnp.float32)
    # softplus(-x) = max(x, 0) - x + log1p(exp(-|x|))
    val = jnp.maximum(x, 0.0) - x + jnp.log1p(jnp.exp(-jnp.abs(x)))

    if not ragged:
        out_ref[0] = _rowsum(val)
    else:
        last = pl.num_programs(0) - 1

        @pl.when(pl.program_id(0) < last)
        def _full():
            out_ref[0] = _rowsum(val)

        @pl.when(pl.program_id(0) == last)
        def _ragged_block():
            tr, lanes = x_ref.shape
            row = lax.broadcasted_iota(jnp.int32, (tr, lanes), 0)
            out_ref[0] = _rowsum(jnp.where(row < valid_rows_last, val, 0.0))


def _gen_sums_kernel(x_ref, t_ref, bce_ref, inter_ref, pred_ref, tgt_ref,
                     *, valid_rows_last, ragged):
    """Per-block lane partials of
       [sum BCE(x, t), sum sigmoid(x)*t, sum sigmoid(x), sum t]."""
    x = x_ref[...].astype(jnp.float32)
    t = t_ref[...].astype(jnp.float32)

    # Shared transcendental: e = exp(-|x|) feeds both log1p (BCE) and sigmoid.
    e = jnp.exp(-jnp.abs(x))
    bce = jnp.maximum(x, 0.0) - x * t + jnp.log1p(e)
    inv = 1.0 / (1.0 + e)                   # exact (keeps 1e-5 tolerance)
    p = jnp.where(x >= 0.0, inv, e * inv)   # == sigmoid(x)
    pt = p * t

    def _write(bce_v, pt_v, p_v, t_v):
        bce_ref[0] = _rowsum(bce_v)
        inter_ref[0] = _rowsum(pt_v)
        pred_ref[0] = _rowsum(p_v)
        tgt_ref[0] = _rowsum(t_v)

    if not ragged:
        _write(bce, pt, p, t)
    else:
        last = pl.num_programs(0) - 1

        @pl.when(pl.program_id(0) < last)
        def _full():
            _write(bce, pt, p, t)

        @pl.when(pl.program_id(0) == last)
        def _ragged_block():
            tr, lanes = x_ref.shape
            row = lax.broadcasted_iota(jnp.int32, (tr, lanes), 0)
            m = row < valid_rows_last
            _write(jnp.where(m, bce, 0.0), jnp.where(m, pt, 0.0),
                   jnp.where(m, p, 0.0), jnp.where(m, t, 0.0))


# ---------------- Wrappers ----------------

def _prep(x):
    """Zero-copy flatten to a lane-dense (rows, _LANES) bulk + flat tail.

    Returns (bulk_2d, tail_1d_or_None, rows).  For sizes divisible by _LANES
    (the common case for image-shaped masks) this is a pure ravel+reshape with
    no data movement; otherwise the <_LANES-element tail is split off and
    reduced in plain JAX (the bulk slice is the only copy on that rare path).
    """
    n = int(x.size)
    rows = n // _LANES
    n_bulk = rows * _LANES
    xf = jnp.ravel(x)
    if n_bulk == n:
        return xf.reshape(rows, _LANES), None, rows
    return xf[:n_bulk].reshape(rows, _LANES), xf[n_bulk:], rows


def _tiling(rows):
    """tile_rows (multiple of 32), num_blocks, valid rows in the last block."""
    tile_rows = min(_MAX_TILE_ROWS, (rows // 32) * 32)
    nblk = -(-rows // tile_rows)
    valid_last = rows - (nblk - 1) * tile_rows
    return tile_rows, nblk, valid_last


def _jnp_bce_ones_sum(x):
    x = x.astype(jnp.float32)
    return jnp.sum(jnp.maximum(x, 0.0) - x + jnp.log1p(jnp.exp(-jnp.abs(x))))


def _jnp_gen_sums(x, t):
    x = x.astype(jnp.float32)
    t = t.astype(jnp.float32)
    bce = jnp.maximum(x, 0.0) - x * t + jnp.log1p(jnp.exp(-jnp.abs(x)))
    p = jax.nn.sigmoid(x)
    return jnp.sum(bce), jnp.sum(p * t), jnp.sum(p), jnp.sum(t)


_COMPILER_PARAMS = pltpu.CompilerParams(
    dimension_semantics=("parallel",),      # per-block partials -> independent
    vmem_limit_bytes=32 * 1024 * 1024,      # v5e scoped default is only 16 MiB
)


def _bce_ones_sum(x):
    """sum over all elements of BCEWithLogits(x, target=1)."""
    n = int(x.size)
    if n < _SMALL_N:
        return _jnp_bce_ones_sum(x)         # small-input fast path

    bulk, tail, rows = _prep(x)
    tr, nblk, valid_last = _tiling(rows)
    kernel = functools.partial(_bce_ones_kernel,
                               valid_rows_last=valid_last,
                               ragged=valid_last != tr)
    partials = pl.pallas_call(
        kernel,
        out_shape=jax.ShapeDtypeStruct((nblk, 1, _LANES), jnp.float32),
        grid_spec=pltpu.PrefetchScalarGridSpec(
            num_scalar_prefetch=0,
            grid=(nblk,),
            in_specs=[pl.BlockSpec((tr, _LANES), lambda i: (i, 0))],
            out_specs=pl.BlockSpec((1, 1, _LANES), lambda i: (i, 0, 0)),
        ),
        compiler_params=_COMPILER_PARAMS,
        cost_estimate=pl.CostEstimate(
            flops=6 * n, transcendentals=2 * n,
            bytes_accessed=x.dtype.itemsize * n + 4 * nblk * _LANES),
    )(bulk)
    total = jnp.sum(partials)
    if tail is not None:
        total = total + _jnp_bce_ones_sum(tail)
    return total


def _gen_sums(x, t):
    """(sum BCE(x,t), sum sigmoid(x)*t, sum sigmoid(x), sum t)."""
    n = int(x.size)
    if n < _SMALL_N:
        return _jnp_gen_sums(x, t)          # small-input fast path

    x2, xtail, rows = _prep(x)
    t2, ttail, _ = _prep(t)
    tr, nblk, valid_last = _tiling(rows)
    kernel = functools.partial(_gen_sums_kernel,
                               valid_rows_last=valid_last,
                               ragged=valid_last != tr)
    part_shape = jax.ShapeDtypeStruct((nblk, 1, _LANES), jnp.float32)
    out_spec = pl.BlockSpec((1, 1, _LANES), lambda i: (i, 0, 0))
    pb, pi, pp, ptg = pl.pallas_call(
        kernel,
        out_shape=(part_shape,) * 4,
        grid_spec=pltpu.PrefetchScalarGridSpec(
            num_scalar_prefetch=0,
            grid=(nblk,),
            in_specs=[pl.BlockSpec((tr, _LANES), lambda i: (i, 0)),
                      pl.BlockSpec((tr, _LANES), lambda i: (i, 0))],
            out_specs=(out_spec,) * 4,
        ),
        compiler_params=_COMPILER_PARAMS,
        cost_estimate=pl.CostEstimate(
            flops=12 * n, transcendentals=2 * n,
            bytes_accessed=(x.dtype.itemsize + t.dtype.itemsize) * n
                           + 16 * nblk * _LANES),
    )(x2, t2)
    sums = (jnp.sum(pb), jnp.sum(pi), jnp.sum(pp), jnp.sum(ptg))
    if xtail is not None:
        tails = _jnp_gen_sums(xtail, ttail)
        sums = tuple(a + b for a, b in zip(sums, tails))
    return sums


def gen_loss(dis_output, gen_mask, target_mask,
             alpha=1.0, lambd=2.0, bce_weight=0.5):
    """Matches GenLoss.forward (pos_weight=None, mean-reduction BCE)."""
    n_dis = float(dis_output.size)
    n_gen = float(gen_mask.size)

    dis_sum = _bce_ones_sum(dis_output)
    bce_sum, inter, pred_sum, tgt_sum = _gen_sums(gen_mask, target_mask)

    loss = dis_sum / n_dis                 # BCE(dis_output, ones), mean
    bce_loss = bce_sum / n_gen             # BCE(gen_mask, target_mask), mean
    smooth = 1e-6
    dice_loss = 1.0 - (2.0 * inter + smooth) / (pred_sum + tgt_sum + smooth)

    return alpha * loss + lambd * (bce_weight * bce_loss
                                   + (1.0 - bce_weight) * dice_loss)


# ---------------- Pure-JAX reference for verification ----------------

def _ref_gen_loss(dis_output, gen_mask, target_mask,
                  alpha=1.0, lambd=2.0, bce_weight=0.5):
    def bce_with_logits(x, y):
        x = x.astype(jnp.float32)
        y = y.astype(jnp.float32)
        return jnp.mean(jnp.maximum(x, 0.0) - x * y
                        + jnp.log1p(jnp.exp(-jnp.abs(x))))
    loss = bce_with_logits(dis_output, jnp.ones_like(dis_output))
    bce_loss = bce_with_logits(gen_mask, target_mask)
    p = jax.nn.sigmoid(gen_mask.astype(jnp.float32))
    smooth = 1e-6
    inter = jnp.sum(p * target_mask)
    union = jnp.sum(p) + jnp.sum(target_mask)
    dice = 1.0 - (2.0 * inter + smooth) / (union + smooth)
    return alpha * loss + lambd * (bce_weight * bce_loss + (1 - bce_weight) * dice)


if __name__ == "__main__":
    key = jax.random.PRNGKey(0)
    k1, k2, k3, k4, k5, k6 = jax.random.split(key, 6)

    loss_fn = jax.jit(gen_loss)

    # Case 1: moderate image-mask shapes -> exercises the Pallas kernels
    # (zero-copy divisible layout for dis_output; ragged-last-block masking plus
    # the <512-element tail epilogue for gen_mask/target_mask).
    dis1 = jax.random.normal(k1, (2, 1, 256, 256), dtype=jnp.float32)
    gen1 = jax.random.normal(k2, (3, 1, 200, 200), dtype=jnp.float32)
    tgt1 = (jax.random.uniform(k3, (3, 1, 200, 200)) > 0.5).astype(jnp.float32)
    out1 = jax.block_until_ready(loss_fn(dis1, gen1, tgt1))
    ref1 = _ref_gen_loss(dis1, gen1, tgt1)
    assert jnp.allclose(out1, ref1, rtol=1e-5, atol=1e-5), (out1, ref1)

    # Case 2: tiny shapes (patch-discriminator scale) -> small-input fast path.
    dis2 = jax.random.normal(k4, (2, 1, 16, 16), dtype=jnp.float32)
    gen2 = jax.random.normal(k5, (2, 1, 16, 16), dtype=jnp.float32)
    tgt2 = (jax.random.uniform(k6, (2, 1, 16, 16)) > 0.5).astype(jnp.float32)
    out2 = jax.block_until_ready(loss_fn(dis2, gen2, tgt2))
    ref2 = _ref_gen_loss(dis2, gen2, tgt2)
    assert jnp.allclose(out2, ref2, rtol=1e-5, atol=1e-5), (out2, ref2)

    print("KERNEL_OK")
</pallas_src>

<mosaic_0001>
module attributes {stable_mosaic.version = 11 : i64} {
  func.func @_bce_ones_kernel(%arg0: i32, %arg1: memref<256x512xf32, #tpu.memory_space<vmem>>, %arg2: memref<1x1x512xf32, #tpu.memory_space<vmem>>) attributes {dimension_semantics = [#tpu.dimension_semantics<parallel>], iteration_bounds = array<i64: 1>, scalar_prefetch = 0 : i64, scratch_operands = 0 : i64, tpu.core_type = #tpu.core_type<tc>, window_params = [{transform_indices = @transform_0, window_bounds = array<i64: 256, 512>}, {transform_indices = @transform_1, window_bounds = array<i64: 1, 1, 512>}]} {
    %c0 = arith.constant 0 : index
    %c0_0 = arith.constant 0 : index
    %0 = vector.load %arg1[%c0, %c0_0] : memref<256x512xf32, #tpu.memory_space<vmem>>, vector<256x512xf32>
    %cst = arith.constant 0.000000e+00 : f32
    %1 = vector.broadcast %cst : f32 to vector<256x512xf32>
    %2 = arith.maximumf %0, %1 : vector<256x512xf32>
    %3 = arith.subf %2, %0 : vector<256x512xf32>
    %4 = math.absf %0 : vector<256x512xf32>
    %cst_1 = arith.constant 0.000000e+00 : f32
    %5 = vector.broadcast %cst_1 : f32 to vector<256x512xf32>
    %6 = arith.subf %5, %4 : vector<256x512xf32>
    %7 = math.exp %6 : vector<256x512xf32>
    %8 = math.log1p %7 : vector<256x512xf32>
    %9 = arith.addf %3, %8 : vector<256x512xf32>
    %cst_2 = arith.constant dense<0.000000e+00> : vector<512xf32>
    %10 = vector.multi_reduction <add>, %9, %cst_2 [0] : vector<256x512xf32> to vector<512xf32>
    %11 = vector.shape_cast %10 : vector<512xf32> to vector<1x512xf32>
    %c0_3 = arith.constant 0 : index
    %c0_4 = arith.constant 0 : index
    %c0_5 = arith.constant 0 : index
    %12 = vector.load %arg2[%c0_3, %c0_4, %c0_5] : memref<1x1x512xf32, #tpu.memory_space<vmem>>, vector<1x1x512xf32>
    %13 = vector.shape_cast %12 : vector<1x1x512xf32> to vector<1x512xf32>
    %14 = vector.shape_cast %11 : vector<1x512xf32> to vector<1x1x512xf32>
    tpu.vector_store %arg2[%c0_3, %c0_4, %c0_5], %14 {strides = array<i32>} : memref<1x1x512xf32, #tpu.memory_space<vmem>>, vector<1x1x512xf32>,
    return
  }
  func.func @transform_0(%arg0: i32) -> (i32, i32) {
    %c0_i32 = arith.constant 0 : i32
    %c0_i32_0 = arith.constant 0 : i32
    return %arg0, %c0_i32 : i32, i32
  }
  func.func @transform_1(%arg0: i32) -> (i32, i32, i32) {
    %c0_i32 = arith.constant 0 : i32
    %c0_i32_0 = arith.constant 0 : i32
    %c0_i32_1 = arith.constant 0 : i32
    return %arg0, %c0_i32, %c0_i32_0 : i32, i32, i32
  }
}

module attributes {stable_mosaic.version = 11 : i64} {
  func.func @_gen_sums_kernel(%arg0: i32, %arg1: memref<224x512xf32, #tpu.memory_space<vmem>>, %arg2: memref<224x512xf32, #tpu.memory_space<vmem>>, %arg3: memref<1x1x512xf32, #tpu.memory_space<vmem>>, %arg4: memref<1x1x512xf32, #tpu.memory_space<vmem>>, %arg5: memref<1x1x512xf32, #tpu.memory_space<vmem>>, %arg6: memref<1x1x512xf32, #tpu.memory_space<vmem>>) attributes {dimension_semantics = [#tpu.dimension_semantics<parallel>], iteration_bounds = array<i64: 2>, scalar_prefetch = 0 : i64, scratch_operands = 0 : i64, tpu.core_type = #tpu.core_type<tc>, window_params = [{transform_indices = @transform_0, window_bounds = array<i64: 224, 512>}, {transform_indices = @transform_1, window_bounds = array<i64: 224, 512>}, {transform_indices = @transform_2, window_bounds = array<i64: 1, 1, 512>}, {transform_indices = @transform_3, window_bounds = array<i64: 1, 1, 512>}, {transform_indices = @transform_4, window_bounds = array<i64: 1, 1, 512>}, {transform_indices = @transform_5, window_bounds = array<i64: 1, 1, 512>}]} {
    %c0 = arith.constant 0 : index
    %c0_0 = arith.constant 0 : index
    %0 = vector.load %arg1[%c0, %c0_0] : memref<224x512xf32, #tpu.memory_space<vmem>>, vector<224x512xf32>
    %c0_1 = arith.constant 0 : index
    %c0_2 = arith.constant 0 : index
    %1 = vector.load %arg2[%c0_1, %c0_2] : memref<224x512xf32, #tpu.memory_space<vmem>>, vector<224x512xf32>
    %2 = math.absf %0 : vector<224x512xf32>
    %cst = arith.constant 0.000000e+00 : f32
    %3 = vector.broadcast %cst : f32 to vector<224x512xf32>
    %4 = arith.subf %3, %2 : vector<224x512xf32>
    %5 = math.exp %4 : vector<224x512xf32>
    %cst_3 = arith.constant 0.000000e+00 : f32
    %6 = vector.broadcast %cst_3 : f32 to vector<224x512xf32>
    %7 = arith.maximumf %0, %6 : vector<224x512xf32>
    %8 = arith.mulf %0, %1 : vector<224x512xf32>
    %9 = arith.subf %7, %8 : vector<224x512xf32>
    %10 = math.log1p %5 : vector<224x512xf32>
    %11 = arith.addf %9, %10 : vector<224x512xf32>
    %cst_4 = arith.constant 1.000000e+00 : f32
    %12 = vector.broadcast %cst_4 : f32 to vector<224x512xf32>
    %13 = arith.addf %12, %5 : vector<224x512xf32>
    %cst_5 = arith.constant 1.000000e+00 : f32
    %14 = vector.broadcast %cst_5 : f32 to vector<224x512xf32>
    %15 = arith.divf %14, %13 : vector<224x512xf32>
    %cst_6 = arith.constant 0.000000e+00 : f32
    %16 = vector.broadcast %cst_6 : f32 to vector<224x512xf32>
    %17 = arith.cmpf oge, %0, %16 : vector<224x512xf32>
    %18 = arith.mulf %5, %15 : vector<224x512xf32>
    %19 = arith.select %17, %15, %18 : vector<224x512xi1>, vector<224x512xf32>
    %20 = arith.mulf %19, %1 : vector<224x512xf32>
    %c1_i32 = arith.constant 1 : i32
    %21 = arith.cmpi slt, %arg0, %c1_i32 : i32
    %22 = arith.extui %21 : i1 to i32
    %c0_i32 = arith.constant 0 : i32
    %23 = arith.cmpi ne, %22, %c0_i32 : i32
    scf.if %23 {
      %cst_9 = arith.constant dense<0.000000e+00> : vector<512xf32>
      %27 = vector.multi_reduction <add>, %11, %cst_9 [0] : vector<224x512xf32> to vector<512xf32>
      %28 = vector.shape_cast %27 : vector<512xf32> to vector<1x512xf32>
      %c0_10 = arith.constant 0 : index
      %c0_11 = arith.constant 0 : index
      %c0_12 = arith.constant 0 : index
      %29 = vector.load %arg3[%c0_10, %c0_11, %c0_12] : memref<1x1x512xf32, #tpu.memory_space<vmem>>, vector<1x1x512xf32>
      %30 = vector.shape_cast %29 : vector<1x1x512xf32> to vector<1x512xf32>
      %31 = vector.shape_cast %28 : vector<1x512xf32> to vector<1x1x512xf32>
      tpu.vector_store %arg3[%c0_10, %c0_11, %c0_12], %31 {strides = array<i32>} : memref<1x1x512xf32, #tpu.memory_space<vmem>>, vector<1x1x512xf32>,
      %cst_13 = arith.constant dense<0.000000e+00> : vector<512xf32>
      %32 = vector.multi_reduction <add>, %20, %cst_13 [0] : vector<224x512xf32> to vector<512xf32>
      %33 = vector.shape_cast %32 : vector<512xf32> to vector<1x512xf32>
      %c0_14 = arith.constant 0 : index
      %c0_15 = arith.constant 0 : index
      %c0_16 = arith.constant 0 : index
      %34 = vector.load %arg4[%c0_14, %c0_15, %c0_16] : memref<1x1x512xf32, #tpu.memory_space<vmem>>, vector<1x1x512xf32>
      %35 = vector.shape_cast %34 : vector<1x1x512xf32> to vector<1x512xf32>
      %36 = vector.shape_cast %33 : vector<1x512xf32> to vector<1x1x512xf32>
      tpu.vector_store %arg4[%c0_14, %c0_15, %c0_16], %36 {strides = array<i32>} : memref<1x1x512xf32, #tpu.memory_space<vmem>>, vector<1x1x512xf32>,
      %cst_17 = arith.constant dense<0.000000e+00> : vector<512xf32>
      %37 = vector.multi_reduction <add>, %19, %cst_17 [0] : vector<224x512xf32> to vector<512xf32>
      %38 = vector.shape_cast %37 : vector<512xf32> to vector<1x512xf32>
      %c0_18 = arith.constant 0 : index
      %c0_19 = arith.constant 0 : index
      %c0_20 = arith.constant 0 : index
      %39 = vector.load %arg5[%c0_18, %c0_19, %c0_20] : memref<1x1x512xf32, #tpu.memory_space<vmem>>, vector<1x1x512xf32>
      %40 = vector.shape_cast %39 : vector<1x1x512xf32> to vector<1x512xf32>
      %41 = vector.shape_cast %38 : vector<1x512xf32> to vector<1x1x512xf32>
      tpu.vector_store %arg5[%c0_18, %c0_19, %c0_20], %41 {strides = array<i32>} : memref<1x1x512xf32, #tpu.memory_space<vmem>>, vector<1x1x512xf32>,
      %cst_21 = arith.constant dense<0.000000e+00> : vector<512xf32>
      %42 = vector.multi_reduction <add>, %1, %cst_21 [0] : vector<224x512xf32> to vector<512xf32>
      %43 = vector.shape_cast %42 : vector<512xf32> to vector<1x512xf32>
      %c0_22 = arith.constant 0 : index
      %c0_23 = arith.constant 0 : index
      %c0_24 = arith.constant 0 : index
      %44 = vector.load %arg6[%c0_22, %c0_23, %c0_24] : memref<1x1x512xf32, #tpu.memory_space<vmem>>, vector<1x1x512xf32>
      %45 = vector.shape_cast %44 : vector<1x1x512xf32> to vector<1x512xf32>
      %46 = vector.shape_cast %43 : vector<1x512xf32> to vector<1x1x512xf32>
      tpu.vector_store %arg6[%c0_22, %c0_23, %c0_24], %46 {strides = array<i32>} : memref<1x1x512xf32, #tpu.memory_space<vmem>>, vector<1x1x512xf32>,
    } else {
    }
    %c1_i32_7 = arith.constant 1 : i32
    %24 = arith.cmpi eq, %arg0, %c1_i32_7 : i32
    %25 = arith.extui %24 : i1 to i32
    %c0_i32_8 = arith.constant 0 : i32
    %26 = arith.cmpi ne, %25, %c0_i32_8 : i32
    scf.if %26 {
      %27 = tpu.iota {dimensions = array<i32: 0>} : vector<224x512xi32>
      %c10_i32 = arith.constant 10 : i32
      %28 = vector.broadcast %c10_i32 : i32 to vector<224x512xi32>
      %29 = arith.cmpi slt, %27, %28 : vector<224x512xi32>
      %cst_9 = arith.constant 0.000000e+00 : f32
      %30 = vector.broadcast %cst_9 : f32 to vector<224x512xf32>
      %31 = arith.select %29, %11, %30 : vector<224x512xi1>, vector<224x512xf32>
      %cst_10 = arith.constant 0.000000e+00 : f32
      %32 = vector.broadcast %cst_10 : f32 to vector<224x512xf32>
      %33 = arith.select %29, %20, %32 : vector<224x512xi1>, vector<224x512xf32>
      %cst_11 = arith.constant 0.000000e+00 : f32
      %34 = vector.broadcast %cst_11 : f32 to vector<224x512xf32>
      %35 = arith.select %29, %19, %34 : vector<224x512xi1>, vector<224x512xf32>
      %cst_12 = arith.constant 0.000000e+00 : f32
      %36 = vector.broadcast %cst_12 : f32 to vector<224x512xf32>
      %37 = arith.select %29, %1, %36 : vector<224x512xi1>, vector<224x512xf32>
      %cst_13 = arith.constant dense<0.000000e+00> : vector<512xf32>
      %38 = vector.multi_reduction <add>, %31, %cst_13 [0] : vector<224x512xf32> to vector<512xf32>
      %39 = vector.shape_cast %38 : vector<512xf32> to vector<1x512xf32>
      %c0_14 = arith.constant 0 : index
      %c0_15 = arith.constant 0 : index
      %c0_16 = arith.constant 0 : index
      %40 = vector.load %arg3[%c0_14, %c0_15, %c0_16] : memref<1x1x512xf32, #tpu.memory_space<vmem>>, vector<1x1x512xf32>
      %41 = vector.shape_cast %40 : vector<1x1x512xf32> to vector<1x512xf32>
      %42 = vector.shape_cast %39 : vector<1x512xf32> to vector<1x1x512xf32>
      tpu.vector_store %arg3[%c0_14, %c0_15, %c0_16], %42 {strides = array<i32>} : memref<1x1x512xf32, #tpu.memory_space<vmem>>, vector<1x1x512xf32>,
      %cst_17 = arith.constant dense<0.000000e+00> : vector<512xf32>
      %43 = vector.multi_reduction <add>, %33, %cst_17 [0] : vector<224x512xf32> to vector<512xf32>
      %44 = vector.shape_cast %43 : vector<512xf32> to vector<1x512xf32>
      %c0_18 = arith.constant 0 : index
      %c0_19 = arith.constant 0 : index
      %c0_20 = arith.constant 0 : index
      %45 = vector.load %arg4[%c0_18, %c0_19, %c0_20] : memref<1x1x512xf32, #tpu.memory_space<vmem>>, vector<1x1x512xf32>
      %46 = vector.shape_cast %45 : vector<1x1x512xf32> to vector<1x512xf32>
      %47 = vector.shape_cast %44 : vector<1x512xf32> to vector<1x1x512xf32>
      tpu.vector_store %arg4[%c0_18, %c0_19, %c0_20], %47 {strides = array<i32>} : memref<1x1x512xf32, #tpu.memory_space<vmem>>, vector<1x1x512xf32>,
      %cst_21 = arith.constant dense<0.000000e+00> : vector<512xf32>
      %48 = vector.multi_reduction <add>, %35, %cst_21 [0] : vector<224x512xf32> to vector<512xf32>
      %49 = vector.shape_cast %48 : vector<512xf32> to vector<1x512xf32>
      %c0_22 = arith.constant 0 : index
      %c0_23 = arith.constant 0 : index
      %c0_24 = arith.constant 0 : index
      %50 = vector.load %arg5[%c0_22, %c0_23, %c0_24] : memref<1x1x512xf32, #tpu.memory_space<vmem>>, vector<1x1x512xf32>
      %51 = vector.shape_cast %50 : vector<1x1x512xf32> to vector<1x512xf32>
      %52 = vector.shape_cast %49 : vector<1x512xf32> to vector<1x1x512xf32>
      tpu.vector_store %arg5[%c0_22, %c0_23, %c0_24], %52 {strides = array<i32>} : memref<1x1x512xf32, #tpu.memory_space<vmem>>, vector<1x1x512xf32>,
      %cst_25 = arith.constant dense<0.000000e+00> : vector<512xf32>
      %53 = vector.multi_reduction <add>, %37, %cst_25 [0] : vector<224x512xf32> to vector<512xf32>
      %54 = vector.shape_cast %53 : vector<512xf32> to vector<1x512xf32>
      %c0_26 = arith.constant 0 : index
      %c0_27 = arith.constant 0 : index
      %c0_28 = arith.constant 0 : index
      %55 = vector.load %arg6[%c0_26, %c0_27, %c0_28] : memref<1x1x512xf32, #tpu.memory_space<vmem>>, vector<1x1x512xf32>
      %56 = vector.shape_cast %55 : vector<1x1x512xf32> to vector<1x512xf32>
      %57 = vector.shape_cast %54 : vector<1x512xf32> to vector<1x1x512xf32>
      tpu.vector_store %arg6[%c0_26, %c0_27, %c0_28], %57 {strides = array<i32>} : memref<1x1x512xf32, #tpu.memory_space<vmem>>, vector<1x1x512xf32>,
    } else {
    }
    return
  }
  func.func @transform_0(%arg0: i32) -> (i32, i32) {
    %c0_i32 = arith.constant 0 : i32
    %c0_i32_0 = arith.constant 0 : i32
    return %arg0, %c0_i32 : i32, i32
  }
  func.func @transform_1(%arg0: i32) -> (i32, i32) {
    %c0_i32 = arith.constant 0 : i32
    %c0_i32_0 = arith.constant 0 : i32
    return %arg0, %c0_i32 : i32, i32
  }
  func.func @transform_2(%arg0: i32) -> (i32, i32, i32) {
    %c0_i32 = arith.constant 0 : i32
    %c0_i32_0 = arith.constant 0 : i32
    %c0_i32_1 = arith.constant 0 : i32
    return %arg0, %c0_i32, %c0_i32_0 : i32, i32, i32
  }
  func.func @transform_3(%arg0: i32) -> (i32, i32, i32) {
    %c0_i32 = arith.constant 0 : i32
    %c0_i32_0 = arith.constant 0 : i32
    %c0_i32_1 = arith.constant 0 : i32
    return %arg0, %c0_i32, %c0_i32_0 : i32, i32, i32
  }
  func.func @transform_4(%arg0: i32) -> (i32, i32, i32) {
    %c0_i32 = arith.constant 0 : i32
    %c0_i32_0 = arith.constant 0 : i32
    %c0_i32_1 = arith.constant 0 : i32
    return %arg0, %c0_i32, %c0_i32_0 : i32, i32, i32
  }
  func.func @transform_5(%arg0: i32) -> (i32, i32, i32) {
    %c0_i32 = arith.constant 0 : i32
    %c0_i32_0 = arith.constant 0 : i32
    %c0_i32_1 = arith.constant 0 : i32
    return %arg0, %c0_i32, %c0_i32_0 : i32, i32, i32
  }
}

</mosaic_0001>

<llo_original>
// kernel: gen_loss.2
$region0: #{gen_loss.2}
  #allocation0 [shape = 'u32[]', space=smem, size = 0x4, offset = 0x4, fixed_abs, tag = 'smem constant byte address 0x4 - core index']
  #allocation1 [shape = 'u32[144,128]{1,0:T(1,128)}', space=vmem, size = 0x12000, scoped, tag = 'internal scratch']
  %s0 = inlined_call_operand.vmem [shape: f32[256,512], index: 0, kind: input, shape index: {}]
  %s1 = inlined_call_operand.vmem [shape: f32[1,1,512], index: 1, kind: output, shape index: {}]
  %s2 = sld [smem:[#allocation0]]
  $region14: #{gen_loss.2} parent=0
    _
  %s4 = ssub.s32 1, %s2
  %s5 = scalar_select 0, %s4, %s2
  // Predicated region
  $region2: #{gen_loss.2} parent=0 // pred_check
    _
  $region3: #{gen_loss.2} parent=0 // pred_check_branch
    %7 = sbr.rel (0) target = $region5
  $region4: #{gen_loss.2} parent=0 // pred_region
    _
  $region5: #{gen_loss.2} parent=0 // pred_fallthru
    _
  %v8 = vld [vmem:[%s0] sm:$0xff]
  %v9 = vld [vmem:[%s0 + $0x8] sm:$0xff]
  %v10 = vld [vmem:[%s0 + $0x10] sm:$0xff]
  %v11 = vld [vmem:[%s0 + $0x18] sm:$0xff]
  %v12 = vld [vmem:[%s0 + $0x20] sm:$0xff]
  %v13 = vld [vmem:[%s0 + $0x28] sm:$0xff]
  %v14 = vld [vmem:[%s0 + $0x30] sm:$0xff]
  %v15 = vld [vmem:[%s0 + $0x38] sm:$0xff]
  %v16 = vld [vmem:[%s0 + $0x40] sm:$0xff]
  %v17 = vld [vmem:[%s0 + $0x48] sm:$0xff]
  %v18 = vld [vmem:[%s0 + $0x50] sm:$0xff]
  %v19 = vld [vmem:[%s0 + $0x58] sm:$0xff]
  %v20 = vld [vmem:[%s0 + $0x60] sm:$0xff]
  %v21 = vld [vmem:[%s0 + $0x68] sm:$0xff]
  %v22 = vld [vmem:[%s0 + $0x70] sm:$0xff]
  %v23 = vld [vmem:[%s0 + $0x78] sm:$0xff]
  %v24 = vld [vmem:[%s0 + $0x80] sm:$0xff]
  %v25 = vld [vmem:[%s0 + $0x88] sm:$0xff]
  %v26 = vld [vmem:[%s0 + $0x90] sm:$0xff]
  %v27 = vld [vmem:[%s0 + $0x98] sm:$0xff]
  %v28 = vld [vmem:[%s0 + $0xa0] sm:$0xff]
  %v29 = vld [vmem:[%s0 + $0xa8] sm:$0xff]
  %v30 = vld [vmem:[%s0 + $0xb0] sm:$0xff]
  %v31 = vld [vmem:[%s0 + $0xb8] sm:$0xff]
  %v32 = vld [vmem:[%s0 + $0xc0] sm:$0xff]
  %v33 = vld [vmem:[%s0 + $0xc8] sm:$0xff]
  %v34 = vld [vmem:[%s0 + $0xd0] sm:$0xff]
  %v35 = vld [vmem:[%s0 + $0xd8] sm:$0xff]
  %v36 = vld [vmem:[%s0 + $0xe0] sm:$0xff]
  %v37 = vld [vmem:[%s0 + $0xe8] sm:$0xff]
  %v38 = vld [vmem:[%s0 + $0xf0] sm:$0xff]
  %v39 = vld [vmem:[%s0 + $0xf8] sm:$0xff]
  %v40 = vld [vmem:[%s0 + $0x100] sm:$0xff]
  %v41 = vld [vmem:[%s0 + $0x108] sm:$0xff]
  %v42 = vld [vmem:[%s0 + $0x110] sm:$0xff]
  %v43 = vld [vmem:[%s0 + $0x118] sm:$0xff]
  %v44 = vld [vmem:[%s0 + $0x120] sm:$0xff]
  %v45 = vld [vmem:[%s0 + $0x128] sm:$0xff]
  %v46 = vld [vmem:[%s0 + $0x130] sm:$0xff]
  %v47 = vld [vmem:[%s0 + $0x138] sm:$0xff]
  %v48 = vld [vmem:[%s0 + $0x140] sm:$0xff]
  %v49 = vld [vmem:[%s0 + $0x148] sm:$0xff]
  %v50 = vld [vmem:[%s0 + $0x150] sm:$0xff]
  %v51 = vld [vmem:[%s0 + $0x158] sm:$0xff]
  %v52 = vld [vmem:[%s0 + $0x160] sm:$0xff]
  %v53 = vld [vmem:[%s0 + $0x168] sm:$0xff]
  %v54 = vld [vmem:[%s0 + $0x170] sm:$0xff]
  %v55 = vld [vmem:[%s0 + $0x178] sm:$0xff]
  %v56 = vld [vmem:[%s0 + $0x180] sm:$0xff]
  %v57 = vld [vmem:[%s0 + $0x188] sm:$0xff]
  %v58 = vld [vmem:[%s0 + $0x190] sm:$0xff]
  %v59 = vld [vmem:[%s0 + $0x198] sm:$0xff]
  %v60 = vld [vmem:[%s0 + $0x1a0] sm:$0xff]
  %v61 = vld [vmem:[%s0 + $0x1a8] sm:$0xff]
  %v62 = vld [vmem:[%s0 + $0x1b0] sm:$0xff]
  %v63 = vld [vmem:[%s0 + $0x1b8] sm:$0xff]
  %v64 = vld [vmem:[%s0 + $0x1c0] sm:$0xff]
  %v65 = vld [vmem:[%s0 + $0x1c8] sm:$0xff]
  %v66 = vld [vmem:[%s0 + $0x1d0] sm:$0xff]
  %v67 = vld [vmem:[%s0 + $0x1d8] sm:$0xff]
  %v68 = vld [vmem:[%s0 + $0x1e0] sm:$0xff]
  %v69 = vld [vmem:[%s0 + $0x1e8] sm:$0xff]
  %v70 = vld [vmem:[%s0 + $0x1f0] sm:$0xff]
  %v71 = vld [vmem:[%s0 + $0x1f8] sm:$0xff]
  %v72 = vld [vmem:[%s0 + $0x200] sm:$0xff]
  %v73 = vld [vmem:[%s0 + $0x208] sm:$0xff]
  %v74 = vld [vmem:[%s0 + $0x210] sm:$0xff]
  %v75 = vld [vmem:[%s0 + $0x218] sm:$0xff]
  %v76 = vld [vmem:[%s0 + $0x220] sm:$0xff]
  %v77 = vld [vmem:[%s0 + $0x228] sm:$0xff]
  %v78 = vld [vmem:[%s0 + $0x230] sm:$0xff]
  %v79 = vld [vmem:[%s0 + $0x238] sm:$0xff]
  %v80 = vld [vmem:[%s0 + $0x240] sm:$0xff]
  %v81 = vld [vmem:[%s0 + $0x248] sm:$0xff]
  %v82 = vld [vmem:[%s0 + $0x250] sm:$0xff]
  %v83 = vld [vmem:[%s0 + $0x258] sm:$0xff]
  %v84 = vld [vmem:[%s0 + $0x260] sm:$0xff]
  %v85 = vld [vmem:[%s0 + $0x268] sm:$0xff]
  %v86 = vld [vmem:[%s0 + $0x270] sm:$0xff]
  %v87 = vld [vmem:[%s0 + $0x278] sm:$0xff]
  %v88 = vld [vmem:[%s0 + $0x280] sm:$0xff]
  %v89 = vld [vmem:[%s0 + $0x288] sm:$0xff]
  %v90 = vld [vmem:[%s0 + $0x290] sm:$0xff]
  %v91 = vld [vmem:[%s0 + $0x298] sm:$0xff]
  %v92 = vld [vmem:[%s0 + $0x2a0] sm:$0xff]
  %v93 = vld [vmem:[%s0 + $0x2a8] sm:$0xff]
  %v94 = vld [vmem:[%s0 + $0x2b0] sm:$0xff]
  %v95 = vld [vmem:[%s0 + $0x2b8] sm:$0xff]
  %v96 = vld [vmem:[%s0 + $0x2c0] sm:$0xff]
  %v97 = vld [vmem:[%s0 + $0x2c8] sm:$0xff]
  %v98 = vld [vmem:[%s0 + $0x2d0] sm:$0xff]
  %v99 = vld [vmem:[%s0 + $0x2d8] sm:$0xff]
  %v100 = vld [vmem:[%s0 + $0x2e0] sm:$0xff]
  %v101 = vld [vmem:[%s0 + $0x2e8] sm:$0xff]
  %v102 = vld [vmem:[%s0 + $0x2f0] sm:$0xff]
  %v103 = vld [vmem:[%s0 + $0x2f8] sm:$0xff]
  %v104 = vld [vmem:[%s0 + $0x300] sm:$0xff]
  %v105 = vld [vmem:[%s0 + $0x308] sm:$0xff]
  %v106 = vld [vmem:[%s0 + $0x310] sm:$0xff]
  %v107 = vld [vmem:[%s0 + $0x318] sm:$0xff]
  %v108 = vld [vmem:[%s0 + $0x320] sm:$0xff]
  %v109 = vld [vmem:[%s0 + $0x328] sm:$0xff]
  %v110 = vld [vmem:[%s0 + $0x330] sm:$0xff]
  %v111 = vld [vmem:[%s0 + $0x338] sm:$0xff]
  %v112 = vld [vmem:[%s0 + $0x340] sm:$0xff]
  %v113 = vld [vmem:[%s0 + $0x348] sm:$0xff]
  %v114 = vld [vmem:[%s0 + $0x350] sm:$0xff]
  %v115 = vld [vmem:[%s0 + $0x358] sm:$0xff]
  %v116 = vld [vmem:[%s0 + $0x360] sm:$0xff]
  %v117 = vld [vmem:[%s0 + $0x368] sm:$0xff]
  %v118 = vld [vmem:[%s0 + $0x370] sm:$0xff]
  %v119 = vld [vmem:[%s0 + $0x378] sm:$0xff]
  %v120 = vld [vmem:[%s0 + $0x380] sm:$0xff]
  %v121 = vld [vmem:[%s0 + $0x388] sm:$0xff]
  %v122 = vld [vmem:[%s0 + $0x390] sm:$0xff]
  %v123 = vld [vmem:[%s0 + $0x398] sm:$0xff]
  %v124 = vld [vmem:[%s0 + $0x3a0] sm:$0xff]
  %v125 = vld [vmem:[%s0 + $0x3a8] sm:$0xff]
  %v126 = vld [vmem:[%s0 + $0x3b0] sm:$0xff]
  %v127 = vld [vmem:[%s0 + $0x3b8] sm:$0xff]
  %v128 = vld [vmem:[%s0 + $0x3c0] sm:$0xff]
  %v129 = vld [vmem:[%s0 + $0x3c8] sm:$0xff]
  %v130 = vld [vmem:[%s0 + $0x3d0] sm:$0xff]
  %v131 = vld [vmem:[%s0 + $0x3d8] sm:$0xff]
  %v132 = vld [vmem:[%s0 + $0x3e0] sm:$0xff]
  %v133 = vld [vmem:[%s0 + $0x3e8] sm:$0xff]
  %v134 = vld [vmem:[%s0 + $0x3f0] sm:$0xff]
  %v135 = vld [vmem:[%s0 + $0x3f8] sm:$0xff]
  %v136 = vmax.f32 %v8, 0.0
  %v137 = vmax.f32 %v9, 0.0
  %v138 = vmax.f32 %v10, 0.0
  %v139 = vmax.f32 %v11, 0.0
  %v140 = vmax.f32 %v12, 0.0
  %v141 = vmax.f32 %v13, 0.0
  %v142 = vmax.f32 %v14, 0.0
  %v143 = vmax.f32 %v15, 0.0
  %v144 = vmax.f32 %v16, 0.0
  %v145 = vmax.f32 %v17, 0.0
  %v146 = vmax.f32 %v18, 0.0
  %v147 = vmax.f32 %v19, 0.0
  %v148 = vmax.f32 %v20, 0.0
  %v149 = vmax.f32 %v21, 0.0
  %v150 = vmax.f32 %v22, 0.0
  %v151 = vmax.f32 %v23, 0.0
  %v152 = vmax.f32 %v24, 0.0
  %v153 = vmax.f32 %v25, 0.0
  %v154 = vmax.f32 %v26, 0.0
  %v155 = vmax.f32 %v27, 0.0
  %v156 = vmax.f32 %v28, 0.0
  %v157 = vmax.f32 %v29, 0.0
  %v158 = vmax.f32 %v30, 0.0
  %v159 = vmax.f32 %v31, 0.0
  %v160 = vmax.f32 %v32, 0.0
  %v161 = vmax.f32 %v33, 0.0
  %v162 = vmax.f32 %v34, 0.0
  %v163 = vmax.f32 %v35, 0.0
  %v164 = vmax.f32 %v36, 0.0
  %v165 = vmax.f32 %v37, 0.0
  %v166 = vmax.f32 %v38, 0.0
  %v167 = vmax.f32 %v39, 0.0
  %v168 = vmax.f32 %v40, 0.0
  %v169 = vmax.f32 %v41, 0.0
  %v170 = vmax.f32 %v42, 0.0
  %v171 = vmax.f32 %v43, 0.0
  %v172 = vmax.f32 %v44, 0.0
  %v173 = vmax.f32 %v45, 0.0
  %v174 = vmax.f32 %v46, 0.0
  %v175 = vmax.f32 %v47, 0.0
  %v176 = vmax.f32 %v48, 0.0
  %v177 = vmax.f32 %v49, 0.0
  %v178 = vmax.f32 %v50, 0.0
  %v179 = vmax.f32 %v51, 0.0
  %v180 = vmax.f32 %v52, 0.0
  %v181 = vmax.f32 %v53, 0.0
  %v182 = vmax.f32 %v54, 0.0
  %v183 = vmax.f32 %v55, 0.0
  %v184 = vmax.f32 %v56, 0.0
  %v185 = vmax.f32 %v57, 0.0
  %v186 = vmax.f32 %v58, 0.0
  %v187 = vmax.f32 %v59, 0.0
  %v188 = vmax.f32 %v60, 0.0
  %v189 = vmax.f32 %v61, 0.0
  %v190 = vmax.f32 %v62, 0.0
  %v191 = vmax.f32 %v63, 0.0
  %v192 = vmax.f32 %v64, 0.0
  %v193 = vmax.f32 %v65, 0.0
  %v194 = vmax.f32 %v66, 0.0
  %v195 = vmax.f32 %v67, 0.0
  %v196 = vmax.f32 %v68, 0.0
  %v197 = vmax.f32 %v69, 0.0
  %v198 = vmax.f32 %v70, 0.0
  %v199 = vmax.f32 %v71, 0.0
  %v200 = vmax.f32 %v72, 0.0
  %v201 = vmax.f32 %v73, 0.0
  %v202 = vmax.f32 %v74, 0.0
  %v203 = vmax.f32 %v75, 0.0
  %v204 = vmax.f32 %v76, 0.0
  %v205 = vmax.f32 %v77, 0.0
  %v206 = vmax.f32 %v78, 0.0
  %v207 = vmax.f32 %v79, 0.0
  %v208 = vmax.f32 %v80, 0.0
  %v209 = vmax.f32 %v81, 0.0
  %v210 = vmax.f32 %v82, 0.0
  %v211 = vmax.f32 %v83, 0.0
  %v212 = vmax.f32 %v84, 0.0
  %v213 = vmax.f32 %v85, 0.0
  %v214 = vmax.f32 %v86, 0.0
  %v215 = vmax.f32 %v87, 0.0
  %v216 = vmax.f32 %v88, 0.0
  %v217 = vmax.f32 %v89, 0.0
  %v218 = vmax.f32 %v90, 0.0
  %v219 = vmax.f32 %v91, 0.0
  %v220 = vmax.f32 %v92, 0.0
  %v221 = vmax.f32 %v93, 0.0
  %v222 = vmax.f32 %v94, 0.0
  %v223 = vmax.f32 %v95, 0.0
  %v224 = vmax.f32 %v96, 0.0
  %v225 = vmax.f32 %v97, 0.0
  %v226 = vmax.f32 %v98, 0.0
  %v227 = vmax.f32 %v99, 0.0
  %v228 = vmax.f32 %v100, 0.0
  %v229 = vmax.f32 %v101, 0.0
  %v230 = vmax.f32 %v102, 0.0
  %v231 = vmax.f32 %v103, 0.0
  %v232 = vmax.f32 %v104, 0.0
  %v233 = vmax.f32 %v105, 0.0
  %v234 = vmax.f32 %v106, 0.0
  %v235 = vmax.f32 %v107, 0.0
  %v236 = vmax.f32 %v108, 0.0
  %v237 = vmax.f32 %v109, 0.0
  %v238 = vmax.f32 %v110, 0.0
  %v239 = vmax.f32 %v111, 0.0
  %v240 = vmax.f32 %v112, 0.0
  %v241 = vmax.f32 %v113, 0.0
  %v242 = vmax.f32 %v114, 0.0
  %v243 = vmax.f32 %v115, 0.0
  %v244 = vmax.f32 %v116, 0.0
  %v245 = vmax.f32 %v117, 0.0
  %v246 = vmax.f32 %v118, 0.0
  %v247 = vmax.f32 %v119, 0.0
  %v248 = vmax.f32 %v120, 0.0
  %v249 = vmax.f32 %v121, 0.0
  %v250 = vmax.f32 %v122, 0.0
  %v251 = vmax.f32 %v123, 0.0
  %v252 = vmax.f32 %v124, 0.0
  %v253 = vmax.f32 %v125, 0.0
  %v254 = vmax.f32 %v126, 0.0
  %v255 = vmax.f32 %v127, 0.0
  %v256 = vmax.f32 %v128, 0.0
  %v257 = vmax.f32 %v129, 0.0
  %v258 = vmax.f32 %v130, 0.0
  %v259 = vmax.f32 %v131, 0.0
  %v260 = vmax.f32 %v132, 0.0
  %v261 = vmax.f32 %v133, 0.0
  %v262 = vmax.f32 %v134, 0.0
  %v263 = vmax.f32 %v135, 0.0
  %v264 = vsub.f32 %v136, %v8
  %v265 = vsub.f32 %v137, %v9
  %v266 = vsub.f32 %v138, %v10
  %v267 = vsub.f32 %v139, %v11
  %v268 = vsub.f32 %v140, %v12
  %v269 = vsub.f32 %v141, %v13
  %v270 = vsub.f32 %v142, %v14
  %v271 = vsub.f32 %v143, %v15
  %v272 = vsub.f32 %v144, %v16
  %v273 = vsub.f32 %v145, %v17
  %v274 = vsub.f32 %v146, %v18
  %v275 = vsub.f32 %v147, %v19
  %v276 = vsub.f32 %v148, %v20
  %v277 = vsub.f32 %v149, %v21
  %v278 = vsub.f32 %v150, %v22
  %v279 = vsub.f32 %v151, %v23
  %v280 = vsub.f32 %v152, %v24
  %v281 = vsub.f32 %v153, %v25
  %v282 = vsub.f32 %v154, %v26
  %v283 = vsub.f32 %v155, %v27
  %v284 = vsub.f32 %v156, %v28
  %v285 = vsub.f32 %v157, %v29
  %v286 = vsub.f32 %v158, %v30
  %v287 = vsub.f32 %v159, %v31
  %v288 = vsub.f32 %v160, %v32
  %v289 = vsub.f32 %v161, %v33
  %v290 = vsub.f32 %v162, %v34
  %v291 = vsub.f32 %v163, %v35
  %v292 = vsub.f32 %v164, %v36
  %v293 = vsub.f32 %v165, %v37
  %v294 = vsub.f32 %v166, %v38
  %v295 = vsub.f32 %v167, %v39
  %v296 = vsub.f32 %v168, %v40
  %v297 = vsub.f32 %v169, %v41
  %v298 = vsub.f32 %v170, %v42
  %v299 = vsub.f32 %v171, %v43
  %v300 = vsub.f32 %v172, %v44
  %v301 = vsub.f32 %v173, %v45
  %v302 = vsub.f32 %v174, %v46
  %v303 = vsub.f32 %v175, %v47
  %v304 = vsub.f32 %v176, %v48
  %v305 = vsub.f32 %v177, %v49
  %v306 = vsub.f32 %v178, %v50
  %v307 = vsub.f32 %v179, %v51
  %v308 = vsub.f32 %v180, %v52
  %v309 = vsub.f32 %v181, %v53
  %v310 = vsub.f32 %v182, %v54
  %v311 = vsub.f32 %v183, %v55
  %v312 = vsub.f32 %v184, %v56
  %v313 = vsub.f32 %v185, %v57
  %v314 = vsub.f32 %v186, %v58
  %v315 = vsub.f32 %v187, %v59
  %v316 = vsub.f32 %v188, %v60
  %v317 = vsub.f32 %v189, %v61
  %v318 = vsub.f32 %v190, %v62
  %v319 = vsub.f32 %v191, %v63
  %v320 = vsub.f32 %v192, %v64
  %v321 = vsub.f32 %v193, %v65
  %v322 = vsub.f32 %v194, %v66
  %v323 = vsub.f32 %v195, %v67
  %v324 = vsub.f32 %v196, %v68
  %v325 = vsub.f32 %v197, %v69
  %v326 = vsub.f32 %v198, %v70
  %v327 = vsub.f32 %v199, %v71
  %v328 = vsub.f32 %v200, %v72
  %v329 = vsub.f32 %v201, %v73
  %v330 = vsub.f32 %v202, %v74
  %v331 = vsub.f32 %v203, %v75
  %v332 = vsub.f32 %v204, %v76
  %v333 = vsub.f32 %v205, %v77
  %v334 = vsub.f32 %v206, %v78
  %v335 = vsub.f32 %v207, %v79
  %v336 = vsub.f32 %v208, %v80
  %v337 = vsub.f32 %v209, %v81
  %v338 = vsub.f32 %v210, %v82
  %v339 = vsub.f32 %v211, %v83
  %v340 = vsub.f32 %v212, %v84
  %v341 = vsub.f32 %v213, %v85
  %v342 = vsub.f32 %v214, %v86
  %v343 = vsub.f32 %v215, %v87
  %v344 = vsub.f32 %v216, %v88
  %v345 = vsub.f32 %v217, %v89
  %v346 = vsub.f32 %v218, %v90
  %v347 = vsub.f32 %v219, %v91
  %v348 = vsub.f32 %v220, %v92
  %v349 = vsub.f32 %v221, %v93
  %v350 = vsub.f32 %v222, %v94
  %v351 = vsub.f32 %v223, %v95
  %v352 = vsub.f32 %v224, %v96
  %v353 = vsub.f32 %v225, %v97
  %v354 = vsub.f32 %v226, %v98
  %v355 = vsub.f32 %v227, %v99
  %v356 = vsub.f32 %v228, %v100
  %v357 = vsub.f32 %v229, %v101
  %v358 = vsub.f32 %v230, %v102
  %v359 = vsub.f32 %v231, %v103
  %v360 = vsub.f32 %v232, %v104
  %v361 = vsub.f32 %v233, %v105
  %v362 = vsub.f32 %v234, %v106
  %v363 = vsub.f32 %v235, %v107
  %v364 = vsub.f32 %v236, %v108
  %v365 = vsub.f32 %v237, %v109
  %v366 = vsub.f32 %v238, %v110
  %v367 = vsub.f32 %v239, %v111
  %v368 = vsub.f32 %v240, %v112
  %v369 = vsub.f32 %v241, %v113
  %v370 = vsub.f32 %v242, %v114
  %v371 = vsub.f32 %v243, %v115
  %v372 = vsub.f32 %v244, %v116
  %v373 = vsub.f32 %v245, %v117
  %v374 = vsub.f32 %v246, %v118
  %v375 = vsub.f32 %v247, %v119
  %v376 = vsub.f32 %v248, %v120
  %v377 = vsub.f32 %v249, %v121
  %v378 = vsub.f32 %v250, %v122
  %v379 = vsub.f32 %v251, %v123
  %v380 = vsub.f32 %v252, %v124
  %v381 = vsub.f32 %v253, %v125
  %v382 = vsub.f32 %v254, %v126
  %v383 = vsub.f32 %v255, %v127
  %v384 = vsub.f32 %v256, %v128
  %v385 = vsub.f32 %v257, %v129
  %v386 = vsub.f32 %v258, %v130
  %v387 = vsub.f32 %v259, %v131
  %v388 = vsub.f32 %v260, %v132
  %v389 = vsub.f32 %v261, %v133
  %v390 = vsub.f32 %v262, %v134
  %v391 = vsub.f32 %v263, %v135
  %v392 = vand.u32 2147483647, %v8
  %v393 = vand.u32 2147483647, %v9
  %v394 = vand.u32 2147483647, %v10
  %v395 = vand.u32 2147483647, %v11
  %v396 = vand.u32 2147483647, %v12
  %v397 = vand.u32 2147483647, %v13
  %v398 = vand.u32 2147483647, %v14
  %v399 = vand.u32 2147483647, %v15
  %v400 = vand.u32 2147483647, %v16
  %v401 = vand.u32 2147483647, %v17
  %v402 = vand.u32 2147483647, %v18
  %v403 = vand.u32 2147483647, %v19
  %v404 = vand.u32 2147483647, %v20
  %v405 = vand.u32 2147483647, %v21
  %v406 = vand.u32 2147483647, %v22
  %v407 = vand.u32 2147483647, %v23
  %v408 = vand.u32 2147483647, %v24
  %v409 = vand.u32 2147483647, %v25
  %v410 = vand.u32 2147483647, %v26
  %v411 = vand.u32 2147483647, %v27
  %v412 = vand.u32 2147483647, %v28
  %v413 = vand.u32 2147483647, %v29
  %v414 = vand.u32 2147483647, %v30
  %v415 = vand.u32 2147483647, %v31
  %v416 = vand.u32 2147483647, %v32
  %v417 = vand.u32 2147483647, %v33
  %v418 = vand.u32 2147483647, %v34
  %v419 = vand.u32 2147483647, %v35
  %v420 = vand.u32 2147483647, %v36
  %v421 = vand.u32 2147483647, %v37
  %v422 = vand.u32 2147483647, %v38
  %v423 = vand.u32 2147483647, %v39
  %v424 = vand.u32 2147483647, %v40
  %v425 = vand.u32 2147483647, %v41
  %v426 = vand.u32 2147483647, %v42
  %v427 = vand.u32 2147483647, %v43
  %v428 = vand.u32 2147483647, %v44
  %v429 = vand.u32 2147483647, %v45
  %v430 = vand.u32 2147483647, %v46
  %v431 = vand.u32 2147483647, %v47
  %v432 = vand.u32 2147483647, %v48
  %v433 = vand.u32 2147483647, %v49
  %v434 = vand.u32 2147483647, %v50
  %v435 = vand.u32 2147483647, %v51
  %v436 = vand.u32 2147483647, %v52
  %v437 = vand.u32 2147483647, %v53
  %v438 = vand.u32 2147483647, %v54
  %v439 = vand.u32 2147483647, %v55
  %v440 = vand.u32 2147483647, %v56
  %v441 = vand.u32 2147483647, %v57
  %v442 = vand.u32 2147483647, %v58
  %v443 = vand.u32 2147483647, %v59
  %v444 = vand.u32 2147483647, %v60
  %v445 = vand.u32 2147483647, %v61
  %v446 = vand.u32 2147483647, %v62
  %v447 = vand.u32 2147483647, %v63
  %v448 = vand.u32 2147483647, %v64
  %v449 = vand.u32 2147483647, %v65
  %v450 = vand.u32 2147483647, %v66
  %v451 = vand.u32 2147483647, %v67
  %v452 = vand.u32 2147483647, %v68
  %v453 = vand.u32 2147483647, %v69
  %v454 = vand.u32 2147483647, %v70
  %v455 = vand.u32 2147483647, %v71
  %v456 = vand.u32 2147483647, %v72
  %v457 = vand.u32 2147483647, %v73
  %v458 = vand.u32 2147483647, %v74
  %v459 = vand.u32 2147483647, %v75
  %v460 = vand.u32 2147483647, %v76
  %v461 = vand.u32 2147483647, %v77
  %v462 = vand.u32 2147483647, %v78
  %v463 = vand.u32 2147483647, %v79
  %v464 = vand.u32 2147483647, %v80
  %v465 = vand.u32 2147483647, %v81
  %v466 = vand.u32 2147483647, %v82
  %v467 = vand.u32 2147483647, %v83
  %v468 = vand.u32 2147483647, %v84
  %v469 = vand.u32 2147483647, %v85
  %v470 = vand.u32 2147483647, %v86
  %v471 = vand.u32 2147483647, %v87
  %v472 = vand.u32 2147483647, %v88
  %v473 = vand.u32 2147483647, %v89
  %v474 = vand.u32 2147483647, %v90
  %v475 = vand.u32 2147483647, %v91
  %v476 = vand.u32 2147483647, %v92
  %v477 = vand.u32 2147483647, %v93
  %v478 = vand.u32 2147483647, %v94
  %v479 = vand.u32 2147483647, %v95
  %v480 = vand.u32 2147483647, %v96
  %v481 = vand.u32 2147483647, %v97
  %v482 = vand.u32 2147483647, %v98
  %v483 = vand.u32 2147483647, %v99
  %v484 = vand.u32 2147483647, %v100
  %v485 = vand.u32 2147483647, %v101
  %v486 = vand.u32 2147483647, %v102
  %v487 = vand.u32 2147483647, %v103
  %v488 = vand.u32 2147483647, %v104
  %v489 = vand.u32 2147483647, %v105
  %v490 = vand.u32 2147483647, %v106
  %v491 = vand.u32 2147483647, %v107
  %v492 = vand.u32 2147483647, %v108
  %v493 = vand.u32 2147483647, %v109
  %v494 = vand.u32 2147483647, %v110
  %v495 = vand.u32 2147483647, %v111
  %v496 = vand.u32 2147483647, %v112
  %v497 = vand.u32 2147483647, %v113
  %v498 = vand.u32 2147483647, %v114
  %v499 = vand.u32 2147483647, %v115
  %v500 = vand.u32 2147483647, %v116
  %v501 = vand.u32 2147483647, %v117
  %v502 = vand.u32 2147483647, %v118
  %v503 = vand.u32 2147483647, %v119
  %v504 = vand.u32 2147483647, %v120
  %v505 = vand.u32 2147483647, %v121
  %v506 = vand.u32 2147483647, %v122
  %v507 = vand.u32 2147483647, %v123
  %v508 = vand.u32 2147483647, %v124
  %v509 = vand.u32 2147483647, %v125
  %v510 = vand.u32 2147483647, %v126
  %v511 = vand.u32 2147483647, %v127
  %v512 = vand.u32 2147483647, %v128
  %v513 = vand.u32 2147483647, %v129
  %v514 = vand.u32 2147483647, %v130
  %v515 = vand.u32 2147483647, %v131
  %v516 = vand.u32 2147483647, %v132
  %v517 = vand.u32 2147483647, %v133
  %v518 = vand.u32 2147483647, %v134
  %v519 = vand.u32 2147483647, %v135
  %v520 = vsub.f32 0.0, %v392
  %v521 = vsub.f32 0.0, %v393
  %v522 = vsub.f32 0.0, %v394
  %v523 = vsub.f32 0.0, %v395
  %v524 = vsub.f32 0.0, %v396
  %v525 = vsub.f32 0.0, %v397
  %v526 = vsub.f32 0.0, %v398
  %v527 = vsub.f32 0.0, %v399
  %v528 = vsub.f32 0.0, %v400
  %v529 = vsub.f32 0.0, %v401
  %v530 = vsub.f32 0.0, %v402
  %v531 = vsub.f32 0.0, %v403
  %v532 = vsub.f32 0.0, %v404
  %v533 = vsub.f32 0.0, %v405
  %v534 = vsub.f32 0.0, %v406
  %v535 = vsub.f32 0.0, %v407
  %v536 = vsub.f32 0.0, %v408
  %v537 = vsub.f32 0.0, %v409
  %v538 = vsub.f32 0.0, %v410
  %v539 = vsub.f32 0.0, %v411
  %v540 = vsub.f32 0.0, %v412
  %v541 = vsub.f32 0.0, %v413
  %v542 = vsub.f32 0.0, %v414
  %v543 = vsub.f32 0.0, %v415
  %v544 = vsub.f32 0.0, %v416
  %v545 = vsub.f32 0.0, %v417
  %v546 = vsub.f32 0.0, %v418
  %v547 = vsub.f32 0.0, %v419
  %v548 = vsub.f32 0.0, %v420
  %v549 = vsub.f32 0.0, %v421
  %v550 = vsub.f32 0.0, %v422
  %v551 = vsub.f32 0.0, %v423
  %v552 = vsub.f32 0.0, %v424
  %v553 = vsub.f32 0.0, %v425
  %v554 = vsub.f32 0.0, %v426
  %v555 = vsub.f32 0.0, %v427
  %v556 = vsub.f32 0.0, %v428
  %v557 = vsub.f32 0.0, %v429
  %v558 = vsub.f32 0.0, %v430
  %v559 = vsub.f32 0.0, %v431
  %v560 = vsub.f32 0.0, %v432
  %v561 = vsub.f32 0.0, %v433
  %v562 = vsub.f32 0.0, %v434
  %v563 = vsub.f32 0.0, %v435
  %v564 = vsub.f32 0.0, %v436
  %v565 = vsub.f32 0.0, %v437
  %v566 = vsub.f32 0.0, %v438
  %v567 = vsub.f32 0.0, %v439
  %v568 = vsub.f32 0.0, %v440
  %v569 = vsub.f32 0.0, %v441
  %v570 = vsub.f32 0.0, %v442
  %v571 = vsub.f32 0.0, %v443
  %v572 = vsub.f32 0.0, %v444
  %v573 = vsub.f32 0.0, %v445
  %v574 = vsub.f32 0.0, %v446
  %v575 = vsub.f32 0.0, %v447
  %v576 = vsub.f32 0.0, %v448
  %v577 = vsub.f32 0.0, %v449
  %v578 = vsub.f32 0.0, %v450
  %v579 = vsub.f32 0.0, %v451
  %v580 = vsub.f32 0.0, %v452
  %v581 = vsub.f32 0.0, %v453
  %v582 = vsub.f32 0.0, %v454
  %v583 = vsub.f32 0.0, %v455
  %v584 = vsub.f32 0.0, %v456
  %v585 = vsub.f32 0.0, %v457
  %v586 = vsub.f32 0.0, %v458
  %v587 = vsub.f32 0.0, %v459
  %v588 = vsub.f32 0.0, %v460
  %v589 = vsub.f32 0.0, %v461
  %v590 = vsub.f32 0.0, %v462
  %v591 = vsub.f32 0.0, %v463
  %v592 = vsub.f32 0.0, %v464
  %v593 = vsub.f32 0.0, %v465
  %v594 = vsub.f32 0.0, %v466
  %v595 = vsub.f32 0.0, %v467
  %v596 = vsub.f32 0.0, %v468
  %v597 = vsub.f32 0.0, %v469
  %v598 = vsub.f32 0.0, %v470
  %v599 = vsub.f32 0.0, %v471
  %v600 = vsub.f32 0.0, %v472
  %v601 = vsub.f32 0.0, %v473
  %v602 = vsub.f32 0.0, %v474
  %v603 = vsub.f32 0.0, %v475
  %v604 = vsub.f32 0.0, %v476
  %v605 = vsub.f32 0.0, %v477
  %v606 = vsub.f32 0.0, %v478
  %v607 = vsub.f32 0.0, %v479
  %v608 = vsub.f32 0.0, %v480
  %v609 = vsub.f32 0.0, %v481
  %v610 = vsub.f32 0.0, %v482
  %v611 = vsub.f32 0.0, %v483
  %v612 = vsub.f32 0.0, %v484
  %v613 = vsub.f32 0.0, %v485
  %v614 = vsub.f32 0.0, %v486
  %v615 = vsub.f32 0.0, %v487
  %v616 = vsub.f32 0.0, %v488
  %v617 = vsub.f32 0.0, %v489
  %v618 = vsub.f32 0.0, %v490
  %v619 = vsub.f32 0.0, %v491
  %v620 = vsub.f32 0.0, %v492
  %v621 = vsub.f32 0.0, %v493
  %v622 = vsub.f32 0.0, %v494
  %v623 = vsub.f32 0.0, %v495
  %v624 = vsub.f32 0.0, %v496
  %v625 = vsub.f32 0.0, %v497
  %v626 = vsub.f32 0.0, %v498
  %v627 = vsub.f32 0.0, %v499
  %v628 = vsub.f32 0.0, %v500
  %v629 = vsub.f32 0.0, %v501
  %v630 = vsub.f32 0.0, %v502
  %v631 = vsub.f32 0.0, %v503
  %v632 = vsub.f32 0.0, %v504
  %v633 = vsub.f32 0.0, %v505
  %v634 = vsub.f32 0.0, %v506
  %v635 = vsub.f32 0.0, %v507
  %v636 = vsub.f32 0.0, %v508
  %v637 = vsub.f32 0.0, %v509
  %v638 = vsub.f32 0.0, %v510
  %v639 = vsub.f32 0.0, %v511
  %v640 = vsub.f32 0.0, %v512
  %v641 = vsub.f32 0.0, %v513
  %v642 = vsub.f32 0.0, %v514
  %v643 = vsub.f32 0.0, %v515
  %v644 = vsub.f32 0.0, %v516
  %v645 = vsub.f32 0.0, %v517
  %v646 = vsub.f32 0.0, %v518
  %v647 = vsub.f32 0.0, %v519
  %v648 = vmul.f32 %v520, 1.442695
  %v649 = vpow.pop %v648
  %v650 = vmul.f32 %v521, 1.442695
  %v651 = vpow.pop %v650
  %v652 = vmul.f32 %v522, 1.442695
  %v653 = vpow.pop %v652
  %v654 = vmul.f32 %v523, 1.442695
  %v655 = vpow.pop %v654
  %v656 = vmul.f32 %v524, 1.442695
  %v657 = vpow.pop %v656
  %v658 = vmul.f32 %v525, 1.442695
  %v659 = vpow.pop %v658
  %v660 = vmul.f32 %v526, 1.442695
  %v661 = vpow.pop %v660
  %v662 = vmul.f32 %v527, 1.442695
  %v663 = vpow.pop %v662
  %v664 = vmul.f32 %v528, 1.442695
  %v665 = vpow.pop %v664
  %v666 = vmul.f32 %v529, 1.442695
  %v667 = vpow.pop %v666
  %v668 = vmul.f32 %v530, 1.442695
  %v669 = vpow.pop %v668
  %v670 = vmul.f32 %v531, 1.442695
  %v671 = vpow.pop %v670
  %v672 = vmul.f32 %v532, 1.442695
  %v673 = vpow.pop %v672
  %v674 = vmul.f32 %v533, 1.442695
  %v675 = vpow.pop %v674
  %v676 = vmul.f32 %v534, 1.442695
  %v677 = vpow.pop %v676
  %v678 = vmul.f32 %v535, 1.442695
  %v679 = vpow.pop %v678
  %v680 = vmul.f32 %v536, 1.442695
  %v681 = vpow.pop %v680
  %v682 = vmul.f32 %v537, 1.442695
  %v683 = vpow.pop %v682
  %v684 = vmul.f32 %v538, 1.442695
  %v685 = vpow.pop %v684
  %v686 = vmul.f32 %v539, 1.442695
  %v687 = vpow.pop %v686
  %v688 = vmul.f32 %v540, 1.442695
  %v689 = vpow.pop %v688
  %v690 = vmul.f32 %v541, 1.442695
  %v691 = vpow.pop %v690
  %v692 = vmul.f32 %v542, 1.442695
  %v693 = vpow.pop %v692
  %v694 = vmul.f32 %v543, 1.442695
  %v695 = vpow.pop %v694
  %v696 = vmul.f32 %v544, 1.442695
  %v697 = vpow.pop %v696
  %v698 = vmul.f32 %v545, 1.442695
  %v699 = vpow.pop %v698
  %v700 = vmul.f32 %v546, 1.442695
  %v701 = vpow.pop %v700
  %v702 = vmul.f32 %v547, 1.442695
  %v703 = vpow.pop %v702
  %v704 = vmul.f32 %v548, 1.442695
  %v705 = vpow.pop %v704
  %v706 = vmul.f32 %v549, 1.442695
  %v707 = vpow.pop %v706
  %v708 = vmul.f32 %v550, 1.442695
  %v709 = vpow.pop %v708
  %v710 = vmul.f32 %v551, 1.442695
  %v711 = vpow.pop %v710
  %v712 = vmul.f32 %v552, 1.442695
  %v713 = vpow.pop %v712
  %v714 = vmul.f32 %v553, 1.442695
  %v715 = vpow.pop %v714
  %v716 = vmul.f32 %v554, 1.442695
  %v717 = vpow.pop %v716
  %v718 = vmul.f32 %v555, 1.442695
  %v719 = vpow.pop %v718
  %v720 = vmul.f32 %v556, 1.442695
  %v721 = vpow.pop %v720
  %v722 = vmul.f32 %v557, 1.442695
  %v723 = vpow.pop %v722
  %v724 = vmul.f32 %v558, 1.442695
  %v725 = vpow.pop %v724
  %v726 = vmul.f32 %v559, 1.442695
  %v727 = vpow.pop %v726
  %v728 = vmul.f32 %v560, 1.442695
  %v729 = vpow.pop %v728
  %v730 = vmul.f32 %v561, 1.442695
  %v731 = vpow.pop %v730
  %v732 = vmul.f32 %v562, 1.442695
  %v733 = vpow.pop %v732
  %v734 = vmul.f32 %v563, 1.442695
  %v735 = vpow.pop %v734
  %v736 = vmul.f32 %v564, 1.442695
  %v737 = vpow.pop %v736
  %v738 = vmul.f32 %v565, 1.442695
  %v739 = vpow.pop %v738
  %v740 = vmul.f32 %v566, 1.442695
  %v741 = vpow.pop %v740
  %v742 = vmul.f32 %v567, 1.442695
  %v743 = vpow.pop %v742
  %v744 = vmul.f32 %v568, 1.442695
  %v745 = vpow.pop %v744
  %v746 = vmul.f32 %v569, 1.442695
  %v747 = vpow.pop %v746
  %v748 = vmul.f32 %v570, 1.442695
  %v749 = vpow.pop %v748
  %v750 = vmul.f32 %v571, 1.442695
  %v751 = vpow.pop %v750
  %v752 = vmul.f32 %v572, 1.442695
  %v753 = vpow.pop %v752
  %v754 = vmul.f32 %v573, 1.442695
  %v755 = vpow.pop %v754
  %v756 = vmul.f32 %v574, 1.442695
  %v757 = vpow.pop %v756
  %v758 = vmul.f32 %v575, 1.442695
  %v759 = vpow.pop %v758
  %v760 = vmul.f32 %v576, 1.442695
  %v761 = vpow.pop %v760
  %v762 = vmul.f32 %v577, 1.442695
  %v763 = vpow.pop %v762
  %v764 = vmul.f32 %v578, 1.442695
  %v765 = vpow.pop %v764
  %v766 = vmul.f32 %v579, 1.442695
  %v767 = vpow.pop %v766
  %v768 = vmul.f32 %v580, 1.442695
  %v769 = vpow.pop %v768
  %v770 = vmul.f32 %v581, 1.442695
  %v771 = vpow.pop %v770
  %v772 = vmul.f32 %v582, 1.442695
  %v773 = vpow.pop %v772
  %v774 = vmul.f32 %v583, 1.442695
  %v775 = vpow.pop %v774
  %v776 = vmul.f32 %v584, 1.442695
  %v777 = vpow.pop %v776
  %v778 = vmul.f32 %v585, 1.442695
  %v779 = vpow.pop %v778
  %v780 = vmul.f32 %v586, 1.442695
  %v781 = vpow.pop %v780
  %v782 = vmul.f32 %v587, 1.442695
  %v783 = vpow.pop %v782
  %v784 = vmul.f32 %v588, 1.442695
  %v785 = vpow.pop %v784
  %v786 = vmul.f32 %v589, 1.442695
  %v787 = vpow.pop %v786
  %v788 = vmul.f32 %v590, 1.442695
  %v789 = vpow.pop %v788
  %v790 = vmul.f32 %v591, 1.442695
  %v791 = vpow.pop %v790
  %v792 = vmul.f32 %v592, 1.442695
  %v793 = vpow.pop %v792
  %v794 = vmul.f32 %v593, 1.442695
  %v795 = vpow.pop %v794
  %v796 = vmul.f32 %v594, 1.442695
  %v797 = vpow.pop %v796
  %v798 = vmul.f32 %v595, 1.442695
  %v799 = vpow.pop %v798
  %v800 = vmul.f32 %v596, 1.442695
  %v801 = vpow.pop %v800
  %v802 = vmul.f32 %v597, 1.442695
  %v803 = vpow.pop %v802
  %v804 = vmul.f32 %v598, 1.442695
  %v805 = vpow.pop %v804
  %v806 = vmul.f32 %v599, 1.442695
  %v807 = vpow.pop %v806
  %v808 = vmul.f32 %v600, 1.442695
  %v809 = vpow.pop %v808
  %v810 = vmul.f32 %v601, 1.442695
  %v811 = vpow.pop %v810
  %v812 = vmul.f32 %v602, 1.442695
  %v813 = vpow.pop %v812
  %v814 = vmul.f32 %v603, 1.442695
  %v815 = vpow.pop %v814
  %v816 = vmul.f32 %v604, 1.442695
  %v817 = vpow.pop %v816
  %v818 = vmul.f32 %v605, 1.442695
  %v819 = vpow.pop %v818
  %v820 = vmul.f32 %v606, 1.442695
  %v821 = vpow.pop %v820
  %v822 = vmul.f32 %v607, 1.442695
  %v823 = vpow.pop %v822
  %v824 = vmul.f32 %v608, 1.442695
  %v825 = vpow.pop %v824
  %v826 = vmul.f32 %v609, 1.442695
  %v827 = vpow.pop %v826
  %v828 = vmul.f32 %v610, 1.442695
  %v829 = vpow.pop %v828
  %v830 = vmul.f32 %v611, 1.442695
  %v831 = vpow.pop %v830
  %v832 = vmul.f32 %v612, 1.442695
  %v833 = vpow.pop %v832
  %v834 = vmul.f32 %v613, 1.442695
  %v835 = vpow.pop %v834
  %v836 = vmul.f32 %v614, 1.442695
  %v837 = vpow.pop %v836
  %v838 = vmul.f32 %v615, 1.442695
  %v839 = vpow.pop %v838
  %v840 = vmul.f32 %v616, 1.442695
  %v841 = vpow.pop %v840
  %v842 = vmul.f32 %v617, 1.442695
  %v843 = vpow.pop %v842
  %v844 = vmul.f32 %v618, 1.442695
  %v845 = vpow.pop %v844
  %v846 = vmul.f32 %v619, 1.442695
  %v847 = vpow.pop %v846
  %v848 = vmul.f32 %v620, 1.442695
  %v849 = vpow.pop %v848
  %v850 = vmul.f32 %v621, 1.442695
  %v851 = vpow.pop %v850
  %v852 = vmul.f32 %v622, 1.442695
  %v853 = vpow.pop %v852
  %v854 = vmul.f32 %v623, 1.442695
  %v855 = vpow.pop %v854
  %v856 = vmul.f32 %v624, 1.442695
  %v857 = vpow.pop %v856
  %v858 = vmul.f32 %v625, 1.442695
  %v859 = vpow.pop %v858
  %v860 = vmul.f32 %v626, 1.442695
  %v861 = vpow.pop %v860
  %v862 = vmul.f32 %v627, 1.442695
  %v863 = vpow.pop %v862
  %v864 = vmul.f32 %v628, 1.442695
  %v865 = vpow.pop %v864
  %v866 = vmul.f32 %v629, 1.442695
  %v867 = vpow.pop %v866
  %v868 = vmul.f32 %v630, 1.442695
  %v869 = vpow.pop %v868
  %v870 = vmul.f32 %v631, 1.442695
  %v871 = vpow.pop %v870
  %v872 = vmul.f32 %v632, 1.442695
  %v873 = vpow.pop %v872
  %v874 = vmul.f32 %v633, 1.442695
  %v875 = vpow.pop %v874
  %v876 = vmul.f32 %v634, 1.442695
  %v877 = vpow.pop %v876
  %v878 = vmul.f32 %v635, 1.442695
  %v879 = vpow.pop %v878
  %v880 = vmul.f32 %v636, 1.442695
  %v881 = vpow.pop %v880
  %v882 = vmul.f32 %v637, 1.442695
  %v883 = vpow.pop %v882
  %v884 = vmul.f32 %v638, 1.442695
  %v885 = vpow.pop %v884
  %v886 = vmul.f32 %v639, 1.442695
  %v887 = vpow.pop %v886
  %v888 = vmul.f32 %v640, 1.442695
  %v889 = vpow.pop %v888
  %v890 = vmul.f32 %v641, 1.442695
  %v891 = vpow.pop %v890
  %v892 = vmul.f32 %v642, 1.442695
  %v893 = vpow.pop %v892
  %v894 = vmul.f32 %v643, 1.442695
  %v895 = vpow.pop %v894
  %v896 = vmul.f32 %v644, 1.442695
  %v897 = vpow.pop %v896
  %v898 = vmul.f32 %v645, 1.442695
  %v899 = vpow.pop %v898
  %v900 = vmul.f32 %v646, 1.442695
  %v901 = vpow.pop %v900
  %v902 = vmul.f32 %v647, 1.442695
  %v903 = vpow.pop %v902
  %v904 = vadd.f32 %v649, 1.0
  %v905 = vlog2.pop %v904
  %v906 = vmul.f32 %v905, 0.6931472
  %v907 = vmul.f32 -0.5, %v649
  %v908 = vadd.f32 %v907, 1.0
  %v909 = vmul.f32 %v908, %v649
  %v910 = vand.u32 2147483647, %v649
  %vm911 = vcmp.lt.f32.partialorder %v910, 0.0004427343
  %v912 = vsel %vm911, %v909, %v906
  %v913 = vadd.f32 %v651, 1.0
  %v914 = vlog2.pop %v913
  %v915 = vmul.f32 %v914, 0.6931472
  %v916 = vmul.f32 -0.5, %v651
  %v917 = vadd.f32 %v916, 1.0
  %v918 = vmul.f32 %v917, %v651
  %v919 = vand.u32 2147483647, %v651
  %vm920 = vcmp.lt.f32.partialorder %v919, 0.0004427343
  %v921 = vsel %vm920, %v918, %v915
  %v922 = vadd.f32 %v653, 1.0
  %v923 = vlog2.pop %v922
  %v924 = vmul.f32 %v923, 0.6931472
  %v925 = vmul.f32 -0.5, %v653
  %v926 = vadd.f32 %v925, 1.0
  %v927 = vmul.f32 %v926, %v653
  %v928 = vand.u32 2147483647, %v653
  %vm929 = vcmp.lt.f32.partialorder %v928, 0.0004427343
  %v930 = vsel %vm929, %v927, %v924
  %v931 = vadd.f32 %v655, 1.0
  %v932 = vlog2.pop %v931
  %v933 = vmul.f32 %v932, 0.6931472
  %v934 = vmul.f32 -0.5, %v655
  %v935 = vadd.f32 %v934, 1.0
  %v936 = vmul.f32 %v935, %v655
  %v937 = vand.u32 2147483647, %v655
  %vm938 = vcmp.lt.f32.partialorder %v937, 0.0004427343
  %v939 = vsel %vm938, %v936, %v933
  %v940 = vadd.f32 %v657, 1.0
  %v941 = vlog2.pop %v940
  %v942 = vmul.f32 %v941, 0.6931472
  %v943 = vmul.f32 -0.5, %v657
  %v944 = vadd.f32 %v943, 1.0
  %v945 = vmul.f32 %v944, %v657
  %v946 = vand.u32 2147483647, %v657
  %vm947 = vcmp.lt.f32.partialorder %v946, 0.0004427343
  %v948 = vsel %vm947, %v945, %v942
  %v949 = vadd.f32 %v659, 1.0
  %v950 = vlog2.pop %v949
  %v951 = vmul.f32 %v950, 0.6931472
  %v952 = vmul.f32 -0.5, %v659
  %v953 = vadd.f32 %v952, 1.0
  %v954 = vmul.f32 %v953, %v659
  %v955 = vand.u32 2147483647, %v659
  %vm956 = vcmp.lt.f32.partialorder %v955, 0.0004427343
  %v957 = vsel %vm956, %v954, %v951
  %v958 = vadd.f32 %v661, 1.0
  %v959 = vlog2.pop %v958
  %v960 = vmul.f32 %v959, 0.6931472
  %v961 = vmul.f32 -0.5, %v661
  %v962 = vadd.f32 %v961, 1.0
  %v963 = vmul.f32 %v962, %v661
  %v964 = vand.u32 2147483647, %v661
  %vm965 = vcmp.lt.f32.partialorder %v964, 0.0004427343
  %v966 = vsel %vm965, %v963, %v960
  %v967 = vadd.f32 %v663, 1.0
  %v968 = vlog2.pop %v967
  %v969 = vmul.f32 %v968, 0.6931472
  %v970 = vmul.f32 -0.5, %v663
  %v971 = vadd.f32 %v970, 1.0
  %v972 = vmul.f32 %v971, %v663
  %v973 = vand.u32 2147483647, %v663
  %vm974 = vcmp.lt.f32.partialorder %v973, 0.0004427343
  %v975 = vsel %vm974, %v972, %v969
  %v976 = vadd.f32 %v665, 1.0
  %v977 = vlog2.pop %v976
  %v978 = vmul.f32 %v977, 0.6931472
  %v979 = vmul.f32 -0.5, %v665
  %v980 = vadd.f32 %v979, 1.0
  %v981 = vmul.f32 %v980, %v665
  %v982 = vand.u32 2147483647, %v665
  %vm983 = vcmp.lt.f32.partialorder %v982, 0.0004427343
  %v984 = vsel %vm983, %v981, %v978
  %v985 = vadd.f32 %v667, 1.0
  %v986 = vlog2.pop %v985
  %v987 = vmul.f32 %v986, 0.6931472
  %v988 = vmul.f32 -0.5, %v667
  %v989 = vadd.f32 %v988, 1.0
  %v990 = vmul.f32 %v989, %v667
  %v991 = vand.u32 2147483647, %v667
  %vm992 = vcmp.lt.f32.partialorder %v991, 0.0004427343
  %v993 = vsel %vm992, %v990, %v987
  %v994 = vadd.f32 %v669, 1.0
  %v995 = vlog2.pop %v994
  %v996 = vmul.f32 %v995, 0.6931472
  %v997 = vmul.f32 -0.5, %v669
  %v998 = vadd.f32 %v997, 1.0
  %v999 = vmul.f32 %v998, %v669
  %v1000 = vand.u32 2147483647, %v669
  %vm1001 = vcmp.lt.f32.partialorder %v1000, 0.0004427343
  %v1002 = vsel %vm1001, %v999, %v996
  %v1003 = vadd.f32 %v671, 1.0
  %v1004 = vlog2.pop %v1003
  %v1005 = vmul.f32 %v1004, 0.6931472
  %v1006 = vmul.f32 -0.5, %v671
  %v1007 = vadd.f32 %v1006, 1.0
  %v1008 = vmul.f32 %v1007, %v671
  %v1009 = vand.u32 2147483647, %v671
  %vm1010 = vcmp.lt.f32.partialorder %v1009, 0.0004427343
  %v1011 = vsel %vm1010, %v1008, %v1005
  %v1012 = vadd.f32 %v673, 1.0
  %v1013 = vlog2.pop %v1012
  %v1014 = vmul.f32 %v1013, 0.6931472
  %v1015 = vmul.f32 -0.5, %v673
  %v1016 = vadd.f32 %v1015, 1.0
  %v1017 = vmul.f32 %v1016, %v673
  %v1018 = vand.u32 2147483647, %v673
  %vm1019 = vcmp.lt.f32.partialorder %v1018, 0.0004427343
  %v1020 = vsel %vm1019, %v1017, %v1014
  %v1021 = vadd.f32 %v675, 1.0
  %v1022 = vlog2.pop %v1021
  %v1023 = vmul.f32 %v1022, 0.6931472
  %v1024 = vmul.f32 -0.5, %v675
  %v1025 = vadd.f32 %v1024, 1.0
  %v1026 = vmul.f32 %v1025, %v675
  %v1027 = vand.u32 2147483647, %v675
  %vm1028 = vcmp.lt.f32.partialorder %v1027, 0.0004427343
  %v1029 = vsel %vm1028, %v1026, %v1023
  %v1030 = vadd.f32 %v677, 1.0
  %v1031 = vlog2.pop %v1030
  %v1032 = vmul.f32 %v1031, 0.6931472
  %v1033 = vmul.f32 -0.5, %v677
  %v1034 = vadd.f32 %v1033, 1.0
  %v1035 = vmul.f32 %v1034, %v677
  %v1036 = vand.u32 2147483647, %v677
  %vm1037 = vcmp.lt.f32.partialorder %v1036, 0.0004427343
  %v1038 = vsel %vm1037, %v1035, %v1032
  %v1039 = vadd.f32 %v679, 1.0
  %v1040 = vlog2.pop %v1039
  %v1041 = vmul.f32 %v1040, 0.6931472
  %v1042 = vmul.f32 -0.5, %v679
  %v1043 = vadd.f32 %v1042, 1.0
  %v1044 = vmul.f32 %v1043, %v679
  %v1045 = vand.u32 2147483647, %v679
  %vm1046 = vcmp.lt.f32.partialorder %v1045, 0.0004427343
  %v1047 = vsel %vm1046, %v1044, %v1041
  %v1048 = vadd.f32 %v681, 1.0
  %v1049 = vlog2.pop %v1048
  %v1050 = vmul.f32 %v1049, 0.6931472
  %v1051 = vmul.f32 -0.5, %v681
  %v1052 = vadd.f32 %v1051, 1.0
  %v1053 = vmul.f32 %v1052, %v681
  %v1054 = vand.u32 2147483647, %v681
  %vm1055 = vcmp.lt.f32.partialorder %v1054, 0.0004427343
  %v1056 = vsel %vm1055, %v1053, %v1050
  %v1057 = vadd.f32 %v683, 1.0
  %v1058 = vlog2.pop %v1057
  %v1059 = vmul.f32 %v1058, 0.6931472
  %v1060 = vmul.f32 -0.5, %v683
  %v1061 = vadd.f32 %v1060, 1.0
  %v1062 = vmul.f32 %v1061, %v683
  %v1063 = vand.u32 2147483647, %v683
  %vm1064 = vcmp.lt.f32.partialorder %v1063, 0.0004427343
  %v1065 = vsel %vm1064, %v1062, %v1059
  %v1066 = vadd.f32 %v685, 1.0
  %v1067 = vlog2.pop %v1066
  %v1068 = vmul.f32 %v1067, 0.6931472
  %v1069 = vmul.f32 -0.5, %v685
  %v1070 = vadd.f32 %v1069, 1.0
  %v1071 = vmul.f32 %v1070, %v685
  %v1072 = vand.u32 2147483647, %v685
  %vm1073 = vcmp.lt.f32.partialorder %v1072, 0.0004427343
  %v1074 = vsel %vm1073, %v1071, %v1068
  %v1075 = vadd.f32 %v687, 1.0
  %v1076 = vlog2.pop %v1075
  %v1077 = vmul.f32 %v1076, 0.6931472
  %v1078 = vmul.f32 -0.5, %v687
  %v1079 = vadd.f32 %v1078, 1.0
  %v1080 = vmul.f32 %v1079, %v687
  %v1081 = vand.u32 2147483647, %v687
  %vm1082 = vcmp.lt.f32.partialorder %v1081, 0.0004427343
  %v1083 = vsel %vm1082, %v1080, %v1077
  %v1084 = vadd.f32 %v689, 1.0
  %v1085 = vlog2.pop %v1084
  %v1086 = vmul.f32 %v1085, 0.6931472
  %v1087 = vmul.f32 -0.5, %v689
  %v1088 = vadd.f32 %v1087, 1.0
  %v1089 = vmul.f32 %v1088, %v689
  %v1090 = vand.u32 2147483647, %v689
  %vm1091 = vcmp.lt.f32.partialorder %v1090, 0.0004427343
  %v1092 = vsel %vm1091, %v1089, %v1086
  %v1093 = vadd.f32 %v691, 1.0
  %v1094 = vlog2.pop %v1093
  %v1095 = vmul.f32 %v1094, 0.6931472
  %v1096 = vmul.f32 -0.5, %v691
  %v1097 = vadd.f32 %v1096, 1.0
  %v1098 = vmul.f32 %v1097, %v691
  %v1099 = vand.u32 2147483647, %v691
  %vm1100 = vcmp.lt.f32.partialorder %v1099, 0.0004427343
  %v1101 = vsel %vm1100, %v1098, %v1095
  %v1102 = vadd.f32 %v693, 1.0
  %v1103 = vlog2.pop %v1102
  %v1104 = vmul.f32 %v1103, 0.6931472
  %v1105 = vmul.f32 -0.5, %v693
  %v1106 = vadd.f32 %v1105, 1.0
  %v1107 = vmul.f32 %v1106, %v693
  %v1108 = vand.u32 2147483647, %v693
  %vm1109 = vcmp.lt.f32.partialorder %v1108, 0.0004427343
  %v1110 = vsel %vm1109, %v1107, %v1104
  %v1111 = vadd.f32 %v695, 1.0
  %v1112 = vlog2.pop %v1111
  %v1113 = vmul.f32 %v1112, 0.6931472
  %v1114 = vmul.f32 -0.5, %v695
  %v1115 = vadd.f32 %v1114, 1.0
  %v1116 = vmul.f32 %v1115, %v695
  %v1117 = vand.u32 2147483647, %v695
  %vm1118 = vcmp.lt.f32.partialorder %v1117, 0.0004427343
  %v1119 = vsel %vm1118, %v1116, %v1113
  %v1120 = vadd.f32 %v697, 1.0
  %v1121 = vlog2.pop %v1120
  %v1122 = vmul.f32 %v1121, 0.6931472
  %v1123 = vmul.f32 -0.5, %v697
  %v1124 = vadd.f32 %v1123, 1.0
  %v1125 = vmul.f32 %v1124, %v697
  %v1126 = vand.u32 2147483647, %v697
  %vm1127 = vcmp.lt.f32.partialorder %v1126, 0.0004427343
  %v1128 = vsel %vm1127, %v1125, %v1122
  %v1129 = vadd.f32 %v699, 1.0
  %v1130 = vlog2.pop %v1129
  %v1131 = vmul.f32 %v1130, 0.6931472
  %v1132 = vmul.f32 -0.5, %v699
  %v1133 = vadd.f32 %v1132, 1.0
  %v1134 = vmul.f32 %v1133, %v699
  %v1135 = vand.u32 2147483647, %v699
  %vm1136 = vcmp.lt.f32.partialorder %v1135, 0.0004427343
  %v1137 = vsel %vm1136, %v1134, %v1131
  %v1138 = vadd.f32 %v701, 1.0
  %v1139 = vlog2.pop %v1138
  %v1140 = vmul.f32 %v1139, 0.6931472
  %v1141 = vmul.f32 -0.5, %v701
  %v1142 = vadd.f32 %v1141, 1.0
  %v1143 = vmul.f32 %v1142, %v701
  %v1144 = vand.u32 2147483647, %v701
  %vm1145 = vcmp.lt.f32.partialorder %v1144, 0.0004427343
  %v1146 = vsel %vm1145, %v1143, %v1140
  %v1147 = vadd.f32 %v703, 1.0
  %v1148 = vlog2.pop %v1147
  %v1149 = vmul.f32 %v1148, 0.6931472
  %v1150 = vmul.f32 -0.5, %v703
  %v1151 = vadd.f32 %v1150, 1.0
  %v1152 = vmul.f32 %v1151, %v703
  %v1153 = vand.u32 2147483647, %v703
  %vm1154 = vcmp.lt.f32.partialorder %v1153, 0.0004427343
  %v1155 = vsel %vm1154, %v1152, %v1149
  %v1156 = vadd.f32 %v705, 1.0
  %v1157 = vlog2.pop %v1156
  %v1158 = vmul.f32 %v1157, 0.6931472
  %v1159 = vmul.f32 -0.5, %v705
  %v1160 = vadd.f32 %v1159, 1.0
  %v1161 = vmul.f32 %v1160, %v705
  %v1162 = vand.u32 2147483647, %v705
  %vm1163 = vcmp.lt.f32.partialorder %v1162, 0.0004427343
  %v1164 = vsel %vm1163, %v1161, %v1158
  %v1165 = vadd.f32 %v707, 1.0
  %v1166 = vlog2.pop %v1165
  %v1167 = vmul.f32 %v1166, 0.6931472
  %v1168 = vmul.f32 -0.5, %v707
  %v1169 = vadd.f32 %v1168, 1.0
  %v1170 = vmul.f32 %v1169, %v707
  %v1171 = vand.u32 2147483647, %v707
  %vm1172 = vcmp.lt.f32.partialorder %v1171, 0.0004427343
  %v1173 = vsel %vm1172, %v1170, %v1167
  %v1174 = vadd.f32 %v709, 1.0
  %v1175 = vlog2.pop %v1174
  %v1176 = vmul.f32 %v1175, 0.6931472
  %v1177 = vmul.f32 -0.5, %v709
  %v1178 = vadd.f32 %v1177, 1.0
  %v1179 = vmul.f32 %v1178, %v709
  %v1180 = vand.u32 2147483647, %v709
  %vm1181 = vcmp.lt.f32.partialorder %v1180, 0.0004427343
  %v1182 = vsel %vm1181, %v1179, %v1176
  %v1183 = vadd.f32 %v711, 1.0
  %v1184 = vlog2.pop %v1183
  %v1185 = vmul.f32 %v1184, 0.6931472
  %v1186 = vmul.f32 -0.5, %v711
  %v1187 = vadd.f32 %v1186, 1.0
  %v1188 = vmul.f32 %v1187, %v711
  %v1189 = vand.u32 2147483647, %v711
  %vm1190 = vcmp.lt.f32.partialorder %v1189, 0.0004427343
  %v1191 = vsel %vm1190, %v1188, %v1185
  %v1192 = vadd.f32 %v713, 1.0
  %v1193 = vlog2.pop %v1192
  %v1194 = vmul.f32 %v1193, 0.6931472
  %v1195 = vmul.f32 -0.5, %v713
  %v1196 = vadd.f32 %v1195, 1.0
  %v1197 = vmul.f32 %v1196, %v713
  %v1198 = vand.u32 2147483647, %v713
  %vm1199 = vcmp.lt.f32.partialorder %v1198, 0.0004427343
  %v1200 = vsel %vm1199, %v1197, %v1194
  %v1201 = vadd.f32 %v715, 1.0
  %v1202 = vlog2.pop %v1201
  %v1203 = vmul.f32 %v1202, 0.6931472
  %v1204 = vmul.f32 -0.5, %v715
  %v1205 = vadd.f32 %v1204, 1.0
  %v1206 = vmul.f32 %v1205, %v715
  %v1207 = vand.u32 2147483647, %v715
  %vm1208 = vcmp.lt.f32.partialorder %v1207, 0.0004427343
  %v1209 = vsel %vm1208, %v1206, %v1203
  %v1210 = vadd.f32 %v717, 1.0
  %v1211 = vlog2.pop %v1210
  %v1212 = vmul.f32 %v1211, 0.6931472
  %v1213 = vmul.f32 -0.5, %v717
  %v1214 = vadd.f32 %v1213, 1.0
  %v1215 = vmul.f32 %v1214, %v717
  %v1216 = vand.u32 2147483647, %v717
  %vm1217 = vcmp.lt.f32.partialorder %v1216, 0.0004427343
  %v1218 = vsel %vm1217, %v1215, %v1212
  %v1219 = vadd.f32 %v719, 1.0
  %v1220 = vlog2.pop %v1219
  %v1221 = vmul.f32 %v1220, 0.6931472
  %v1222 = vmul.f32 -0.5, %v719
  %v1223 = vadd.f32 %v1222, 1.0
  %v1224 = vmul.f32 %v1223, %v719
  %v1225 = vand.u32 2147483647, %v719
  %vm1226 = vcmp.lt.f32.partialorder %v1225, 0.0004427343
  %v1227 = vsel %vm1226, %v1224, %v1221
  %v1228 = vadd.f32 %v721, 1.0
  %v1229 = vlog2.pop %v1228
  %v1230 = vmul.f32 %v1229, 0.6931472
  %v1231 = vmul.f32 -0.5, %v721
  %v1232 = vadd.f32 %v1231, 1.0
  %v1233 = vmul.f32 %v1232, %v721
  %v1234 = vand.u32 2147483647, %v721
  %vm1235 = vcmp.lt.f32.partialorder %v1234, 0.0004427343
  %v1236 = vsel %vm1235, %v1233, %v1230
  %v1237 = vadd.f32 %v723, 1.0
  %v1238 = vlog2.pop %v1237
  %v1239 = vmul.f32 %v1238, 0.6931472
  %v1240 = vmul.f32 -0.5, %v723
  %v1241 = vadd.f32 %v1240, 1.0
  %v1242 = vmul.f32 %v1241, %v723
  %v1243 = vand.u32 2147483647, %v723
  %vm1244 = vcmp.lt.f32.partialorder %v1243, 0.0004427343
  %v1245 = vsel %vm1244, %v1242, %v1239
  %v1246 = vadd.f32 %v725, 1.0
  %v1247 = vlog2.pop %v1246
  %v1248 = vmul.f32 %v1247, 0.6931472
  %v1249 = vmul.f32 -0.5, %v725
  %v1250 = vadd.f32 %v1249, 1.0
  %v1251 = vmul.f32 %v1250, %v725
  %v1252 = vand.u32 2147483647, %v725
  %vm1253 = vcmp.lt.f32.partialorder %v1252, 0.0004427343
  %v1254 = vsel %vm1253, %v1251, %v1248
  %v1255 = vadd.f32 %v727, 1.0
  %v1256 = vlog2.pop %v1255
  %v1257 = vmul.f32 %v1256, 0.6931472
  %v1258 = vmul.f32 -0.5, %v727
  %v1259 = vadd.f32 %v1258, 1.0
  %v1260 = vmul.f32 %v1259, %v727
  %v1261 = vand.u32 2147483647, %v727
  %vm1262 = vcmp.lt.f32.partialorder %v1261, 0.0004427343
  %v1263 = vsel %vm1262, %v1260, %v1257
  %v1264 = vadd.f32 %v729, 1.0
  %v1265 = vlog2.pop %v1264
  %v1266 = vmul.f32 %v1265, 0.6931472
  %v1267 = vmul.f32 -0.5, %v729
  %v1268 = vadd.f32 %v1267, 1.0
  %v1269 = vmul.f32 %v1268, %v729
  %v1270 = vand.u32 2147483647, %v729
  %vm1271 = vcmp.lt.f32.partialorder %v1270, 0.0004427343
  %v1272 = vsel %vm1271, %v1269, %v1266
  %v1273 = vadd.f32 %v731, 1.0
  %v1274 = vlog2.pop %v1273
  %v1275 = vmul.f32 %v1274, 0.6931472
  %v1276 = vmul.f32 -0.5, %v731
  %v1277 = vadd.f32 %v1276, 1.0
  %v1278 = vmul.f32 %v1277, %v731
  %v1279 = vand.u32 2147483647, %v731
  %vm1280 = vcmp.lt.f32.partialorder %v1279, 0.0004427343
  %v1281 = vsel %vm1280, %v1278, %v1275
  %v1282 = vadd.f32 %v733, 1.0
  %v1283 = vlog2.pop %v1282
  %v1284 = vmul.f32 %v1283, 0.6931472
  %v1285 = vmul.f32 -0.5, %v733
  %v1286 = vadd.f32 %v1285, 1.0
  %v1287 = vmul.f32 %v1286, %v733
  %v1288 = vand.u32 2147483647, %v733
  %vm1289 = vcmp.lt.f32.partialorder %v1288, 0.0004427343
  %v1290 = vsel %vm1289, %v1287, %v1284
  %v1291 = vadd.f32 %v735, 1.0
  %v1292 = vlog2.pop %v1291
  %v1293 = vmul.f32 %v1292, 0.6931472
  %v1294 = vmul.f32 -0.5, %v735
  %v1295 = vadd.f32 %v1294, 1.0
  %v1296 = vmul.f32 %v1295, %v735
  %v1297 = vand.u32 2147483647, %v735
  %vm1298 = vcmp.lt.f32.partialorder %v1297, 0.0004427343
  %v1299 = vsel %vm1298, %v1296, %v1293
  %v1300 = vadd.f32 %v737, 1.0
  %v1301 = vlog2.pop %v1300
  %v1302 = vmul.f32 %v1301, 0.6931472
  %v1303 = vmul.f32 -0.5, %v737
  %v1304 = vadd.f32 %v1303, 1.0
  %v1305 = vmul.f32 %v1304, %v737
  %v1306 = vand.u32 2147483647, %v737
  %vm1307 = vcmp.lt.f32.partialorder %v1306, 0.0004427343
  %v1308 = vsel %vm1307, %v1305, %v1302
  %v1309 = vadd.f32 %v739, 1.0
  %v1310 = vlog2.pop %v1309
  %v1311 = vmul.f32 %v1310, 0.6931472
  %v1312 = vmul.f32 -0.5, %v739
  %v1313 = vadd.f32 %v1312, 1.0
  %v1314 = vmul.f32 %v1313, %v739
  %v1315 = vand.u32 2147483647, %v739
  %vm1316 = vcmp.lt.f32.partialorder %v1315, 0.0004427343
  %v1317 = vsel %vm1316, %v1314, %v1311
  %v1318 = vadd.f32 %v741, 1.0
  %v1319 = vlog2.pop %v1318
  %v1320 = vmul.f32 %v1319, 0.6931472
  %v1321 = vmul.f32 -0.5, %v741
  %v1322 = vadd.f32 %v1321, 1.0
  %v1323 = vmul.f32 %v1322, %v741
  %v1324 = vand.u32 2147483647, %v741
  %vm1325 = vcmp.lt.f32.partialorder %v1324, 0.0004427343
  %v1326 = vsel %vm1325, %v1323, %v1320
  %v1327 = vadd.f32 %v743, 1.0
  %v1328 = vlog2.pop %v1327
  %v1329 = vmul.f32 %v1328, 0.6931472
  %v1330 = vmul.f32 -0.5, %v743
  %v1331 = vadd.f32 %v1330, 1.0
  %v1332 = vmul.f32 %v1331, %v743
  %v1333 = vand.u32 2147483647, %v743
  %vm1334 = vcmp.lt.f32.partialorder %v1333, 0.0004427343
  %v1335 = vsel %vm1334, %v1332, %v1329
  %v1336 = vadd.f32 %v745, 1.0
  %v1337 = vlog2.pop %v1336
  %v1338 = vmul.f32 %v1337, 0.6931472
  %v1339 = vmul.f32 -0.5, %v745
  %v1340 = vadd.f32 %v1339, 1.0
  %v1341 = vmul.f32 %v1340, %v745
  %v1342 = vand.u32 2147483647, %v745
  %vm1343 = vcmp.lt.f32.partialorder %v1342, 0.0004427343
  %v1344 = vsel %vm1343, %v1341, %v1338
  %v1345 = vadd.f32 %v747, 1.0
  %v1346 = vlog2.pop %v1345
  %v1347 = vmul.f32 %v1346, 0.6931472
  %v1348 = vmul.f32 -0.5, %v747
  %v1349 = vadd.f32 %v1348, 1.0
  %v1350 = vmul.f32 %v1349, %v747
  %v1351 = vand.u32 2147483647, %v747
  %vm1352 = vcmp.lt.f32.partialorder %v1351, 0.0004427343
  %v1353 = vsel %vm1352, %v1350, %v1347
  %v1354 = vadd.f32 %v749, 1.0
  %v1355 = vlog2.pop %v1354
  %v1356 = vmul.f32 %v1355, 0.6931472
  %v1357 = vmul.f32 -0.5, %v749
  %v1358 = vadd.f32 %v1357, 1.0
  %v1359 = vmul.f32 %v1358, %v749
  %v1360 = vand.u32 2147483647, %v749
  %vm1361 = vcmp.lt.f32.partialorder %v1360, 0.0004427343
  %v1362 = vsel %vm1361, %v1359, %v1356
  %v1363 = vadd.f32 %v751, 1.0
  %v1364 = vlog2.pop %v1363
  %v1365 = vmul.f32 %v1364, 0.6931472
  %v1366 = vmul.f32 -0.5, %v751
  %v1367 = vadd.f32 %v1366, 1.0
  %v1368 = vmul.f32 %v1367, %v751
  %v1369 = vand.u32 2147483647, %v751
  %vm1370 = vcmp.lt.f32.partialorder %v1369, 0.0004427343
  %v1371 = vsel %vm1370, %v1368, %v1365
  %v1372 = vadd.f32 %v753, 1.0
  %v1373 = vlog2.pop %v1372
  %v1374 = vmul.f32 %v1373, 0.6931472
  %v1375 = vmul.f32 -0.5, %v753
  %v1376 = vadd.f32 %v1375, 1.0
  %v1377 = vmul.f32 %v1376, %v753
  %v1378 = vand.u32 2147483647, %v753
  %vm1379 = vcmp.lt.f32.partialorder %v1378, 0.0004427343
  %v1380 = vsel %vm1379, %v1377, %v1374
  %v1381 = vadd.f32 %v755, 1.0
  %v1382 = vlog2.pop %v1381
  %v1383 = vmul.f32 %v1382, 0.6931472
  %v1384 = vmul.f32 -0.5, %v755
  %v1385 = vadd.f32 %v1384, 1.0
  %v1386 = vmul.f32 %v1385, %v755
  %v1387 = vand.u32 2147483647, %v755
  %vm1388 = vcmp.lt.f32.partialorder %v1387, 0.0004427343
  %v1389 = vsel %vm1388, %v1386, %v1383
  %v1390 = vadd.f32 %v757, 1.0
  %v1391 = vlog2.pop %v1390
  %v1392 = vmul.f32 %v1391, 0.6931472
  %v1393 = vmul.f32 -0.5, %v757
  %v1394 = vadd.f32 %v1393, 1.0
  %v1395 = vmul.f32 %v1394, %v757
  %v1396 = vand.u32 2147483647, %v757
  %vm1397 = vcmp.lt.f32.partialorder %v1396, 0.0004427343
  %v1398 = vsel %vm1397, %v1395, %v1392
  %v1399 = vadd.f32 %v759, 1.0
  %v1400 = vlog2.pop %v1399
  %v1401 = vmul.f32 %v1400, 0.6931472
  %v1402 = vmul.f32 -0.5, %v759
  %v1403 = vadd.f32 %v1402, 1.0
  %v1404 = vmul.f32 %v1403, %v759
  %v1405 = vand.u32 2147483647, %v759
  %vm1406 = vcmp.lt.f32.partialorder %v1405, 0.0004427343
  %v1407 = vsel %vm1406, %v1404, %v1401
  %v1408 = vadd.f32 %v761, 1.0
  %v1409 = vlog2.pop %v1408
  %v1410 = vmul.f32 %v1409, 0.6931472
  %v1411 = vmul.f32 -0.5, %v761
  %v1412 = vadd.f32 %v1411, 1.0
  %v1413 = vmul.f32 %v1412, %v761
  %v1414 = vand.u32 2147483647, %v761
  %vm1415 = vcmp.lt.f32.partialorder %v1414, 0.0004427343
  %v1416 = vsel %vm1415, %v1413, %v1410
  %v1417 = vadd.f32 %v763, 1.0
  %v1418 = vlog2.pop %v1417
  %v1419 = vmul.f32 %v1418, 0.6931472
  %v1420 = vmul.f32 -0.5, %v763
  %v1421 = vadd.f32 %v1420, 1.0
  %v1422 = vmul.f32 %v1421, %v763
  %v1423 = vand.u32 2147483647, %v763
  %vm1424 = vcmp.lt.f32.partialorder %v1423, 0.0004427343
  %v1425 = vsel %vm1424, %v1422, %v1419
  %v1426 = vadd.f32 %v765, 1.0
  %v1427 = vlog2.pop %v1426
  %v1428 = vmul.f32 %v1427, 0.6931472
  %v1429 = vmul.f32 -0.5, %v765
  %v1430 = vadd.f32 %v1429, 1.0
  %v1431 = vmul.f32 %v1430, %v765
  %v1432 = vand.u32 2147483647, %v765
  %vm1433 = vcmp.lt.f32.partialorder %v1432, 0.0004427343
  %v1434 = vsel %vm1433, %v1431, %v1428
  %v1435 = vadd.f32 %v767, 1.0
  %v1436 = vlog2.pop %v1435
  %v1437 = vmul.f32 %v1436, 0.6931472
  %v1438 = vmul.f32 -0.5, %v767
  %v1439 = vadd.f32 %v1438, 1.0
  %v1440 = vmul.f32 %v1439, %v767
  %v1441 = vand.u32 2147483647, %v767
  %vm1442 = vcmp.lt.f32.partialorder %v1441, 0.0004427343
  %v1443 = vsel %vm1442, %v1440, %v1437
  %v1444 = vadd.f32 %v769, 1.0
  %v1445 = vlog2.pop %v1444
  %v1446 = vmul.f32 %v1445, 0.6931472
  %v1447 = vmul.f32 -0.5, %v769
  %v1448 = vadd.f32 %v1447, 1.0
  %v1449 = vmul.f32 %v1448, %v769
  %v1450 = vand.u32 2147483647, %v769
  %vm1451 = vcmp.lt.f32.partialorder %v1450, 0.0004427343
  %v1452 = vsel %vm1451, %v1449, %v1446
  %v1453 = vadd.f32 %v771, 1.0
  %v1454 = vlog2.pop %v1453
  %v1455 = vmul.f32 %v1454, 0.6931472
  %v1456 = vmul.f32 -0.5, %v771
  %v1457 = vadd.f32 %v1456, 1.0
  %v1458 = vmul.f32 %v1457, %v771
  %v1459 = vand.u32 2147483647, %v771
  %vm1460 = vcmp.lt.f32.partialorder %v1459, 0.0004427343
  %v1461 = vsel %vm1460, %v1458, %v1455
  %v1462 = vadd.f32 %v773, 1.0
  %v1463 = vlog2.pop %v1462
  %v1464 = vmul.f32 %v1463, 0.6931472
  %v1465 = vmul.f32 -0.5, %v773
  %v1466 = vadd.f32 %v1465, 1.0
  %v1467 = vmul.f32 %v1466, %v773
  %v1468 = vand.u32 2147483647, %v773
  %vm1469 = vcmp.lt.f32.partialorder %v1468, 0.0004427343
  %v1470 = vsel %vm1469, %v1467, %v1464
  %v1471 = vadd.f32 %v775, 1.0
  %v1472 = vlog2.pop %v1471
  %v1473 = vmul.f32 %v1472, 0.6931472
  %v1474 = vmul.f32 -0.5, %v775
  %v1475 = vadd.f32 %v1474, 1.0
  %v1476 = vmul.f32 %v1475, %v775
  %v1477 = vand.u32 2147483647, %v775
  %vm1478 = vcmp.lt.f32.partialorder %v1477, 0.0004427343
  %v1479 = vsel %vm1478, %v1476, %v1473
  %v1480 = vadd.f32 %v777, 1.0
  %v1481 = vlog2.pop %v1480
  %v1482 = vmul.f32 %v1481, 0.6931472
  %v1483 = vmul.f32 -0.5, %v777
  %v1484 = vadd.f32 %v1483, 1.0
  %v1485 = vmul.f32 %v1484, %v777
  %v1486 = vand.u32 2147483647, %v777
  %vm1487 = vcmp.lt.f32.partialorder %v1486, 0.0004427343
  %v1488 = vsel %vm1487, %v1485, %v1482
  %v1489 = vadd.f32 %v779, 1.0
  %v1490 = vlog2.pop %v1489
  %v1491 = vmul.f32 %v1490, 0.6931472
  %v1492 = vmul.f32 -0.5, %v779
  %v1493 = vadd.f32 %v1492, 1.0
  %v1494 = vmul.f32 %v1493, %v779
  %v1495 = vand.u32 2147483647, %v779
  %vm1496 = vcmp.lt.f32.partialorder %v1495, 0.0004427343
  %v1497 = vsel %vm1496, %v1494, %v1491
  %v1498 = vadd.f32 %v781, 1.0
  %v1499 = vlog2.pop %v1498
  %v1500 = vmul.f32 %v1499, 0.6931472
  %v1501 = vmul.f32 -0.5, %v781
  %v1502 = vadd.f32 %v1501, 1.0
  %v1503 = vmul.f32 %v1502, %v781
  %v1504 = vand.u32 2147483647, %v781
  %vm1505 = vcmp.lt.f32.partialorder %v1504, 0.0004427343
  %v1506 = vsel %vm1505, %v1503, %v1500
  %v1507 = vadd.f32 %v783, 1.0
  %v1508 = vlog2.pop %v1507
  %v1509 = vmul.f32 %v1508, 0.6931472
  %v1510 = vmul.f32 -0.5, %v783
  %v1511 = vadd.f32 %v1510, 1.0
  %v1512 = vmul.f32 %v1511, %v783
  %v1513 = vand.u32 2147483647, %v783
  %vm1514 = vcmp.lt.f32.partialorder %v1513, 0.0004427343
  %v1515 = vsel %vm1514, %v1512, %v1509
  %v1516 = vadd.f32 %v785, 1.0
  %v1517 = vlog2.pop %v1516
  %v1518 = vmul.f32 %v1517, 0.6931472
  %v1519 = vmul.f32 -0.5, %v785
  %v1520 = vadd.f32 %v1519, 1.0
  %v1521 = vmul.f32 %v1520, %v785
  %v1522 = vand.u32 2147483647, %v785
  %vm1523 = vcmp.lt.f32.partialorder %v1522, 0.0004427343
  %v1524 = vsel %vm1523, %v1521, %v1518
  %v1525 = vadd.f32 %v787, 1.0
  %v1526 = vlog2.pop %v1525
  %v1527 = vmul.f32 %v1526, 0.6931472
  %v1528 = vmul.f32 -0.5, %v787
  %v1529 = vadd.f32 %v1528, 1.0
  %v1530 = vmul.f32 %v1529, %v787
  %v1531 = vand.u32 2147483647, %v787
  %vm1532 = vcmp.lt.f32.partialorder %v1531, 0.0004427343
  %v1533 = vsel %vm1532, %v1530, %v1527
  %v1534 = vadd.f32 %v789, 1.0
  %v1535 = vlog2.pop %v1534
  %v1536 = vmul.f32 %v1535, 0.6931472
  %v1537 = vmul.f32 -0.5, %v789
  %v1538 = vadd.f32 %v1537, 1.0
  %v1539 = vmul.f32 %v1538, %v789
  %v1540 = vand.u32 2147483647, %v789
  %vm1541 = vcmp.lt.f32.partialorder %v1540, 0.0004427343
  %v1542 = vsel %vm1541, %v1539, %v1536
  %v1543 = vadd.f32 %v791, 1.0
  %v1544 = vlog2.pop %v1543
  %v1545 = vmul.f32 %v1544, 0.6931472
  %v1546 = vmul.f32 -0.5, %v791
  %v1547 = vadd.f32 %v1546, 1.0
  %v1548 = vmul.f32 %v1547, %v791
  %v1549 = vand.u32 2147483647, %v791
  %vm1550 = vcmp.lt.f32.partialorder %v1549, 0.0004427343
  %v1551 = vsel %vm1550, %v1548, %v1545
  %v1552 = vadd.f32 %v793, 1.0
  %v1553 = vlog2.pop %v1552
  %v1554 = vmul.f32 %v1553, 0.6931472
  %v1555 = vmul.f32 -0.5, %v793
  %v1556 = vadd.f32 %v1555, 1.0
  %v1557 = vmul.f32 %v1556, %v793
  %v1558 = vand.u32 2147483647, %v793
  %vm1559 = vcmp.lt.f32.partialorder %v1558, 0.0004427343
  %v1560 = vsel %vm1559, %v1557, %v1554
  %v1561 = vadd.f32 %v795, 1.0
  %v1562 = vlog2.pop %v1561
  %v1563 = vmul.f32 %v1562, 0.6931472
  %v1564 = vmul.f32 -0.5, %v795
  %v1565 = vadd.f32 %v1564, 1.0
  %v1566 = vmul.f32 %v1565, %v795
  %v1567 = vand.u32 2147483647, %v795
  %vm1568 = vcmp.lt.f32.partialorder %v1567, 0.0004427343
  %v1569 = vsel %vm1568, %v1566, %v1563
  %v1570 = vadd.f32 %v797, 1.0
  %v1571 = vlog2.pop %v1570
  %v1572 = vmul.f32 %v1571, 0.6931472
  %v1573 = vmul.f32 -0.5, %v797
  %v1574 = vadd.f32 %v1573, 1.0
  %v1575 = vmul.f32 %v1574, %v797
  %v1576 = vand.u32 2147483647, %v797
  %vm1577 = vcmp.lt.f32.partialorder %v1576, 0.0004427343
  %v1578 = vsel %vm1577, %v1575, %v1572
  %v1579 = vadd.f32 %v799, 1.0
  %v1580 = vlog2.pop %v1579
  %v1581 = vmul.f32 %v1580, 0.6931472
  %v1582 = vmul.f32 -0.5, %v799
  %v1583 = vadd.f32 %v1582, 1.0
  %v1584 = vmul.f32 %v1583, %v799
  %v1585 = vand.u32 2147483647, %v799
  %vm1586 = vcmp.lt.f32.partialorder %v1585, 0.0004427343
  %v1587 = vsel %vm1586, %v1584, %v1581
  %v1588 = vadd.f32 %v801, 1.0
  %v1589 = vlog2.pop %v1588
  %v1590 = vmul.f32 %v1589, 0.6931472
  %v1591 = vmul.f32 -0.5, %v801
  %v1592 = vadd.f32 %v1591, 1.0
  %v1593 = vmul.f32 %v1592, %v801
  %v1594 = vand.u32 2147483647, %v801
  %vm1595 = vcmp.lt.f32.partialorder %v1594, 0.0004427343
  %v1596 = vsel %vm1595, %v1593, %v1590
  %v1597 = vadd.f32 %v803, 1.0
  %v1598 = vlog2.pop %v1597
  %v1599 = vmul.f32 %v1598, 0.6931472
  %v1600 = vmul.f32 -0.5, %v803
  %v1601 = vadd.f32 %v1600, 1.0
  %v1602 = vmul.f32 %v1601, %v803
  %v1603 = vand.u32 2147483647, %v803
  %vm1604 = vcmp.lt.f32.partialorder %v1603, 0.0004427343
  %v1605 = vsel %vm1604, %v1602, %v1599
  %v1606 = vadd.f32 %v805, 1.0
  %v1607 = vlog2.pop %v1606
  %v1608 = vmul.f32 %v1607, 0.6931472
  %v1609 = vmul.f32 -0.5, %v805
  %v1610 = vadd.f32 %v1609, 1.0
  %v1611 = vmul.f32 %v1610, %v805
  %v1612 = vand.u32 2147483647, %v805
  %vm1613 = vcmp.lt.f32.partialorder %v1612, 0.0004427343
  %v1614 = vsel %vm1613, %v1611, %v1608
  %v1615 = vadd.f32 %v807, 1.0
  %v1616 = vlog2.pop %v1615
  %v1617 = vmul.f32 %v1616, 0.6931472
  %v1618 = vmul.f32 -0.5, %v807
  %v1619 = vadd.f32 %v1618, 1.0
  %v1620 = vmul.f32 %v1619, %v807
  %v1621 = vand.u32 2147483647, %v807
  %vm1622 = vcmp.lt.f32.partialorder %v1621, 0.0004427343
  %v1623 = vsel %vm1622, %v1620, %v1617
  %v1624 = vadd.f32 %v809, 1.0
  %v1625 = vlog2.pop %v1624
  %v1626 = vmul.f32 %v1625, 0.6931472
  %v1627 = vmul.f32 -0.5, %v809
  %v1628 = vadd.f32 %v1627, 1.0
  %v1629 = vmul.f32 %v1628, %v809
  %v1630 = vand.u32 2147483647, %v809
  %vm1631 = vcmp.lt.f32.partialorder %v1630, 0.0004427343
  %v1632 = vsel %vm1631, %v1629, %v1626
  %v1633 = vadd.f32 %v811, 1.0
  %v1634 = vlog2.pop %v1633
  %v1635 = vmul.f32 %v1634, 0.6931472
  %v1636 = vmul.f32 -0.5, %v811
  %v1637 = vadd.f32 %v1636, 1.0
  %v1638 = vmul.f32 %v1637, %v811
  %v1639 = vand.u32 2147483647, %v811
  %vm1640 = vcmp.lt.f32.partialorder %v1639, 0.0004427343
  %v1641 = vsel %vm1640, %v1638, %v1635
  %v1642 = vadd.f32 %v813, 1.0
  %v1643 = vlog2.pop %v1642
  %v1644 = vmul.f32 %v1643, 0.6931472
  %v1645 = vmul.f32 -0.5, %v813
  %v1646 = vadd.f32 %v1645, 1.0
  %v1647 = vmul.f32 %v1646, %v813
  %v1648 = vand.u32 2147483647, %v813
  %vm1649 = vcmp.lt.f32.partialorder %v1648, 0.0004427343
  %v1650 = vsel %vm1649, %v1647, %v1644
  %v1651 = vadd.f32 %v815, 1.0
  %v1652 = vlog2.pop %v1651
  %v1653 = vmul.f32 %v1652, 0.6931472
  %v1654 = vmul.f32 -0.5, %v815
  %v1655 = vadd.f32 %v1654, 1.0
  %v1656 = vmul.f32 %v1655, %v815
  %v1657 = vand.u32 2147483647, %v815
  %vm1658 = vcmp.lt.f32.partialorder %v1657, 0.0004427343
  %v1659 = vsel %vm1658, %v1656, %v1653
  %v1660 = vadd.f32 %v817, 1.0
  %v1661 = vlog2.pop %v1660
  %v1662 = vmul.f32 %v1661, 0.6931472
  %v1663 = vmul.f32 -0.5, %v817
  %v1664 = vadd.f32 %v1663, 1.0
  %v1665 = vmul.f32 %v1664, %v817
  %v1666 = vand.u32 2147483647, %v817
  %vm1667 = vcmp.lt.f32.partialorder %v1666, 0.0004427343
  %v1668 = vsel %vm1667, %v1665, %v1662
  %v1669 = vadd.f32 %v819, 1.0
  %v1670 = vlog2.pop %v1669
  %v1671 = vmul.f32 %v1670, 0.6931472
  %v1672 = vmul.f32 -0.5, %v819
  %v1673 = vadd.f32 %v1672, 1.0
  %v1674 = vmul.f32 %v1673, %v819
  %v1675 = vand.u32 2147483647, %v819
  %vm1676 = vcmp.lt.f32.partialorder %v1675, 0.0004427343
  %v1677 = vsel %vm1676, %v1674, %v1671
  %v1678 = vadd.f32 %v821, 1.0
  %v1679 = vlog2.pop %v1678
  %v1680 = vmul.f32 %v1679, 0.6931472
  %v1681 = vmul.f32 -0.5, %v821
  %v1682 = vadd.f32 %v1681, 1.0
  %v1683 = vmul.f32 %v1682, %v821
  %v1684 = vand.u32 2147483647, %v821
  %vm1685 = vcmp.lt.f32.partialorder %v1684, 0.0004427343
  %v1686 = vsel %vm1685, %v1683, %v1680
  %v1687 = vadd.f32 %v823, 1.0
  %v1688 = vlog2.pop %v1687
  %v1689 = vmul.f32 %v1688, 0.6931472
  %v1690 = vmul.f32 -0.5, %v823
  %v1691 = vadd.f32 %v1690, 1.0
  %v1692 = vmul.f32 %v1691, %v823
  %v1693 = vand.u32 2147483647, %v823
  %vm1694 = vcmp.lt.f32.partialorder %v1693, 0.0004427343
  %v1695 = vsel %vm1694, %v1692, %v1689
  %v1696 = vadd.f32 %v825, 1.0
  %v1697 = vlog2.pop %v1696
  %v1698 = vmul.f32 %v1697, 0.6931472
  %v1699 = vmul.f32 -0.5, %v825
  %v1700 = vadd.f32 %v1699, 1.0
  %v1701 = vmul.f32 %v1700, %v825
  %v1702 = vand.u32 2147483647, %v825
  %vm1703 = vcmp.lt.f32.partialorder %v1702, 0.0004427343
  %v1704 = vsel %vm1703, %v1701, %v1698
  %v1705 = vadd.f32 %v827, 1.0
  %v1706 = vlog2.pop %v1705
  %v1707 = vmul.f32 %v1706, 0.6931472
  %v1708 = vmul.f32 -0.5, %v827
  %v1709 = vadd.f32 %v1708, 1.0
  %v1710 = vmul.f32 %v1709, %v827
  %v1711 = vand.u32 2147483647, %v827
  %vm1712 = vcmp.lt.f32.partialorder %v1711, 0.0004427343
  %v1713 = vsel %vm1712, %v1710, %v1707
  %v1714 = vadd.f32 %v829, 1.0
  %v1715 = vlog2.pop %v1714
  %v1716 = vmul.f32 %v1715, 0.6931472
  %v1717 = vmul.f32 -0.5, %v829
  %v1718 = vadd.f32 %v1717, 1.0
  %v1719 = vmul.f32 %v1718, %v829
  %v1720 = vand.u32 2147483647, %v829
  %vm1721 = vcmp.lt.f32.partialorder %v1720, 0.0004427343
  %v1722 = vsel %vm1721, %v1719, %v1716
  %v1723 = vadd.f32 %v831, 1.0
  %v1724 = vlog2.pop %v1723
  %v1725 = vmul.f32 %v1724, 0.6931472
  %v1726 = vmul.f32 -0.5, %v831
  %v1727 = vadd.f32 %v1726, 1.0
  %v1728 = vmul.f32 %v1727, %v831
  %v1729 = vand.u32 2147483647, %v831
  %vm1730 = vcmp.lt.f32.partialorder %v1729, 0.0004427343
  %v1731 = vsel %vm1730, %v1728, %v1725
  %v1732 = vadd.f32 %v833, 1.0
  %v1733 = vlog2.pop %v1732
  %v1734 = vmul.f32 %v1733, 0.6931472
  %v1735 = vmul.f32 -0.5, %v833
  %v1736 = vadd.f32 %v1735, 1.0
  %v1737 = vmul.f32 %v1736, %v833
  %v1738 = vand.u32 2147483647, %v833
  %vm1739 = vcmp.lt.f32.partialorder %v1738, 0.0004427343
  %v1740 = vsel %vm1739, %v1737, %v1734
  %v1741 = vadd.f32 %v835, 1.0
  %v1742 = vlog2.pop %v1741
  %v1743 = vmul.f32 %v1742, 0.6931472
  %v1744 = vmul.f32 -0.5, %v835
  %v1745 = vadd.f32 %v1744, 1.0
  %v1746 = vmul.f32 %v1745, %v835
  %v1747 = vand.u32 2147483647, %v835
  %vm1748 = vcmp.lt.f32.partialorder %v1747, 0.0004427343
  %v1749 = vsel %vm1748, %v1746, %v1743
  %v1750 = vadd.f32 %v837, 1.0
  %v1751 = vlog2.pop %v1750
  %v1752 = vmul.f32 %v1751, 0.6931472
  %v1753 = vmul.f32 -0.5, %v837
  %v1754 = vadd.f32 %v1753, 1.0
  %v1755 = vmul.f32 %v1754, %v837
  %v1756 = vand.u32 2147483647, %v837
  %vm1757 = vcmp.lt.f32.partialorder %v1756, 0.0004427343
  %v1758 = vsel %vm1757, %v1755, %v1752
  %v1759 = vadd.f32 %v839, 1.0
  %v1760 = vlog2.pop %v1759
  %v1761 = vmul.f32 %v1760, 0.6931472
  %v1762 = vmul.f32 -0.5, %v839
  %v1763 = vadd.f32 %v1762, 1.0
  %v1764 = vmul.f32 %v1763, %v839
  %v1765 = vand.u32 2147483647, %v839
  %vm1766 = vcmp.lt.f32.partialorder %v1765, 0.0004427343
  %v1767 = vsel %vm1766, %v1764, %v1761
  %v1768 = vadd.f32 %v841, 1.0
  %v1769 = vlog2.pop %v1768
  %v1770 = vmul.f32 %v1769, 0.6931472
  %v1771 = vmul.f32 -0.5, %v841
  %v1772 = vadd.f32 %v1771, 1.0
  %v1773 = vmul.f32 %v1772, %v841
  %v1774 = vand.u32 2147483647, %v841
  %vm1775 = vcmp.lt.f32.partialorder %v1774, 0.0004427343
  %v1776 = vsel %vm1775, %v1773, %v1770
  %v1777 = vadd.f32 %v843, 1.0
  %v1778 = vlog2.pop %v1777
  %v1779 = vmul.f32 %v1778, 0.6931472
  %v1780 = vmul.f32 -0.5, %v843
  %v1781 = vadd.f32 %v1780, 1.0
  %v1782 = vmul.f32 %v1781, %v843
  %v1783 = vand.u32 2147483647, %v843
  %vm1784 = vcmp.lt.f32.partialorder %v1783, 0.0004427343
  %v1785 = vsel %vm1784, %v1782, %v1779
  %v1786 = vadd.f32 %v845, 1.0
  %v1787 = vlog2.pop %v1786
  %v1788 = vmul.f32 %v1787, 0.6931472
  %v1789 = vmul.f32 -0.5, %v845
  %v1790 = vadd.f32 %v1789, 1.0
  %v1791 = vmul.f32 %v1790, %v845
  %v1792 = vand.u32 2147483647, %v845
  %vm1793 = vcmp.lt.f32.partialorder %v1792, 0.0004427343
  %v1794 = vsel %vm1793, %v1791, %v1788
  %v1795 = vadd.f32 %v847, 1.0
  %v1796 = vlog2.pop %v1795
  %v1797 = vmul.f32 %v1796, 0.6931472
  %v1798 = vmul.f32 -0.5, %v847
  %v1799 = vadd.f32 %v1798, 1.0
  %v1800 = vmul.f32 %v1799, %v847
  %v1801 = vand.u32 2147483647, %v847
  %vm1802 = vcmp.lt.f32.partialorder %v1801, 0.0004427343
  %v1803 = vsel %vm1802, %v1800, %v1797
  %v1804 = vadd.f32 %v849, 1.0
  %v1805 = vlog2.pop %v1804
  %v1806 = vmul.f32 %v1805, 0.6931472
  %v1807 = vmul.f32 -0.5, %v849
  %v1808 = vadd.f32 %v1807, 1.0
  %v1809 = vmul.f32 %v1808, %v849
  %v1810 = vand.u32 2147483647, %v849
  %vm1811 = vcmp.lt.f32.partialorder %v1810, 0.0004427343
  %v1812 = vsel %vm1811, %v1809, %v1806
  %v1813 = vadd.f32 %v851, 1.0
  %v1814 = vlog2.pop %v1813
  %v1815 = vmul.f32 %v1814, 0.6931472
  %v1816 = vmul.f32 -0.5, %v851
  %v1817 = vadd.f32 %v1816, 1.0
  %v1818 = vmul.f32 %v1817, %v851
  %v1819 = vand.u32 2147483647, %v851
  %vm1820 = vcmp.lt.f32.partialorder %v1819, 0.0004427343
  %v1821 = vsel %vm1820, %v1818, %v1815
  %v1822 = vadd.f32 %v853, 1.0
  %v1823 = vlog2.pop %v1822
  %v1824 = vmul.f32 %v1823, 0.6931472
  %v1825 = vmul.f32 -0.5, %v853
  %v1826 = vadd.f32 %v1825, 1.0
  %v1827 = vmul.f32 %v1826, %v853
  %v1828 = vand.u32 2147483647, %v853
  %vm1829 = vcmp.lt.f32.partialorder %v1828, 0.0004427343
  %v1830 = vsel %vm1829, %v1827, %v1824
  %v1831 = vadd.f32 %v855, 1.0
  %v1832 = vlog2.pop %v1831
  %v1833 = vmul.f32 %v1832, 0.6931472
  %v1834 = vmul.f32 -0.5, %v855
  %v1835 = vadd.f32 %v1834, 1.0
  %v1836 = vmul.f32 %v1835, %v855
  %v1837 = vand.u32 2147483647, %v855
  %vm1838 = vcmp.lt.f32.partialorder %v1837, 0.0004427343
  %v1839 = vsel %vm1838, %v1836, %v1833
  %v1840 = vadd.f32 %v857, 1.0
  %v1841 = vlog2.pop %v1840
  %v1842 = vmul.f32 %v1841, 0.6931472
  %v1843 = vmul.f32 -0.5, %v857
  %v1844 = vadd.f32 %v1843, 1.0
  %v1845 = vmul.f32 %v1844, %v857
  %v1846 = vand.u32 2147483647, %v857
  %vm1847 = vcmp.lt.f32.partialorder %v1846, 0.0004427343
  %v1848 = vsel %vm1847, %v1845, %v1842
  %v1849 = vadd.f32 %v859, 1.0
  %v1850 = vlog2.pop %v1849
  %v1851 = vmul.f32 %v1850, 0.6931472
  %v1852 = vmul.f32 -0.5, %v859
  %v1853 = vadd.f32 %v1852, 1.0
  %v1854 = vmul.f32 %v1853, %v859
  %v1855 = vand.u32 2147483647, %v859
  %vm1856 = vcmp.lt.f32.partialorder %v1855, 0.0004427343
  %v1857 = vsel %vm1856, %v1854, %v1851
  %v1858 = vadd.f32 %v861, 1.0
  %v1859 = vlog2.pop %v1858
  %v1860 = vmul.f32 %v1859, 0.6931472
  %v1861 = vmul.f32 -0.5, %v861
  %v1862 = vadd.f32 %v1861, 1.0
  %v1863 = vmul.f32 %v1862, %v861
  %v1864 = vand.u32 2147483647, %v861
  %vm1865 = vcmp.lt.f32.partialorder %v1864, 0.0004427343
  %v1866 = vsel %vm1865, %v1863, %v1860
  %v1867 = vadd.f32 %v863, 1.0
  %v1868 = vlog2.pop %v1867
  %v1869 = vmul.f32 %v1868, 0.6931472
  %v1870 = vmul.f32 -0.5, %v863
  %v1871 = vadd.f32 %v1870, 1.0
  %v1872 = vmul.f32 %v1871, %v863
  %v1873 = vand.u32 2147483647, %v863
  %vm1874 = vcmp.lt.f32.partialorder %v1873, 0.0004427343
  %v1875 = vsel %vm1874, %v1872, %v1869
  %v1876 = vadd.f32 %v865, 1.0
  %v1877 = vlog2.pop %v1876
  %v1878 = vmul.f32 %v1877, 0.6931472
  %v1879 = vmul.f32 -0.5, %v865
  %v1880 = vadd.f32 %v1879, 1.0
  %v1881 = vmul.f32 %v1880, %v865
  %v1882 = vand.u32 2147483647, %v865
  %vm1883 = vcmp.lt.f32.partialorder %v1882, 0.0004427343
  %v1884 = vsel %vm1883, %v1881, %v1878
  %v1885 = vadd.f32 %v867, 1.0
  %v1886 = vlog2.pop %v1885
  %v1887 = vmul.f32 %v1886, 0.6931472
  %v1888 = vmul.f32 -0.5, %v867
  %v1889 = vadd.f32 %v1888, 1.0
  %v1890 = vmul.f32 %v1889, %v867
  %v1891 = vand.u32 2147483647, %v867
  %vm1892 = vcmp.lt.f32.partialorder %v1891, 0.0004427343
  %v1893 = vsel %vm1892, %v1890, %v1887
  %v1894 = vadd.f32 %v869, 1.0
  %v1895 = vlog2.pop %v1894
  %v1896 = vmul.f32 %v1895, 0.6931472
  %v1897 = vmul.f32 -0.5, %v869
  %v1898 = vadd.f32 %v1897, 1.0
  %v1899 = vmul.f32 %v1898, %v869
  %v1900 = vand.u32 2147483647, %v869
  %vm1901 = vcmp.lt.f32.partialorder %v1900, 0.0004427343
  %v1902 = vsel %vm1901, %v1899, %v1896
  %v1903 = vadd.f32 %v871, 1.0
  %v1904 = vlog2.pop %v1903
  %v1905 = vmul.f32 %v1904, 0.6931472
  %v1906 = vmul.f32 -0.5, %v871
  %v1907 = vadd.f32 %v1906, 1.0
  %v1908 = vmul.f32 %v1907, %v871
  %v1909 = vand.u32 2147483647, %v871
  %vm1910 = vcmp.lt.f32.partialorder %v1909, 0.0004427343
  %v1911 = vsel %vm1910, %v1908, %v1905
  %v1912 = vadd.f32 %v873, 1.0
  %v1913 = vlog2.pop %v1912
  %v1914 = vmul.f32 %v1913, 0.6931472
  %v1915 = vmul.f32 -0.5, %v873
  %v1916 = vadd.f32 %v1915, 1.0
  %v1917 = vmul.f32 %v1916, %v873
  %v1918 = vand.u32 2147483647, %v873
  %vm1919 = vcmp.lt.f32.partialorder %v1918, 0.0004427343
  %v1920 = vsel %vm1919, %v1917, %v1914
  %v1921 = vadd.f32 %v875, 1.0
  %v1922 = vlog2.pop %v1921
  %v1923 = vmul.f32 %v1922, 0.6931472
  %v1924 = vmul.f32 -0.5, %v875
  %v1925 = vadd.f32 %v1924, 1.0
  %v1926 = vmul.f32 %v1925, %v875
  %v1927 = vand.u32 2147483647, %v875
  %vm1928 = vcmp.lt.f32.partialorder %v1927, 0.0004427343
  %v1929 = vsel %vm1928, %v1926, %v1923
  %v1930 = vadd.f32 %v877, 1.0
  %v1931 = vlog2.pop %v1930
  %v1932 = vmul.f32 %v1931, 0.6931472
  %v1933 = vmul.f32 -0.5, %v877
  %v1934 = vadd.f32 %v1933, 1.0
  %v1935 = vmul.f32 %v1934, %v877
  %v1936 = vand.u32 2147483647, %v877
  %vm1937 = vcmp.lt.f32.partialorder %v1936, 0.0004427343
  %v1938 = vsel %vm1937, %v1935, %v1932
  %v1939 = vadd.f32 %v879, 1.0
  %v1940 = vlog2.pop %v1939
  %v1941 = vmul.f32 %v1940, 0.6931472
  %v1942 = vmul.f32 -0.5, %v879
  %v1943 = vadd.f32 %v1942, 1.0
  %v1944 = vmul.f32 %v1943, %v879
  %v1945 = vand.u32 2147483647, %v879
  %vm1946 = vcmp.lt.f32.partialorder %v1945, 0.0004427343
  %v1947 = vsel %vm1946, %v1944, %v1941
  %v1948 = vadd.f32 %v881, 1.0
  %v1949 = vlog2.pop %v1948
  %v1950 = vmul.f32 %v1949, 0.6931472
  %v1951 = vmul.f32 -0.5, %v881
  %v1952 = vadd.f32 %v1951, 1.0
  %v1953 = vmul.f32 %v1952, %v881
  %v1954 = vand.u32 2147483647, %v881
  %vm1955 = vcmp.lt.f32.partialorder %v1954, 0.0004427343
  %v1956 = vsel %vm1955, %v1953, %v1950
  %v1957 = vadd.f32 %v883, 1.0
  %v1958 = vlog2.pop %v1957
  %v1959 = vmul.f32 %v1958, 0.6931472
  %v1960 = vmul.f32 -0.5, %v883
  %v1961 = vadd.f32 %v1960, 1.0
  %v1962 = vmul.f32 %v1961, %v883
  %v1963 = vand.u32 2147483647, %v883
  %vm1964 = vcmp.lt.f32.partialorder %v1963, 0.0004427343
  %v1965 = vsel %vm1964, %v1962, %v1959
  %v1966 = vadd.f32 %v885, 1.0
  %v1967 = vlog2.pop %v1966
  %v1968 = vmul.f32 %v1967, 0.6931472
  %v1969 = vmul.f32 -0.5, %v885
  %v1970 = vadd.f32 %v1969, 1.0
  %v1971 = vmul.f32 %v1970, %v885
  %v1972 = vand.u32 2147483647, %v885
  %vm1973 = vcmp.lt.f32.partialorder %v1972, 0.0004427343
  %v1974 = vsel %vm1973, %v1971, %v1968
  %v1975 = vadd.f32 %v887, 1.0
  %v1976 = vlog2.pop %v1975
  %v1977 = vmul.f32 %v1976, 0.6931472
  %v1978 = vmul.f32 -0.5, %v887
  %v1979 = vadd.f32 %v1978, 1.0
  %v1980 = vmul.f32 %v1979, %v887
  %v1981 = vand.u32 2147483647, %v887
  %vm1982 = vcmp.lt.f32.partialorder %v1981, 0.0004427343
  %v1983 = vsel %vm1982, %v1980, %v1977
  %v1984 = vadd.f32 %v889, 1.0
  %v1985 = vlog2.pop %v1984
  %v1986 = vmul.f32 %v1985, 0.6931472
  %v1987 = vmul.f32 -0.5, %v889
  %v1988 = vadd.f32 %v1987, 1.0
  %v1989 = vmul.f32 %v1988, %v889
  %v1990 = vand.u32 2147483647, %v889
  %vm1991 = vcmp.lt.f32.partialorder %v1990, 0.0004427343
  %v1992 = vsel %vm1991, %v1989, %v1986
  %v1993 = vadd.f32 %v891, 1.0
  %v1994 = vlog2.pop %v1993
  %v1995 = vmul.f32 %v1994, 0.6931472
  %v1996 = vmul.f32 -0.5, %v891
  %v1997 = vadd.f32 %v1996, 1.0
  %v1998 = vmul.f32 %v1997, %v891
  %v1999 = vand.u32 2147483647, %v891
  %vm2000 = vcmp.lt.f32.partialorder %v1999, 0.0004427343
  %v2001 = vsel %vm2000, %v1998, %v1995
  %v2002 = vadd.f32 %v893, 1.0
  %v2003 = vlog2.pop %v2002
  %v2004 = vmul.f32 %v2003, 0.6931472
  %v2005 = vmul.f32 -0.5, %v893
  %v2006 = vadd.f32 %v2005, 1.0
  %v2007 = vmul.f32 %v2006, %v893
  %v2008 = vand.u32 2147483647, %v893
  %vm2009 = vcmp.lt.f32.partialorder %v2008, 0.0004427343
  %v2010 = vsel %vm2009, %v2007, %v2004
  %v2011 = vadd.f32 %v895, 1.0
  %v2012 = vlog2.pop %v2011
  %v2013 = vmul.f32 %v2012, 0.6931472
  %v2014 = vmul.f32 -0.5, %v895
  %v2015 = vadd.f32 %v2014, 1.0
  %v2016 = vmul.f32 %v2015, %v895
  %v2017 = vand.u32 2147483647, %v895
  %vm2018 = vcmp.lt.f32.partialorder %v2017, 0.0004427343
  %v2019 = vsel %vm2018, %v2016, %v2013
  %v2020 = vadd.f32 %v897, 1.0
  %v2021 = vlog2.pop %v2020
  %v2022 = vmul.f32 %v2021, 0.6931472
  %v2023 = vmul.f32 -0.5, %v897
  %v2024 = vadd.f32 %v2023, 1.0
  %v2025 = vmul.f32 %v2024, %v897
  %v2026 = vand.u32 2147483647, %v897
  %vm2027 = vcmp.lt.f32.partialorder %v2026, 0.0004427343
  %v2028 = vsel %vm2027, %v2025, %v2022
  %v2029 = vadd.f32 %v899, 1.0
  %v2030 = vlog2.pop %v2029
  %v2031 = vmul.f32 %v2030, 0.6931472
  %v2032 = vmul.f32 -0.5, %v899
  %v2033 = vadd.f32 %v2032, 1.0
  %v2034 = vmul.f32 %v2033, %v899
  %v2035 = vand.u32 2147483647, %v899
  %vm2036 = vcmp.lt.f32.partialorder %v2035, 0.0004427343
  %v2037 = vsel %vm2036, %v2034, %v2031
  %v2038 = vadd.f32 %v901, 1.0
  %v2039 = vlog2.pop %v2038
  %v2040 = vmul.f32 %v2039, 0.6931472
  %v2041 = vmul.f32 -0.5, %v901
  %v2042 = vadd.f32 %v2041, 1.0
  %v2043 = vmul.f32 %v2042, %v901
  %v2044 = vand.u32 2147483647, %v901
  %vm2045 = vcmp.lt.f32.partialorder %v2044, 0.0004427343
  %v2046 = vsel %vm2045, %v2043, %v2040
  %v2047 = vadd.f32 %v903, 1.0
  %v2048 = vlog2.pop %v2047
  %v2049 = vmul.f32 %v2048, 0.6931472
  %v2050 = vmul.f32 -0.5, %v903
  %v2051 = vadd.f32 %v2050, 1.0
  %v2052 = vmul.f32 %v2051, %v903
  %v2053 = vand.u32 2147483647, %v903
  %vm2054 = vcmp.lt.f32.partialorder %v2053, 0.0004427343
  %v2055 = vsel %vm2054, %v2052, %v2049
  %v2056 = vadd.f32 %v264, %v912
  %v2057 = vadd.f32 %v265, %v921
  %v2058 = vadd.f32 %v266, %v930
  %v2059 = vadd.f32 %v267, %v939
  %v2060 = vadd.f32 %v268, %v948
  %v2061 = vadd.f32 %v269, %v957
  %v2062 = vadd.f32 %v270, %v966
  %v2063 = vadd.f32 %v271, %v975
  %v2064 = vadd.f32 %v272, %v984
  %v2065 = vadd.f32 %v273, %v993
  %v2066 = vadd.f32 %v274, %v1002
  %v2067 = vadd.f32 %v275, %v1011
  %v2068 = vadd.f32 %v276, %v1020
  %v2069 = vadd.f32 %v277, %v1029
  %v2070 = vadd.f32 %v278, %v1038
  %v2071 = vadd.f32 %v279, %v1047
  %v2072 = vadd.f32 %v280, %v1056
  %v2073 = vadd.f32 %v281, %v1065
  %v2074 = vadd.f32 %v282, %v1074
  %v2075 = vadd.f32 %v283, %v1083
  %v2076 = vadd.f32 %v284, %v1092
  %v2077 = vadd.f32 %v285, %v1101
  %v2078 = vadd.f32 %v286, %v1110
  %v2079 = vadd.f32 %v287, %v1119
  %v2080 = vadd.f32 %v288, %v1128
  %v2081 = vadd.f32 %v289, %v1137
  %v2082 = vadd.f32 %v290, %v1146
  %v2083 = vadd.f32 %v291, %v1155
  %v2084 = vadd.f32 %v292, %v1164
  %v2085 = vadd.f32 %v293, %v1173
  %v2086 = vadd.f32 %v294, %v1182
  %v2087 = vadd.f32 %v295, %v1191
  %v2088 = vadd.f32 %v296, %v1200
  %v2089 = vadd.f32 %v297, %v1209
  %v2090 = vadd.f32 %v298, %v1218
  %v2091 = vadd.f32 %v299, %v1227
  %v2092 = vadd.f32 %v300, %v1236
  %v2093 = vadd.f32 %v301, %v1245
  %v2094 = vadd.f32 %v302, %v1254
  %v2095 = vadd.f32 %v303, %v1263
  %v2096 = vadd.f32 %v304, %v1272
  %v2097 = vadd.f32 %v305, %v1281
  %v2098 = vadd.f32 %v306, %v1290
  %v2099 = vadd.f32 %v307, %v1299
  %v2100 = vadd.f32 %v308, %v1308
  %v2101 = vadd.f32 %v309, %v1317
  %v2102 = vadd.f32 %v310, %v1326
  %v2103 = vadd.f32 %v311, %v1335
  %v2104 = vadd.f32 %v312, %v1344
  %v2105 = vadd.f32 %v313, %v1353
  %v2106 = vadd.f32 %v314, %v1362
  %v2107 = vadd.f32 %v315, %v1371
  %v2108 = vadd.f32 %v316, %v1380
  %v2109 = vadd.f32 %v317, %v1389
  %v2110 = vadd.f32 %v318, %v1398
  %v2111 = vadd.f32 %v319, %v1407
  %v2112 = vadd.f32 %v320, %v1416
  %v2113 = vadd.f32 %v321, %v1425
  %v2114 = vadd.f32 %v322, %v1434
  %v2115 = vadd.f32 %v323, %v1443
  %v2116 = vadd.f32 %v324, %v1452
  %v2117 = vadd.f32 %v325, %v1461
  %v2118 = vadd.f32 %v326, %v1470
  %v2119 = vadd.f32 %v327, %v1479
  %v2120 = vadd.f32 %v328, %v1488
  %v2121 = vadd.f32 %v329, %v1497
  %v2122 = vadd.f32 %v330, %v1506
  %v2123 = vadd.f32 %v331, %v1515
  %v2124 = vadd.f32 %v332, %v1524
  %v2125 = vadd.f32 %v333, %v1533
  %v2126 = vadd.f32 %v334, %v1542
  %v2127 = vadd.f32 %v335, %v1551
  %v2128 = vadd.f32 %v336, %v1560
  %v2129 = vadd.f32 %v337, %v1569
  %v2130 = vadd.f32 %v338, %v1578
  %v2131 = vadd.f32 %v339, %v1587
  %v2132 = vadd.f32 %v340, %v1596
  %v2133 = vadd.f32 %v341, %v1605
  %v2134 = vadd.f32 %v342, %v1614
  %v2135 = vadd.f32 %v343, %v1623
  %v2136 = vadd.f32 %v344, %v1632
  %v2137 = vadd.f32 %v345, %v1641
  %v2138 = vadd.f32 %v346, %v1650
  %v2139 = vadd.f32 %v347, %v1659
  %v2140 = vadd.f32 %v348, %v1668
  %v2141 = vadd.f32 %v349, %v1677
  %v2142 = vadd.f32 %v350, %v1686
  %v2143 = vadd.f32 %v351, %v1695
  %v2144 = vadd.f32 %v352, %v1704
  %v2145 = vadd.f32 %v353, %v1713
  %v2146 = vadd.f32 %v354, %v1722
  %v2147 = vadd.f32 %v355, %v1731
  %v2148 = vadd.f32 %v356, %v1740
  %v2149 = vadd.f32 %v357, %v1749
  %v2150 = vadd.f32 %v358, %v1758
  %v2151 = vadd.f32 %v359, %v1767
  %v2152 = vadd.f32 %v360, %v1776
  %v2153 = vadd.f32 %v361, %v1785
  %v2154 = vadd.f32 %v362, %v1794
  %v2155 = vadd.f32 %v363, %v1803
  %v2156 = vadd.f32 %v364, %v1812
  %v2157 = vadd.f32 %v365, %v1821
  %v2158 = vadd.f32 %v366, %v1830
  %v2159 = vadd.f32 %v367, %v1839
  %v2160 = vadd.f32 %v368, %v1848
  %v2161 = vadd.f32 %v369, %v1857
  %v2162 = vadd.f32 %v370, %v1866
  %v2163 = vadd.f32 %v371, %v1875
  %v2164 = vadd.f32 %v372, %v1884
  %v2165 = vadd.f32 %v373, %v1893
  %v2166 = vadd.f32 %v374, %v1902
  %v2167 = vadd.f32 %v375, %v1911
  %v2168 = vadd.f32 %v376, %v1920
  %v2169 = vadd.f32 %v377, %v1929
  %v2170 = vadd.f32 %v378, %v1938
  %v2171 = vadd.f32 %v379, %v1947
  %v2172 = vadd.f32 %v380, %v1956
  %v2173 = vadd.f32 %v381, %v1965
  %v2174 = vadd.f32 %v382, %v1974
  %v2175 = vadd.f32 %v383, %v1983
  %v2176 = vadd.f32 %v384, %v1992
  %v2177 = vadd.f32 %v385, %v2001
  %v2178 = vadd.f32 %v386, %v2010
  %v2179 = vadd.f32 %v387, %v2019
  %v2180 = vadd.f32 %v388, %v2028
  %v2181 = vadd.f32 %v389, %v2037
  %v2182 = vadd.f32 %v390, %v2046
  %v2183 = vadd.f32 %v391, %v2055
  %v2184 = vadd.f32 %v2056, %v2060
  %v2185 = vadd.f32 %v2184, %v2064
  %v2186 = vadd.f32 %v2185, %v2068
  %v2187 = vadd.f32 %v2186, %v2072
  %v2188 = vadd.f32 %v2187, %v2076
  %v2189 = vadd.f32 %v2188, %v2080
  %v2190 = vadd.f32 %v2189, %v2084
  %v2191 = vadd.f32 %v2190, %v2088
  %v2192 = vadd.f32 %v2191, %v2092
  %v2193 = vadd.f32 %v2192, %v2096
  %v2194 = vadd.f32 %v2193, %v2100
  %v2195 = vadd.f32 %v2194, %v2104
  %v2196 = vadd.f32 %v2195, %v2108
  %v2197 = vadd.f32 %v2196, %v2112
  %v2198 = vadd.f32 %v2197, %v2116
  %v2199 = vadd.f32 %v2198, %v2120
  %v2200 = vadd.f32 %v2199, %v2124
  %v2201 = vadd.f32 %v2200, %v2128
  %v2202 = vadd.f32 %v2201, %v2132
  %v2203 = vadd.f32 %v2202, %v2136
  %v2204 = vadd.f32 %v2203, %v2140
  %v2205 = vadd.f32 %v2204, %v2144
  %v2206 = vadd.f32 %v2205, %v2148
  %v2207 = vadd.f32 %v2206, %v2152
  %v2208 = vadd.f32 %v2207, %v2156
  %v2209 = vadd.f32 %v2208, %v2160
  %v2210 = vadd.f32 %v2209, %v2164
  %v2211 = vadd.f32 %v2210, %v2168
  %v2212 = vadd.f32 %v2211, %v2172
  %v2213 = vadd.f32 %v2212, %v2176
  %v2214 = vadd.f32 %v2213, %v2180
  %v2215 = vrot.slane %v2214, 4
  %v2216 = vadd.f32 %v2214, %v2215
  %v2217 = vrot.slane %v2216, 2
  %v2218 = vadd.f32 %v2216, %v2217
  %v2219 = vrot.slane %v2218, 1
  %v2220 = vadd.f32 %v2218, %v2219
  %v2221 = vadd.f32 %v2057, %v2061
  %v2222 = vadd.f32 %v2221, %v2065
  %v2223 = vadd.f32 %v2222, %v2069
  %v2224 = vadd.f32 %v2223, %v2073
  %v2225 = vadd.f32 %v2224, %v2077
  %v2226 = vadd.f32 %v2225, %v2081
  %v2227 = vadd.f32 %v2226, %v2085
  %v2228 = vadd.f32 %v2227, %v2089
  %v2229 = vadd.f32 %v2228, %v2093
  %v2230 = vadd.f32 %v2229, %v2097
  %v2231 = vadd.f32 %v2230, %v2101
  %v2232 = vadd.f32 %v2231, %v2105
  %v2233 = vadd.f32 %v2232, %v2109
  %v2234 = vadd.f32 %v2233, %v2113
  %v2235 = vadd.f32 %v2234, %v2117
  %v2236 = vadd.f32 %v2235, %v2121
  %v2237 = vadd.f32 %v2236, %v2125
  %v2238 = vadd.f32 %v2237, %v2129
  %v2239 = vadd.f32 %v2238, %v2133
  %v2240 = vadd.f32 %v2239, %v2137
  %v2241 = vadd.f32 %v2240, %v2141
  %v2242 = vadd.f32 %v2241, %v2145
  %v2243 = vadd.f32 %v2242, %v2149
  %v2244 = vadd.f32 %v2243, %v2153
  %v2245 = vadd.f32 %v2244, %v2157
  %v2246 = vadd.f32 %v2245, %v2161
  %v2247 = vadd.f32 %v2246, %v2165
  %v2248 = vadd.f32 %v2247, %v2169
  %v2249 = vadd.f32 %v2248, %v2173
  %v2250 = vadd.f32 %v2249, %v2177
  %v2251 = vadd.f32 %v2250, %v2181
  %v2252 = vrot.slane %v2251, 4
  %v2253 = vadd.f32 %v2251, %v2252
  %v2254 = vrot.slane %v2253, 2
  %v2255 = vadd.f32 %v2253, %v2254
  %v2256 = vrot.slane %v2255, 1
  %v2257 = vadd.f32 %v2255, %v2256
  %v2258 = vadd.f32 %v2058, %v2062
  %v2259 = vadd.f32 %v2258, %v2066
  %v2260 = vadd.f32 %v2259, %v2070
  %v2261 = vadd.f32 %v2260, %v2074
  %v2262 = vadd.f32 %v2261, %v2078
  %v2263 = vadd.f32 %v2262, %v2082
  %v2264 = vadd.f32 %v2263, %v2086
  %v2265 = vadd.f32 %v2264, %v2090
  %v2266 = vadd.f32 %v2265, %v2094
  %v2267 = vadd.f32 %v2266, %v2098
  %v2268 = vadd.f32 %v2267, %v2102
  %v2269 = vadd.f32 %v2268, %v2106
  %v2270 = vadd.f32 %v2269, %v2110
  %v2271 = vadd.f32 %v2270, %v2114
  %v2272 = vadd.f32 %v2271, %v2118
  %v2273 = vadd.f32 %v2272, %v2122
  %v2274 = vadd.f32 %v2273, %v2126
  %v2275 = vadd.f32 %v2274, %v2130
  %v2276 = vadd.f32 %v2275, %v2134
  %v2277 = vadd.f32 %v2276, %v2138
  %v2278 = vadd.f32 %v2277, %v2142
  %v2279 = vadd.f32 %v2278, %v2146
  %v2280 = vadd.f32 %v2279, %v2150
  %v2281 = vadd.f32 %v2280, %v2154
  %v2282 = vadd.f32 %v2281, %v2158
  %v2283 = vadd.f32 %v2282, %v2162
  %v2284 = vadd.f32 %v2283, %v2166
  %v2285 = vadd.f32 %v2284, %v2170
  %v2286 = vadd.f32 %v2285, %v2174
  %v2287 = vadd.f32 %v2286, %v2178
  %v2288 = vadd.f32 %v2287, %v2182
  %v2289 = vrot.slane %v2288, 4
  %v2290 = vadd.f32 %v2288, %v2289
  %v2291 = vrot.slane %v2290, 2
  %v2292 = vadd.f32 %v2290, %v2291
  %v2293 = vrot.slane %v2292, 1
  %v2294 = vadd.f32 %v2292, %v2293
  %v2295 = vadd.f32 %v2059, %v2063
  %v2296 = vadd.f32 %v2295, %v2067
  %v2297 = vadd.f32 %v2296, %v2071
  %v2298 = vadd.f32 %v2297, %v2075
  %v2299 = vadd.f32 %v2298, %v2079
  %v2300 = vadd.f32 %v2299, %v2083
  %v2301 = vadd.f32 %v2300, %v2087
  %v2302 = vadd.f32 %v2301, %v2091
  %v2303 = vadd.f32 %v2302, %v2095
  %v2304 = vadd.f32 %v2303, %v2099
  %v2305 = vadd.f32 %v2304, %v2103
  %v2306 = vadd.f32 %v2305, %v2107
  %v2307 = vadd.f32 %v2306, %v2111
  %v2308 = vadd.f32 %v2307, %v2115
  %v2309 = vadd.f32 %v2308, %v2119
  %v2310 = vadd.f32 %v2309, %v2123
  %v2311 = vadd.f32 %v2310, %v2127
  %v2312 = vadd.f32 %v2311, %v2131
  %v2313 = vadd.f32 %v2312, %v2135
  %v2314 = vadd.f32 %v2313, %v2139
  %v2315 = vadd.f32 %v2314, %v2143
  %v2316 = vadd.f32 %v2315, %v2147
  %v2317 = vadd.f32 %v2316, %v2151
  %v2318 = vadd.f32 %v2317, %v2155
  %v2319 = vadd.f32 %v2318, %v2159
  %v2320 = vadd.f32 %v2319, %v2163
  %v2321 = vadd.f32 %v2320, %v2167
  %v2322 = vadd.f32 %v2321, %v2171
  %v2323 = vadd.f32 %v2322, %v2175
  %v2324 = vadd.f32 %v2323, %v2179
  %v2325 = vadd.f32 %v2324, %v2183
  %v2326 = vrot.slane %v2325, 4
  %v2327 = vadd.f32 %v2325, %v2326
  %v2328 = vrot.slane %v2327, 2
  %v2329 = vadd.f32 %v2327, %v2328
  %v2330 = vrot.slane %v2329, 1
  %v2331 = vadd.f32 %v2329, %v2330
  %v2336 = vcombine.low %v2220, %v2257
  %v2337 = vcombine.low %v2294, %v2331
  %v2339 = vunpack.c.l.s4 1966171168
  %v2340 = vunpack.c.0.s8 %v2339
  %v2341 = vlaneseq
  %v2342 = vshrl.u32 %v2341, 7
  %v2343 = vsub.s32 %v2340, %v2342
  %v2344 = vrot.slane %v2336, %v2343
  %v2346 = vunpack.c.l.s4 1966171168
  %v2347 = vunpack.c.0.s8 %v2346
  %v2348 = vlaneseq
  %v2349 = vshrl.u32 %v2348, 7
  %v2350 = vsub.s32 %v2347, %v2349
  %v2351 = vrot.slane %v2337, %v2350
  %v2352 = vcombine.low %v2344, %v2351
  %v2354 = vunpack.c.l.s4 1966171168
  %v2355 = vunpack.c.0.s8 %v2354
  %v2356 = vlaneseq
  %v2357 = vshrl.u32 %v2356, 7
  %v2358 = vsub.s32 %v2355, %v2357
  %v2359 = vrot.slane %v2352, %v2358
  %v2361 = vlaneseq
  %vm2362 = vcmp.ge.s32.totalorder %v2361, 0
  %vm2363 = vcmp.lt.s32.totalorder %v2361, 512
  %vm2364 = vmand %vm2362, %vm2363
  %2365 = vst.msk [vmem:[%s1] sm:$0xf] %vm2364, %v2359
  // Predicated region
  $region6: #{gen_loss.2} parent=0 // pred_check
    _
  $region7: #{gen_loss.2} parent=0 // pred_check_branch
    %2367 = sbr.rel (0) target = $region9
  $region8: #{gen_loss.2} parent=0 // pred_region
    _
  $region9: #{gen_loss.2} parent=0 // pred_fallthru
    _
  // Predicated region
  $region10: #{gen_loss.2} parent=0 // pred_check
    _
  $region11: #{gen_loss.2} parent=0 // pred_check_branch
    %2369 = sbr.rel (0) target = $region13
  $region12: #{gen_loss.2} parent=0 // pred_region
    _
  $region13: #{gen_loss.2} parent=0 // pred_fallthru
    _

// kernel: gen_loss.3
$region0: #{gen_loss.3}
  #allocation0 [shape = 'u32[]', space=smem, size = 0x4, offset = 0x4, fixed_abs, tag = 'smem constant byte address 0x4 - core index']
  #allocation1 [shape = 'u32[144,128]{1,0:T(1,128)}', space=vmem, size = 0x12000, scoped, tag = 'internal scratch']
  %s0 = inlined_call_operand.vmem [shape: f32[234,512], index: 0, kind: input, shape index: {}]
  %s1 = inlined_call_operand.vmem [shape: f32[234,512], index: 1, kind: input, shape index: {}]
  %s2 = inlined_call_operand.vmem [shape: f32[2,1,512], index: 2, kind: output, shape index: {0}]
  %s3 = inlined_call_operand.vmem [shape: f32[2,1,512], index: 3, kind: output, shape index: {1}]
  %s4 = inlined_call_operand.vmem [shape: f32[2,1,512], index: 4, kind: output, shape index: {2}]
  %s5 = inlined_call_operand.vmem [shape: f32[2,1,512], index: 5, kind: output, shape index: {3}]
  %6 = xla_tuple %s2, %s3, %s4, %s5
  %s7 = sld [smem:[#allocation0]]
  $region73: #{gen_loss.3} parent=0
    _
  %s9 = ssub.s32 1, %s7
  %s10 = scalar_select 0, %s9, %s7
  loop: start=0, step=1, limit=4
  $region2: #{gen_loss.3} parent=0 // loop_pre_header
    _
  $region3: #{gen_loss.3} parent=0 // loop_header
    %s12 = sphi 0, %s16
    %p13 = scmp.ge.s32.totalorder %s12, 4
    %s22 = sphi 0, %s24
    %s25 = sphi 0, %s22
    %s26 = sphi 0, %s25
    %s42 = sphi 0, %s26
    %s48 = sphi 0, %s50
    %s51 = sphi 0, %s48
    %s52 = sphi 0, %s51
    %s68 = sphi 0, %s52
    %s74 = sphi 0, %s76
    %s77 = sphi 0, %s74
    %s78 = sphi 0, %s77
    %s94 = sphi 0, %s78
    %s100 = sphi 0, %s102
    %s103 = sphi 0, %s100
    %s104 = sphi 0, %s103
    %s120 = sphi 0, %s104
    %s126 = sphi 0, %s128
    %s129 = sphi 0, %s126
    %s130 = sphi 0, %s129
    %s146 = sphi 0, %s130
    %s152 = sphi 0, %s154
    %s155 = sphi 0, %s152
    %s156 = sphi 0, %s155
    %s172 = sphi 0, %s156
  $region4: #{gen_loss.3} parent=0 // loop_header_branch
    %15 = sbr.rel (%p13) target = $region8
  $region5: #{gen_loss.3} parent=0 // loop_body
    %s17 = ssub.s32 %s12, 1
    %s18 = ssub.s32 %s12, 2
    %s19 = sadd.s32 %s12, 1
    %s20 = ssub.s32 %s12, %s19
    %p21 = scmp.eq.s32.totalorder %s20, 0
    %s23 = sadd.s32 %s22, 1
    %s24 = scalar_select %p21, %s22, %s23
    %p27 = pneg %p21
    %p28 = scmp.eq.s32.totalorder %s12, 1
    %p29 = por %p27, %p28
    %p30 = scmp.ne.s32.totalorder %s22, %s25
    %p31 = scmp.eq.s32.totalorder %s12, 0
    %p32 = por %p30, %p31
    %p33 = scmp.ne.s32.totalorder %s22, %s25
    %p34 = scmp.eq.s32.totalorder %s17, 1
    %p35 = por %p33, %p34
    %p36 = scmp.ne.s32.totalorder %s25, %s26
    %p37 = scmp.eq.s32.totalorder %s17, 0
    %p38 = por %p36, %p37
    %p39 = scmp.ne.s32.totalorder %s25, %s26
    %p40 = scmp.eq.s32.totalorder %s18, 1
    %p41 = por %p39, %p40
    %p43 = scmp.ne.s32.totalorder %s26, %s42
    %p44 = scmp.eq.s32.totalorder %s18, 0
    %p45 = por %p43, %p44
    %s46 = ssub.s32 %s12, %s19
    %p47 = scmp.eq.s32.totalorder %s46, 0
    %s49 = sadd.s32 %s48, 1
    %s50 = scalar_select %p47, %s48, %s49
    %p53 = pneg %p47
    %p54 = scmp.eq.s32.totalorder %s12, 1
    %p55 = por %p53, %p54
    %p56 = scmp.ne.s32.totalorder %s48, %s51
    %p57 = scmp.eq.s32.totalorder %s12, 0
    %p58 = por %p56, %p57
    %p59 = scmp.ne.s32.totalorder %s48, %s51
    %p60 = scmp.eq.s32.totalorder %s17, 1
    %p61 = por %p59, %p60
    %p62 = scmp.ne.s32.totalorder %s51, %s52
    %p63 = scmp.eq.s32.totalorder %s17, 0
    %p64 = por %p62, %p63
    %p65 = scmp.ne.s32.totalorder %s51, %s52
    %p66 = scmp.eq.s32.totalorder %s18, 1
    %p67 = por %p65, %p66
    %p69 = scmp.ne.s32.totalorder %s52, %s68
    %p70 = scmp.eq.s32.totalorder %s18, 0
    %p71 = por %p69, %p70
    %s72 = ssub.s32 %s12, %s19
    %p73 = scmp.eq.s32.totalorder %s72, 0
    %s75 = sadd.s32 %s74, 1
    %s76 = scalar_select %p73, %s74, %s75
    %p79 = pneg %p73
    %p80 = scmp.eq.s32.totalorder %s12, 1
    %p81 = por %p79, %p80
    %p82 = scmp.ne.s32.totalorder %s74, %s77
    %p83 = scmp.eq.s32.totalorder %s12, 0
    %p84 = por %p82, %p83
    %p85 = scmp.ne.s32.totalorder %s74, %s77
    %p86 = scmp.eq.s32.totalorder %s17, 1
    %p87 = por %p85, %p86
    %p88 = scmp.ne.s32.totalorder %s77, %s78
    %p89 = scmp.eq.s32.totalorder %s17, 0
    %p90 = por %p88, %p89
    %p91 = scmp.ne.s32.totalorder %s77, %s78
    %p92 = scmp.eq.s32.totalorder %s18, 1
    %p93 = por %p91, %p92
    %p95 = scmp.ne.s32.totalorder %s78, %s94
    %p96 = scmp.eq.s32.totalorder %s18, 0
    %p97 = por %p95, %p96
    %s98 = ssub.s32 %s12, %s19
    %p99 = scmp.eq.s32.totalorder %s98, 0
    %s101 = sadd.s32 %s100, 1
    %s102 = scalar_select %p99, %s100, %s101
    %p105 = pneg %p99
    %p106 = scmp.eq.s32.totalorder %s12, 1
    %p107 = por %p105, %p106
    %p108 = scmp.ne.s32.totalorder %s100, %s103
    %p109 = scmp.eq.s32.totalorder %s12, 0
    %p110 = por %p108, %p109
    %p111 = scmp.ne.s32.totalorder %s100, %s103
    %p112 = scmp.eq.s32.totalorder %s17, 1
    %p113 = por %p111, %p112
    %p114 = scmp.ne.s32.totalorder %s103, %s104
    %p115 = scmp.eq.s32.totalorder %s17, 0
    %p116 = por %p114, %p115
    %p117 = scmp.ne.s32.totalorder %s103, %s104
    %p118 = scmp.eq.s32.totalorder %s18, 1
    %p119 = por %p117, %p118
    %p121 = scmp.ne.s32.totalorder %s104, %s120
    %p122 = scmp.eq.s32.totalorder %s18, 0
    %p123 = por %p121, %p122
    %s124 = ssub.s32 %s12, %s19
    %p125 = scmp.eq.s32.totalorder %s124, 0
    %s127 = sadd.s32 %s126, 1
    %s128 = scalar_select %p125, %s126, %s127
    %p131 = pneg %p125
    %p132 = scmp.eq.s32.totalorder %s12, 1
    %p133 = por %p131, %p132
    %p134 = scmp.ne.s32.totalorder %s126, %s129
    %p135 = scmp.eq.s32.totalorder %s12, 0
    %p136 = por %p134, %p135
    %p137 = scmp.ne.s32.totalorder %s126, %s129
    %p138 = scmp.eq.s32.totalorder %s17, 1
    %p139 = por %p137, %p138
    %p140 = scmp.ne.s32.totalorder %s129, %s130
    %p141 = scmp.eq.s32.totalorder %s17, 0
    %p142 = por %p140, %p141
    %p143 = scmp.ne.s32.totalorder %s129, %s130
    %p144 = scmp.eq.s32.totalorder %s18, 1
    %p145 = por %p143, %p144
    %p147 = scmp.ne.s32.totalorder %s130, %s146
    %p148 = scmp.eq.s32.totalorder %s18, 0
    %p149 = por %p147, %p148
    %s150 = ssub.s32 %s12, %s19
    %p151 = scmp.eq.s32.totalorder %s150, 0
    %s153 = sadd.s32 %s152, 1
    %s154 = scalar_select %p151, %s152, %s153
    %p157 = pneg %p151
    %p158 = scmp.eq.s32.totalorder %s12, 1
    %p159 = por %p157, %p158
    %p160 = scmp.ne.s32.totalorder %s152, %s155
    %p161 = scmp.eq.s32.totalorder %s12, 0
    %p162 = por %p160, %p161
    %p163 = scmp.ne.s32.totalorder %s152, %s155
    %p164 = scmp.eq.s32.totalorder %s17, 1
    %p165 = por %p163, %p164
    %p166 = scmp.ne.s32.totalorder %s155, %s156
    %p167 = scmp.eq.s32.totalorder %s17, 0
    %p168 = por %p166, %p167
    %p169 = scmp.ne.s32.totalorder %s155, %s156
    %p170 = scmp.eq.s32.totalorder %s18, 1
    %p171 = por %p169, %p170
    %p173 = scmp.ne.s32.totalorder %s156, %s172
    %p174 = scmp.eq.s32.totalorder %s18, 0
    %p175 = por %p173, %p174
    %p176 = scmp.le.s32.totalorder 1, %s12
    %p177 = scmp.lt.s32.totalorder %s12, 3
    %p178 = pnand %p176, %p177
    %p179 = pneg %p178
    // Predicated region
    $region9: #{gen_loss.3} parent=5 // pred_check
      _
    $region10: #{gen_loss.3} parent=5 // pred_check_branch
      %181 = sbr.rel (%p178) target = $region12
    $region11: #{gen_loss.3} parent=5 // pred_region
      %s182 = ssub.s32 %s12, 1
    $region12: #{gen_loss.3} parent=5 // pred_fallthru
      _
    %p183 = scmp.lt.s32.totalorder %s12, 2
    // Predicated region
    $region13: #{gen_loss.3} parent=5 // pred_check
      %p184 = pneg %p183
    $region14: #{gen_loss.3} parent=5 // pred_check_branch
      %186 = sbr.rel (%p184) target = $region16
    $region15: #{gen_loss.3} parent=5 // pred_region
      // Predicated region
      $region17: #{gen_loss.3} parent=15 // pred_check
        %p187 = pneg %p32
      $region18: #{gen_loss.3} parent=15 // pred_check_branch
        %189 = sbr.rel (%p187) target = $region20
      $region19: #{gen_loss.3} parent=15 // pred_region
        %s190 = smul.u32 28, %s12
        %s191 = ssub.s32 30, %s190
        %p192 = scmp.lt.s32.totalorder %s191, 28
        %s193 = scalar_select %p192, %s191, 28
        %s194 = smul.u32 128, %s193
        %s195 = smul.u32 %s194, 4
        %p196 = scmp.lt.s32.totalorder %s190, 29
        %s197 = scalar_select %p196, %s190, 29
        %s198 = smul.addr %s197, 4
        %s199 = smul.addr %s198, 8
        %s200 = scalar_lea.vmem %s0, %s199
        %s201 = smul.u32 28, %s12
        %s202 = ssub.s32 30, %s201
        %p203 = scmp.lt.s32.totalorder %s202, 28
        %s204 = scalar_select %p203, %s202, 28
        %s205 = smul.u32 128, %s204
        %s206 = smul.u32 %s205, 4
      $region20: #{gen_loss.3} parent=15 // pred_fallthru
        _
      // Predicated region
      $region21: #{gen_loss.3} parent=15 // pred_check
        %p207 = pneg %p58
      $region22: #{gen_loss.3} parent=15 // pred_check_branch
        %209 = sbr.rel (%p207) target = $region24
      $region23: #{gen_loss.3} parent=15 // pred_region
        %s210 = smul.u32 28, %s12
        %s211 = ssub.s32 30, %s210
        %p212 = scmp.lt.s32.totalorder %s211, 28
        %s213 = scalar_select %p212, %s211, 28
        %s214 = smul.u32 128, %s213
        %s215 = smul.u32 %s214, 4
        %p216 = scmp.lt.s32.totalorder %s210, 29
        %s217 = scalar_select %p216, %s210, 29
        %s218 = smul.addr %s217, 4
        %s219 = smul.addr %s218, 8
        %s220 = scalar_lea.vmem %s1, %s219
        %s221 = smul.u32 28, %s12
        %s222 = ssub.s32 30, %s221
        %p223 = scmp.lt.s32.totalorder %s222, 28
        %s224 = scalar_select %p223, %s222, 28
        %s225 = smul.u32 128, %s224
        %s226 = smul.u32 %s225, 4
      $region24: #{gen_loss.3} parent=15 // pred_fallthru
        _
    $region16: #{gen_loss.3} parent=5 // pred_fallthru
      _
    %p227 = scmp.le.s32.totalorder 1, %s12
    %p228 = scmp.lt.s32.totalorder %s12, 3
    %p229 = pnand %p227, %p228
    %p230 = pneg %p229
    // Predicated region
    $region25: #{gen_loss.3} parent=5 // pred_check
      _
    $region26: #{gen_loss.3} parent=5 // pred_check_branch
      %232 = sbr.rel (%p229) target = $region28
    $region27: #{gen_loss.3} parent=5 // pred_region
      %s233 = ssub.s32 %s12, 1
      %s234 = smul.u32 28, %s17
      %s235 = ssub.s32 30, %s234
      %p236 = scmp.lt.s32.totalorder %s235, 28
      %s237 = scalar_select %p236, %s235, 28
      %s238 = smul.u32 128, %s237
      %s239 = smul.u32 %s238, 4
      %p240 = scmp.lt.s32.totalorder %s234, 29
      %s241 = scalar_select %p240, %s234, 29
      %s242 = smul.addr %s241, 4
      %s243 = smul.addr %s242, 8
      %s244 = scalar_lea.vmem %s0, %s243
      %p245 = pneg %p38
      %p246 = pneg %p35
      %s247 = smul.u32 28, %s17
      %s248 = ssub.s32 30, %s247
      %p249 = scmp.lt.s32.totalorder %s248, 28
      %s250 = scalar_select %p249, %s248, 28
      %s251 = smul.u32 128, %s250
      %s252 = smul.u32 %s251, 4
      %p253 = scmp.lt.s32.totalorder %s247, 29
      %s254 = scalar_select %p253, %s247, 29
      %s255 = smul.addr %s254, 4
      %s256 = smul.addr %s255, 8
      %s257 = scalar_lea.vmem %s1, %s256
      %p258 = pneg %p64
      %p259 = pneg %p61
      %p260 = pneg %p90
      %p261 = pneg %p87
      %p262 = scmp.lt.s32.totalorder %s17, 1
      %s263 = scalar_select %p262, %s17, 1
      %s264 = smul.addr %s263, 4
      %s265 = scalar_lea.vmem %s2, %s264
      %p266 = pneg %p116
      %p267 = pneg %p113
      %p268 = scmp.lt.s32.totalorder %s17, 1
      %s269 = scalar_select %p268, %s17, 1
      %s270 = smul.addr %s269, 4
      %s271 = scalar_lea.vmem %s3, %s270
      %p272 = pneg %p142
      %p273 = pneg %p139
      %p274 = scmp.lt.s32.totalorder %s17, 1
      %s275 = scalar_select %p274, %s17, 1
      %s276 = smul.addr %s275, 4
      %s277 = scalar_lea.vmem %s4, %s276
      %p278 = pneg %p168
      %p279 = pneg %p165
      %p280 = scmp.lt.s32.totalorder %s17, 1
      %s281 = scalar_select %p280, %s17, 1
      %s282 = smul.addr %s281, 4
      %s283 = scalar_lea.vmem %s5, %s282
      %s284 = smul.u32 28, %s17
      %s285 = ssub.s32 30, %s284
      %p286 = scmp.lt.s32.totalorder %s285, 28
      %s287 = scalar_select %p286, %s285, 28
      %s288 = smul.u32 128, %s287
      %s289 = smul.u32 %s288, 4
      %p290 = scmp.lt.s32.totalorder %s284, 29
      %s291 = scalar_select %p290, %s284, 29
      %s292 = smul.addr %s291, 4
      %s293 = smul.addr %s292, 8
      %s294 = scalar_lea.vmem %s0, %s293
      %s295 = smul.u32 28, %s17
      %s296 = ssub.s32 30, %s295
      %p297 = scmp.lt.s32.totalorder %s296, 28
      %s298 = scalar_select %p297, %s296, 28
      %s299 = smul.u32 128, %s298
      %s300 = smul.u32 %s299, 4
      %s301 = smul.u32 28, %s17
      %s302 = ssub.s32 30, %s301
      %p303 = scmp.lt.s32.totalorder %s302, 28
      %s304 = scalar_select %p303, %s302, 28
      %s305 = smul.u32 128, %s304
      %s306 = smul.u32 %s305, 4
      %p307 = scmp.lt.s32.totalorder %s301, 29
      %s308 = scalar_select %p307, %s301, 29
      %s309 = smul.addr %s308, 4
      %s310 = smul.addr %s309, 8
      %s311 = scalar_lea.vmem %s1, %s310
      %s312 = smul.u32 28, %s17
      %s313 = ssub.s32 30, %s312
      %p314 = scmp.lt.s32.totalorder %s313, 28
      %s315 = scalar_select %p314, %s313, 28
      %s316 = smul.u32 128, %s315
      %s317 = smul.u32 %s316, 4
      %p318 = scmp.lt.s32.totalorder %s17, 1
      %s319 = scalar_select %p318, %s17, 1
      %s320 = smul.addr %s319, 4
      %s321 = scalar_lea.vmem %s2, %s320
      %p322 = scmp.lt.s32.totalorder %s17, 1
      %s323 = scalar_select %p322, %s17, 1
      %s324 = smul.addr %s323, 4
      %s325 = scalar_lea.vmem %s3, %s324
      %p326 = scmp.lt.s32.totalorder %s17, 1
      %s327 = scalar_select %p326, %s17, 1
      %s328 = smul.addr %s327, 4
      %s329 = scalar_lea.vmem %s4, %s328
      %p330 = scmp.lt.s32.totalorder %s17, 1
      %s331 = scalar_select %p330, %s17, 1
      %s332 = smul.addr %s331, 4
      %s333 = scalar_lea.vmem %s5, %s332
      %v334 = vld [vmem:[%s294] sm:$0xff]
      %v335 = vld [vmem:[%s294 + $0x8] sm:$0xff]
      %v336 = vld [vmem:[%s294 + $0x10] sm:$0xff]
      %v337 = vld [vmem:[%s294 + $0x18] sm:$0xff]
      %v338 = vld [vmem:[%s294 + $0x20] sm:$0xff]
      %v339 = vld [vmem:[%s294 + $0x28] sm:$0xff]
      %v340 = vld [vmem:[%s294 + $0x30] sm:$0xff]
      %v341 = vld [vmem:[%s294 + $0x38] sm:$0xff]
      %v342 = vld [vmem:[%s294 + $0x40] sm:$0xff]
      %v343 = vld [vmem:[%s294 + $0x48] sm:$0xff]
      %v344 = vld [vmem:[%s294 + $0x50] sm:$0xff]
      %v345 = vld [vmem:[%s294 + $0x58] sm:$0xff]
      %v346 = vld [vmem:[%s294 + $0x60] sm:$0xff]
      %v347 = vld [vmem:[%s294 + $0x68] sm:$0xff]
      %v348 = vld [vmem:[%s294 + $0x70] sm:$0xff]
      %v349 = vld [vmem:[%s294 + $0x78] sm:$0xff]
      %v350 = vld [vmem:[%s294 + $0x80] sm:$0xff]
      %v351 = vld [vmem:[%s294 + $0x88] sm:$0xff]
      %v352 = vld [vmem:[%s294 + $0x90] sm:$0xff]
      %v353 = vld [vmem:[%s294 + $0x98] sm:$0xff]
      %v354 = vld [vmem:[%s294 + $0xa0] sm:$0xff]
      %v355 = vld [vmem:[%s294 + $0xa8] sm:$0xff]
      %v356 = vld [vmem:[%s294 + $0xb0] sm:$0xff]
      %v357 = vld [vmem:[%s294 + $0xb8] sm:$0xff]
      %v358 = vld [vmem:[%s294 + $0xc0] sm:$0xff]
      %v359 = vld [vmem:[%s294 + $0xc8] sm:$0xff]
      %v360 = vld [vmem:[%s294 + $0xd0] sm:$0xff]
      %v361 = vld [vmem:[%s294 + $0xd8] sm:$0xff]
      %v362 = vld [vmem:[%s294 + $0xe0] sm:$0xff]
      %v363 = vld [vmem:[%s294 + $0xe8] sm:$0xff]
      %v364 = vld [vmem:[%s294 + $0xf0] sm:$0xff]
      %v365 = vld [vmem:[%s294 + $0xf8] sm:$0xff]
      %v366 = vld [vmem:[%s294 + $0x100] sm:$0xff]
      %v367 = vld [vmem:[%s294 + $0x108] sm:$0xff]
      %v368 = vld [vmem:[%s294 + $0x110] sm:$0xff]
      %v369 = vld [vmem:[%s294 + $0x118] sm:$0xff]
      %v370 = vld [vmem:[%s294 + $0x120] sm:$0xff]
      %v371 = vld [vmem:[%s294 + $0x128] sm:$0xff]
      %v372 = vld [vmem:[%s294 + $0x130] sm:$0xff]
      %v373 = vld [vmem:[%s294 + $0x138] sm:$0xff]
      %v374 = vld [vmem:[%s294 + $0x140] sm:$0xff]
      %v375 = vld [vmem:[%s294 + $0x148] sm:$0xff]
      %v376 = vld [vmem:[%s294 + $0x150] sm:$0xff]
      %v377 = vld [vmem:[%s294 + $0x158] sm:$0xff]
      %v378 = vld [vmem:[%s294 + $0x160] sm:$0xff]
      %v379 = vld [vmem:[%s294 + $0x168] sm:$0xff]
      %v380 = vld [vmem:[%s294 + $0x170] sm:$0xff]
      %v381 = vld [vmem:[%s294 + $0x178] sm:$0xff]
      %v382 = vld [vmem:[%s294 + $0x180] sm:$0xff]
      %v383 = vld [vmem:[%s294 + $0x188] sm:$0xff]
      %v384 = vld [vmem:[%s294 + $0x190] sm:$0xff]
      %v385 = vld [vmem:[%s294 + $0x198] sm:$0xff]
      %v386 = vld [vmem:[%s294 + $0x1a0] sm:$0xff]
      %v387 = vld [vmem:[%s294 + $0x1a8] sm:$0xff]
      %v388 = vld [vmem:[%s294 + $0x1b0] sm:$0xff]
      %v389 = vld [vmem:[%s294 + $0x1b8] sm:$0xff]
      %v390 = vld [vmem:[%s294 + $0x1c0] sm:$0xff]
      %v391 = vld [vmem:[%s294 + $0x1c8] sm:$0xff]
      %v392 = vld [vmem:[%s294 + $0x1d0] sm:$0xff]
      %v393 = vld [vmem:[%s294 + $0x1d8] sm:$0xff]
      %v394 = vld [vmem:[%s294 + $0x1e0] sm:$0xff]
      %v395 = vld [vmem:[%s294 + $0x1e8] sm:$0xff]
      %v396 = vld [vmem:[%s294 + $0x1f0] sm:$0xff]
      %v397 = vld [vmem:[%s294 + $0x1f8] sm:$0xff]
      %v398 = vld [vmem:[%s294 + $0x200] sm:$0xff]
      %v399 = vld [vmem:[%s294 + $0x208] sm:$0xff]
      %v400 = vld [vmem:[%s294 + $0x210] sm:$0xff]
      %v401 = vld [vmem:[%s294 + $0x218] sm:$0xff]
      %v402 = vld [vmem:[%s294 + $0x220] sm:$0xff]
      %v403 = vld [vmem:[%s294 + $0x228] sm:$0xff]
      %v404 = vld [vmem:[%s294 + $0x230] sm:$0xff]
      %v405 = vld [vmem:[%s294 + $0x238] sm:$0xff]
      %v406 = vld [vmem:[%s294 + $0x240] sm:$0xff]
      %v407 = vld [vmem:[%s294 + $0x248] sm:$0xff]
      %v408 = vld [vmem:[%s294 + $0x250] sm:$0xff]
      %v409 = vld [vmem:[%s294 + $0x258] sm:$0xff]
      %v410 = vld [vmem:[%s294 + $0x260] sm:$0xff]
      %v411 = vld [vmem:[%s294 + $0x268] sm:$0xff]
      %v412 = vld [vmem:[%s294 + $0x270] sm:$0xff]
      %v413 = vld [vmem:[%s294 + $0x278] sm:$0xff]
      %v414 = vld [vmem:[%s294 + $0x280] sm:$0xff]
      %v415 = vld [vmem:[%s294 + $0x288] sm:$0xff]
      %v416 = vld [vmem:[%s294 + $0x290] sm:$0xff]
      %v417 = vld [vmem:[%s294 + $0x298] sm:$0xff]
      %v418 = vld [vmem:[%s294 + $0x2a0] sm:$0xff]
      %v419 = vld [vmem:[%s294 + $0x2a8] sm:$0xff]
      %v420 = vld [vmem:[%s294 + $0x2b0] sm:$0xff]
      %v421 = vld [vmem:[%s294 + $0x2b8] sm:$0xff]
      %v422 = vld [vmem:[%s294 + $0x2c0] sm:$0xff]
      %v423 = vld [vmem:[%s294 + $0x2c8] sm:$0xff]
      %v424 = vld [vmem:[%s294 + $0x2d0] sm:$0xff]
      %v425 = vld [vmem:[%s294 + $0x2d8] sm:$0xff]
      %v426 = vld [vmem:[%s294 + $0x2e0] sm:$0xff]
      %v427 = vld [vmem:[%s294 + $0x2e8] sm:$0xff]
      %v428 = vld [vmem:[%s294 + $0x2f0] sm:$0xff]
      %v429 = vld [vmem:[%s294 + $0x2f8] sm:$0xff]
      %v430 = vld [vmem:[%s294 + $0x300] sm:$0xff]
      %v431 = vld [vmem:[%s294 + $0x308] sm:$0xff]
      %v432 = vld [vmem:[%s294 + $0x310] sm:$0xff]
      %v433 = vld [vmem:[%s294 + $0x318] sm:$0xff]
      %v434 = vld [vmem:[%s294 + $0x320] sm:$0xff]
      %v435 = vld [vmem:[%s294 + $0x328] sm:$0xff]
      %v436 = vld [vmem:[%s294 + $0x330] sm:$0xff]
      %v437 = vld [vmem:[%s294 + $0x338] sm:$0xff]
      %v438 = vld [vmem:[%s294 + $0x340] sm:$0xff]
      %v439 = vld [vmem:[%s294 + $0x348] sm:$0xff]
      %v440 = vld [vmem:[%s294 + $0x350] sm:$0xff]
      %v441 = vld [vmem:[%s294 + $0x358] sm:$0xff]
      %v442 = vld [vmem:[%s294 + $0x360] sm:$0xff]
      %v443 = vld [vmem:[%s294 + $0x368] sm:$0xff]
      %v444 = vld [vmem:[%s294 + $0x370] sm:$0xff]
      %v445 = vld [vmem:[%s294 + $0x378] sm:$0xff]
      %v446 = vld [vmem:[%s311] sm:$0xff]
      %v447 = vld [vmem:[%s311 + $0x8] sm:$0xff]
      %v448 = vld [vmem:[%s311 + $0x10] sm:$0xff]
      %v449 = vld [vmem:[%s311 + $0x18] sm:$0xff]
      %v450 = vld [vmem:[%s311 + $0x20] sm:$0xff]
      %v451 = vld [vmem:[%s311 + $0x28] sm:$0xff]
      %v452 = vld [vmem:[%s311 + $0x30] sm:$0xff]
      %v453 = vld [vmem:[%s311 + $0x38] sm:$0xff]
      %v454 = vld [vmem:[%s311 + $0x40] sm:$0xff]
      %v455 = vld [vmem:[%s311 + $0x48] sm:$0xff]
      %v456 = vld [vmem:[%s311 + $0x50] sm:$0xff]
      %v457 = vld [vmem:[%s311 + $0x58] sm:$0xff]
      %v458 = vld [vmem:[%s311 + $0x60] sm:$0xff]
      %v459 = vld [vmem:[%s311 + $0x68] sm:$0xff]
      %v460 = vld [vmem:[%s311 + $0x70] sm:$0xff]
      %v461 = vld [vmem:[%s311 + $0x78] sm:$0xff]
      %v462 = vld [vmem:[%s311 + $0x80] sm:$0xff]
      %v463 = vld [vmem:[%s311 + $0x88] sm:$0xff]
      %v464 = vld [vmem:[%s311 + $0x90] sm:$0xff]
      %v465 = vld [vmem:[%s311 + $0x98] sm:$0xff]
      %v466 = vld [vmem:[%s311 + $0xa0] sm:$0xff]
      %v467 = vld [vmem:[%s311 + $0xa8] sm:$0xff]
      %v468 = vld [vmem:[%s311 + $0xb0] sm:$0xff]
      %v469 = vld [vmem:[%s311 + $0xb8] sm:$0xff]
      %v470 = vld [vmem:[%s311 + $0xc0] sm:$0xff]
      %v471 = vld [vmem:[%s311 + $0xc8] sm:$0xff]
      %v472 = vld [vmem:[%s311 + $0xd0] sm:$0xff]
      %v473 = vld [vmem:[%s311 + $0xd8] sm:$0xff]
      %v474 = vld [vmem:[%s311 + $0xe0] sm:$0xff]
      %v475 = vld [vmem:[%s311 + $0xe8] sm:$0xff]
      %v476 = vld [vmem:[%s311 + $0xf0] sm:$0xff]
      %v477 = vld [vmem:[%s311 + $0xf8] sm:$0xff]
      %v478 = vld [vmem:[%s311 + $0x100] sm:$0xff]
      %v479 = vld [vmem:[%s311 + $0x108] sm:$0xff]
      %v480 = vld [vmem:[%s311 + $0x110] sm:$0xff]
      %v481 = vld [vmem:[%s311 + $0x118] sm:$0xff]
      %v482 = vld [vmem:[%s311 + $0x120] sm:$0xff]
      %v483 = vld [vmem:[%s311 + $0x128] sm:$0xff]
      %v484 = vld [vmem:[%s311 + $0x130] sm:$0xff]
      %v485 = vld [vmem:[%s311 + $0x138] sm:$0xff]
      %v486 = vld [vmem:[%s311 + $0x140] sm:$0xff]
      %v487 = vld [vmem:[%s311 + $0x148] sm:$0xff]
      %v488 = vld [vmem:[%s311 + $0x150] sm:$0xff]
      %v489 = vld [vmem:[%s311 + $0x158] sm:$0xff]
      %v490 = vld [vmem:[%s311 + $0x160] sm:$0xff]
      %v491 = vld [vmem:[%s311 + $0x168] sm:$0xff]
      %v492 = vld [vmem:[%s311 + $0x170] sm:$0xff]
      %v493 = vld [vmem:[%s311 + $0x178] sm:$0xff]
      %v494 = vld [vmem:[%s311 + $0x180] sm:$0xff]
      %v495 = vld [vmem:[%s311 + $0x188] sm:$0xff]
      %v496 = vld [vmem:[%s311 + $0x190] sm:$0xff]
      %v497 = vld [vmem:[%s311 + $0x198] sm:$0xff]
      %v498 = vld [vmem:[%s311 + $0x1a0] sm:$0xff]
      %v499 = vld [vmem:[%s311 + $0x1a8] sm:$0xff]
      %v500 = vld [vmem:[%s311 + $0x1b0] sm:$0xff]
      %v501 = vld [vmem:[%s311 + $0x1b8] sm:$0xff]
      %v502 = vld [vmem:[%s311 + $0x1c0] sm:$0xff]
      %v503 = vld [vmem:[%s311 + $0x1c8] sm:$0xff]
      %v504 = vld [vmem:[%s311 + $0x1d0] sm:$0xff]
      %v505 = vld [vmem:[%s311 + $0x1d8] sm:$0xff]
      %v506 = vld [vmem:[%s311 + $0x1e0] sm:$0xff]
      %v507 = vld [vmem:[%s311 + $0x1e8] sm:$0xff]
      %v508 = vld [vmem:[%s311 + $0x1f0] sm:$0xff]
      %v509 = vld [vmem:[%s311 + $0x1f8] sm:$0xff]
      %v510 = vld [vmem:[%s311 + $0x200] sm:$0xff]
      %v511 = vld [vmem:[%s311 + $0x208] sm:$0xff]
      %v512 = vld [vmem:[%s311 + $0x210] sm:$0xff]
      %v513 = vld [vmem:[%s311 + $0x218] sm:$0xff]
      %v514 = vld [vmem:[%s311 + $0x220] sm:$0xff]
      %v515 = vld [vmem:[%s311 + $0x228] sm:$0xff]
      %v516 = vld [vmem:[%s311 + $0x230] sm:$0xff]
      %v517 = vld [vmem:[%s311 + $0x238] sm:$0xff]
      %v518 = vld [vmem:[%s311 + $0x240] sm:$0xff]
      %v519 = vld [vmem:[%s311 + $0x248] sm:$0xff]
      %v520 = vld [vmem:[%s311 + $0x250] sm:$0xff]
      %v521 = vld [vmem:[%s311 + $0x258] sm:$0xff]
      %v522 = vld [vmem:[%s311 + $0x260] sm:$0xff]
      %v523 = vld [vmem:[%s311 + $0x268] sm:$0xff]
      %v524 = vld [vmem:[%s311 + $0x270] sm:$0xff]
      %v525 = vld [vmem:[%s311 + $0x278] sm:$0xff]
      %v526 = vld [vmem:[%s311 + $0x280] sm:$0xff]
      %v527 = vld [vmem:[%s311 + $0x288] sm:$0xff]
      %v528 = vld [vmem:[%s311 + $0x290] sm:$0xff]
      %v529 = vld [vmem:[%s311 + $0x298] sm:$0xff]
      %v530 = vld [vmem:[%s311 + $0x2a0] sm:$0xff]
      %v531 = vld [vmem:[%s311 + $0x2a8] sm:$0xff]
      %v532 = vld [vmem:[%s311 + $0x2b0] sm:$0xff]
      %v533 = vld [vmem:[%s311 + $0x2b8] sm:$0xff]
      %v534 = vld [vmem:[%s311 + $0x2c0] sm:$0xff]
      %v535 = vld [vmem:[%s311 + $0x2c8] sm:$0xff]
      %v536 = vld [vmem:[%s311 + $0x2d0] sm:$0xff]
      %v537 = vld [vmem:[%s311 + $0x2d8] sm:$0xff]
      %v538 = vld [vmem:[%s311 + $0x2e0] sm:$0xff]
      %v539 = vld [vmem:[%s311 + $0x2e8] sm:$0xff]
      %v540 = vld [vmem:[%s311 + $0x2f0] sm:$0xff]
      %v541 = vld [vmem:[%s311 + $0x2f8] sm:$0xff]
      %v542 = vld [vmem:[%s311 + $0x300] sm:$0xff]
      %v543 = vld [vmem:[%s311 + $0x308] sm:$0xff]
      %v544 = vld [vmem:[%s311 + $0x310] sm:$0xff]
      %v545 = vld [vmem:[%s311 + $0x318] sm:$0xff]
      %v546 = vld [vmem:[%s311 + $0x320] sm:$0xff]
      %v547 = vld [vmem:[%s311 + $0x328] sm:$0xff]
      %v548 = vld [vmem:[%s311 + $0x330] sm:$0xff]
      %v549 = vld [vmem:[%s311 + $0x338] sm:$0xff]
      %v550 = vld [vmem:[%s311 + $0x340] sm:$0xff]
      %v551 = vld [vmem:[%s311 + $0x348] sm:$0xff]
      %v552 = vld [vmem:[%s311 + $0x350] sm:$0xff]
      %v553 = vld [vmem:[%s311 + $0x358] sm:$0xff]
      %v554 = vld [vmem:[%s311 + $0x360] sm:$0xff]
      %v555 = vld [vmem:[%s311 + $0x368] sm:$0xff]
      %v556 = vld [vmem:[%s311 + $0x370] sm:$0xff]
      %v557 = vld [vmem:[%s311 + $0x378] sm:$0xff]
      %v558 = vand.u32 2147483647, %v334
      %v559 = vand.u32 2147483647, %v335
      %v560 = vand.u32 2147483647, %v336
      %v561 = vand.u32 2147483647, %v337
      %v562 = vand.u32 2147483647, %v338
      %v563 = vand.u32 2147483647, %v339
      %v564 = vand.u32 2147483647, %v340
      %v565 = vand.u32 2147483647, %v341
      %v566 = vand.u32 2147483647, %v342
      %v567 = vand.u32 2147483647, %v343
      %v568 = vand.u32 2147483647, %v344
      %v569 = vand.u32 2147483647, %v345
      %v570 = vand.u32 2147483647, %v346
      %v571 = vand.u32 2147483647, %v347
      %v572 = vand.u32 2147483647, %v348
      %v573 = vand.u32 2147483647, %v349
      %v574 = vand.u32 2147483647, %v350
      %v575 = vand.u32 2147483647, %v351
      %v576 = vand.u32 2147483647, %v352
      %v577 = vand.u32 2147483647, %v353
      %v578 = vand.u32 2147483647, %v354
      %v579 = vand.u32 2147483647, %v355
      %v580 = vand.u32 2147483647, %v356
      %v581 = vand.u32 2147483647, %v357
      %v582 = vand.u32 2147483647, %v358
      %v583 = vand.u32 2147483647, %v359
      %v584 = vand.u32 2147483647, %v360
      %v585 = vand.u32 2147483647, %v361
      %v586 = vand.u32 2147483647, %v362
      %v587 = vand.u32 2147483647, %v363
      %v588 = vand.u32 2147483647, %v364
      %v589 = vand.u32 2147483647, %v365
      %v590 = vand.u32 2147483647, %v366
      %v591 = vand.u32 2147483647, %v367
      %v592 = vand.u32 2147483647, %v368
      %v593 = vand.u32 2147483647, %v369
      %v594 = vand.u32 2147483647, %v370
      %v595 = vand.u32 2147483647, %v371
      %v596 = vand.u32 2147483647, %v372
      %v597 = vand.u32 2147483647, %v373
      %v598 = vand.u32 2147483647, %v374
      %v599 = vand.u32 2147483647, %v375
      %v600 = vand.u32 2147483647, %v376
      %v601 = vand.u32 2147483647, %v377
      %v602 = vand.u32 2147483647, %v378
      %v603 = vand.u32 2147483647, %v379
      %v604 = vand.u32 2147483647, %v380
      %v605 = vand.u32 2147483647, %v381
      %v606 = vand.u32 2147483647, %v382
      %v607 = vand.u32 2147483647, %v383
      %v608 = vand.u32 2147483647, %v384
      %v609 = vand.u32 2147483647, %v385
      %v610 = vand.u32 2147483647, %v386
      %v611 = vand.u32 2147483647, %v387
      %v612 = vand.u32 2147483647, %v388
      %v613 = vand.u32 2147483647, %v389
      %v614 = vand.u32 2147483647, %v390
      %v615 = vand.u32 2147483647, %v391
      %v616 = vand.u32 2147483647, %v392
      %v617 = vand.u32 2147483647, %v393
      %v618 = vand.u32 2147483647, %v394
      %v619 = vand.u32 2147483647, %v395
      %v620 = vand.u32 2147483647, %v396
      %v621 = vand.u32 2147483647, %v397
      %v622 = vand.u32 2147483647, %v398
      %v623 = vand.u32 2147483647, %v399
      %v624 = vand.u32 2147483647, %v400
      %v625 = vand.u32 2147483647, %v401
      %v626 = vand.u32 2147483647, %v402
      %v627 = vand.u32 2147483647, %v403
      %v628 = vand.u32 2147483647, %v404
      %v629 = vand.u32 2147483647, %v405
      %v630 = vand.u32 2147483647, %v406
      %v631 = vand.u32 2147483647, %v407
      %v632 = vand.u32 2147483647, %v408
      %v633 = vand.u32 2147483647, %v409
      %v634 = vand.u32 2147483647, %v410
      %v635 = vand.u32 2147483647, %v411
      %v636 = vand.u32 2147483647, %v412
      %v637 = vand.u32 2147483647, %v413
      %v638 = vand.u32 2147483647, %v414
      %v639 = vand.u32 2147483647, %v415
      %v640 = vand.u32 2147483647, %v416
      %v641 = vand.u32 2147483647, %v417
      %v642 = vand.u32 2147483647, %v418
      %v643 = vand.u32 2147483647, %v419
      %v644 = vand.u32 2147483647, %v420
      %v645 = vand.u32 2147483647, %v421
      %v646 = vand.u32 2147483647, %v422
      %v647 = vand.u32 2147483647, %v423
      %v648 = vand.u32 2147483647, %v424
      %v649 = vand.u32 2147483647, %v425
      %v650 = vand.u32 2147483647, %v426
      %v651 = vand.u32 2147483647, %v427
      %v652 = vand.u32 2147483647, %v428
      %v653 = vand.u32 2147483647, %v429
      %v654 = vand.u32 2147483647, %v430
      %v655 = vand.u32 2147483647, %v431
      %v656 = vand.u32 2147483647, %v432
      %v657 = vand.u32 2147483647, %v433
      %v658 = vand.u32 2147483647, %v434
      %v659 = vand.u32 2147483647, %v435
      %v660 = vand.u32 2147483647, %v436
      %v661 = vand.u32 2147483647, %v437
      %v662 = vand.u32 2147483647, %v438
      %v663 = vand.u32 2147483647, %v439
      %v664 = vand.u32 2147483647, %v440
      %v665 = vand.u32 2147483647, %v441
      %v666 = vand.u32 2147483647, %v442
      %v667 = vand.u32 2147483647, %v443
      %v668 = vand.u32 2147483647, %v444
      %v669 = vand.u32 2147483647, %v445
      %v670 = vsub.f32 0.0, %v558
      %v671 = vsub.f32 0.0, %v559
      %v672 = vsub.f32 0.0, %v560
      %v673 = vsub.f32 0.0, %v561
      %v674 = vsub.f32 0.0, %v562
      %v675 = vsub.f32 0.0, %v563
      %v676 = vsub.f32 0.0, %v564
      %v677 = vsub.f32 0.0, %v565
      %v678 = vsub.f32 0.0, %v566
      %v679 = vsub.f32 0.0, %v567
      %v680 = vsub.f32 0.0, %v568
      %v681 = vsub.f32 0.0, %v569
      %v682 = vsub.f32 0.0, %v570
      %v683 = vsub.f32 0.0, %v571
      %v684 = vsub.f32 0.0, %v572
      %v685 = vsub.f32 0.0, %v573
      %v686 = vsub.f32 0.0, %v574
      %v687 = vsub.f32 0.0, %v575
      %v688 = vsub.f32 0.0, %v576
      %v689 = vsub.f32 0.0, %v577
      %v690 = vsub.f32 0.0, %v578
      %v691 = vsub.f32 0.0, %v579
      %v692 = vsub.f32 0.0, %v580
      %v693 = vsub.f32 0.0, %v581
      %v694 = vsub.f32 0.0, %v582
      %v695 = vsub.f32 0.0, %v583
      %v696 = vsub.f32 0.0, %v584
      %v697 = vsub.f32 0.0, %v585
      %v698 = vsub.f32 0.0, %v586
      %v699 = vsub.f32 0.0, %v587
      %v700 = vsub.f32 0.0, %v588
      %v701 = vsub.f32 0.0, %v589
      %v702 = vsub.f32 0.0, %v590
      %v703 = vsub.f32 0.0, %v591
      %v704 = vsub.f32 0.0, %v592
      %v705 = vsub.f32 0.0, %v593
      %v706 = vsub.f32 0.0, %v594
      %v707 = vsub.f32 0.0, %v595
      %v708 = vsub.f32 0.0, %v596
      %v709 = vsub.f32 0.0, %v597
      %v710 = vsub.f32 0.0, %v598
      %v711 = vsub.f32 0.0, %v599
      %v712 = vsub.f32 0.0, %v600
      %v713 = vsub.f32 0.0, %v601
      %v714 = vsub.f32 0.0, %v602
      %v715 = vsub.f32 0.0, %v603
      %v716 = vsub.f32 0.0, %v604
      %v717 = vsub.f32 0.0, %v605
      %v718 = vsub.f32 0.0, %v606
      %v719 = vsub.f32 0.0, %v607
      %v720 = vsub.f32 0.0, %v608
      %v721 = vsub.f32 0.0, %v609
      %v722 = vsub.f32 0.0, %v610
      %v723 = vsub.f32 0.0, %v611
      %v724 = vsub.f32 0.0, %v612
      %v725 = vsub.f32 0.0, %v613
      %v726 = vsub.f32 0.0, %v614
      %v727 = vsub.f32 0.0, %v615
      %v728 = vsub.f32 0.0, %v616
      %v729 = vsub.f32 0.0, %v617
      %v730 = vsub.f32 0.0, %v618
      %v731 = vsub.f32 0.0, %v619
      %v732 = vsub.f32 0.0, %v620
      %v733 = vsub.f32 0.0, %v621
      %v734 = vsub.f32 0.0, %v622
      %v735 = vsub.f32 0.0, %v623
      %v736 = vsub.f32 0.0, %v624
      %v737 = vsub.f32 0.0, %v625
      %v738 = vsub.f32 0.0, %v626
      %v739 = vsub.f32 0.0, %v627
      %v740 = vsub.f32 0.0, %v628
      %v741 = vsub.f32 0.0, %v629
      %v742 = vsub.f32 0.0, %v630
      %v743 = vsub.f32 0.0, %v631
      %v744 = vsub.f32 0.0, %v632
      %v745 = vsub.f32 0.0, %v633
      %v746 = vsub.f32 0.0, %v634
      %v747 = vsub.f32 0.0, %v635
      %v748 = vsub.f32 0.0, %v636
      %v749 = vsub.f32 0.0, %v637
      %v750 = vsub.f32 0.0, %v638
      %v751 = vsub.f32 0.0, %v639
      %v752 = vsub.f32 0.0, %v640
      %v753 = vsub.f32 0.0, %v641
      %v754 = vsub.f32 0.0, %v642
      %v755 = vsub.f32 0.0, %v643
      %v756 = vsub.f32 0.0, %v644
      %v757 = vsub.f32 0.0, %v645
      %v758 = vsub.f32 0.0, %v646
      %v759 = vsub.f32 0.0, %v647
      %v760 = vsub.f32 0.0, %v648
      %v761 = vsub.f32 0.0, %v649
      %v762 = vsub.f32 0.0, %v650
      %v763 = vsub.f32 0.0, %v651
      %v764 = vsub.f32 0.0, %v652
      %v765 = vsub.f32 0.0, %v653
      %v766 = vsub.f32 0.0, %v654
      %v767 = vsub.f32 0.0, %v655
      %v768 = vsub.f32 0.0, %v656
      %v769 = vsub.f32 0.0, %v657
      %v770 = vsub.f32 0.0, %v658
      %v771 = vsub.f32 0.0, %v659
      %v772 = vsub.f32 0.0, %v660
      %v773 = vsub.f32 0.0, %v661
      %v774 = vsub.f32 0.0, %v662
      %v775 = vsub.f32 0.0, %v663
      %v776 = vsub.f32 0.0, %v664
      %v777 = vsub.f32 0.0, %v665
      %v778 = vsub.f32 0.0, %v666
      %v779 = vsub.f32 0.0, %v667
      %v780 = vsub.f32 0.0, %v668
      %v781 = vsub.f32 0.0, %v669
      %v782 = vmul.f32 %v670, 1.442695
      %v783 = vpow.pop %v782
      %v784 = vmul.f32 %v671, 1.442695
      %v785 = vpow.pop %v784
      %v786 = vmul.f32 %v672, 1.442695
      %v787 = vpow.pop %v786
      %v788 = vmul.f32 %v673, 1.442695
      %v789 = vpow.pop %v788
      %v790 = vmul.f32 %v674, 1.442695
      %v791 = vpow.pop %v790
      %v792 = vmul.f32 %v675, 1.442695
      %v793 = vpow.pop %v792
      %v794 = vmul.f32 %v676, 1.442695
      %v795 = vpow.pop %v794
      %v796 = vmul.f32 %v677, 1.442695
      %v797 = vpow.pop %v796
      %v798 = vmul.f32 %v678, 1.442695
      %v799 = vpow.pop %v798
      %v800 = vmul.f32 %v679, 1.442695
      %v801 = vpow.pop %v800
      %v802 = vmul.f32 %v680, 1.442695
      %v803 = vpow.pop %v802
      %v804 = vmul.f32 %v681, 1.442695
      %v805 = vpow.pop %v804
      %v806 = vmul.f32 %v682, 1.442695
      %v807 = vpow.pop %v806
      %v808 = vmul.f32 %v683, 1.442695
      %v809 = vpow.pop %v808
      %v810 = vmul.f32 %v684, 1.442695
      %v811 = vpow.pop %v810
      %v812 = vmul.f32 %v685, 1.442695
      %v813 = vpow.pop %v812
      %v814 = vmul.f32 %v686, 1.442695
      %v815 = vpow.pop %v814
      %v816 = vmul.f32 %v687, 1.442695
      %v817 = vpow.pop %v816
      %v818 = vmul.f32 %v688, 1.442695
      %v819 = vpow.pop %v818
      %v820 = vmul.f32 %v689, 1.442695
      %v821 = vpow.pop %v820
      %v822 = vmul.f32 %v690, 1.442695
      %v823 = vpow.pop %v822
      %v824 = vmul.f32 %v691, 1.442695
      %v825 = vpow.pop %v824
      %v826 = vmul.f32 %v692, 1.442695
      %v827 = vpow.pop %v826
      %v828 = vmul.f32 %v693, 1.442695
      %v829 = vpow.pop %v828
      %v830 = vmul.f32 %v694, 1.442695
      %v831 = vpow.pop %v830
      %v832 = vmul.f32 %v695, 1.442695
      %v833 = vpow.pop %v832
      %v834 = vmul.f32 %v696, 1.442695
      %v835 = vpow.pop %v834
      %v836 = vmul.f32 %v697, 1.442695
      %v837 = vpow.pop %v836
      %v838 = vmul.f32 %v698, 1.442695
      %v839 = vpow.pop %v838
      %v840 = vmul.f32 %v699, 1.442695
      %v841 = vpow.pop %v840
      %v842 = vmul.f32 %v700, 1.442695
      %v843 = vpow.pop %v842
      %v844 = vmul.f32 %v701, 1.442695
      %v845 = vpow.pop %v844
      %v846 = vmul.f32 %v702, 1.442695
      %v847 = vpow.pop %v846
      %v848 = vmul.f32 %v703, 1.442695
      %v849 = vpow.pop %v848
      %v850 = vmul.f32 %v704, 1.442695
      %v851 = vpow.pop %v850
      %v852 = vmul.f32 %v705, 1.442695
      %v853 = vpow.pop %v852
      %v854 = vmul.f32 %v706, 1.442695
      %v855 = vpow.pop %v854
      %v856 = vmul.f32 %v707, 1.442695
      %v857 = vpow.pop %v856
      %v858 = vmul.f32 %v708, 1.442695
      %v859 = vpow.pop %v858
      %v860 = vmul.f32 %v709, 1.442695
      %v861 = vpow.pop %v860
      %v862 = vmul.f32 %v710, 1.442695
      %v863 = vpow.pop %v862
      %v864 = vmul.f32 %v711, 1.442695
      %v865 = vpow.pop %v864
      %v866 = vmul.f32 %v712, 1.442695
      %v867 = vpow.pop %v866
      %v868 = vmul.f32 %v713, 1.442695
      %v869 = vpow.pop %v868
      %v870 = vmul.f32 %v714, 1.442695
      %v871 = vpow.pop %v870
      %v872 = vmul.f32 %v715, 1.442695
      %v873 = vpow.pop %v872
      %v874 = vmul.f32 %v716, 1.442695
      %v875 = vpow.pop %v874
      %v876 = vmul.f32 %v717, 1.442695
      %v877 = vpow.pop %v876
      %v878 = vmul.f32 %v718, 1.442695
      %v879 = vpow.pop %v878
      %v880 = vmul.f32 %v719, 1.442695
      %v881 = vpow.pop %v880
      %v882 = vmul.f32 %v720, 1.442695
      %v883 = vpow.pop %v882
      %v884 = vmul.f32 %v721, 1.442695
      %v885 = vpow.pop %v884
      %v886 = vmul.f32 %v722, 1.442695
      %v887 = vpow.pop %v886
      %v888 = vmul.f32 %v723, 1.442695
      %v889 = vpow.pop %v888
      %v890 = vmul.f32 %v724, 1.442695
      %v891 = vpow.pop %v890
      %v892 = vmul.f32 %v725, 1.442695
      %v893 = vpow.pop %v892
      %v894 = vmul.f32 %v726, 1.442695
      %v895 = vpow.pop %v894
      %v896 = vmul.f32 %v727, 1.442695
      %v897 = vpow.pop %v896
      %v898 = vmul.f32 %v728, 1.442695
      %v899 = vpow.pop %v898
      %v900 = vmul.f32 %v729, 1.442695
      %v901 = vpow.pop %v900
      %v902 = vmul.f32 %v730, 1.442695
      %v903 = vpow.pop %v902
      %v904 = vmul.f32 %v731, 1.442695
      %v905 = vpow.pop %v904
      %v906 = vmul.f32 %v732, 1.442695
      %v907 = vpow.pop %v906
      %v908 = vmul.f32 %v733, 1.442695
      %v909 = vpow.pop %v908
      %v910 = vmul.f32 %v734, 1.442695
      %v911 = vpow.pop %v910
      %v912 = vmul.f32 %v735, 1.442695
      %v913 = vpow.pop %v912
      %v914 = vmul.f32 %v736, 1.442695
      %v915 = vpow.pop %v914
      %v916 = vmul.f32 %v737, 1.442695
      %v917 = vpow.pop %v916
      %v918 = vmul.f32 %v738, 1.442695
      %v919 = vpow.pop %v918
      %v920 = vmul.f32 %v739, 1.442695
      %v921 = vpow.pop %v920
      %v922 = vmul.f32 %v740, 1.442695
      %v923 = vpow.pop %v922
      %v924 = vmul.f32 %v741, 1.442695
      %v925 = vpow.pop %v924
      %v926 = vmul.f32 %v742, 1.442695
      %v927 = vpow.pop %v926
      %v928 = vmul.f32 %v743, 1.442695
      %v929 = vpow.pop %v928
      %v930 = vmul.f32 %v744, 1.442695
      %v931 = vpow.pop %v930
      %v932 = vmul.f32 %v745, 1.442695
      %v933 = vpow.pop %v932
      %v934 = vmul.f32 %v746, 1.442695
      %v935 = vpow.pop %v934
      %v936 = vmul.f32 %v747, 1.442695
      %v937 = vpow.pop %v936
      %v938 = vmul.f32 %v748, 1.442695
      %v939 = vpow.pop %v938
      %v940 = vmul.f32 %v749, 1.442695
      %v941 = vpow.pop %v940
      %v942 = vmul.f32 %v750, 1.442695
      %v943 = vpow.pop %v942
      %v944 = vmul.f32 %v751, 1.442695
      %v945 = vpow.pop %v944
      %v946 = vmul.f32 %v752, 1.442695
      %v947 = vpow.pop %v946
      %v948 = vmul.f32 %v753, 1.442695
      %v949 = vpow.pop %v948
      %v950 = vmul.f32 %v754, 1.442695
      %v951 = vpow.pop %v950
      %v952 = vmul.f32 %v755, 1.442695
      %v953 = vpow.pop %v952
      %v954 = vmul.f32 %v756, 1.442695
      %v955 = vpow.pop %v954
      %v956 = vmul.f32 %v757, 1.442695
      %v957 = vpow.pop %v956
      %v958 = vmul.f32 %v758, 1.442695
      %v959 = vpow.pop %v958
      %v960 = vmul.f32 %v759, 1.442695
      %v961 = vpow.pop %v960
      %v962 = vmul.f32 %v760, 1.442695
      %v963 = vpow.pop %v962
      %v964 = vmul.f32 %v761, 1.442695
      %v965 = vpow.pop %v964
      %v966 = vmul.f32 %v762, 1.442695
      %v967 = vpow.pop %v966
      %v968 = vmul.f32 %v763, 1.442695
      %v969 = vpow.pop %v968
      %v970 = vmul.f32 %v764, 1.442695
      %v971 = vpow.pop %v970
      %v972 = vmul.f32 %v765, 1.442695
      %v973 = vpow.pop %v972
      %v974 = vmul.f32 %v766, 1.442695
      %v975 = vpow.pop %v974
      %v976 = vmul.f32 %v767, 1.442695
      %v977 = vpow.pop %v976
      %v978 = vmul.f32 %v768, 1.442695
      %v979 = vpow.pop %v978
      %v980 = vmul.f32 %v769, 1.442695
      %v981 = vpow.pop %v980
      %v982 = vmul.f32 %v770, 1.442695
      %v983 = vpow.pop %v982
      %v984 = vmul.f32 %v771, 1.442695
      %v985 = vpow.pop %v984
      %v986 = vmul.f32 %v772, 1.442695
      %v987 = vpow.pop %v986
      %v988 = vmul.f32 %v773, 1.442695
      %v989 = vpow.pop %v988
      %v990 = vmul.f32 %v774, 1.442695
      %v991 = vpow.pop %v990
      %v992 = vmul.f32 %v775, 1.442695
      %v993 = vpow.pop %v992
      %v994 = vmul.f32 %v776, 1.442695
      %v995 = vpow.pop %v994
      %v996 = vmul.f32 %v777, 1.442695
      %v997 = vpow.pop %v996
      %v998 = vmul.f32 %v778, 1.442695
      %v999 = vpow.pop %v998
      %v1000 = vmul.f32 %v779, 1.442695
      %v1001 = vpow.pop %v1000
      %v1002 = vmul.f32 %v780, 1.442695
      %v1003 = vpow.pop %v1002
      %v1004 = vmul.f32 %v781, 1.442695
      %v1005 = vpow.pop %v1004
      %v1006 = vmax.f32 %v334, 0.0
      %v1007 = vmax.f32 %v335, 0.0
      %v1008 = vmax.f32 %v336, 0.0
      %v1009 = vmax.f32 %v337, 0.0
      %v1010 = vmax.f32 %v338, 0.0
      %v1011 = vmax.f32 %v339, 0.0
      %v1012 = vmax.f32 %v340, 0.0
      %v1013 = vmax.f32 %v341, 0.0
      %v1014 = vmax.f32 %v342, 0.0
      %v1015 = vmax.f32 %v343, 0.0
      %v1016 = vmax.f32 %v344, 0.0
      %v1017 = vmax.f32 %v345, 0.0
      %v1018 = vmax.f32 %v346, 0.0
      %v1019 = vmax.f32 %v347, 0.0
      %v1020 = vmax.f32 %v348, 0.0
      %v1021 = vmax.f32 %v349, 0.0
      %v1022 = vmax.f32 %v350, 0.0
      %v1023 = vmax.f32 %v351, 0.0
      %v1024 = vmax.f32 %v352, 0.0
      %v1025 = vmax.f32 %v353, 0.0
      %v1026 = vmax.f32 %v354, 0.0
      %v1027 = vmax.f32 %v355, 0.0
      %v1028 = vmax.f32 %v356, 0.0
      %v1029 = vmax.f32 %v357, 0.0
      %v1030 = vmax.f32 %v358, 0.0
      %v1031 = vmax.f32 %v359, 0.0
      %v1032 = vmax.f32 %v360, 0.0
      %v1033 = vmax.f32 %v361, 0.0
      %v1034 = vmax.f32 %v362, 0.0
      %v1035 = vmax.f32 %v363, 0.0
      %v1036 = vmax.f32 %v364, 0.0
      %v1037 = vmax.f32 %v365, 0.0
      %v1038 = vmax.f32 %v366, 0.0
      %v1039 = vmax.f32 %v367, 0.0
      %v1040 = vmax.f32 %v368, 0.0
      %v1041 = vmax.f32 %v369, 0.0
      %v1042 = vmax.f32 %v370, 0.0
      %v1043 = vmax.f32 %v371, 0.0
      %v1044 = vmax.f32 %v372, 0.0
      %v1045 = vmax.f32 %v373, 0.0
      %v1046 = vmax.f32 %v374, 0.0
      %v1047 = vmax.f32 %v375, 0.0
      %v1048 = vmax.f32 %v376, 0.0
      %v1049 = vmax.f32 %v377, 0.0
      %v1050 = vmax.f32 %v378, 0.0
      %v1051 = vmax.f32 %v379, 0.0
      %v1052 = vmax.f32 %v380, 0.0
      %v1053 = vmax.f32 %v381, 0.0
      %v1054 = vmax.f32 %v382, 0.0
      %v1055 = vmax.f32 %v383, 0.0
      %v1056 = vmax.f32 %v384, 0.0
      %v1057 = vmax.f32 %v385, 0.0
      %v1058 = vmax.f32 %v386, 0.0
      %v1059 = vmax.f32 %v387, 0.0
      %v1060 = vmax.f32 %v388, 0.0
      %v1061 = vmax.f32 %v389, 0.0
      %v1062 = vmax.f32 %v390, 0.0
      %v1063 = vmax.f32 %v391, 0.0
      %v1064 = vmax.f32 %v392, 0.0
      %v1065 = vmax.f32 %v393, 0.0
      %v1066 = vmax.f32 %v394, 0.0
      %v1067 = vmax.f32 %v395, 0.0
      %v1068 = vmax.f32 %v396, 0.0
      %v1069 = vmax.f32 %v397, 0.0
      %v1070 = vmax.f32 %v398, 0.0
      %v1071 = vmax.f32 %v399, 0.0
      %v1072 = vmax.f32 %v400, 0.0
      %v1073 = vmax.f32 %v401, 0.0
      %v1074 = vmax.f32 %v402, 0.0
      %v1075 = vmax.f32 %v403, 0.0
      %v1076 = vmax.f32 %v404, 0.0
      %v1077 = vmax.f32 %v405, 0.0
      %v1078 = vmax.f32 %v406, 0.0
      %v1079 = vmax.f32 %v407, 0.0
      %v1080 = vmax.f32 %v408, 0.0
      %v1081 = vmax.f32 %v409, 0.0
      %v1082 = vmax.f32 %v410, 0.0
      %v1083 = vmax.f32 %v411, 0.0
      %v1084 = vmax.f32 %v412, 0.0
      %v1085 = vmax.f32 %v413, 0.0
      %v1086 = vmax.f32 %v414, 0.0
      %v1087 = vmax.f32 %v415, 0.0
      %v1088 = vmax.f32 %v416, 0.0
      %v1089 = vmax.f32 %v417, 0.0
      %v1090 = vmax.f32 %v418, 0.0
      %v1091 = vmax.f32 %v419, 0.0
      %v1092 = vmax.f32 %v420, 0.0
      %v1093 = vmax.f32 %v421, 0.0
      %v1094 = vmax.f32 %v422, 0.0
      %v1095 = vmax.f32 %v423, 0.0
      %v1096 = vmax.f32 %v424, 0.0
      %v1097 = vmax.f32 %v425, 0.0
      %v1098 = vmax.f32 %v426, 0.0
      %v1099 = vmax.f32 %v427, 0.0
      %v1100 = vmax.f32 %v428, 0.0
      %v1101 = vmax.f32 %v429, 0.0
      %v1102 = vmax.f32 %v430, 0.0
      %v1103 = vmax.f32 %v431, 0.0
      %v1104 = vmax.f32 %v432, 0.0
      %v1105 = vmax.f32 %v433, 0.0
      %v1106 = vmax.f32 %v434, 0.0
      %v1107 = vmax.f32 %v435, 0.0
      %v1108 = vmax.f32 %v436, 0.0
      %v1109 = vmax.f32 %v437, 0.0
      %v1110 = vmax.f32 %v438, 0.0
      %v1111 = vmax.f32 %v439, 0.0
      %v1112 = vmax.f32 %v440, 0.0
      %v1113 = vmax.f32 %v441, 0.0
      %v1114 = vmax.f32 %v442, 0.0
      %v1115 = vmax.f32 %v443, 0.0
      %v1116 = vmax.f32 %v444, 0.0
      %v1117 = vmax.f32 %v445, 0.0
      %v1118 = vmul.f32 %v334, %v446
      %v1119 = vmul.f32 %v335, %v447
      %v1120 = vmul.f32 %v336, %v448
      %v1121 = vmul.f32 %v337, %v449
      %v1122 = vmul.f32 %v338, %v450
      %v1123 = vmul.f32 %v339, %v451
      %v1124 = vmul.f32 %v340, %v452
      %v1125 = vmul.f32 %v341, %v453
      %v1126 = vmul.f32 %v342, %v454
      %v1127 = vmul.f32 %v343, %v455
      %v1128 = vmul.f32 %v344, %v456
      %v1129 = vmul.f32 %v345, %v457
      %v1130 = vmul.f32 %v346, %v458
      %v1131 = vmul.f32 %v347, %v459
      %v1132 = vmul.f32 %v348, %v460
      %v1133 = vmul.f32 %v349, %v461
      %v1134 = vmul.f32 %v350, %v462
      %v1135 = vmul.f32 %v351, %v463
      %v1136 = vmul.f32 %v352, %v464
      %v1137 = vmul.f32 %v353, %v465
      %v1138 = vmul.f32 %v354, %v466
      %v1139 = vmul.f32 %v355, %v467
      %v1140 = vmul.f32 %v356, %v468
      %v1141 = vmul.f32 %v357, %v469
      %v1142 = vmul.f32 %v358, %v470
      %v1143 = vmul.f32 %v359, %v471
      %v1144 = vmul.f32 %v360, %v472
      %v1145 = vmul.f32 %v361, %v473
      %v1146 = vmul.f32 %v362, %v474
      %v1147 = vmul.f32 %v363, %v475
      %v1148 = vmul.f32 %v364, %v476
      %v1149 = vmul.f32 %v365, %v477
      %v1150 = vmul.f32 %v366, %v478
      %v1151 = vmul.f32 %v367, %v479
      %v1152 = vmul.f32 %v368, %v480
      %v1153 = vmul.f32 %v369, %v481
      %v1154 = vmul.f32 %v370, %v482
      %v1155 = vmul.f32 %v371, %v483
      %v1156 = vmul.f32 %v372, %v484
      %v1157 = vmul.f32 %v373, %v485
      %v1158 = vmul.f32 %v374, %v486
      %v1159 = vmul.f32 %v375, %v487
      %v1160 = vmul.f32 %v376, %v488
      %v1161 = vmul.f32 %v377, %v489
      %v1162 = vmul.f32 %v378, %v490
      %v1163 = vmul.f32 %v379, %v491
      %v1164 = vmul.f32 %v380, %v492
      %v1165 = vmul.f32 %v381, %v493
      %v1166 = vmul.f32 %v382, %v494
      %v1167 = vmul.f32 %v383, %v495
      %v1168 = vmul.f32 %v384, %v496
      %v1169 = vmul.f32 %v385, %v497
      %v1170 = vmul.f32 %v386, %v498
      %v1171 = vmul.f32 %v387, %v499
      %v1172 = vmul.f32 %v388, %v500
      %v1173 = vmul.f32 %v389, %v501
      %v1174 = vmul.f32 %v390, %v502
      %v1175 = vmul.f32 %v391, %v503
      %v1176 = vmul.f32 %v392, %v504
      %v1177 = vmul.f32 %v393, %v505
      %v1178 = vmul.f32 %v394, %v506
      %v1179 = vmul.f32 %v395, %v507
      %v1180 = vmul.f32 %v396, %v508
      %v1181 = vmul.f32 %v397, %v509
      %v1182 = vmul.f32 %v398, %v510
      %v1183 = vmul.f32 %v399, %v511
      %v1184 = vmul.f32 %v400, %v512
      %v1185 = vmul.f32 %v401, %v513
      %v1186 = vmul.f32 %v402, %v514
      %v1187 = vmul.f32 %v403, %v515
      %v1188 = vmul.f32 %v404, %v516
      %v1189 = vmul.f32 %v405, %v517
      %v1190 = vmul.f32 %v406, %v518
      %v1191 = vmul.f32 %v407, %v519
      %v1192 = vmul.f32 %v408, %v520
      %v1193 = vmul.f32 %v409, %v521
      %v1194 = vmul.f32 %v410, %v522
      %v1195 = vmul.f32 %v411, %v523
      %v1196 = vmul.f32 %v412, %v524
      %v1197 = vmul.f32 %v413, %v525
      %v1198 = vmul.f32 %v414, %v526
      %v1199 = vmul.f32 %v415, %v527
      %v1200 = vmul.f32 %v416, %v528
      %v1201 = vmul.f32 %v417, %v529
      %v1202 = vmul.f32 %v418, %v530
      %v1203 = vmul.f32 %v419, %v531
      %v1204 = vmul.f32 %v420, %v532
      %v1205 = vmul.f32 %v421, %v533
      %v1206 = vmul.f32 %v422, %v534
      %v1207 = vmul.f32 %v423, %v535
      %v1208 = vmul.f32 %v424, %v536
      %v1209 = vmul.f32 %v425, %v537
      %v1210 = vmul.f32 %v426, %v538
      %v1211 = vmul.f32 %v427, %v539
      %v1212 = vmul.f32 %v428, %v540
      %v1213 = vmul.f32 %v429, %v541
      %v1214 = vmul.f32 %v430, %v542
      %v1215 = vmul.f32 %v431, %v543
      %v1216 = vmul.f32 %v432, %v544
      %v1217 = vmul.f32 %v433, %v545
      %v1218 = vmul.f32 %v434, %v546
      %v1219 = vmul.f32 %v435, %v547
      %v1220 = vmul.f32 %v436, %v548
      %v1221 = vmul.f32 %v437, %v549
      %v1222 = vmul.f32 %v438, %v550
      %v1223 = vmul.f32 %v439, %v551
      %v1224 = vmul.f32 %v440, %v552
      %v1225 = vmul.f32 %v441, %v553
      %v1226 = vmul.f32 %v442, %v554
      %v1227 = vmul.f32 %v443, %v555
      %v1228 = vmul.f32 %v444, %v556
      %v1229 = vmul.f32 %v445, %v557
      %v1230 = vsub.f32 %v1006, %v1118
      %v1231 = vsub.f32 %v1007, %v1119
      %v1232 = vsub.f32 %v1008, %v1120
      %v1233 = vsub.f32 %v1009, %v1121
      %v1234 = vsub.f32 %v1010, %v1122
      %v1235 = vsub.f32 %v1011, %v1123
      %v1236 = vsub.f32 %v1012, %v1124
      %v1237 = vsub.f32 %v1013, %v1125
      %v1238 = vsub.f32 %v1014, %v1126
      %v1239 = vsub.f32 %v1015, %v1127
      %v1240 = vsub.f32 %v1016, %v1128
      %v1241 = vsub.f32 %v1017, %v1129
      %v1242 = vsub.f32 %v1018, %v1130
      %v1243 = vsub.f32 %v1019, %v1131
      %v1244 = vsub.f32 %v1020, %v1132
      %v1245 = vsub.f32 %v1021, %v1133
      %v1246 = vsub.f32 %v1022, %v1134
      %v1247 = vsub.f32 %v1023, %v1135
      %v1248 = vsub.f32 %v1024, %v1136
      %v1249 = vsub.f32 %v1025, %v1137
      %v1250 = vsub.f32 %v1026, %v1138
      %v1251 = vsub.f32 %v1027, %v1139
      %v1252 = vsub.f32 %v1028, %v1140
      %v1253 = vsub.f32 %v1029, %v1141
      %v1254 = vsub.f32 %v1030, %v1142
      %v1255 = vsub.f32 %v1031, %v1143
      %v1256 = vsub.f32 %v1032, %v1144
      %v1257 = vsub.f32 %v1033, %v1145
      %v1258 = vsub.f32 %v1034, %v1146
      %v1259 = vsub.f32 %v1035, %v1147
      %v1260 = vsub.f32 %v1036, %v1148
      %v1261 = vsub.f32 %v1037, %v1149
      %v1262 = vsub.f32 %v1038, %v1150
      %v1263 = vsub.f32 %v1039, %v1151
      %v1264 = vsub.f32 %v1040, %v1152
      %v1265 = vsub.f32 %v1041, %v1153
      %v1266 = vsub.f32 %v1042, %v1154
      %v1267 = vsub.f32 %v1043, %v1155
      %v1268 = vsub.f32 %v1044, %v1156
      %v1269 = vsub.f32 %v1045, %v1157
      %v1270 = vsub.f32 %v1046, %v1158
      %v1271 = vsub.f32 %v1047, %v1159
      %v1272 = vsub.f32 %v1048, %v1160
      %v1273 = vsub.f32 %v1049, %v1161
      %v1274 = vsub.f32 %v1050, %v1162
      %v1275 = vsub.f32 %v1051, %v1163
      %v1276 = vsub.f32 %v1052, %v1164
      %v1277 = vsub.f32 %v1053, %v1165
      %v1278 = vsub.f32 %v1054, %v1166
      %v1279 = vsub.f32 %v1055, %v1167
      %v1280 = vsub.f32 %v1056, %v1168
      %v1281 = vsub.f32 %v1057, %v1169
      %v1282 = vsub.f32 %v1058, %v1170
      %v1283 = vsub.f32 %v1059, %v1171
      %v1284 = vsub.f32 %v1060, %v1172
      %v1285 = vsub.f32 %v1061, %v1173
      %v1286 = vsub.f32 %v1062, %v1174
      %v1287 = vsub.f32 %v1063, %v1175
      %v1288 = vsub.f32 %v1064, %v1176
      %v1289 = vsub.f32 %v1065, %v1177
      %v1290 = vsub.f32 %v1066, %v1178
      %v1291 = vsub.f32 %v1067, %v1179
      %v1292 = vsub.f32 %v1068, %v1180
      %v1293 = vsub.f32 %v1069, %v1181
      %v1294 = vsub.f32 %v1070, %v1182
      %v1295 = vsub.f32 %v1071, %v1183
      %v1296 = vsub.f32 %v1072, %v1184
      %v1297 = vsub.f32 %v1073, %v1185
      %v1298 = vsub.f32 %v1074, %v1186
      %v1299 = vsub.f32 %v1075, %v1187
      %v1300 = vsub.f32 %v1076, %v1188
      %v1301 = vsub.f32 %v1077, %v1189
      %v1302 = vsub.f32 %v1078, %v1190
      %v1303 = vsub.f32 %v1079, %v1191
      %v1304 = vsub.f32 %v1080, %v1192
      %v1305 = vsub.f32 %v1081, %v1193
      %v1306 = vsub.f32 %v1082, %v1194
      %v1307 = vsub.f32 %v1083, %v1195
      %v1308 = vsub.f32 %v1084, %v1196
      %v1309 = vsub.f32 %v1085, %v1197
      %v1310 = vsub.f32 %v1086, %v1198
      %v1311 = vsub.f32 %v1087, %v1199
      %v1312 = vsub.f32 %v1088, %v1200
      %v1313 = vsub.f32 %v1089, %v1201
      %v1314 = vsub.f32 %v1090, %v1202
      %v1315 = vsub.f32 %v1091, %v1203
      %v1316 = vsub.f32 %v1092, %v1204
      %v1317 = vsub.f32 %v1093, %v1205
      %v1318 = vsub.f32 %v1094, %v1206
      %v1319 = vsub.f32 %v1095, %v1207
      %v1320 = vsub.f32 %v1096, %v1208
      %v1321 = vsub.f32 %v1097, %v1209
      %v1322 = vsub.f32 %v1098, %v1210
      %v1323 = vsub.f32 %v1099, %v1211
      %v1324 = vsub.f32 %v1100, %v1212
      %v1325 = vsub.f32 %v1101, %v1213
      %v1326 = vsub.f32 %v1102, %v1214
      %v1327 = vsub.f32 %v1103, %v1215
      %v1328 = vsub.f32 %v1104, %v1216
      %v1329 = vsub.f32 %v1105, %v1217
      %v1330 = vsub.f32 %v1106, %v1218
      %v1331 = vsub.f32 %v1107, %v1219
      %v1332 = vsub.f32 %v1108, %v1220
      %v1333 = vsub.f32 %v1109, %v1221
      %v1334 = vsub.f32 %v1110, %v1222
      %v1335 = vsub.f32 %v1111, %v1223
      %v1336 = vsub.f32 %v1112, %v1224
      %v1337 = vsub.f32 %v1113, %v1225
      %v1338 = vsub.f32 %v1114, %v1226
      %v1339 = vsub.f32 %v1115, %v1227
      %v1340 = vsub.f32 %v1116, %v1228
      %v1341 = vsub.f32 %v1117, %v1229
      %v1342 = vadd.f32 %v783, 1.0
      %v1343 = vlog2.pop %v1342
      %v1344 = vmul.f32 %v1343, 0.6931472
      %v1345 = vmul.f32 -0.5, %v783
      %v1346 = vadd.f32 %v1345, 1.0
      %v1347 = vmul.f32 %v1346, %v783
      %v1348 = vand.u32 2147483647, %v783
      %vm1349 = vcmp.lt.f32.partialorder %v1348, 0.0004427343
      %v1350 = vsel %vm1349, %v1347, %v1344
      %v1351 = vadd.f32 %v785, 1.0
      %v1352 = vlog2.pop %v1351
      %v1353 = vmul.f32 %v1352, 0.6931472
      %v1354 = vmul.f32 -0.5, %v785
      %v1355 = vadd.f32 %v1354, 1.0
      %v1356 = vmul.f32 %v1355, %v785
      %v1357 = vand.u32 2147483647, %v785
      %vm1358 = vcmp.lt.f32.partialorder %v1357, 0.0004427343
      %v1359 = vsel %vm1358, %v1356, %v1353
      %v1360 = vadd.f32 %v787, 1.0
      %v1361 = vlog2.pop %v1360
      %v1362 = vmul.f32 %v1361, 0.6931472
      %v1363 = vmul.f32 -0.5, %v787
      %v1364 = vadd.f32 %v1363, 1.0
      %v1365 = vmul.f32 %v1364, %v787
      %v1366 = vand.u32 2147483647, %v787
      %vm1367 = vcmp.lt.f32.partialorder %v1366, 0.0004427343
      %v1368 = vsel %vm1367, %v1365, %v1362
      %v1369 = vadd.f32 %v789, 1.0
      %v1370 = vlog2.pop %v1369
      %v1371 = vmul.f32 %v1370, 0.6931472
      %v1372 = vmul.f32 -0.5, %v789
      %v1373 = vadd.f32 %v1372, 1.0
      %v1374 = vmul.f32 %v1373, %v789
      %v1375 = vand.u32 2147483647, %v789
      %vm1376 = vcmp.lt.f32.partialorder %v1375, 0.0004427343
      %v1377 = vsel %vm1376, %v1374, %v1371
      %v1378 = vadd.f32 %v791, 1.0
      %v1379 = vlog2.pop %v1378
      %v1380 = vmul.f32 %v1379, 0.6931472
      %v1381 = vmul.f32 -0.5, %v791
      %v1382 = vadd.f32 %v1381, 1.0
      %v1383 = vmul.f32 %v1382, %v791
      %v1384 = vand.u32 2147483647, %v791
      %vm1385 = vcmp.lt.f32.partialorder %v1384, 0.0004427343
      %v1386 = vsel %vm1385, %v1383, %v1380
      %v1387 = vadd.f32 %v793, 1.0
      %v1388 = vlog2.pop %v1387
      %v1389 = vmul.f32 %v1388, 0.6931472
      %v1390 = vmul.f32 -0.5, %v793
      %v1391 = vadd.f32 %v1390, 1.0
      %v1392 = vmul.f32 %v1391, %v793
      %v1393 = vand.u32 2147483647, %v793
      %vm1394 = vcmp.lt.f32.partialorder %v1393, 0.0004427343
      %v1395 = vsel %vm1394, %v1392, %v1389
      %v1396 = vadd.f32 %v795, 1.0
      %v1397 = vlog2.pop %v1396
      %v1398 = vmul.f32 %v1397, 0.6931472
      %v1399 = vmul.f32 -0.5, %v795
      %v1400 = vadd.f32 %v1399, 1.0
      %v1401 = vmul.f32 %v1400, %v795
      %v1402 = vand.u32 2147483647, %v795
      %vm1403 = vcmp.lt.f32.partialorder %v1402, 0.0004427343
      %v1404 = vsel %vm1403, %v1401, %v1398
      %v1405 = vadd.f32 %v797, 1.0
      %v1406 = vlog2.pop %v1405
      %v1407 = vmul.f32 %v1406, 0.6931472
      %v1408 = vmul.f32 -0.5, %v797
      %v1409 = vadd.f32 %v1408, 1.0
      %v1410 = vmul.f32 %v1409, %v797
      %v1411 = vand.u32 2147483647, %v797
      %vm1412 = vcmp.lt.f32.partialorder %v1411, 0.0004427343
      %v1413 = vsel %vm1412, %v1410, %v1407
      %v1414 = vadd.f32 %v799, 1.0
      %v1415 = vlog2.pop %v1414
      %v1416 = vmul.f32 %v1415, 0.6931472
      %v1417 = vmul.f32 -0.5, %v799
      %v1418 = vadd.f32 %v1417, 1.0
      %v1419 = vmul.f32 %v1418, %v799
      %v1420 = vand.u32 2147483647, %v799
      %vm1421 = vcmp.lt.f32.partialorder %v1420, 0.0004427343
      %v1422 = vsel %vm1421, %v1419, %v1416
      %v1423 = vadd.f32 %v801, 1.0
      %v1424 = vlog2.pop %v1423
      %v1425 = vmul.f32 %v1424, 0.6931472
      %v1426 = vmul.f32 -0.5, %v801
      %v1427 = vadd.f32 %v1426, 1.0
      %v1428 = vmul.f32 %v1427, %v801
      %v1429 = vand.u32 2147483647, %v801
      %vm1430 = vcmp.lt.f32.partialorder %v1429, 0.0004427343
      %v1431 = vsel %vm1430, %v1428, %v1425
      %v1432 = vadd.f32 %v803, 1.0
      %v1433 = vlog2.pop %v1432
      %v1434 = vmul.f32 %v1433, 0.6931472
      %v1435 = vmul.f32 -0.5, %v803
      %v1436 = vadd.f32 %v1435, 1.0
      %v1437 = vmul.f32 %v1436, %v803
      %v1438 = vand.u32 2147483647, %v803
      %vm1439 = vcmp.lt.f32.partialorder %v1438, 0.0004427343
      %v1440 = vsel %vm1439, %v1437, %v1434
      %v1441 = vadd.f32 %v805, 1.0
      %v1442 = vlog2.pop %v1441
      %v1443 = vmul.f32 %v1442, 0.6931472
      %v1444 = vmul.f32 -0.5, %v805
      %v1445 = vadd.f32 %v1444, 1.0
      %v1446 = vmul.f32 %v1445, %v805
      %v1447 = vand.u32 2147483647, %v805
      %vm1448 = vcmp.lt.f32.partialorder %v1447, 0.0004427343
      %v1449 = vsel %vm1448, %v1446, %v1443
      %v1450 = vadd.f32 %v807, 1.0
      %v1451 = vlog2.pop %v1450
      %v1452 = vmul.f32 %v1451, 0.6931472
      %v1453 = vmul.f32 -0.5, %v807
      %v1454 = vadd.f32 %v1453, 1.0
      %v1455 = vmul.f32 %v1454, %v807
      %v1456 = vand.u32 2147483647, %v807
      %vm1457 = vcmp.lt.f32.partialorder %v1456, 0.0004427343
      %v1458 = vsel %vm1457, %v1455, %v1452
      %v1459 = vadd.f32 %v809, 1.0
      %v1460 = vlog2.pop %v1459
      %v1461 = vmul.f32 %v1460, 0.6931472
      %v1462 = vmul.f32 -0.5, %v809
      %v1463 = vadd.f32 %v1462, 1.0
      %v1464 = vmul.f32 %v1463, %v809
      %v1465 = vand.u32 2147483647, %v809
      %vm1466 = vcmp.lt.f32.partialorder %v1465, 0.0004427343
      %v1467 = vsel %vm1466, %v1464, %v1461
      %v1468 = vadd.f32 %v811, 1.0
      %v1469 = vlog2.pop %v1468
      %v1470 = vmul.f32 %v1469, 0.6931472
      %v1471 = vmul.f32 -0.5, %v811
      %v1472 = vadd.f32 %v1471, 1.0
      %v1473 = vmul.f32 %v1472, %v811
      %v1474 = vand.u32 2147483647, %v811
      %vm1475 = vcmp.lt.f32.partialorder %v1474, 0.0004427343
      %v1476 = vsel %vm1475, %v1473, %v1470
      %v1477 = vadd.f32 %v813, 1.0
      %v1478 = vlog2.pop %v1477
      %v1479 = vmul.f32 %v1478, 0.6931472
      %v1480 = vmul.f32 -0.5, %v813
      %v1481 = vadd.f32 %v1480, 1.0
      %v1482 = vmul.f32 %v1481, %v813
      %v1483 = vand.u32 2147483647, %v813
      %vm1484 = vcmp.lt.f32.partialorder %v1483, 0.0004427343
      %v1485 = vsel %vm1484, %v1482, %v1479
      %v1486 = vadd.f32 %v815, 1.0
      %v1487 = vlog2.pop %v1486
      %v1488 = vmul.f32 %v1487, 0.6931472
      %v1489 = vmul.f32 -0.5, %v815
      %v1490 = vadd.f32 %v1489, 1.0
      %v1491 = vmul.f32 %v1490, %v815
      %v1492 = vand.u32 2147483647, %v815
      %vm1493 = vcmp.lt.f32.partialorder %v1492, 0.0004427343
      %v1494 = vsel %vm1493, %v1491, %v1488
      %v1495 = vadd.f32 %v817, 1.0
      %v1496 = vlog2.pop %v1495
      %v1497 = vmul.f32 %v1496, 0.6931472
      %v1498 = vmul.f32 -0.5, %v817
      %v1499 = vadd.f32 %v1498, 1.0
      %v1500 = vmul.f32 %v1499, %v817
      %v1501 = vand.u32 2147483647, %v817
      %vm1502 = vcmp.lt.f32.partialorder %v1501, 0.0004427343
      %v1503 = vsel %vm1502, %v1500, %v1497
      %v1504 = vadd.f32 %v819, 1.0
      %v1505 = vlog2.pop %v1504
      %v1506 = vmul.f32 %v1505, 0.6931472
      %v1507 = vmul.f32 -0.5, %v819
      %v1508 = vadd.f32 %v1507, 1.0
      %v1509 = vmul.f32 %v1508, %v819
      %v1510 = vand.u32 2147483647, %v819
      %vm1511 = vcmp.lt.f32.partialorder %v1510, 0.0004427343
      %v1512 = vsel %vm1511, %v1509, %v1506
      %v1513 = vadd.f32 %v821, 1.0
      %v1514 = vlog2.pop %v1513
      %v1515 = vmul.f32 %v1514, 0.6931472
      %v1516 = vmul.f32 -0.5, %v821
      %v1517 = vadd.f32 %v1516, 1.0
      %v1518 = vmul.f32 %v1517, %v821
      %v1519 = vand.u32 2147483647, %v821
      %vm1520 = vcmp.lt.f32.partialorder %v1519, 0.0004427343
      %v1521 = vsel %vm1520, %v1518, %v1515
      %v1522 = vadd.f32 %v823, 1.0
      %v1523 = vlog2.pop %v1522
      %v1524 = vmul.f32 %v1523, 0.6931472
      %v1525 = vmul.f32 -0.5, %v823
      %v1526 = vadd.f32 %v1525, 1.0
      %v1527 = vmul.f32 %v1526, %v823
      %v1528 = vand.u32 2147483647, %v823
      %vm1529 = vcmp.lt.f32.partialorder %v1528, 0.0004427343
      %v1530 = vsel %vm1529, %v1527, %v1524
      %v1531 = vadd.f32 %v825, 1.0
      %v1532 = vlog2.pop %v1531
      %v1533 = vmul.f32 %v1532, 0.6931472
      %v1534 = vmul.f32 -0.5, %v825
      %v1535 = vadd.f32 %v1534, 1.0
      %v1536 = vmul.f32 %v1535, %v825
      %v1537 = vand.u32 2147483647, %v825
      %vm1538 = vcmp.lt.f32.partialorder %v1537, 0.0004427343
      %v1539 = vsel %vm1538, %v1536, %v1533
      %v1540 = vadd.f32 %v827, 1.0
      %v1541 = vlog2.pop %v1540
      %v1542 = vmul.f32 %v1541, 0.6931472
      %v1543 = vmul.f32 -0.5, %v827
      %v1544 = vadd.f32 %v1543, 1.0
      %v1545 = vmul.f32 %v1544, %v827
      %v1546 = vand.u32 2147483647, %v827
      %vm1547 = vcmp.lt.f32.partialorder %v1546, 0.0004427343
      %v1548 = vsel %vm1547, %v1545, %v1542
      %v1549 = vadd.f32 %v829, 1.0
      %v1550 = vlog2.pop %v1549
      %v1551 = vmul.f32 %v1550, 0.6931472
      %v1552 = vmul.f32 -0.5, %v829
      %v1553 = vadd.f32 %v1552, 1.0
      %v1554 = vmul.f32 %v1553, %v829
      %v1555 = vand.u32 2147483647, %v829
      %vm1556 = vcmp.lt.f32.partialorder %v1555, 0.0004427343
      %v1557 = vsel %vm1556, %v1554, %v1551
      %v1558 = vadd.f32 %v831, 1.0
      %v1559 = vlog2.pop %v1558
      %v1560 = vmul.f32 %v1559, 0.6931472
      %v1561 = vmul.f32 -0.5, %v831
      %v1562 = vadd.f32 %v1561, 1.0
      %v1563 = vmul.f32 %v1562, %v831
      %v1564 = vand.u32 2147483647, %v831
      %vm1565 = vcmp.lt.f32.partialorder %v1564, 0.0004427343
      %v1566 = vsel %vm1565, %v1563, %v1560
      %v1567 = vadd.f32 %v833, 1.0
      %v1568 = vlog2.pop %v1567
      %v1569 = vmul.f32 %v1568, 0.6931472
      %v1570 = vmul.f32 -0.5, %v833
      %v1571 = vadd.f32 %v1570, 1.0
      %v1572 = vmul.f32 %v1571, %v833
      %v1573 = vand.u32 2147483647, %v833
      %vm1574 = vcmp.lt.f32.partialorder %v1573, 0.0004427343
      %v1575 = vsel %vm1574, %v1572, %v1569
      %v1576 = vadd.f32 %v835, 1.0
      %v1577 = vlog2.pop %v1576
      %v1578 = vmul.f32 %v1577, 0.6931472
      %v1579 = vmul.f32 -0.5, %v835
      %v1580 = vadd.f32 %v1579, 1.0
      %v1581 = vmul.f32 %v1580, %v835
      %v1582 = vand.u32 2147483647, %v835
      %vm1583 = vcmp.lt.f32.partialorder %v1582, 0.0004427343
      %v1584 = vsel %vm1583, %v1581, %v1578
      %v1585 = vadd.f32 %v837, 1.0
      %v1586 = vlog2.pop %v1585
      %v1587 = vmul.f32 %v1586, 0.6931472
      %v1588 = vmul.f32 -0.5, %v837
      %v1589 = vadd.f32 %v1588, 1.0
      %v1590 = vmul.f32 %v1589, %v837
      %v1591 = vand.u32 2147483647, %v837
      %vm1592 = vcmp.lt.f32.partialorder %v1591, 0.0004427343
      %v1593 = vsel %vm1592, %v1590, %v1587
      %v1594 = vadd.f32 %v839, 1.0
      %v1595 = vlog2.pop %v1594
      %v1596 = vmul.f32 %v1595, 0.6931472
      %v1597 = vmul.f32 -0.5, %v839
      %v1598 = vadd.f32 %v1597, 1.0
      %v1599 = vmul.f32 %v1598, %v839
      %v1600 = vand.u32 2147483647, %v839
      %vm1601 = vcmp.lt.f32.partialorder %v1600, 0.0004427343
      %v1602 = vsel %vm1601, %v1599, %v1596
      %v1603 = vadd.f32 %v841, 1.0
      %v1604 = vlog2.pop %v1603
      %v1605 = vmul.f32 %v1604, 0.6931472
      %v1606 = vmul.f32 -0.5, %v841
      %v1607 = vadd.f32 %v1606, 1.0
      %v1608 = vmul.f32 %v1607, %v841
      %v1609 = vand.u32 2147483647, %v841
      %vm1610 = vcmp.lt.f32.partialorder %v1609, 0.0004427343
      %v1611 = vsel %vm1610, %v1608, %v1605
      %v1612 = vadd.f32 %v843, 1.0
      %v1613 = vlog2.pop %v1612
      %v1614 = vmul.f32 %v1613, 0.6931472
      %v1615 = vmul.f32 -0.5, %v843
      %v1616 = vadd.f32 %v1615, 1.0
      %v1617 = vmul.f32 %v1616, %v843
      %v1618 = vand.u32 2147483647, %v843
      %vm1619 = vcmp.lt.f32.partialorder %v1618, 0.0004427343
      %v1620 = vsel %vm1619, %v1617, %v1614
      %v1621 = vadd.f32 %v845, 1.0
      %v1622 = vlog2.pop %v1621
      %v1623 = vmul.f32 %v1622, 0.6931472
      %v1624 = vmul.f32 -0.5, %v845
      %v1625 = vadd.f32 %v1624, 1.0
      %v1626 = vmul.f32 %v1625, %v845
      %v1627 = vand.u32 2147483647, %v845
      %vm1628 = vcmp.lt.f32.partialorder %v1627, 0.0004427343
      %v1629 = vsel %vm1628, %v1626, %v1623
      %v1630 = vadd.f32 %v847, 1.0
      %v1631 = vlog2.pop %v1630
      %v1632 = vmul.f32 %v1631, 0.6931472
      %v1633 = vmul.f32 -0.5, %v847
      %v1634 = vadd.f32 %v1633, 1.0
      %v1635 = vmul.f32 %v1634, %v847
      %v1636 = vand.u32 2147483647, %v847
      %vm1637 = vcmp.lt.f32.partialorder %v1636, 0.0004427343
      %v1638 = vsel %vm1637, %v1635, %v1632
      %v1639 = vadd.f32 %v849, 1.0
      %v1640 = vlog2.pop %v1639
      %v1641 = vmul.f32 %v1640, 0.6931472
      %v1642 = vmul.f32 -0.5, %v849
      %v1643 = vadd.f32 %v1642, 1.0
      %v1644 = vmul.f32 %v1643, %v849
      %v1645 = vand.u32 2147483647, %v849
      %vm1646 = vcmp.lt.f32.partialorder %v1645, 0.0004427343
      %v1647 = vsel %vm1646, %v1644, %v1641
      %v1648 = vadd.f32 %v851, 1.0
      %v1649 = vlog2.pop %v1648
      %v1650 = vmul.f32 %v1649, 0.6931472
      %v1651 = vmul.f32 -0.5, %v851
      %v1652 = vadd.f32 %v1651, 1.0
      %v1653 = vmul.f32 %v1652, %v851
      %v1654 = vand.u32 2147483647, %v851
      %vm1655 = vcmp.lt.f32.partialorder %v1654, 0.0004427343
      %v1656 = vsel %vm1655, %v1653, %v1650
      %v1657 = vadd.f32 %v853, 1.0
      %v1658 = vlog2.pop %v1657
      %v1659 = vmul.f32 %v1658, 0.6931472
      %v1660 = vmul.f32 -0.5, %v853
      %v1661 = vadd.f32 %v1660, 1.0
      %v1662 = vmul.f32 %v1661, %v853
      %v1663 = vand.u32 2147483647, %v853
      %vm1664 = vcmp.lt.f32.partialorder %v1663, 0.0004427343
      %v1665 = vsel %vm1664, %v1662, %v1659
      %v1666 = vadd.f32 %v855, 1.0
      %v1667 = vlog2.pop %v1666
      %v1668 = vmul.f32 %v1667, 0.6931472
      %v1669 = vmul.f32 -0.5, %v855
      %v1670 = vadd.f32 %v1669, 1.0
      %v1671 = vmul.f32 %v1670, %v855
      %v1672 = vand.u32 2147483647, %v855
      %vm1673 = vcmp.lt.f32.partialorder %v1672, 0.0004427343
      %v1674 = vsel %vm1673, %v1671, %v1668
      %v1675 = vadd.f32 %v857, 1.0
      %v1676 = vlog2.pop %v1675
      %v1677 = vmul.f32 %v1676, 0.6931472
      %v1678 = vmul.f32 -0.5, %v857
      %v1679 = vadd.f32 %v1678, 1.0
      %v1680 = vmul.f32 %v1679, %v857
      %v1681 = vand.u32 2147483647, %v857
      %vm1682 = vcmp.lt.f32.partialorder %v1681, 0.0004427343
      %v1683 = vsel %vm1682, %v1680, %v1677
      %v1684 = vadd.f32 %v859, 1.0
      %v1685 = vlog2.pop %v1684
      %v1686 = vmul.f32 %v1685, 0.6931472
      %v1687 = vmul.f32 -0.5, %v859
      %v1688 = vadd.f32 %v1687, 1.0
      %v1689 = vmul.f32 %v1688, %v859
      %v1690 = vand.u32 2147483647, %v859
      %vm1691 = vcmp.lt.f32.partialorder %v1690, 0.0004427343
      %v1692 = vsel %vm1691, %v1689, %v1686
      %v1693 = vadd.f32 %v861, 1.0
      %v1694 = vlog2.pop %v1693
      %v1695 = vmul.f32 %v1694, 0.6931472
      %v1696 = vmul.f32 -0.5, %v861
      %v1697 = vadd.f32 %v1696, 1.0
      %v1698 = vmul.f32 %v1697, %v861
      %v1699 = vand.u32 2147483647, %v861
      %vm1700 = vcmp.lt.f32.partialorder %v1699, 0.0004427343
      %v1701 = vsel %vm1700, %v1698, %v1695
      %v1702 = vadd.f32 %v863, 1.0
      %v1703 = vlog2.pop %v1702
      %v1704 = vmul.f32 %v1703, 0.6931472
      %v1705 = vmul.f32 -0.5, %v863
      %v1706 = vadd.f32 %v1705, 1.0
      %v1707 = vmul.f32 %v1706, %v863
      %v1708 = vand.u32 2147483647, %v863
      %vm1709 = vcmp.lt.f32.partialorder %v1708, 0.0004427343
      %v1710 = vsel %vm1709, %v1707, %v1704
      %v1711 = vadd.f32 %v865, 1.0
      %v1712 = vlog2.pop %v1711
      %v1713 = vmul.f32 %v1712, 0.6931472
      %v1714 = vmul.f32 -0.5, %v865
      %v1715 = vadd.f32 %v1714, 1.0
      %v1716 = vmul.f32 %v1715, %v865
      %v1717 = vand.u32 2147483647, %v865
      %vm1718 = vcmp.lt.f32.partialorder %v1717, 0.0004427343
      %v1719 = vsel %vm1718, %v1716, %v1713
      %v1720 = vadd.f32 %v867, 1.0
      %v1721 = vlog2.pop %v1720
      %v1722 = vmul.f32 %v1721, 0.6931472
      %v1723 = vmul.f32 -0.5, %v867
      %v1724 = vadd.f32 %v1723, 1.0
      %v1725 = vmul.f32 %v1724, %v867
      %v1726 = vand.u32 2147483647, %v867
      %vm1727 = vcmp.lt.f32.partialorder %v1726, 0.0004427343
      %v1728 = vsel %vm1727, %v1725, %v1722
      %v1729 = vadd.f32 %v869, 1.0
      %v1730 = vlog2.pop %v1729
      %v1731 = vmul.f32 %v1730, 0.6931472
      %v1732 = vmul.f32 -0.5, %v869
      %v1733 = vadd.f32 %v1732, 1.0
      %v1734 = vmul.f32 %v1733, %v869
      %v1735 = vand.u32 2147483647, %v869
      %vm1736 = vcmp.lt.f32.partialorder %v1735, 0.0004427343
      %v1737 = vsel %vm1736, %v1734, %v1731
      %v1738 = vadd.f32 %v871, 1.0
      %v1739 = vlog2.pop %v1738
      %v1740 = vmul.f32 %v1739, 0.6931472
      %v1741 = vmul.f32 -0.5, %v871
      %v1742 = vadd.f32 %v1741, 1.0
      %v1743 = vmul.f32 %v1742, %v871
      %v1744 = vand.u32 2147483647, %v871
      %vm1745 = vcmp.lt.f32.partialorder %v1744, 0.0004427343
      %v1746 = vsel %vm1745, %v1743, %v1740
      %v1747 = vadd.f32 %v873, 1.0
      %v1748 = vlog2.pop %v1747
      %v1749 = vmul.f32 %v1748, 0.6931472
      %v1750 = vmul.f32 -0.5, %v873
      %v1751 = vadd.f32 %v1750, 1.0
      %v1752 = vmul.f32 %v1751, %v873
      %v1753 = vand.u32 2147483647, %v873
      %vm1754 = vcmp.lt.f32.partialorder %v1753, 0.0004427343
      %v1755 = vsel %vm1754, %v1752, %v1749
      %v1756 = vadd.f32 %v875, 1.0
      %v1757 = vlog2.pop %v1756
      %v1758 = vmul.f32 %v1757, 0.6931472
      %v1759 = vmul.f32 -0.5, %v875
      %v1760 = vadd.f32 %v1759, 1.0
      %v1761 = vmul.f32 %v1760, %v875
      %v1762 = vand.u32 2147483647, %v875
      %vm1763 = vcmp.lt.f32.partialorder %v1762, 0.0004427343
      %v1764 = vsel %vm1763, %v1761, %v1758
      %v1765 = vadd.f32 %v877, 1.0
      %v1766 = vlog2.pop %v1765
      %v1767 = vmul.f32 %v1766, 0.6931472
      %v1768 = vmul.f32 -0.5, %v877
      %v1769 = vadd.f32 %v1768, 1.0
      %v1770 = vmul.f32 %v1769, %v877
      %v1771 = vand.u32 2147483647, %v877
      %vm1772 = vcmp.lt.f32.partialorder %v1771, 0.0004427343
      %v1773 = vsel %vm1772, %v1770, %v1767
      %v1774 = vadd.f32 %v879, 1.0
      %v1775 = vlog2.pop %v1774
      %v1776 = vmul.f32 %v1775, 0.6931472
      %v1777 = vmul.f32 -0.5, %v879
      %v1778 = vadd.f32 %v1777, 1.0
      %v1779 = vmul.f32 %v1778, %v879
      %v1780 = vand.u32 2147483647, %v879
      %vm1781 = vcmp.lt.f32.partialorder %v1780, 0.0004427343
      %v1782 = vsel %vm1781, %v1779, %v1776
      %v1783 = vadd.f32 %v881, 1.0
      %v1784 = vlog2.pop %v1783
      %v1785 = vmul.f32 %v1784, 0.6931472
      %v1786 = vmul.f32 -0.5, %v881
      %v1787 = vadd.f32 %v1786, 1.0
      %v1788 = vmul.f32 %v1787, %v881
      %v1789 = vand.u32 2147483647, %v881
      %vm1790 = vcmp.lt.f32.partialorder %v1789, 0.0004427343
      %v1791 = vsel %vm1790, %v1788, %v1785
      %v1792 = vadd.f32 %v883, 1.0
      %v1793 = vlog2.pop %v1792
      %v1794 = vmul.f32 %v1793, 0.6931472
      %v1795 = vmul.f32 -0.5, %v883
      %v1796 = vadd.f32 %v1795, 1.0
      %v1797 = vmul.f32 %v1796, %v883
      %v1798 = vand.u32 2147483647, %v883
      %vm1799 = vcmp.lt.f32.partialorder %v1798, 0.0004427343
      %v1800 = vsel %vm1799, %v1797, %v1794
      %v1801 = vadd.f32 %v885, 1.0
      %v1802 = vlog2.pop %v1801
      %v1803 = vmul.f32 %v1802, 0.6931472
      %v1804 = vmul.f32 -0.5, %v885
      %v1805 = vadd.f32 %v1804, 1.0
      %v1806 = vmul.f32 %v1805, %v885
      %v1807 = vand.u32 2147483647, %v885
      %vm1808 = vcmp.lt.f32.partialorder %v1807, 0.0004427343
      %v1809 = vsel %vm1808, %v1806, %v1803
      %v1810 = vadd.f32 %v887, 1.0
      %v1811 = vlog2.pop %v1810
      %v1812 = vmul.f32 %v1811, 0.6931472
      %v1813 = vmul.f32 -0.5, %v887
      %v1814 = vadd.f32 %v1813, 1.0
      %v1815 = vmul.f32 %v1814, %v887
      %v1816 = vand.u32 2147483647, %v887
      %vm1817 = vcmp.lt.f32.partialorder %v1816, 0.0004427343
      %v1818 = vsel %vm1817, %v1815, %v1812
      %v1819 = vadd.f32 %v889, 1.0
      %v1820 = vlog2.pop %v1819
      %v1821 = vmul.f32 %v1820, 0.6931472
      %v1822 = vmul.f32 -0.5, %v889
      %v1823 = vadd.f32 %v1822, 1.0
      %v1824 = vmul.f32 %v1823, %v889
      %v1825 = vand.u32 2147483647, %v889
      %vm1826 = vcmp.lt.f32.partialorder %v1825, 0.0004427343
      %v1827 = vsel %vm1826, %v1824, %v1821
      %v1828 = vadd.f32 %v891, 1.0
      %v1829 = vlog2.pop %v1828
      %v1830 = vmul.f32 %v1829, 0.6931472
      %v1831 = vmul.f32 -0.5, %v891
      %v1832 = vadd.f32 %v1831, 1.0
      %v1833 = vmul.f32 %v1832, %v891
      %v1834 = vand.u32 2147483647, %v891
      %vm1835 = vcmp.lt.f32.partialorder %v1834, 0.0004427343
      %v1836 = vsel %vm1835, %v1833, %v1830
      %v1837 = vadd.f32 %v893, 1.0
      %v1838 = vlog2.pop %v1837
      %v1839 = vmul.f32 %v1838, 0.6931472
      %v1840 = vmul.f32 -0.5, %v893
      %v1841 = vadd.f32 %v1840, 1.0
      %v1842 = vmul.f32 %v1841, %v893
      %v1843 = vand.u32 2147483647, %v893
      %vm1844 = vcmp.lt.f32.partialorder %v1843, 0.0004427343
      %v1845 = vsel %vm1844, %v1842, %v1839
      %v1846 = vadd.f32 %v895, 1.0
      %v1847 = vlog2.pop %v1846
      %v1848 = vmul.f32 %v1847, 0.6931472
      %v1849 = vmul.f32 -0.5, %v895
      %v1850 = vadd.f32 %v1849, 1.0
      %v1851 = vmul.f32 %v1850, %v895
      %v1852 = vand.u32 2147483647, %v895
      %vm1853 = vcmp.lt.f32.partialorder %v1852, 0.0004427343
      %v1854 = vsel %vm1853, %v1851, %v1848
      %v1855 = vadd.f32 %v897, 1.0
      %v1856 = vlog2.pop %v1855
      %v1857 = vmul.f32 %v1856, 0.6931472
      %v1858 = vmul.f32 -0.5, %v897
      %v1859 = vadd.f32 %v1858, 1.0
      %v1860 = vmul.f32 %v1859, %v897
      %v1861 = vand.u32 2147483647, %v897
      %vm1862 = vcmp.lt.f32.partialorder %v1861, 0.0004427343
      %v1863 = vsel %vm1862, %v1860, %v1857
      %v1864 = vadd.f32 %v899, 1.0
      %v1865 = vlog2.pop %v1864
      %v1866 = vmul.f32 %v1865, 0.6931472
      %v1867 = vmul.f32 -0.5, %v899
      %v1868 = vadd.f32 %v1867, 1.0
      %v1869 = vmul.f32 %v1868, %v899
      %v1870 = vand.u32 2147483647, %v899
      %vm1871 = vcmp.lt.f32.partialorder %v1870, 0.0004427343
      %v1872 = vsel %vm1871, %v1869, %v1866
      %v1873 = vadd.f32 %v901, 1.0
      %v1874 = vlog2.pop %v1873
      %v1875 = vmul.f32 %v1874, 0.6931472
      %v1876 = vmul.f32 -0.5, %v901
      %v1877 = vadd.f32 %v1876, 1.0
      %v1878 = vmul.f32 %v1877, %v901
      %v1879 = vand.u32 2147483647, %v901
      %vm1880 = vcmp.lt.f32.partialorder %v1879, 0.0004427343
      %v1881 = vsel %vm1880, %v1878, %v1875
      %v1882 = vadd.f32 %v903, 1.0
      %v1883 = vlog2.pop %v1882
      %v1884 = vmul.f32 %v1883, 0.6931472
      %v1885 = vmul.f32 -0.5, %v903
      %v1886 = vadd.f32 %v1885, 1.0
      %v1887 = vmul.f32 %v1886, %v903
      %v1888 = vand.u32 2147483647, %v903
      %vm1889 = vcmp.lt.f32.partialorder %v1888, 0.0004427343
      %v1890 = vsel %vm1889, %v1887, %v1884
      %v1891 = vadd.f32 %v905, 1.0
      %v1892 = vlog2.pop %v1891
      %v1893 = vmul.f32 %v1892, 0.6931472
      %v1894 = vmul.f32 -0.5, %v905
      %v1895 = vadd.f32 %v1894, 1.0
      %v1896 = vmul.f32 %v1895, %v905
      %v1897 = vand.u32 2147483647, %v905
      %vm1898 = vcmp.lt.f32.partialorder %v1897, 0.0004427343
      %v1899 = vsel %vm1898, %v1896, %v1893
      %v1900 = vadd.f32 %v907, 1.0
      %v1901 = vlog2.pop %v1900
      %v1902 = vmul.f32 %v1901, 0.6931472
      %v1903 = vmul.f32 -0.5, %v907
      %v1904 = vadd.f32 %v1903, 1.0
      %v1905 = vmul.f32 %v1904, %v907
      %v1906 = vand.u32 2147483647, %v907
      %vm1907 = vcmp.lt.f32.partialorder %v1906, 0.0004427343
      %v1908 = vsel %vm1907, %v1905, %v1902
      %v1909 = vadd.f32 %v909, 1.0
      %v1910 = vlog2.pop %v1909
      %v1911 = vmul.f32 %v1910, 0.6931472
      %v1912 = vmul.f32 -0.5, %v909
      %v1913 = vadd.f32 %v1912, 1.0
      %v1914 = vmul.f32 %v1913, %v909
      %v1915 = vand.u32 2147483647, %v909
      %vm1916 = vcmp.lt.f32.partialorder %v1915, 0.0004427343
      %v1917 = vsel %vm1916, %v1914, %v1911
      %v1918 = vadd.f32 %v911, 1.0
      %v1919 = vlog2.pop %v1918
      %v1920 = vmul.f32 %v1919, 0.6931472
      %v1921 = vmul.f32 -0.5, %v911
      %v1922 = vadd.f32 %v1921, 1.0
      %v1923 = vmul.f32 %v1922, %v911
      %v1924 = vand.u32 2147483647, %v911
      %vm1925 = vcmp.lt.f32.partialorder %v1924, 0.0004427343
      %v1926 = vsel %vm1925, %v1923, %v1920
      %v1927 = vadd.f32 %v913, 1.0
      %v1928 = vlog2.pop %v1927
      %v1929 = vmul.f32 %v1928, 0.6931472
      %v1930 = vmul.f32 -0.5, %v913
      %v1931 = vadd.f32 %v1930, 1.0
      %v1932 = vmul.f32 %v1931, %v913
      %v1933 = vand.u32 2147483647, %v913
      %vm1934 = vcmp.lt.f32.partialorder %v1933, 0.0004427343
      %v1935 = vsel %vm1934, %v1932, %v1929
      %v1936 = vadd.f32 %v915, 1.0
      %v1937 = vlog2.pop %v1936
      %v1938 = vmul.f32 %v1937, 0.6931472
      %v1939 = vmul.f32 -0.5, %v915
      %v1940 = vadd.f32 %v1939, 1.0
      %v1941 = vmul.f32 %v1940, %v915
      %v1942 = vand.u32 2147483647, %v915
      %vm1943 = vcmp.lt.f32.partialorder %v1942, 0.0004427343
      %v1944 = vsel %vm1943, %v1941, %v1938
      %v1945 = vadd.f32 %v917, 1.0
      %v1946 = vlog2.pop %v1945
      %v1947 = vmul.f32 %v1946, 0.6931472
      %v1948 = vmul.f32 -0.5, %v917
      %v1949 = vadd.f32 %v1948, 1.0
      %v1950 = vmul.f32 %v1949, %v917
      %v1951 = vand.u32 2147483647, %v917
      %vm1952 = vcmp.lt.f32.partialorder %v1951, 0.0004427343
      %v1953 = vsel %vm1952, %v1950, %v1947
      %v1954 = vadd.f32 %v919, 1.0
      %v1955 = vlog2.pop %v1954
      %v1956 = vmul.f32 %v1955, 0.6931472
      %v1957 = vmul.f32 -0.5, %v919
      %v1958 = vadd.f32 %v1957, 1.0
      %v1959 = vmul.f32 %v1958, %v919
      %v1960 = vand.u32 2147483647, %v919
      %vm1961 = vcmp.lt.f32.partialorder %v1960, 0.0004427343
      %v1962 = vsel %vm1961, %v1959, %v1956
      %v1963 = vadd.f32 %v921, 1.0
      %v1964 = vlog2.pop %v1963
      %v1965 = vmul.f32 %v1964, 0.6931472
      %v1966 = vmul.f32 -0.5, %v921
      %v1967 = vadd.f32 %v1966, 1.0
      %v1968 = vmul.f32 %v1967, %v921
      %v1969 = vand.u32 2147483647, %v921
      %vm1970 = vcmp.lt.f32.partialorder %v1969, 0.0004427343
      %v1971 = vsel %vm1970, %v1968, %v1965
      %v1972 = vadd.f32 %v923, 1.0
      %v1973 = vlog2.pop %v1972
      %v1974 = vmul.f32 %v1973, 0.6931472
      %v1975 = vmul.f32 -0.5, %v923
      %v1976 = vadd.f32 %v1975, 1.0
      %v1977 = vmul.f32 %v1976, %v923
      %v1978 = vand.u32 2147483647, %v923
      %vm1979 = vcmp.lt.f32.partialorder %v1978, 0.0004427343
      %v1980 = vsel %vm1979, %v1977, %v1974
      %v1981 = vadd.f32 %v925, 1.0
      %v1982 = vlog2.pop %v1981
      %v1983 = vmul.f32 %v1982, 0.6931472
      %v1984 = vmul.f32 -0.5, %v925
      %v1985 = vadd.f32 %v1984, 1.0
      %v1986 = vmul.f32 %v1985, %v925
      %v1987 = vand.u32 2147483647, %v925
      %vm1988 = vcmp.lt.f32.partialorder %v1987, 0.0004427343
      %v1989 = vsel %vm1988, %v1986, %v1983
      %v1990 = vadd.f32 %v927, 1.0
      %v1991 = vlog2.pop %v1990
      %v1992 = vmul.f32 %v1991, 0.6931472
      %v1993 = vmul.f32 -0.5, %v927
      %v1994 = vadd.f32 %v1993, 1.0
      %v1995 = vmul.f32 %v1994, %v927
      %v1996 = vand.u32 2147483647, %v927
      %vm1997 = vcmp.lt.f32.partialorder %v1996, 0.0004427343
      %v1998 = vsel %vm1997, %v1995, %v1992
      %v1999 = vadd.f32 %v929, 1.0
      %v2000 = vlog2.pop %v1999
      %v2001 = vmul.f32 %v2000, 0.6931472
      %v2002 = vmul.f32 -0.5, %v929
      %v2003 = vadd.f32 %v2002, 1.0
      %v2004 = vmul.f32 %v2003, %v929
      %v2005 = vand.u32 2147483647, %v929
      %vm2006 = vcmp.lt.f32.partialorder %v2005, 0.0004427343
      %v2007 = vsel %vm2006, %v2004, %v2001
      %v2008 = vadd.f32 %v931, 1.0
      %v2009 = vlog2.pop %v2008
      %v2010 = vmul.f32 %v2009, 0.6931472
      %v2011 = vmul.f32 -0.5, %v931
      %v2012 = vadd.f32 %v2011, 1.0
      %v2013 = vmul.f32 %v2012, %v931
      %v2014 = vand.u32 2147483647, %v931
      %vm2015 = vcmp.lt.f32.partialorder %v2014, 0.0004427343
      %v2016 = vsel %vm2015, %v2013, %v2010
      %v2017 = vadd.f32 %v933, 1.0
      %v2018 = vlog2.pop %v2017
      %v2019 = vmul.f32 %v2018, 0.6931472
      %v2020 = vmul.f32 -0.5, %v933
      %v2021 = vadd.f32 %v2020, 1.0
      %v2022 = vmul.f32 %v2021, %v933
      %v2023 = vand.u32 2147483647, %v933
      %vm2024 = vcmp.lt.f32.partialorder %v2023, 0.0004427343
      %v2025 = vsel %vm2024, %v2022, %v2019
      %v2026 = vadd.f32 %v935, 1.0
      %v2027 = vlog2.pop %v2026
      %v2028 = vmul.f32 %v2027, 0.6931472
      %v2029 = vmul.f32 -0.5, %v935
      %v2030 = vadd.f32 %v2029, 1.0
      %v2031 = vmul.f32 %v2030, %v935
      %v2032 = vand.u32 2147483647, %v935
      %vm2033 = vcmp.lt.f32.partialorder %v2032, 0.0004427343
      %v2034 = vsel %vm2033, %v2031, %v2028
      %v2035 = vadd.f32 %v937, 1.0
      %v2036 = vlog2.pop %v2035
      %v2037 = vmul.f32 %v2036, 0.6931472
      %v2038 = vmul.f32 -0.5, %v937
      %v2039 = vadd.f32 %v2038, 1.0
      %v2040 = vmul.f32 %v2039, %v937
      %v2041 = vand.u32 2147483647, %v937
      %vm2042 = vcmp.lt.f32.partialorder %v2041, 0.0004427343
      %v2043 = vsel %vm2042, %v2040, %v2037
      %v2044 = vadd.f32 %v939, 1.0
      %v2045 = vlog2.pop %v2044
      %v2046 = vmul.f32 %v2045, 0.6931472
      %v2047 = vmul.f32 -0.5, %v939
      %v2048 = vadd.f32 %v2047, 1.0
      %v2049 = vmul.f32 %v2048, %v939
      %v2050 = vand.u32 2147483647, %v939
      %vm2051 = vcmp.lt.f32.partialorder %v2050, 0.0004427343
      %v2052 = vsel %vm2051, %v2049, %v2046
      %v2053 = vadd.f32 %v941, 1.0
      %v2054 = vlog2.pop %v2053
      %v2055 = vmul.f32 %v2054, 0.6931472
      %v2056 = vmul.f32 -0.5, %v941
      %v2057 = vadd.f32 %v2056, 1.0
      %v2058 = vmul.f32 %v2057, %v941
      %v2059 = vand.u32 2147483647, %v941
      %vm2060 = vcmp.lt.f32.partialorder %v2059, 0.0004427343
      %v2061 = vsel %vm2060, %v2058, %v2055
      %v2062 = vadd.f32 %v943, 1.0
      %v2063 = vlog2.pop %v2062
      %v2064 = vmul.f32 %v2063, 0.6931472
      %v2065 = vmul.f32 -0.5, %v943
      %v2066 = vadd.f32 %v2065, 1.0
      %v2067 = vmul.f32 %v2066, %v943
      %v2068 = vand.u32 2147483647, %v943
      %vm2069 = vcmp.lt.f32.partialorder %v2068, 0.0004427343
      %v2070 = vsel %vm2069, %v2067, %v2064
      %v2071 = vadd.f32 %v945, 1.0
      %v2072 = vlog2.pop %v2071
      %v2073 = vmul.f32 %v2072, 0.6931472
      %v2074 = vmul.f32 -0.5, %v945
      %v2075 = vadd.f32 %v2074, 1.0
      %v2076 = vmul.f32 %v2075, %v945
      %v2077 = vand.u32 2147483647, %v945
      %vm2078 = vcmp.lt.f32.partialorder %v2077, 0.0004427343
      %v2079 = vsel %vm2078, %v2076, %v2073
      %v2080 = vadd.f32 %v947, 1.0
      %v2081 = vlog2.pop %v2080
      %v2082 = vmul.f32 %v2081, 0.6931472
      %v2083 = vmul.f32 -0.5, %v947
      %v2084 = vadd.f32 %v2083, 1.0
      %v2085 = vmul.f32 %v2084, %v947
      %v2086 = vand.u32 2147483647, %v947
      %vm2087 = vcmp.lt.f32.partialorder %v2086, 0.0004427343
      %v2088 = vsel %vm2087, %v2085, %v2082
      %v2089 = vadd.f32 %v949, 1.0
      %v2090 = vlog2.pop %v2089
      %v2091 = vmul.f32 %v2090, 0.6931472
      %v2092 = vmul.f32 -0.5, %v949
      %v2093 = vadd.f32 %v2092, 1.0
      %v2094 = vmul.f32 %v2093, %v949
      %v2095 = vand.u32 2147483647, %v949
      %vm2096 = vcmp.lt.f32.partialorder %v2095, 0.0004427343
      %v2097 = vsel %vm2096, %v2094, %v2091
      %v2098 = vadd.f32 %v951, 1.0
      %v2099 = vlog2.pop %v2098
      %v2100 = vmul.f32 %v2099, 0.6931472
      %v2101 = vmul.f32 -0.5, %v951
      %v2102 = vadd.f32 %v2101, 1.0
      %v2103 = vmul.f32 %v2102, %v951
      %v2104 = vand.u32 2147483647, %v951
      %vm2105 = vcmp.lt.f32.partialorder %v2104, 0.0004427343
      %v2106 = vsel %vm2105, %v2103, %v2100
      %v2107 = vadd.f32 %v953, 1.0
      %v2108 = vlog2.pop %v2107
      %v2109 = vmul.f32 %v2108, 0.6931472
      %v2110 = vmul.f32 -0.5, %v953
      %v2111 = vadd.f32 %v2110, 1.0
      %v2112 = vmul.f32 %v2111, %v953
      %v2113 = vand.u32 2147483647, %v953
      %vm2114 = vcmp.lt.f32.partialorder %v2113, 0.0004427343
      %v2115 = vsel %vm2114, %v2112, %v2109
      %v2116 = vadd.f32 %v955, 1.0
      %v2117 = vlog2.pop %v2116
      %v2118 = vmul.f32 %v2117, 0.6931472
      %v2119 = vmul.f32 -0.5, %v955
      %v2120 = vadd.f32 %v2119, 1.0
      %v2121 = vmul.f32 %v2120, %v955
      %v2122 = vand.u32 2147483647, %v955
      %vm2123 = vcmp.lt.f32.partialorder %v2122, 0.0004427343
      %v2124 = vsel %vm2123, %v2121, %v2118
      %v2125 = vadd.f32 %v957, 1.0
      %v2126 = vlog2.pop %v2125
      %v2127 = vmul.f32 %v2126, 0.6931472
      %v2128 = vmul.f32 -0.5, %v957
      %v2129 = vadd.f32 %v2128, 1.0
      %v2130 = vmul.f32 %v2129, %v957
      %v2131 = vand.u32 2147483647, %v957
      %vm2132 = vcmp.lt.f32.partialorder %v2131, 0.0004427343
      %v2133 = vsel %vm2132, %v2130, %v2127
      %v2134 = vadd.f32 %v959, 1.0
      %v2135 = vlog2.pop %v2134
      %v2136 = vmul.f32 %v2135, 0.6931472
      %v2137 = vmul.f32 -0.5, %v959
      %v2138 = vadd.f32 %v2137, 1.0
      %v2139 = vmul.f32 %v2138, %v959
      %v2140 = vand.u32 2147483647, %v959
      %vm2141 = vcmp.lt.f32.partialorder %v2140, 0.0004427343
      %v2142 = vsel %vm2141, %v2139, %v2136
      %v2143 = vadd.f32 %v961, 1.0
      %v2144 = vlog2.pop %v2143
      %v2145 = vmul.f32 %v2144, 0.6931472
      %v2146 = vmul.f32 -0.5, %v961
      %v2147 = vadd.f32 %v2146, 1.0
      %v2148 = vmul.f32 %v2147, %v961
      %v2149 = vand.u32 2147483647, %v961
      %vm2150 = vcmp.lt.f32.partialorder %v2149, 0.0004427343
      %v2151 = vsel %vm2150, %v2148, %v2145
      %v2152 = vadd.f32 %v963, 1.0
      %v2153 = vlog2.pop %v2152
      %v2154 = vmul.f32 %v2153, 0.6931472
      %v2155 = vmul.f32 -0.5, %v963
      %v2156 = vadd.f32 %v2155, 1.0
      %v2157 = vmul.f32 %v2156, %v963
      %v2158 = vand.u32 2147483647, %v963
      %vm2159 = vcmp.lt.f32.partialorder %v2158, 0.0004427343
      %v2160 = vsel %vm2159, %v2157, %v2154
      %v2161 = vadd.f32 %v965, 1.0
      %v2162 = vlog2.pop %v2161
      %v2163 = vmul.f32 %v2162, 0.6931472
      %v2164 = vmul.f32 -0.5, %v965
      %v2165 = vadd.f32 %v2164, 1.0
      %v2166 = vmul.f32 %v2165, %v965
      %v2167 = vand.u32 2147483647, %v965
      %vm2168 = vcmp.lt.f32.partialorder %v2167, 0.0004427343
      %v2169 = vsel %vm2168, %v2166, %v2163
      %v2170 = vadd.f32 %v967, 1.0
      %v2171 = vlog2.pop %v2170
      %v2172 = vmul.f32 %v2171, 0.6931472
      %v2173 = vmul.f32 -0.5, %v967
      %v2174 = vadd.f32 %v2173, 1.0
      %v2175 = vmul.f32 %v2174, %v967
      %v2176 = vand.u32 2147483647, %v967
      %vm2177 = vcmp.lt.f32.partialorder %v2176, 0.0004427343
      %v2178 = vsel %vm2177, %v2175, %v2172
      %v2179 = vadd.f32 %v969, 1.0
      %v2180 = vlog2.pop %v2179
      %v2181 = vmul.f32 %v2180, 0.6931472
      %v2182 = vmul.f32 -0.5, %v969
      %v2183 = vadd.f32 %v2182, 1.0
      %v2184 = vmul.f32 %v2183, %v969
      %v2185 = vand.u32 2147483647, %v969
      %vm2186 = vcmp.lt.f32.partialorder %v2185, 0.0004427343
      %v2187 = vsel %vm2186, %v2184, %v2181
      %v2188 = vadd.f32 %v971, 1.0
      %v2189 = vlog2.pop %v2188
      %v2190 = vmul.f32 %v2189, 0.6931472
      %v2191 = vmul.f32 -0.5, %v971
      %v2192 = vadd.f32 %v2191, 1.0
      %v2193 = vmul.f32 %v2192, %v971
      %v2194 = vand.u32 2147483647, %v971
      %vm2195 = vcmp.lt.f32.partialorder %v2194, 0.0004427343
      %v2196 = vsel %vm2195, %v2193, %v2190
      %v2197 = vadd.f32 %v973, 1.0
      %v2198 = vlog2.pop %v2197
      %v2199 = vmul.f32 %v2198, 0.6931472
      %v2200 = vmul.f32 -0.5, %v973
      %v2201 = vadd.f32 %v2200, 1.0
      %v2202 = vmul.f32 %v2201, %v973
      %v2203 = vand.u32 2147483647, %v973
      %vm2204 = vcmp.lt.f32.partialorder %v2203, 0.0004427343
      %v2205 = vsel %vm2204, %v2202, %v2199
      %v2206 = vadd.f32 %v975, 1.0
      %v2207 = vlog2.pop %v2206
      %v2208 = vmul.f32 %v2207, 0.6931472
      %v2209 = vmul.f32 -0.5, %v975
      %v2210 = vadd.f32 %v2209, 1.0
      %v2211 = vmul.f32 %v2210, %v975
      %v2212 = vand.u32 2147483647, %v975
      %vm2213 = vcmp.lt.f32.partialorder %v2212, 0.0004427343
      %v2214 = vsel %vm2213, %v2211, %v2208
      %v2215 = vadd.f32 %v977, 1.0
      %v2216 = vlog2.pop %v2215
      %v2217 = vmul.f32 %v2216, 0.6931472
      %v2218 = vmul.f32 -0.5, %v977
      %v2219 = vadd.f32 %v2218, 1.0
      %v2220 = vmul.f32 %v2219, %v977
      %v2221 = vand.u32 2147483647, %v977
      %vm2222 = vcmp.lt.f32.partialorder %v2221, 0.0004427343
      %v2223 = vsel %vm2222, %v2220, %v2217
      %v2224 = vadd.f32 %v979, 1.0
      %v2225 = vlog2.pop %v2224
      %v2226 = vmul.f32 %v2225, 0.6931472
      %v2227 = vmul.f32 -0.5, %v979
      %v2228 = vadd.f32 %v2227, 1.0
      %v2229 = vmul.f32 %v2228, %v979
      %v2230 = vand.u32 2147483647, %v979
      %vm2231 = vcmp.lt.f32.partialorder %v2230, 0.0004427343
      %v2232 = vsel %vm2231, %v2229, %v2226
      %v2233 = vadd.f32 %v981, 1.0
      %v2234 = vlog2.pop %v2233
      %v2235 = vmul.f32 %v2234, 0.6931472
      %v2236 = vmul.f32 -0.5, %v981
      %v2237 = vadd.f32 %v2236, 1.0
      %v2238 = vmul.f32 %v2237, %v981
      %v2239 = vand.u32 2147483647, %v981
      %vm2240 = vcmp.lt.f32.partialorder %v2239, 0.0004427343
      %v2241 = vsel %vm2240, %v2238, %v2235
      %v2242 = vadd.f32 %v983, 1.0
      %v2243 = vlog2.pop %v2242
      %v2244 = vmul.f32 %v2243, 0.6931472
      %v2245 = vmul.f32 -0.5, %v983
      %v2246 = vadd.f32 %v2245, 1.0
      %v2247 = vmul.f32 %v2246, %v983
      %v2248 = vand.u32 2147483647, %v983
      %vm2249 = vcmp.lt.f32.partialorder %v2248, 0.0004427343
      %v2250 = vsel %vm2249, %v2247, %v2244
      %v2251 = vadd.f32 %v985, 1.0
      %v2252 = vlog2.pop %v2251
      %v2253 = vmul.f32 %v2252, 0.6931472
      %v2254 = vmul.f32 -0.5, %v985
      %v2255 = vadd.f32 %v2254, 1.0
      %v2256 = vmul.f32 %v2255, %v985
      %v2257 = vand.u32 2147483647, %v985
      %vm2258 = vcmp.lt.f32.partialorder %v2257, 0.0004427343
      %v2259 = vsel %vm2258, %v2256, %v2253
      %v2260 = vadd.f32 %v987, 1.0
      %v2261 = vlog2.pop %v2260
      %v2262 = vmul.f32 %v2261, 0.6931472
      %v2263 = vmul.f32 -0.5, %v987
      %v2264 = vadd.f32 %v2263, 1.0
      %v2265 = vmul.f32 %v2264, %v987
      %v2266 = vand.u32 2147483647, %v987
      %vm2267 = vcmp.lt.f32.partialorder %v2266, 0.0004427343
      %v2268 = vsel %vm2267, %v2265, %v2262
      %v2269 = vadd.f32 %v989, 1.0
      %v2270 = vlog2.pop %v2269
      %v2271 = vmul.f32 %v2270, 0.6931472
      %v2272 = vmul.f32 -0.5, %v989
      %v2273 = vadd.f32 %v2272, 1.0
      %v2274 = vmul.f32 %v2273, %v989
      %v2275 = vand.u32 2147483647, %v989
      %vm2276 = vcmp.lt.f32.partialorder %v2275, 0.0004427343
      %v2277 = vsel %vm2276, %v2274, %v2271
      %v2278 = vadd.f32 %v991, 1.0
      %v2279 = vlog2.pop %v2278
      %v2280 = vmul.f32 %v2279, 0.6931472
      %v2281 = vmul.f32 -0.5, %v991
      %v2282 = vadd.f32 %v2281, 1.0
      %v2283 = vmul.f32 %v2282, %v991
      %v2284 = vand.u32 2147483647, %v991
      %vm2285 = vcmp.lt.f32.partialorder %v2284, 0.0004427343
      %v2286 = vsel %vm2285, %v2283, %v2280
      %v2287 = vadd.f32 %v993, 1.0
      %v2288 = vlog2.pop %v2287
      %v2289 = vmul.f32 %v2288, 0.6931472
      %v2290 = vmul.f32 -0.5, %v993
      %v2291 = vadd.f32 %v2290, 1.0
      %v2292 = vmul.f32 %v2291, %v993
      %v2293 = vand.u32 2147483647, %v993
      %vm2294 = vcmp.lt.f32.partialorder %v2293, 0.0004427343
      %v2295 = vsel %vm2294, %v2292, %v2289
      %v2296 = vadd.f32 %v995, 1.0
      %v2297 = vlog2.pop %v2296
      %v2298 = vmul.f32 %v2297, 0.6931472
      %v2299 = vmul.f32 -0.5, %v995
      %v2300 = vadd.f32 %v2299, 1.0
      %v2301 = vmul.f32 %v2300, %v995
      %v2302 = vand.u32 2147483647, %v995
      %vm2303 = vcmp.lt.f32.partialorder %v2302, 0.0004427343
      %v2304 = vsel %vm2303, %v2301, %v2298
      %v2305 = vadd.f32 %v997, 1.0
      %v2306 = vlog2.pop %v2305
      %v2307 = vmul.f32 %v2306, 0.6931472
      %v2308 = vmul.f32 -0.5, %v997
      %v2309 = vadd.f32 %v2308, 1.0
      %v2310 = vmul.f32 %v2309, %v997
      %v2311 = vand.u32 2147483647, %v997
      %vm2312 = vcmp.lt.f32.partialorder %v2311, 0.0004427343
      %v2313 = vsel %vm2312, %v2310, %v2307
      %v2314 = vadd.f32 %v999, 1.0
      %v2315 = vlog2.pop %v2314
      %v2316 = vmul.f32 %v2315, 0.6931472
      %v2317 = vmul.f32 -0.5, %v999
      %v2318 = vadd.f32 %v2317, 1.0
      %v2319 = vmul.f32 %v2318, %v999
      %v2320 = vand.u32 2147483647, %v999
      %vm2321 = vcmp.lt.f32.partialorder %v2320, 0.0004427343
      %v2322 = vsel %vm2321, %v2319, %v2316
      %v2323 = vadd.f32 %v1001, 1.0
      %v2324 = vlog2.pop %v2323
      %v2325 = vmul.f32 %v2324, 0.6931472
      %v2326 = vmul.f32 -0.5, %v1001
      %v2327 = vadd.f32 %v2326, 1.0
      %v2328 = vmul.f32 %v2327, %v1001
      %v2329 = vand.u32 2147483647, %v1001
      %vm2330 = vcmp.lt.f32.partialorder %v2329, 0.0004427343
      %v2331 = vsel %vm2330, %v2328, %v2325
      %v2332 = vadd.f32 %v1003, 1.0
      %v2333 = vlog2.pop %v2332
      %v2334 = vmul.f32 %v2333, 0.6931472
      %v2335 = vmul.f32 -0.5, %v1003
      %v2336 = vadd.f32 %v2335, 1.0
      %v2337 = vmul.f32 %v2336, %v1003
      %v2338 = vand.u32 2147483647, %v1003
      %vm2339 = vcmp.lt.f32.partialorder %v2338, 0.0004427343
      %v2340 = vsel %vm2339, %v2337, %v2334
      %v2341 = vadd.f32 %v1005, 1.0
      %v2342 = vlog2.pop %v2341
      %v2343 = vmul.f32 %v2342, 0.6931472
      %v2344 = vmul.f32 -0.5, %v1005
      %v2345 = vadd.f32 %v2344, 1.0
      %v2346 = vmul.f32 %v2345, %v1005
      %v2347 = vand.u32 2147483647, %v1005
      %vm2348 = vcmp.lt.f32.partialorder %v2347, 0.0004427343
      %v2349 = vsel %vm2348, %v2346, %v2343
      %v2350 = vadd.f32 %v1230, %v1350
      %v2351 = vadd.f32 %v1231, %v1359
      %v2352 = vadd.f32 %v1232, %v1368
      %v2353 = vadd.f32 %v1233, %v1377
      %v2354 = vadd.f32 %v1234, %v1386
      %v2355 = vadd.f32 %v1235, %v1395
      %v2356 = vadd.f32 %v1236, %v1404
      %v2357 = vadd.f32 %v1237, %v1413
      %v2358 = vadd.f32 %v1238, %v1422
      %v2359 = vadd.f32 %v1239, %v1431
      %v2360 = vadd.f32 %v1240, %v1440
      %v2361 = vadd.f32 %v1241, %v1449
      %v2362 = vadd.f32 %v1242, %v1458
      %v2363 = vadd.f32 %v1243, %v1467
      %v2364 = vadd.f32 %v1244, %v1476
      %v2365 = vadd.f32 %v1245, %v1485
      %v2366 = vadd.f32 %v1246, %v1494
      %v2367 = vadd.f32 %v1247, %v1503
      %v2368 = vadd.f32 %v1248, %v1512
      %v2369 = vadd.f32 %v1249, %v1521
      %v2370 = vadd.f32 %v1250, %v1530
      %v2371 = vadd.f32 %v1251, %v1539
      %v2372 = vadd.f32 %v1252, %v1548
      %v2373 = vadd.f32 %v1253, %v1557
      %v2374 = vadd.f32 %v1254, %v1566
      %v2375 = vadd.f32 %v1255, %v1575
      %v2376 = vadd.f32 %v1256, %v1584
      %v2377 = vadd.f32 %v1257, %v1593
      %v2378 = vadd.f32 %v1258, %v1602
      %v2379 = vadd.f32 %v1259, %v1611
      %v2380 = vadd.f32 %v1260, %v1620
      %v2381 = vadd.f32 %v1261, %v1629
      %v2382 = vadd.f32 %v1262, %v1638
      %v2383 = vadd.f32 %v1263, %v1647
      %v2384 = vadd.f32 %v1264, %v1656
      %v2385 = vadd.f32 %v1265, %v1665
      %v2386 = vadd.f32 %v1266, %v1674
      %v2387 = vadd.f32 %v1267, %v1683
      %v2388 = vadd.f32 %v1268, %v1692
      %v2389 = vadd.f32 %v1269, %v1701
      %v2390 = vadd.f32 %v1270, %v1710
      %v2391 = vadd.f32 %v1271, %v1719
      %v2392 = vadd.f32 %v1272, %v1728
      %v2393 = vadd.f32 %v1273, %v1737
      %v2394 = vadd.f32 %v1274, %v1746
      %v2395 = vadd.f32 %v1275, %v1755
      %v2396 = vadd.f32 %v1276, %v1764
      %v2397 = vadd.f32 %v1277, %v1773
      %v2398 = vadd.f32 %v1278, %v1782
      %v2399 = vadd.f32 %v1279, %v1791
      %v2400 = vadd.f32 %v1280, %v1800
      %v2401 = vadd.f32 %v1281, %v1809
      %v2402 = vadd.f32 %v1282, %v1818
      %v2403 = vadd.f32 %v1283, %v1827
      %v2404 = vadd.f32 %v1284, %v1836
      %v2405 = vadd.f32 %v1285, %v1845
      %v2406 = vadd.f32 %v1286, %v1854
      %v2407 = vadd.f32 %v1287, %v1863
      %v2408 = vadd.f32 %v1288, %v1872
      %v2409 = vadd.f32 %v1289, %v1881
      %v2410 = vadd.f32 %v1290, %v1890
      %v2411 = vadd.f32 %v1291, %v1899
      %v2412 = vadd.f32 %v1292, %v1908
      %v2413 = vadd.f32 %v1293, %v1917
      %v2414 = vadd.f32 %v1294, %v1926
      %v2415 = vadd.f32 %v1295, %v1935
      %v2416 = vadd.f32 %v1296, %v1944
      %v2417 = vadd.f32 %v1297, %v1953
      %v2418 = vadd.f32 %v1298, %v1962
      %v2419 = vadd.f32 %v1299, %v1971
      %v2420 = vadd.f32 %v1300, %v1980
      %v2421 = vadd.f32 %v1301, %v1989
      %v2422 = vadd.f32 %v1302, %v1998
      %v2423 = vadd.f32 %v1303, %v2007
      %v2424 = vadd.f32 %v1304, %v2016
      %v2425 = vadd.f32 %v1305, %v2025
      %v2426 = vadd.f32 %v1306, %v2034
      %v2427 = vadd.f32 %v1307, %v2043
      %v2428 = vadd.f32 %v1308, %v2052
      %v2429 = vadd.f32 %v1309, %v2061
      %v2430 = vadd.f32 %v1310, %v2070
      %v2431 = vadd.f32 %v1311, %v2079
      %v2432 = vadd.f32 %v1312, %v2088
      %v2433 = vadd.f32 %v1313, %v2097
      %v2434 = vadd.f32 %v1314, %v2106
      %v2435 = vadd.f32 %v1315, %v2115
      %v2436 = vadd.f32 %v1316, %v2124
      %v2437 = vadd.f32 %v1317, %v2133
      %v2438 = vadd.f32 %v1318, %v2142
      %v2439 = vadd.f32 %v1319, %v2151
      %v2440 = vadd.f32 %v1320, %v2160
      %v2441 = vadd.f32 %v1321, %v2169
      %v2442 = vadd.f32 %v1322, %v2178
      %v2443 = vadd.f32 %v1323, %v2187
      %v2444 = vadd.f32 %v1324, %v2196
      %v2445 = vadd.f32 %v1325, %v2205
      %v2446 = vadd.f32 %v1326, %v2214
      %v2447 = vadd.f32 %v1327, %v2223
      %v2448 = vadd.f32 %v1328, %v2232
      %v2449 = vadd.f32 %v1329, %v2241
      %v2450 = vadd.f32 %v1330, %v2250
      %v2451 = vadd.f32 %v1331, %v2259
      %v2452 = vadd.f32 %v1332, %v2268
      %v2453 = vadd.f32 %v1333, %v2277
      %v2454 = vadd.f32 %v1334, %v2286
      %v2455 = vadd.f32 %v1335, %v2295
      %v2456 = vadd.f32 %v1336, %v2304
      %v2457 = vadd.f32 %v1337, %v2313
      %v2458 = vadd.f32 %v1338, %v2322
      %v2459 = vadd.f32 %v1339, %v2331
      %v2460 = vadd.f32 %v1340, %v2340
      %v2461 = vadd.f32 %v1341, %v2349
      %v2462 = vadd.f32 %v783, 1.0
      %v2463 = vadd.f32 %v785, 1.0
      %v2464 = vadd.f32 %v787, 1.0
      %v2465 = vadd.f32 %v789, 1.0
      %v2466 = vadd.f32 %v791, 1.0
      %v2467 = vadd.f32 %v793, 1.0
      %v2468 = vadd.f32 %v795, 1.0
      %v2469 = vadd.f32 %v797, 1.0
      %v2470 = vadd.f32 %v799, 1.0
      %v2471 = vadd.f32 %v801, 1.0
      %v2472 = vadd.f32 %v803, 1.0
      %v2473 = vadd.f32 %v805, 1.0
      %v2474 = vadd.f32 %v807, 1.0
      %v2475 = vadd.f32 %v809, 1.0
      %v2476 = vadd.f32 %v811, 1.0
      %v2477 = vadd.f32 %v813, 1.0
      %v2478 = vadd.f32 %v815, 1.0
      %v2479 = vadd.f32 %v817, 1.0
      %v2480 = vadd.f32 %v819, 1.0
      %v2481 = vadd.f32 %v821, 1.0
      %v2482 = vadd.f32 %v823, 1.0
      %v2483 = vadd.f32 %v825, 1.0
      %v2484 = vadd.f32 %v827, 1.0
      %v2485 = vadd.f32 %v829, 1.0
      %v2486 = vadd.f32 %v831, 1.0
      %v2487 = vadd.f32 %v833, 1.0
      %v2488 = vadd.f32 %v835, 1.0
      %v2489 = vadd.f32 %v837, 1.0
      %v2490 = vadd.f32 %v839, 1.0
      %v2491 = vadd.f32 %v841, 1.0
      %v2492 = vadd.f32 %v843, 1.0
      %v2493 = vadd.f32 %v845, 1.0
      %v2494 = vadd.f32 %v847, 1.0
      %v2495 = vadd.f32 %v849, 1.0
      %v2496 = vadd.f32 %v851, 1.0
      %v2497 = vadd.f32 %v853, 1.0
      %v2498 = vadd.f32 %v855, 1.0
      %v2499 = vadd.f32 %v857, 1.0
      %v2500 = vadd.f32 %v859, 1.0
      %v2501 = vadd.f32 %v861, 1.0
      %v2502 = vadd.f32 %v863, 1.0
      %v2503 = vadd.f32 %v865, 1.0
      %v2504 = vadd.f32 %v867, 1.0
      %v2505 = vadd.f32 %v869, 1.0
      %v2506 = vadd.f32 %v871, 1.0
      %v2507 = vadd.f32 %v873, 1.0
      %v2508 = vadd.f32 %v875, 1.0
      %v2509 = vadd.f32 %v877, 1.0
      %v2510 = vadd.f32 %v879, 1.0
      %v2511 = vadd.f32 %v881, 1.0
      %v2512 = vadd.f32 %v883, 1.0
      %v2513 = vadd.f32 %v885, 1.0
      %v2514 = vadd.f32 %v887, 1.0
      %v2515 = vadd.f32 %v889, 1.0
      %v2516 = vadd.f32 %v891, 1.0
      %v2517 = vadd.f32 %v893, 1.0
      %v2518 = vadd.f32 %v895, 1.0
      %v2519 = vadd.f32 %v897, 1.0
      %v2520 = vadd.f32 %v899, 1.0
      %v2521 = vadd.f32 %v901, 1.0
      %v2522 = vadd.f32 %v903, 1.0
      %v2523 = vadd.f32 %v905, 1.0
      %v2524 = vadd.f32 %v907, 1.0
      %v2525 = vadd.f32 %v909, 1.0
      %v2526 = vadd.f32 %v911, 1.0
      %v2527 = vadd.f32 %v913, 1.0
      %v2528 = vadd.f32 %v915, 1.0
      %v2529 = vadd.f32 %v917, 1.0
      %v2530 = vadd.f32 %v919, 1.0
      %v2531 = vadd.f32 %v921, 1.0
      %v2532 = vadd.f32 %v923, 1.0
      %v2533 = vadd.f32 %v925, 1.0
      %v2534 = vadd.f32 %v927, 1.0
      %v2535 = vadd.f32 %v929, 1.0
      %v2536 = vadd.f32 %v931, 1.0
      %v2537 = vadd.f32 %v933, 1.0
      %v2538 = vadd.f32 %v935, 1.0
      %v2539 = vadd.f32 %v937, 1.0
      %v2540 = vadd.f32 %v939, 1.0
      %v2541 = vadd.f32 %v941, 1.0
      %v2542 = vadd.f32 %v943, 1.0
      %v2543 = vadd.f32 %v945, 1.0
      %v2544 = vadd.f32 %v947, 1.0
      %v2545 = vadd.f32 %v949, 1.0
      %v2546 = vadd.f32 %v951, 1.0
      %v2547 = vadd.f32 %v953, 1.0
      %v2548 = vadd.f32 %v955, 1.0
      %v2549 = vadd.f32 %v957, 1.0
      %v2550 = vadd.f32 %v959, 1.0
      %v2551 = vadd.f32 %v961, 1.0
      %v2552 = vadd.f32 %v963, 1.0
      %v2553 = vadd.f32 %v965, 1.0
      %v2554 = vadd.f32 %v967, 1.0
      %v2555 = vadd.f32 %v969, 1.0
      %v2556 = vadd.f32 %v971, 1.0
      %v2557 = vadd.f32 %v973, 1.0
      %v2558 = vadd.f32 %v975, 1.0
      %v2559 = vadd.f32 %v977, 1.0
      %v2560 = vadd.f32 %v979, 1.0
      %v2561 = vadd.f32 %v981, 1.0
      %v2562 = vadd.f32 %v983, 1.0
      %v2563 = vadd.f32 %v985, 1.0
      %v2564 = vadd.f32 %v987, 1.0
      %v2565 = vadd.f32 %v989, 1.0
      %v2566 = vadd.f32 %v991, 1.0
      %v2567 = vadd.f32 %v993, 1.0
      %v2568 = vadd.f32 %v995, 1.0
      %v2569 = vadd.f32 %v997, 1.0
      %v2570 = vadd.f32 %v999, 1.0
      %v2571 = vadd.f32 %v1001, 1.0
      %v2572 = vadd.f32 %v1003, 1.0
      %v2573 = vadd.f32 %v1005, 1.0
      %v2574 = vrcp.pop %v2462
      %v2575 = vmul.f32 1.0, %v2574
      %v2576 = vrcp.pop %v2463
      %v2577 = vmul.f32 1.0, %v2576
      %v2578 = vrcp.pop %v2464
      %v2579 = vmul.f32 1.0, %v2578
      %v2580 = vrcp.pop %v2465
      %v2581 = vmul.f32 1.0, %v2580
      %v2582 = vrcp.pop %v2466
      %v2583 = vmul.f32 1.0, %v2582
      %v2584 = vrcp.pop %v2467
      %v2585 = vmul.f32 1.0, %v2584
      %v2586 = vrcp.pop %v2468
      %v2587 = vmul.f32 1.0, %v2586
      %v2588 = vrcp.pop %v2469
      %v2589 = vmul.f32 1.0, %v2588
      %v2590 = vrcp.pop %v2470
      %v2591 = vmul.f32 1.0, %v2590
      %v2592 = vrcp.pop %v2471
      %v2593 = vmul.f32 1.0, %v2592
      %v2594 = vrcp.pop %v2472
      %v2595 = vmul.f32 1.0, %v2594
      %v2596 = vrcp.pop %v2473
      %v2597 = vmul.f32 1.0, %v2596
      %v2598 = vrcp.pop %v2474
      %v2599 = vmul.f32 1.0, %v2598
      %v2600 = vrcp.pop %v2475
      %v2601 = vmul.f32 1.0, %v2600
      %v2602 = vrcp.pop %v2476
      %v2603 = vmul.f32 1.0, %v2602
      %v2604 = vrcp.pop %v2477
      %v2605 = vmul.f32 1.0, %v2604
      %v2606 = vrcp.pop %v2478
      %v2607 = vmul.f32 1.0, %v2606
      %v2608 = vrcp.pop %v2479
      %v2609 = vmul.f32 1.0, %v2608
      %v2610 = vrcp.pop %v2480
      %v2611 = vmul.f32 1.0, %v2610
      %v2612 = vrcp.pop %v2481
      %v2613 = vmul.f32 1.0, %v2612
      %v2614 = vrcp.pop %v2482
      %v2615 = vmul.f32 1.0, %v2614
      %v2616 = vrcp.pop %v2483
      %v2617 = vmul.f32 1.0, %v2616
      %v2618 = vrcp.pop %v2484
      %v2619 = vmul.f32 1.0, %v2618
      %v2620 = vrcp.pop %v2485
      %v2621 = vmul.f32 1.0, %v2620
      %v2622 = vrcp.pop %v2486
      %v2623 = vmul.f32 1.0, %v2622
      %v2624 = vrcp.pop %v2487
      %v2625 = vmul.f32 1.0, %v2624
      %v2626 = vrcp.pop %v2488
      %v2627 = vmul.f32 1.0, %v2626
      %v2628 = vrcp.pop %v2489
      %v2629 = vmul.f32 1.0, %v2628
      %v2630 = vrcp.pop %v2490
      %v2631 = vmul.f32 1.0, %v2630
      %v2632 = vrcp.pop %v2491
      %v2633 = vmul.f32 1.0, %v2632
      %v2634 = vrcp.pop %v2492
      %v2635 = vmul.f32 1.0, %v2634
      %v2636 = vrcp.pop %v2493
      %v2637 = vmul.f32 1.0, %v2636
      %v2638 = vrcp.pop %v2494
      %v2639 = vmul.f32 1.0, %v2638
      %v2640 = vrcp.pop %v2495
      %v2641 = vmul.f32 1.0, %v2640
      %v2642 = vrcp.pop %v2496
      %v2643 = vmul.f32 1.0, %v2642
      %v2644 = vrcp.pop %v2497
      %v2645 = vmul.f32 1.0, %v2644
      %v2646 = vrcp.pop %v2498
      %v2647 = vmul.f32 1.0, %v2646
      %v2648 = vrcp.pop %v2499
      %v2649 = vmul.f32 1.0, %v2648
      %v2650 = vrcp.pop %v2500
      %v2651 = vmul.f32 1.0, %v2650
      %v2652 = vrcp.pop %v2501
      %v2653 = vmul.f32 1.0, %v2652
      %v2654 = vrcp.pop %v2502
      %v2655 = vmul.f32 1.0, %v2654
      %v2656 = vrcp.pop %v2503
      %v2657 = vmul.f32 1.0, %v2656
      %v2658 = vrcp.pop %v2504
      %v2659 = vmul.f32 1.0, %v2658
      %v2660 = vrcp.pop %v2505
      %v2661 = vmul.f32 1.0, %v2660
      %v2662 = vrcp.pop %v2506
      %v2663 = vmul.f32 1.0, %v2662
      %v2664 = vrcp.pop %v2507
      %v2665 = vmul.f32 1.0, %v2664
      %v2666 = vrcp.pop %v2508
      %v2667 = vmul.f32 1.0, %v2666
      %v2668 = vrcp.pop %v2509
      %v2669 = vmul.f32 1.0, %v2668
      %v2670 = vrcp.pop %v2510
      %v2671 = vmul.f32 1.0, %v2670
      %v2672 = vrcp.pop %v2511
      %v2673 = vmul.f32 1.0, %v2672
      %v2674 = vrcp.pop %v2512
      %v2675 = vmul.f32 1.0, %v2674
      %v2676 = vrcp.pop %v2513
      %v2677 = vmul.f32 1.0, %v2676
      %v2678 = vrcp.pop %v2514
      %v2679 = vmul.f32 1.0, %v2678
      %v2680 = vrcp.pop %v2515
      %v2681 = vmul.f32 1.0, %v2680
      %v2682 = vrcp.pop %v2516
      %v2683 = vmul.f32 1.0, %v2682
      %v2684 = vrcp.pop %v2517
      %v2685 = vmul.f32 1.0, %v2684
      %v2686 = vrcp.pop %v2518
      %v2687 = vmul.f32 1.0, %v2686
      %v2688 = vrcp.pop %v2519
      %v2689 = vmul.f32 1.0, %v2688
      %v2690 = vrcp.pop %v2520
      %v2691 = vmul.f32 1.0, %v2690
      %v2692 = vrcp.pop %v2521
      %v2693 = vmul.f32 1.0, %v2692
      %v2694 = vrcp.pop %v2522
      %v2695 = vmul.f32 1.0, %v2694
      %v2696 = vrcp.pop %v2523
      %v2697 = vmul.f32 1.0, %v2696
      %v2698 = vrcp.pop %v2524
      %v2699 = vmul.f32 1.0, %v2698
      %v2700 = vrcp.pop %v2525
      %v2701 = vmul.f32 1.0, %v2700
      %v2702 = vrcp.pop %v2526
      %v2703 = vmul.f32 1.0, %v2702
      %v2704 = vrcp.pop %v2527
      %v2705 = vmul.f32 1.0, %v2704
      %v2706 = vrcp.pop %v2528
      %v2707 = vmul.f32 1.0, %v2706
      %v2708 = vrcp.pop %v2529
      %v2709 = vmul.f32 1.0, %v2708
      %v2710 = vrcp.pop %v2530
      %v2711 = vmul.f32 1.0, %v2710
      %v2712 = vrcp.pop %v2531
      %v2713 = vmul.f32 1.0, %v2712
      %v2714 = vrcp.pop %v2532
      %v2715 = vmul.f32 1.0, %v2714
      %v2716 = vrcp.pop %v2533
      %v2717 = vmul.f32 1.0, %v2716
      %v2718 = vrcp.pop %v2534
      %v2719 = vmul.f32 1.0, %v2718
      %v2720 = vrcp.pop %v2535
      %v2721 = vmul.f32 1.0, %v2720
      %v2722 = vrcp.pop %v2536
      %v2723 = vmul.f32 1.0, %v2722
      %v2724 = vrcp.pop %v2537
      %v2725 = vmul.f32 1.0, %v2724
      %v2726 = vrcp.pop %v2538
      %v2727 = vmul.f32 1.0, %v2726
      %v2728 = vrcp.pop %v2539
      %v2729 = vmul.f32 1.0, %v2728
      %v2730 = vrcp.pop %v2540
      %v2731 = vmul.f32 1.0, %v2730
      %v2732 = vrcp.pop %v2541
      %v2733 = vmul.f32 1.0, %v2732
      %v2734 = vrcp.pop %v2542
      %v2735 = vmul.f32 1.0, %v2734
      %v2736 = vrcp.pop %v2543
      %v2737 = vmul.f32 1.0, %v2736
      %v2738 = vrcp.pop %v2544
      %v2739 = vmul.f32 1.0, %v2738
      %v2740 = vrcp.pop %v2545
      %v2741 = vmul.f32 1.0, %v2740
      %v2742 = vrcp.pop %v2546
      %v2743 = vmul.f32 1.0, %v2742
      %v2744 = vrcp.pop %v2547
      %v2745 = vmul.f32 1.0, %v2744
      %v2746 = vrcp.pop %v2548
      %v2747 = vmul.f32 1.0, %v2746
      %v2748 = vrcp.pop %v2549
      %v2749 = vmul.f32 1.0, %v2748
      %v2750 = vrcp.pop %v2550
      %v2751 = vmul.f32 1.0, %v2750
      %v2752 = vrcp.pop %v2551
      %v2753 = vmul.f32 1.0, %v2752
      %v2754 = vrcp.pop %v2552
      %v2755 = vmul.f32 1.0, %v2754
      %v2756 = vrcp.pop %v2553
      %v2757 = vmul.f32 1.0, %v2756
      %v2758 = vrcp.pop %v2554
      %v2759 = vmul.f32 1.0, %v2758
      %v2760 = vrcp.pop %v2555
      %v2761 = vmul.f32 1.0, %v2760
      %v2762 = vrcp.pop %v2556
      %v2763 = vmul.f32 1.0, %v2762
      %v2764 = vrcp.pop %v2557
      %v2765 = vmul.f32 1.0, %v2764
      %v2766 = vrcp.pop %v2558
      %v2767 = vmul.f32 1.0, %v2766
      %v2768 = vrcp.pop %v2559
      %v2769 = vmul.f32 1.0, %v2768
      %v2770 = vrcp.pop %v2560
      %v2771 = vmul.f32 1.0, %v2770
      %v2772 = vrcp.pop %v2561
      %v2773 = vmul.f32 1.0, %v2772
      %v2774 = vrcp.pop %v2562
      %v2775 = vmul.f32 1.0, %v2774
      %v2776 = vrcp.pop %v2563
      %v2777 = vmul.f32 1.0, %v2776
      %v2778 = vrcp.pop %v2564
      %v2779 = vmul.f32 1.0, %v2778
      %v2780 = vrcp.pop %v2565
      %v2781 = vmul.f32 1.0, %v2780
      %v2782 = vrcp.pop %v2566
      %v2783 = vmul.f32 1.0, %v2782
      %v2784 = vrcp.pop %v2567
      %v2785 = vmul.f32 1.0, %v2784
      %v2786 = vrcp.pop %v2568
      %v2787 = vmul.f32 1.0, %v2786
      %v2788 = vrcp.pop %v2569
      %v2789 = vmul.f32 1.0, %v2788
      %v2790 = vrcp.pop %v2570
      %v2791 = vmul.f32 1.0, %v2790
      %v2792 = vrcp.pop %v2571
      %v2793 = vmul.f32 1.0, %v2792
      %v2794 = vrcp.pop %v2572
      %v2795 = vmul.f32 1.0, %v2794
      %v2796 = vrcp.pop %v2573
      %v2797 = vmul.f32 1.0, %v2796
      %vm2798 = vcmp.ge.f32.partialorder %v334, 0.0
      %vm2799 = vcmp.ge.f32.partialorder %v335, 0.0
      %vm2800 = vcmp.ge.f32.partialorder %v336, 0.0
      %vm2801 = vcmp.ge.f32.partialorder %v337, 0.0
      %vm2802 = vcmp.ge.f32.partialorder %v338, 0.0
      %vm2803 = vcmp.ge.f32.partialorder %v339, 0.0
      %vm2804 = vcmp.ge.f32.partialorder %v340, 0.0
      %vm2805 = vcmp.ge.f32.partialorder %v341, 0.0
      %vm2806 = vcmp.ge.f32.partialorder %v342, 0.0
      %vm2807 = vcmp.ge.f32.partialorder %v343, 0.0
      %vm2808 = vcmp.ge.f32.partialorder %v344, 0.0
      %vm2809 = vcmp.ge.f32.partialorder %v345, 0.0
      %vm2810 = vcmp.ge.f32.partialorder %v346, 0.0
      %vm2811 = vcmp.ge.f32.partialorder %v347, 0.0
      %vm2812 = vcmp.ge.f32.partialorder %v348, 0.0
      %vm2813 = vcmp.ge.f32.partialorder %v349, 0.0
      %vm2814 = vcmp.ge.f32.partialorder %v350, 0.0
      %vm2815 = vcmp.ge.f32.partialorder %v351, 0.0
      %vm2816 = vcmp.ge.f32.partialorder %v352, 0.0
      %vm2817 = vcmp.ge.f32.partialorder %v353, 0.0
      %vm2818 = vcmp.ge.f32.partialorder %v354, 0.0
      %vm2819 = vcmp.ge.f32.partialorder %v355, 0.0
      %vm2820 = vcmp.ge.f32.partialorder %v356, 0.0
      %vm2821 = vcmp.ge.f32.partialorder %v357, 0.0
      %vm2822 = vcmp.ge.f32.partialorder %v358, 0.0
      %vm2823 = vcmp.ge.f32.partialorder %v359, 0.0
      %vm2824 = vcmp.ge.f32.partialorder %v360, 0.0
      %vm2825 = vcmp.ge.f32.partialorder %v361, 0.0
      %vm2826 = vcmp.ge.f32.partialorder %v362, 0.0
      %vm2827 = vcmp.ge.f32.partialorder %v363, 0.0
      %vm2828 = vcmp.ge.f32.partialorder %v364, 0.0
      %vm2829 = vcmp.ge.f32.partialorder %v365, 0.0
      %vm2830 = vcmp.ge.f32.partialorder %v366, 0.0
      %vm2831 = vcmp.ge.f32.partialorder %v367, 0.0
      %vm2832 = vcmp.ge.f32.partialorder %v368, 0.0
      %vm2833 = vcmp.ge.f32.partialorder %v369, 0.0
      %vm2834 = vcmp.ge.f32.partialorder %v370, 0.0
      %vm2835 = vcmp.ge.f32.partialorder %v371, 0.0
      %vm2836 = vcmp.ge.f32.partialorder %v372, 0.0
      %vm2837 = vcmp.ge.f32.partialorder %v373, 0.0
      %vm2838 = vcmp.ge.f32.partialorder %v374, 0.0
      %vm2839 = vcmp.ge.f32.partialorder %v375, 0.0
      %vm2840 = vcmp.ge.f32.partialorder %v376, 0.0
      %vm2841 = vcmp.ge.f32.partialorder %v377, 0.0
      %vm2842 = vcmp.ge.f32.partialorder %v378, 0.0
      %vm2843 = vcmp.ge.f32.partialorder %v379, 0.0
      %vm2844 = vcmp.ge.f32.partialorder %v380, 0.0
      %vm2845 = vcmp.ge.f32.partialorder %v381, 0.0
      %vm2846 = vcmp.ge.f32.partialorder %v382, 0.0
      %vm2847 = vcmp.ge.f32.partialorder %v383, 0.0
      %vm2848 = vcmp.ge.f32.partialorder %v384, 0.0
      %vm2849 = vcmp.ge.f32.partialorder %v385, 0.0
      %vm2850 = vcmp.ge.f32.partialorder %v386, 0.0
      %vm2851 = vcmp.ge.f32.partialorder %v387, 0.0
      %vm2852 = vcmp.ge.f32.partialorder %v388, 0.0
      %vm2853 = vcmp.ge.f32.partialorder %v389, 0.0
      %vm2854 = vcmp.ge.f32.partialorder %v390, 0.0
      %vm2855 = vcmp.ge.f32.partialorder %v391, 0.0
      %vm2856 = vcmp.ge.f32.partialorder %v392, 0.0
      %vm2857 = vcmp.ge.f32.partialorder %v393, 0.0
      %vm2858 = vcmp.ge.f32.partialorder %v394, 0.0
      %vm2859 = vcmp.ge.f32.partialorder %v395, 0.0
      %vm2860 = vcmp.ge.f32.partialorder %v396, 0.0
      %vm2861 = vcmp.ge.f32.partialorder %v397, 0.0
      %vm2862 = vcmp.ge.f32.partialorder %v398, 0.0
      %vm2863 = vcmp.ge.f32.partialorder %v399, 0.0
      %vm2864 = vcmp.ge.f32.partialorder %v400, 0.0
      %vm2865 = vcmp.ge.f32.partialorder %v401, 0.0
      %vm2866 = vcmp.ge.f32.partialorder %v402, 0.0
      %vm2867 = vcmp.ge.f32.partialorder %v403, 0.0
      %vm2868 = vcmp.ge.f32.partialorder %v404, 0.0
      %vm2869 = vcmp.ge.f32.partialorder %v405, 0.0
      %vm2870 = vcmp.ge.f32.partialorder %v406, 0.0
      %vm2871 = vcmp.ge.f32.partialorder %v407, 0.0
      %vm2872 = vcmp.ge.f32.partialorder %v408, 0.0
      %vm2873 = vcmp.ge.f32.partialorder %v409, 0.0
      %vm2874 = vcmp.ge.f32.partialorder %v410, 0.0
      %vm2875 = vcmp.ge.f32.partialorder %v411, 0.0
      %vm2876 = vcmp.ge.f32.partialorder %v412, 0.0
      %vm2877 = vcmp.ge.f32.partialorder %v413, 0.0
      %vm2878 = vcmp.ge.f32.partialorder %v414, 0.0
      %vm2879 = vcmp.ge.f32.partialorder %v415, 0.0
      %vm2880 = vcmp.ge.f32.partialorder %v416, 0.0
      %vm2881 = vcmp.ge.f32.partialorder %v417, 0.0
      %vm2882 = vcmp.ge.f32.partialorder %v418, 0.0
      %vm2883 = vcmp.ge.f32.partialorder %v419, 0.0
      %vm2884 = vcmp.ge.f32.partialorder %v420, 0.0
      %vm2885 = vcmp.ge.f32.partialorder %v421, 0.0
      %vm2886 = vcmp.ge.f32.partialorder %v422, 0.0
      %vm2887 = vcmp.ge.f32.partialorder %v423, 0.0
      %vm2888 = vcmp.ge.f32.partialorder %v424, 0.0
      %vm2889 = vcmp.ge.f32.partialorder %v425, 0.0
      %vm2890 = vcmp.ge.f32.partialorder %v426, 0.0
      %vm2891 = vcmp.ge.f32.partialorder %v427, 0.0
      %vm2892 = vcmp.ge.f32.partialorder %v428, 0.0
      %vm2893 = vcmp.ge.f32.partialorder %v429, 0.0
      %vm2894 = vcmp.ge.f32.partialorder %v430, 0.0
      %vm2895 = vcmp.ge.f32.partialorder %v431, 0.0
      %vm2896 = vcmp.ge.f32.partialorder %v432, 0.0
      %vm2897 = vcmp.ge.f32.partialorder %v433, 0.0
      %vm2898 = vcmp.ge.f32.partialorder %v434, 0.0
      %vm2899 = vcmp.ge.f32.partialorder %v435, 0.0
      %vm2900 = vcmp.ge.f32.partialorder %v436, 0.0
      %vm2901 = vcmp.ge.f32.partialorder %v437, 0.0
      %vm2902 = vcmp.ge.f32.partialorder %v438, 0.0
      %vm2903 = vcmp.ge.f32.partialorder %v439, 0.0
      %vm2904 = vcmp.ge.f32.partialorder %v440, 0.0
      %vm2905 = vcmp.ge.f32.partialorder %v441, 0.0
      %vm2906 = vcmp.ge.f32.partialorder %v442, 0.0
      %vm2907 = vcmp.ge.f32.partialorder %v443, 0.0
      %vm2908 = vcmp.ge.f32.partialorder %v444, 0.0
      %vm2909 = vcmp.ge.f32.partialorder %v445, 0.0
      %v2910 = vmul.f32 %v783, %v2575
      %v2911 = vmul.f32 %v785, %v2577
      %v2912 = vmul.f32 %v787, %v2579
      %v2913 = vmul.f32 %v789, %v2581
      %v2914 = vmul.f32 %v791, %v2583
      %v2915 = vmul.f32 %v793, %v2585
      %v2916 = vmul.f32 %v795, %v2587
      %v2917 = vmul.f32 %v797, %v2589
      %v2918 = vmul.f32 %v799, %v2591
      %v2919 = vmul.f32 %v801, %v2593
      %v2920 = vmul.f32 %v803, %v2595
      %v2921 = vmul.f32 %v805, %v2597
      %v2922 = vmul.f32 %v807, %v2599
      %v2923 = vmul.f32 %v809, %v2601
      %v2924 = vmul.f32 %v811, %v2603
      %v2925 = vmul.f32 %v813, %v2605
      %v2926 = vmul.f32 %v815, %v2607
      %v2927 = vmul.f32 %v817, %v2609
      %v2928 = vmul.f32 %v819, %v2611
      %v2929 = vmul.f32 %v821, %v2613
      %v2930 = vmul.f32 %v823, %v2615
      %v2931 = vmul.f32 %v825, %v2617
      %v2932 = vmul.f32 %v827, %v2619
      %v2933 = vmul.f32 %v829, %v2621
      %v2934 = vmul.f32 %v831, %v2623
      %v2935 = vmul.f32 %v833, %v2625
      %v2936 = vmul.f32 %v835, %v2627
      %v2937 = vmul.f32 %v837, %v2629
      %v2938 = vmul.f32 %v839, %v2631
      %v2939 = vmul.f32 %v841, %v2633
      %v2940 = vmul.f32 %v843, %v2635
      %v2941 = vmul.f32 %v845, %v2637
      %v2942 = vmul.f32 %v847, %v2639
      %v2943 = vmul.f32 %v849, %v2641
      %v2944 = vmul.f32 %v851, %v2643
      %v2945 = vmul.f32 %v853, %v2645
      %v2946 = vmul.f32 %v855, %v2647
      %v2947 = vmul.f32 %v857, %v2649
      %v2948 = vmul.f32 %v859, %v2651
      %v2949 = vmul.f32 %v861, %v2653
      %v2950 = vmul.f32 %v863, %v2655
      %v2951 = vmul.f32 %v865, %v2657
      %v2952 = vmul.f32 %v867, %v2659
      %v2953 = vmul.f32 %v869, %v2661
      %v2954 = vmul.f32 %v871, %v2663
      %v2955 = vmul.f32 %v873, %v2665
      %v2956 = vmul.f32 %v875, %v2667
      %v2957 = vmul.f32 %v877, %v2669
      %v2958 = vmul.f32 %v879, %v2671
      %v2959 = vmul.f32 %v881, %v2673
      %v2960 = vmul.f32 %v883, %v2675
      %v2961 = vmul.f32 %v885, %v2677
      %v2962 = vmul.f32 %v887, %v2679
      %v2963 = vmul.f32 %v889, %v2681
      %v2964 = vmul.f32 %v891, %v2683
      %v2965 = vmul.f32 %v893, %v2685
      %v2966 = vmul.f32 %v895, %v2687
      %v2967 = vmul.f32 %v897, %v2689
      %v2968 = vmul.f32 %v899, %v2691
      %v2969 = vmul.f32 %v901, %v2693
      %v2970 = vmul.f32 %v903, %v2695
      %v2971 = vmul.f32 %v905, %v2697
      %v2972 = vmul.f32 %v907, %v2699
      %v2973 = vmul.f32 %v909, %v2701
      %v2974 = vmul.f32 %v911, %v2703
      %v2975 = vmul.f32 %v913, %v2705
      %v2976 = vmul.f32 %v915, %v2707
      %v2977 = vmul.f32 %v917, %v2709
      %v2978 = vmul.f32 %v919, %v2711
      %v2979 = vmul.f32 %v921, %v2713
      %v2980 = vmul.f32 %v923, %v2715
      %v2981 = vmul.f32 %v925, %v2717
      %v2982 = vmul.f32 %v927, %v2719
      %v2983 = vmul.f32 %v929, %v2721
      %v2984 = vmul.f32 %v931, %v2723
      %v2985 = vmul.f32 %v933, %v2725
      %v2986 = vmul.f32 %v935, %v2727
      %v2987 = vmul.f32 %v937, %v2729
      %v2988 = vmul.f32 %v939, %v2731
      %v2989 = vmul.f32 %v941, %v2733
      %v2990 = vmul.f32 %v943, %v2735
      %v2991 = vmul.f32 %v945, %v2737
      %v2992 = vmul.f32 %v947, %v2739
      %v2993 = vmul.f32 %v949, %v2741
      %v2994 = vmul.f32 %v951, %v2743
      %v2995 = vmul.f32 %v953, %v2745
      %v2996 = vmul.f32 %v955, %v2747
      %v2997 = vmul.f32 %v957, %v2749
      %v2998 = vmul.f32 %v959, %v2751
      %v2999 = vmul.f32 %v961, %v2753
      %v3000 = vmul.f32 %v963, %v2755
      %v3001 = vmul.f32 %v965, %v2757
      %v3002 = vmul.f32 %v967, %v2759
      %v3003 = vmul.f32 %v969, %v2761
      %v3004 = vmul.f32 %v971, %v2763
      %v3005 = vmul.f32 %v973, %v2765
      %v3006 = vmul.f32 %v975, %v2767
      %v3007 = vmul.f32 %v977, %v2769
      %v3008 = vmul.f32 %v979, %v2771
      %v3009 = vmul.f32 %v981, %v2773
      %v3010 = vmul.f32 %v983, %v2775
      %v3011 = vmul.f32 %v985, %v2777
      %v3012 = vmul.f32 %v987, %v2779
      %v3013 = vmul.f32 %v989, %v2781
      %v3014 = vmul.f32 %v991, %v2783
      %v3015 = vmul.f32 %v993, %v2785
      %v3016 = vmul.f32 %v995, %v2787
      %v3017 = vmul.f32 %v997, %v2789
      %v3018 = vmul.f32 %v999, %v2791
      %v3019 = vmul.f32 %v1001, %v2793
      %v3020 = vmul.f32 %v1003, %v2795
      %v3021 = vmul.f32 %v1005, %v2797
      %v3022 = vsel %vm2798, %v2575, %v2910
      %v3023 = vsel %vm2799, %v2577, %v2911
      %v3024 = vsel %vm2800, %v2579, %v2912
      %v3025 = vsel %vm2801, %v2581, %v2913
      %v3026 = vsel %vm2802, %v2583, %v2914
      %v3027 = vsel %vm2803, %v2585, %v2915
      %v3028 = vsel %vm2804, %v2587, %v2916
      %v3029 = vsel %vm2805, %v2589, %v2917
      %v3030 = vsel %vm2806, %v2591, %v2918
      %v3031 = vsel %vm2807, %v2593, %v2919
      %v3032 = vsel %vm2808, %v2595, %v2920
      %v3033 = vsel %vm2809, %v2597, %v2921
      %v3034 = vsel %vm2810, %v2599, %v2922
      %v3035 = vsel %vm2811, %v2601, %v2923
      %v3036 = vsel %vm2812, %v2603, %v2924
      %v3037 = vsel %vm2813, %v2605, %v2925
      %v3038 = vsel %vm2814, %v2607, %v2926
      %v3039 = vsel %vm2815, %v2609, %v2927
      %v3040 = vsel %vm2816, %v2611, %v2928
      %v3041 = vsel %vm2817, %v2613, %v2929
      %v3042 = vsel %vm2818, %v2615, %v2930
      %v3043 = vsel %vm2819, %v2617, %v2931
      %v3044 = vsel %vm2820, %v2619, %v2932
      %v3045 = vsel %vm2821, %v2621, %v2933
      %v3046 = vsel %vm2822, %v2623, %v2934
      %v3047 = vsel %vm2823, %v2625, %v2935
      %v3048 = vsel %vm2824, %v2627, %v2936
      %v3049 = vsel %vm2825, %v2629, %v2937
      %v3050 = vsel %vm2826, %v2631, %v2938
      %v3051 = vsel %vm2827, %v2633, %v2939
      %v3052 = vsel %vm2828, %v2635, %v2940
      %v3053 = vsel %vm2829, %v2637, %v2941
      %v3054 = vsel %vm2830, %v2639, %v2942
      %v3055 = vsel %vm2831, %v2641, %v2943
      %v3056 = vsel %vm2832, %v2643, %v2944
      %v3057 = vsel %vm2833, %v2645, %v2945
      %v3058 = vsel %vm2834, %v2647, %v2946
      %v3059 = vsel %vm2835, %v2649, %v2947
      %v3060 = vsel %vm2836, %v2651, %v2948
      %v3061 = vsel %vm2837, %v2653, %v2949
      %v3062 = vsel %vm2838, %v2655, %v2950
      %v3063 = vsel %vm2839, %v2657, %v2951
      %v3064 = vsel %vm2840, %v2659, %v2952
      %v3065 = vsel %vm2841, %v2661, %v2953
      %v3066 = vsel %vm2842, %v2663, %v2954
      %v3067 = vsel %vm2843, %v2665, %v2955
      %v3068 = vsel %vm2844, %v2667, %v2956
      %v3069 = vsel %vm2845, %v2669, %v2957
      %v3070 = vsel %vm2846, %v2671, %v2958
      %v3071 = vsel %vm2847, %v2673, %v2959
      %v3072 = vsel %vm2848, %v2675, %v2960
      %v3073 = vsel %vm2849, %v2677, %v2961
      %v3074 = vsel %vm2850, %v2679, %v2962
      %v3075 = vsel %vm2851, %v2681, %v2963
      %v3076 = vsel %vm2852, %v2683, %v2964
      %v3077 = vsel %vm2853, %v2685, %v2965
      %v3078 = vsel %vm2854, %v2687, %v2966
      %v3079 = vsel %vm2855, %v2689, %v2967
      %v3080 = vsel %vm2856, %v2691, %v2968
      %v3081 = vsel %vm2857, %v2693, %v2969
      %v3082 = vsel %vm2858, %v2695, %v2970
      %v3083 = vsel %vm2859, %v2697, %v2971
      %v3084 = vsel %vm2860, %v2699, %v2972
      %v3085 = vsel %vm2861, %v2701, %v2973
      %v3086 = vsel %vm2862, %v2703, %v2974
      %v3087 = vsel %vm2863, %v2705, %v2975
      %v3088 = vsel %vm2864, %v2707, %v2976
      %v3089 = vsel %vm2865, %v2709, %v2977
      %v3090 = vsel %vm2866, %v2711, %v2978
      %v3091 = vsel %vm2867, %v2713, %v2979
      %v3092 = vsel %vm2868, %v2715, %v2980
      %v3093 = vsel %vm2869, %v2717, %v2981
      %v3094 = vsel %vm2870, %v2719, %v2982
      %v3095 = vsel %vm2871, %v2721, %v2983
      %v3096 = vsel %vm2872, %v2723, %v2984
      %v3097 = vsel %vm2873, %v2725, %v2985
      %v3098 = vsel %vm2874, %v2727, %v2986
      %v3099 = vsel %vm2875, %v2729, %v2987
      %v3100 = vsel %vm2876, %v2731, %v2988
      %v3101 = vsel %vm2877, %v2733, %v2989
      %v3102 = vsel %vm2878, %v2735, %v2990
      %v3103 = vsel %vm2879, %v2737, %v2991
      %v3104 = vsel %vm2880, %v2739, %v2992
      %v3105 = vsel %vm2881, %v2741, %v2993
      %v3106 = vsel %vm2882, %v2743, %v2994
      %v3107 = vsel %vm2883, %v2745, %v2995
      %v3108 = vsel %vm2884, %v2747, %v2996
      %v3109 = vsel %vm2885, %v2749, %v2997
      %v3110 = vsel %vm2886, %v2751, %v2998
      %v3111 = vsel %vm2887, %v2753, %v2999
      %v3112 = vsel %vm2888, %v2755, %v3000
      %v3113 = vsel %vm2889, %v2757, %v3001
      %v3114 = vsel %vm2890, %v2759, %v3002
      %v3115 = vsel %vm2891, %v2761, %v3003
      %v3116 = vsel %vm2892, %v2763, %v3004
      %v3117 = vsel %vm2893, %v2765, %v3005
      %v3118 = vsel %vm2894, %v2767, %v3006
      %v3119 = vsel %vm2895, %v2769, %v3007
      %v3120 = vsel %vm2896, %v2771, %v3008
      %v3121 = vsel %vm2897, %v2773, %v3009
      %v3122 = vsel %vm2898, %v2775, %v3010
      %v3123 = vsel %vm2899, %v2777, %v3011
      %v3124 = vsel %vm2900, %v2779, %v3012
      %v3125 = vsel %vm2901, %v2781, %v3013
      %v3126 = vsel %vm2902, %v2783, %v3014
      %v3127 = vsel %vm2903, %v2785, %v3015
      %v3128 = vsel %vm2904, %v2787, %v3016
      %v3129 = vsel %vm2905, %v2789, %v3017
      %v3130 = vsel %vm2906, %v2791, %v3018
      %v3131 = vsel %vm2907, %v2793, %v3019
      %v3132 = vsel %vm2908, %v2795, %v3020
      %v3133 = vsel %vm2909, %v2797, %v3021
      %v3134 = vmul.f32 %v3022, %v446
      %v3135 = vmul.f32 %v3023, %v447
      %v3136 = vmul.f32 %v3024, %v448
      %v3137 = vmul.f32 %v3025, %v449
      %v3138 = vmul.f32 %v3026, %v450
      %v3139 = vmul.f32 %v3027, %v451
      %v3140 = vmul.f32 %v3028, %v452
      %v3141 = vmul.f32 %v3029, %v453
      %v3142 = vmul.f32 %v3030, %v454
      %v3143 = vmul.f32 %v3031, %v455
      %v3144 = vmul.f32 %v3032, %v456
      %v3145 = vmul.f32 %v3033, %v457
      %v3146 = vmul.f32 %v3034, %v458
      %v3147 = vmul.f32 %v3035, %v459
      %v3148 = vmul.f32 %v3036, %v460
      %v3149 = vmul.f32 %v3037, %v461
      %v3150 = vmul.f32 %v3038, %v462
      %v3151 = vmul.f32 %v3039, %v463
      %v3152 = vmul.f32 %v3040, %v464
      %v3153 = vmul.f32 %v3041, %v465
      %v3154 = vmul.f32 %v3042, %v466
      %v3155 = vmul.f32 %v3043, %v467
      %v3156 = vmul.f32 %v3044, %v468
      %v3157 = vmul.f32 %v3045, %v469
      %v3158 = vmul.f32 %v3046, %v470
      %v3159 = vmul.f32 %v3047, %v471
      %v3160 = vmul.f32 %v3048, %v472
      %v3161 = vmul.f32 %v3049, %v473
      %v3162 = vmul.f32 %v3050, %v474
      %v3163 = vmul.f32 %v3051, %v475
      %v3164 = vmul.f32 %v3052, %v476
      %v3165 = vmul.f32 %v3053, %v477
      %v3166 = vmul.f32 %v3054, %v478
      %v3167 = vmul.f32 %v3055, %v479
      %v3168 = vmul.f32 %v3056, %v480
      %v3169 = vmul.f32 %v3057, %v481
      %v3170 = vmul.f32 %v3058, %v482
      %v3171 = vmul.f32 %v3059, %v483
      %v3172 = vmul.f32 %v3060, %v484
      %v3173 = vmul.f32 %v3061, %v485
      %v3174 = vmul.f32 %v3062, %v486
      %v3175 = vmul.f32 %v3063, %v487
      %v3176 = vmul.f32 %v3064, %v488
      %v3177 = vmul.f32 %v3065, %v489
      %v3178 = vmul.f32 %v3066, %v490
      %v3179 = vmul.f32 %v3067, %v491
      %v3180 = vmul.f32 %v3068, %v492
      %v3181 = vmul.f32 %v3069, %v493
      %v3182 = vmul.f32 %v3070, %v494
      %v3183 = vmul.f32 %v3071, %v495
      %v3184 = vmul.f32 %v3072, %v496
      %v3185 = vmul.f32 %v3073, %v497
      %v3186 = vmul.f32 %v3074, %v498
      %v3187 = vmul.f32 %v3075, %v499
      %v3188 = vmul.f32 %v3076, %v500
      %v3189 = vmul.f32 %v3077, %v501
      %v3190 = vmul.f32 %v3078, %v502
      %v3191 = vmul.f32 %v3079, %v503
      %v3192 = vmul.f32 %v3080, %v504
      %v3193 = vmul.f32 %v3081, %v505
      %v3194 = vmul.f32 %v3082, %v506
      %v3195 = vmul.f32 %v3083, %v507
      %v3196 = vmul.f32 %v3084, %v508
      %v3197 = vmul.f32 %v3085, %v509
      %v3198 = vmul.f32 %v3086, %v510
      %v3199 = vmul.f32 %v3087, %v511
      %v3200 = vmul.f32 %v3088, %v512
      %v3201 = vmul.f32 %v3089, %v513
      %v3202 = vmul.f32 %v3090, %v514
      %v3203 = vmul.f32 %v3091, %v515
      %v3204 = vmul.f32 %v3092, %v516
      %v3205 = vmul.f32 %v3093, %v517
      %v3206 = vmul.f32 %v3094, %v518
      %v3207 = vmul.f32 %v3095, %v519
      %v3208 = vmul.f32 %v3096, %v520
      %v3209 = vmul.f32 %v3097, %v521
      %v3210 = vmul.f32 %v3098, %v522
      %v3211 = vmul.f32 %v3099, %v523
      %v3212 = vmul.f32 %v3100, %v524
      %v3213 = vmul.f32 %v3101, %v525
      %v3214 = vmul.f32 %v3102, %v526
      %v3215 = vmul.f32 %v3103, %v527
      %v3216 = vmul.f32 %v3104, %v528
      %v3217 = vmul.f32 %v3105, %v529
      %v3218 = vmul.f32 %v3106, %v530
      %v3219 = vmul.f32 %v3107, %v531
      %v3220 = vmul.f32 %v3108, %v532
      %v3221 = vmul.f32 %v3109, %v533
      %v3222 = vmul.f32 %v3110, %v534
      %v3223 = vmul.f32 %v3111, %v535
      %v3224 = vmul.f32 %v3112, %v536
      %v3225 = vmul.f32 %v3113, %v537
      %v3226 = vmul.f32 %v3114, %v538
      %v3227 = vmul.f32 %v3115, %v539
      %v3228 = vmul.f32 %v3116, %v540
      %v3229 = vmul.f32 %v3117, %v541
      %v3230 = vmul.f32 %v3118, %v542
      %v3231 = vmul.f32 %v3119, %v543
      %v3232 = vmul.f32 %v3120, %v544
      %v3233 = vmul.f32 %v3121, %v545
      %v3234 = vmul.f32 %v3122, %v546
      %v3235 = vmul.f32 %v3123, %v547
      %v3236 = vmul.f32 %v3124, %v548
      %v3237 = vmul.f32 %v3125, %v549
      %v3238 = vmul.f32 %v3126, %v550
      %v3239 = vmul.f32 %v3127, %v551
      %v3240 = vmul.f32 %v3128, %v552
      %v3241 = vmul.f32 %v3129, %v553
      %v3242 = vmul.f32 %v3130, %v554
      %v3243 = vmul.f32 %v3131, %v555
      %v3244 = vmul.f32 %v3132, %v556
      %v3245 = vmul.f32 %v3133, %v557
      %p3246 = scmp.lt.s32.totalorder %s17, 1
      // Predicated region
      $region29: #{gen_loss.3} parent=27 // pred_check
        %p3247 = pneg %p3246
      $region30: #{gen_loss.3} parent=27 // pred_check_branch
        %3249 = sbr.rel (%p3247) target = $region32
      $region31: #{gen_loss.3} parent=27 // pred_region
        %v3250 = vadd.f32 %v2350, %v2354
        %v3251 = vadd.f32 %v3250, %v2358
        %v3252 = vadd.f32 %v3251, %v2362
        %v3253 = vadd.f32 %v3252, %v2366
        %v3254 = vadd.f32 %v3253, %v2370
        %v3255 = vadd.f32 %v3254, %v2374
        %v3256 = vadd.f32 %v3255, %v2378
        %v3257 = vadd.f32 %v3256, %v2382
        %v3258 = vadd.f32 %v3257, %v2386
        %v3259 = vadd.f32 %v3258, %v2390
        %v3260 = vadd.f32 %v3259, %v2394
        %v3261 = vadd.f32 %v3260, %v2398
        %v3262 = vadd.f32 %v3261, %v2402
        %v3263 = vadd.f32 %v3262, %v2406
        %v3264 = vadd.f32 %v3263, %v2410
        %v3265 = vadd.f32 %v3264, %v2414
        %v3266 = vadd.f32 %v3265, %v2418
        %v3267 = vadd.f32 %v3266, %v2422
        %v3268 = vadd.f32 %v3267, %v2426
        %v3269 = vadd.f32 %v3268, %v2430
        %v3270 = vadd.f32 %v3269, %v2434
        %v3271 = vadd.f32 %v3270, %v2438
        %v3272 = vadd.f32 %v3271, %v2442
        %v3273 = vadd.f32 %v3272, %v2446
        %v3274 = vadd.f32 %v3273, %v2450
        %v3275 = vadd.f32 %v3274, %v2454
        %v3276 = vadd.f32 %v3275, %v2458
        %v3277 = vrot.slane %v3276, 4
        %v3278 = vadd.f32 %v3276, %v3277
        %v3279 = vrot.slane %v3278, 2
        %v3280 = vadd.f32 %v3278, %v3279
        %v3281 = vrot.slane %v3280, 1
        %v3282 = vadd.f32 %v3280, %v3281
        %v3283 = vadd.f32 %v2351, %v2355
        %v3284 = vadd.f32 %v3283, %v2359
        %v3285 = vadd.f32 %v3284, %v2363
        %v3286 = vadd.f32 %v3285, %v2367
        %v3287 = vadd.f32 %v3286, %v2371
        %v3288 = vadd.f32 %v3287, %v2375
        %v3289 = vadd.f32 %v3288, %v2379
        %v3290 = vadd.f32 %v3289, %v2383
        %v3291 = vadd.f32 %v3290, %v2387
        %v3292 = vadd.f32 %v3291, %v2391
        %v3293 = vadd.f32 %v3292, %v2395
        %v3294 = vadd.f32 %v3293, %v2399
        %v3295 = vadd.f32 %v3294, %v2403
        %v3296 = vadd.f32 %v3295, %v2407
        %v3297 = vadd.f32 %v3296, %v2411
        %v3298 = vadd.f32 %v3297, %v2415
        %v3299 = vadd.f32 %v3298, %v2419
        %v3300 = vadd.f32 %v3299, %v2423
        %v3301 = vadd.f32 %v3300, %v2427
        %v3302 = vadd.f32 %v3301, %v2431
        %v3303 = vadd.f32 %v3302, %v2435
        %v3304 = vadd.f32 %v3303, %v2439
        %v3305 = vadd.f32 %v3304, %v2443
        %v3306 = vadd.f32 %v3305, %v2447
        %v3307 = vadd.f32 %v3306, %v2451
        %v3308 = vadd.f32 %v3307, %v2455
        %v3309 = vadd.f32 %v3308, %v2459
        %v3310 = vrot.slane %v3309, 4
        %v3311 = vadd.f32 %v3309, %v3310
        %v3312 = vrot.slane %v3311, 2
        %v3313 = vadd.f32 %v3311, %v3312
        %v3314 = vrot.slane %v3313, 1
        %v3315 = vadd.f32 %v3313, %v3314
        %v3316 = vadd.f32 %v2352, %v2356
        %v3317 = vadd.f32 %v3316, %v2360
        %v3318 = vadd.f32 %v3317, %v2364
        %v3319 = vadd.f32 %v3318, %v2368
        %v3320 = vadd.f32 %v3319, %v2372
        %v3321 = vadd.f32 %v3320, %v2376
        %v3322 = vadd.f32 %v3321, %v2380
        %v3323 = vadd.f32 %v3322, %v2384
        %v3324 = vadd.f32 %v3323, %v2388
        %v3325 = vadd.f32 %v3324, %v2392
        %v3326 = vadd.f32 %v3325, %v2396
        %v3327 = vadd.f32 %v3326, %v2400
        %v3328 = vadd.f32 %v3327, %v2404
        %v3329 = vadd.f32 %v3328, %v2408
        %v3330 = vadd.f32 %v3329, %v2412
        %v3331 = vadd.f32 %v3330, %v2416
        %v3332 = vadd.f32 %v3331, %v2420
        %v3333 = vadd.f32 %v3332, %v2424
        %v3334 = vadd.f32 %v3333, %v2428
        %v3335 = vadd.f32 %v3334, %v2432
        %v3336 = vadd.f32 %v3335, %v2436
        %v3337 = vadd.f32 %v3336, %v2440
        %v3338 = vadd.f32 %v3337, %v2444
        %v3339 = vadd.f32 %v3338, %v2448
        %v3340 = vadd.f32 %v3339, %v2452
        %v3341 = vadd.f32 %v3340, %v2456
        %v3342 = vadd.f32 %v3341, %v2460
        %v3343 = vrot.slane %v3342, 4
        %v3344 = vadd.f32 %v3342, %v3343
        %v3345 = vrot.slane %v3344, 2
        %v3346 = vadd.f32 %v3344, %v3345
        %v3347 = vrot.slane %v3346, 1
        %v3348 = vadd.f32 %v3346, %v3347
        %v3349 = vadd.f32 %v2353, %v2357
        %v3350 = vadd.f32 %v3349, %v2361
        %v3351 = vadd.f32 %v3350, %v2365
        %v3352 = vadd.f32 %v3351, %v2369
        %v3353 = vadd.f32 %v3352, %v2373
        %v3354 = vadd.f32 %v3353, %v2377
        %v3355 = vadd.f32 %v3354, %v2381
        %v3356 = vadd.f32 %v3355, %v2385
        %v3357 = vadd.f32 %v3356, %v2389
        %v3358 = vadd.f32 %v3357, %v2393
        %v3359 = vadd.f32 %v3358, %v2397
        %v3360 = vadd.f32 %v3359, %v2401
        %v3361 = vadd.f32 %v3360, %v2405
        %v3362 = vadd.f32 %v3361, %v2409
        %v3363 = vadd.f32 %v3362, %v2413
        %v3364 = vadd.f32 %v3363, %v2417
        %v3365 = vadd.f32 %v3364, %v2421
        %v3366 = vadd.f32 %v3365, %v2425
        %v3367 = vadd.f32 %v3366, %v2429
        %v3368 = vadd.f32 %v3367, %v2433
        %v3369 = vadd.f32 %v3368, %v2437
        %v3370 = vadd.f32 %v3369, %v2441
        %v3371 = vadd.f32 %v3370, %v2445
        %v3372 = vadd.f32 %v3371, %v2449
        %v3373 = vadd.f32 %v3372, %v2453
        %v3374 = vadd.f32 %v3373, %v2457
        %v3375 = vadd.f32 %v3374, %v2461
        %v3376 = vrot.slane %v3375, 4
        %v3377 = vadd.f32 %v3375, %v3376
        %v3378 = vrot.slane %v3377, 2
        %v3379 = vadd.f32 %v3377, %v3378
        %v3380 = vrot.slane %v3379, 1
        %v3381 = vadd.f32 %v3379, %v3380
        %v3386 = vcombine.low %v3282, %v3315
        %v3387 = vcombine.low %v3348, %v3381
        %v3389 = vunpack.c.l.s4 1966171168
        %v3390 = vunpack.c.0.s8 %v3389
        %v3391 = vlaneseq
        %v3392 = vshrl.u32 %v3391, 7
        %v3393 = vsub.s32 %v3390, %v3392
        %v3394 = vrot.slane %v3386, %v3393
        %v3396 = vunpack.c.l.s4 1966171168
        %v3397 = vunpack.c.0.s8 %v3396
        %v3398 = vlaneseq
        %v3399 = vshrl.u32 %v3398, 7
        %v3400 = vsub.s32 %v3397, %v3399
        %v3401 = vrot.slane %v3387, %v3400
        %v3402 = vcombine.low %v3394, %v3401
        %v3404 = vunpack.c.l.s4 1966171168
        %v3405 = vunpack.c.0.s8 %v3404
        %v3406 = vlaneseq
        %v3407 = vshrl.u32 %v3406, 7
        %v3408 = vsub.s32 %v3405, %v3407
        %v3409 = vrot.slane %v3402, %v3408
        %v3411 = vlaneseq
        %vm3412 = vcmp.ge.s32.totalorder %v3411, 0
        %vm3413 = vcmp.lt.s32.totalorder %v3411, 512
        %vm3414 = vmand %vm3412, %vm3413
        %3415 = vst.msk [vmem:[%s321] sm:$0xf] %vm3414, %v3409
        %v3416 = vadd.f32 %v3134, %v3138
        %v3417 = vadd.f32 %v3416, %v3142
        %v3418 = vadd.f32 %v3417, %v3146
        %v3419 = vadd.f32 %v3418, %v3150
        %v3420 = vadd.f32 %v3419, %v3154
        %v3421 = vadd.f32 %v3420, %v3158
        %v3422 = vadd.f32 %v3421, %v3162
        %v3423 = vadd.f32 %v3422, %v3166
        %v3424 = vadd.f32 %v3423, %v3170
        %v3425 = vadd.f32 %v3424, %v3174
        %v3426 = vadd.f32 %v3425, %v3178
        %v3427 = vadd.f32 %v3426, %v3182
        %v3428 = vadd.f32 %v3427, %v3186
        %v3429 = vadd.f32 %v3428, %v3190
        %v3430 = vadd.f32 %v3429, %v3194
        %v3431 = vadd.f32 %v3430, %v3198
        %v3432 = vadd.f32 %v3431, %v3202
        %v3433 = vadd.f32 %v3432, %v3206
        %v3434 = vadd.f32 %v3433, %v3210
        %v3435 = vadd.f32 %v3434, %v3214
        %v3436 = vadd.f32 %v3435, %v3218
        %v3437 = vadd.f32 %v3436, %v3222
        %v3438 = vadd.f32 %v3437, %v3226
        %v3439 = vadd.f32 %v3438, %v3230
        %v3440 = vadd.f32 %v3439, %v3234
        %v3441 = vadd.f32 %v3440, %v3238
        %v3442 = vadd.f32 %v3441, %v3242
        %v3443 = vrot.slane %v3442, 4
        %v3444 = vadd.f32 %v3442, %v3443
        %v3445 = vrot.slane %v3444, 2
        %v3446 = vadd.f32 %v3444, %v3445
        %v3447 = vrot.slane %v3446, 1
        %v3448 = vadd.f32 %v3446, %v3447
        %v3449 = vadd.f32 %v3135, %v3139
        %v3450 = vadd.f32 %v3449, %v3143
        %v3451 = vadd.f32 %v3450, %v3147
        %v3452 = vadd.f32 %v3451, %v3151
        %v3453 = vadd.f32 %v3452, %v3155
        %v3454 = vadd.f32 %v3453, %v3159
        %v3455 = vadd.f32 %v3454, %v3163
        %v3456 = vadd.f32 %v3455, %v3167
        %v3457 = vadd.f32 %v3456, %v3171
        %v3458 = vadd.f32 %v3457, %v3175
        %v3459 = vadd.f32 %v3458, %v3179
        %v3460 = vadd.f32 %v3459, %v3183
        %v3461 = vadd.f32 %v3460, %v3187
        %v3462 = vadd.f32 %v3461, %v3191
        %v3463 = vadd.f32 %v3462, %v3195
        %v3464 = vadd.f32 %v3463, %v3199
        %v3465 = vadd.f32 %v3464, %v3203
        %v3466 = vadd.f32 %v3465, %v3207
        %v3467 = vadd.f32 %v3466, %v3211
        %v3468 = vadd.f32 %v3467, %v3215
        %v3469 = vadd.f32 %v3468, %v3219
        %v3470 = vadd.f32 %v3469, %v3223
        %v3471 = vadd.f32 %v3470, %v3227
        %v3472 = vadd.f32 %v3471, %v3231
        %v3473 = vadd.f32 %v3472, %v3235
        %v3474 = vadd.f32 %v3473, %v3239
        %v3475 = vadd.f32 %v3474, %v3243
        %v3476 = vrot.slane %v3475, 4
        %v3477 = vadd.f32 %v3475, %v3476
        %v3478 = vrot.slane %v3477, 2
        %v3479 = vadd.f32 %v3477, %v3478
        %v3480 = vrot.slane %v3479, 1
        %v3481 = vadd.f32 %v3479, %v3480
        %v3482 = vadd.f32 %v3136, %v3140
        %v3483 = vadd.f32 %v3482, %v3144
        %v3484 = vadd.f32 %v3483, %v3148
        %v3485 = vadd.f32 %v3484, %v3152
        %v3486 = vadd.f32 %v3485, %v3156
        %v3487 = vadd.f32 %v3486, %v3160
        %v3488 = vadd.f32 %v3487, %v3164
        %v3489 = vadd.f32 %v3488, %v3168
        %v3490 = vadd.f32 %v3489, %v3172
        %v3491 = vadd.f32 %v3490, %v3176
        %v3492 = vadd.f32 %v3491, %v3180
        %v3493 = vadd.f32 %v3492, %v3184
        %v3494 = vadd.f32 %v3493, %v3188
        %v3495 = vadd.f32 %v3494, %v3192
        %v3496 = vadd.f32 %v3495, %v3196
        %v3497 = vadd.f32 %v3496, %v3200
        %v3498 = vadd.f32 %v3497, %v3204
        %v3499 = vadd.f32 %v3498, %v3208
        %v3500 = vadd.f32 %v3499, %v3212
        %v3501 = vadd.f32 %v3500, %v3216
        %v3502 = vadd.f32 %v3501, %v3220
        %v3503 = vadd.f32 %v3502, %v3224
        %v3504 = vadd.f32 %v3503, %v3228
        %v3505 = vadd.f32 %v3504, %v3232
        %v3506 = vadd.f32 %v3505, %v3236
        %v3507 = vadd.f32 %v3506, %v3240
        %v3508 = vadd.f32 %v3507, %v3244
        %v3509 = vrot.slane %v3508, 4
        %v3510 = vadd.f32 %v3508, %v3509
        %v3511 = vrot.slane %v3510, 2
        %v3512 = vadd.f32 %v3510, %v3511
        %v3513 = vrot.slane %v3512, 1
        %v3514 = vadd.f32 %v3512, %v3513
        %v3515 = vadd.f32 %v3137, %v3141
        %v3516 = vadd.f32 %v3515, %v3145
        %v3517 = vadd.f32 %v3516, %v3149
        %v3518 = vadd.f32 %v3517, %v3153
        %v3519 = vadd.f32 %v3518, %v3157
        %v3520 = vadd.f32 %v3519, %v3161
        %v3521 = vadd.f32 %v3520, %v3165
        %v3522 = vadd.f32 %v3521, %v3169
        %v3523 = vadd.f32 %v3522, %v3173
        %v3524 = vadd.f32 %v3523, %v3177
        %v3525 = vadd.f32 %v3524, %v3181
        %v3526 = vadd.f32 %v3525, %v3185
        %v3527 = vadd.f32 %v3526, %v3189
        %v3528 = vadd.f32 %v3527, %v3193
        %v3529 = vadd.f32 %v3528, %v3197
        %v3530 = vadd.f32 %v3529, %v3201
        %v3531 = vadd.f32 %v3530, %v3205
        %v3532 = vadd.f32 %v3531, %v3209
        %v3533 = vadd.f32 %v3532, %v3213
        %v3534 = vadd.f32 %v3533, %v3217
        %v3535 = vadd.f32 %v3534, %v3221
        %v3536 = vadd.f32 %v3535, %v3225
        %v3537 = vadd.f32 %v3536, %v3229
        %v3538 = vadd.f32 %v3537, %v3233
        %v3539 = vadd.f32 %v3538, %v3237
        %v3540 = vadd.f32 %v3539, %v3241
        %v3541 = vadd.f32 %v3540, %v3245
        %v3542 = vrot.slane %v3541, 4
        %v3543 = vadd.f32 %v3541, %v3542
        %v3544 = vrot.slane %v3543, 2
        %v3545 = vadd.f32 %v3543, %v3544
        %v3546 = vrot.slane %v3545, 1
        %v3547 = vadd.f32 %v3545, %v3546
        %v3552 = vcombine.low %v3448, %v3481
        %v3553 = vcombine.low %v3514, %v3547
        %v3555 = vunpack.c.l.s4 1966171168
        %v3556 = vunpack.c.0.s8 %v3555
        %v3557 = vlaneseq
        %v3558 = vshrl.u32 %v3557, 7
        %v3559 = vsub.s32 %v3556, %v3558
        %v3560 = vrot.slane %v3552, %v3559
        %v3562 = vunpack.c.l.s4 1966171168
        %v3563 = vunpack.c.0.s8 %v3562
        %v3564 = vlaneseq
        %v3565 = vshrl.u32 %v3564, 7
        %v3566 = vsub.s32 %v3563, %v3565
        %v3567 = vrot.slane %v3553, %v3566
        %v3568 = vcombine.low %v3560, %v3567
        %v3570 = vunpack.c.l.s4 1966171168
        %v3571 = vunpack.c.0.s8 %v3570
        %v3572 = vlaneseq
        %v3573 = vshrl.u32 %v3572, 7
        %v3574 = vsub.s32 %v3571, %v3573
        %v3575 = vrot.slane %v3568, %v3574
        %3577 = vst.msk [vmem:[%s325] sm:$0xf] %vm3414, %v3575
        %v3578 = vadd.f32 %v3022, %v3026
        %v3579 = vadd.f32 %v3578, %v3030
        %v3580 = vadd.f32 %v3579, %v3034
        %v3581 = vadd.f32 %v3580, %v3038
        %v3582 = vadd.f32 %v3581, %v3042
        %v3583 = vadd.f32 %v3582, %v3046
        %v3584 = vadd.f32 %v3583, %v3050
        %v3585 = vadd.f32 %v3584, %v3054
        %v3586 = vadd.f32 %v3585, %v3058
        %v3587 = vadd.f32 %v3586, %v3062
        %v3588 = vadd.f32 %v3587, %v3066
        %v3589 = vadd.f32 %v3588, %v3070
        %v3590 = vadd.f32 %v3589, %v3074
        %v3591 = vadd.f32 %v3590, %v3078
        %v3592 = vadd.f32 %v3591, %v3082
        %v3593 = vadd.f32 %v3592, %v3086
        %v3594 = vadd.f32 %v3593, %v3090
        %v3595 = vadd.f32 %v3594, %v3094
        %v3596 = vadd.f32 %v3595, %v3098
        %v3597 = vadd.f32 %v3596, %v3102
        %v3598 = vadd.f32 %v3597, %v3106
        %v3599 = vadd.f32 %v3598, %v3110
        %v3600 = vadd.f32 %v3599, %v3114
        %v3601 = vadd.f32 %v3600, %v3118
        %v3602 = vadd.f32 %v3601, %v3122
        %v3603 = vadd.f32 %v3602, %v3126
        %v3604 = vadd.f32 %v3603, %v3130
        %v3605 = vrot.slane %v3604, 4
        %v3606 = vadd.f32 %v3604, %v3605
        %v3607 = vrot.slane %v3606, 2
        %v3608 = vadd.f32 %v3606, %v3607
        %v3609 = vrot.slane %v3608, 1
        %v3610 = vadd.f32 %v3608, %v3609
        %v3611 = vadd.f32 %v3023, %v3027
        %v3612 = vadd.f32 %v3611, %v3031
        %v3613 = vadd.f32 %v3612, %v3035
        %v3614 = vadd.f32 %v3613, %v3039
        %v3615 = vadd.f32 %v3614, %v3043
        %v3616 = vadd.f32 %v3615, %v3047
        %v3617 = vadd.f32 %v3616, %v3051
        %v3618 = vadd.f32 %v3617, %v3055
        %v3619 = vadd.f32 %v3618, %v3059
        %v3620 = vadd.f32 %v3619, %v3063
        %v3621 = vadd.f32 %v3620, %v3067
        %v3622 = vadd.f32 %v3621, %v3071
        %v3623 = vadd.f32 %v3622, %v3075
        %v3624 = vadd.f32 %v3623, %v3079
        %v3625 = vadd.f32 %v3624, %v3083
        %v3626 = vadd.f32 %v3625, %v3087
        %v3627 = vadd.f32 %v3626, %v3091
        %v3628 = vadd.f32 %v3627, %v3095
        %v3629 = vadd.f32 %v3628, %v3099
        %v3630 = vadd.f32 %v3629, %v3103
        %v3631 = vadd.f32 %v3630, %v3107
        %v3632 = vadd.f32 %v3631, %v3111
        %v3633 = vadd.f32 %v3632, %v3115
        %v3634 = vadd.f32 %v3633, %v3119
        %v3635 = vadd.f32 %v3634, %v3123
        %v3636 = vadd.f32 %v3635, %v3127
        %v3637 = vadd.f32 %v3636, %v3131
        %v3638 = vrot.slane %v3637, 4
        %v3639 = vadd.f32 %v3637, %v3638
        %v3640 = vrot.slane %v3639, 2
        %v3641 = vadd.f32 %v3639, %v3640
        %v3642 = vrot.slane %v3641, 1
        %v3643 = vadd.f32 %v3641, %v3642
        %v3644 = vadd.f32 %v3024, %v3028
        %v3645 = vadd.f32 %v3644, %v3032
        %v3646 = vadd.f32 %v3645, %v3036
        %v3647 = vadd.f32 %v3646, %v3040
        %v3648 = vadd.f32 %v3647, %v3044
        %v3649 = vadd.f32 %v3648, %v3048
        %v3650 = vadd.f32 %v3649, %v3052
        %v3651 = vadd.f32 %v3650, %v3056
        %v3652 = vadd.f32 %v3651, %v3060
        %v3653 = vadd.f32 %v3652, %v3064
        %v3654 = vadd.f32 %v3653, %v3068
        %v3655 = vadd.f32 %v3654, %v3072
        %v3656 = vadd.f32 %v3655, %v3076
        %v3657 = vadd.f32 %v3656, %v3080
        %v3658 = vadd.f32 %v3657, %v3084
        %v3659 = vadd.f32 %v3658, %v3088
        %v3660 = vadd.f32 %v3659, %v3092
        %v3661 = vadd.f32 %v3660, %v3096
        %v3662 = vadd.f32 %v3661, %v3100
        %v3663 = vadd.f32 %v3662, %v3104
        %v3664 = vadd.f32 %v3663, %v3108
        %v3665 = vadd.f32 %v3664, %v3112
        %v3666 = vadd.f32 %v3665, %v3116
        %v3667 = vadd.f32 %v3666, %v3120
        %v3668 = vadd.f32 %v3667, %v3124
        %v3669 = vadd.f32 %v3668, %v3128
        %v3670 = vadd.f32 %v3669, %v3132
        %v3671 = vrot.slane %v3670, 4
        %v3672 = vadd.f32 %v3670, %v3671
        %v3673 = vrot.slane %v3672, 2
        %v3674 = vadd.f32 %v3672, %v3673
        %v3675 = vrot.slane %v3674, 1
        %v3676 = vadd.f32 %v3674, %v3675
        %v3677 = vadd.f32 %v3025, %v3029
        %v3678 = vadd.f32 %v3677, %v3033
        %v3679 = vadd.f32 %v3678, %v3037
        %v3680 = vadd.f32 %v3679, %v3041
        %v3681 = vadd.f32 %v3680, %v3045
        %v3682 = vadd.f32 %v3681, %v3049
        %v3683 = vadd.f32 %v3682, %v3053
        %v3684 = vadd.f32 %v3683, %v3057
        %v3685 = vadd.f32 %v3684, %v3061
        %v3686 = vadd.f32 %v3685, %v3065
        %v3687 = vadd.f32 %v3686, %v3069
        %v3688 = vadd.f32 %v3687, %v3073
        %v3689 = vadd.f32 %v3688, %v3077
        %v3690 = vadd.f32 %v3689, %v3081
        %v3691 = vadd.f32 %v3690, %v3085
        %v3692 = vadd.f32 %v3691, %v3089
        %v3693 = vadd.f32 %v3692, %v3093
        %v3694 = vadd.f32 %v3693, %v3097
        %v3695 = vadd.f32 %v3694, %v3101
        %v3696 = vadd.f32 %v3695, %v3105
        %v3697 = vadd.f32 %v3696, %v3109
        %v3698 = vadd.f32 %v3697, %v3113
        %v3699 = vadd.f32 %v3698, %v3117
        %v3700 = vadd.f32 %v3699, %v3121
        %v3701 = vadd.f32 %v3700, %v3125
        %v3702 = vadd.f32 %v3701, %v3129
        %v3703 = vadd.f32 %v3702, %v3133
        %v3704 = vrot.slane %v3703, 4
        %v3705 = vadd.f32 %v3703, %v3704
        %v3706 = vrot.slane %v3705, 2
        %v3707 = vadd.f32 %v3705, %v3706
        %v3708 = vrot.slane %v3707, 1
        %v3709 = vadd.f32 %v3707, %v3708
        %v3714 = vcombine.low %v3610, %v3643
        %v3715 = vcombine.low %v3676, %v3709
        %v3717 = vunpack.c.l.s4 1966171168
        %v3718 = vunpack.c.0.s8 %v3717
        %v3719 = vlaneseq
        %v3720 = vshrl.u32 %v3719, 7
        %v3721 = vsub.s32 %v3718, %v3720
        %v3722 = vrot.slane %v3714, %v3721
        %v3724 = vunpack.c.l.s4 1966171168
        %v3725 = vunpack.c.0.s8 %v3724
        %v3726 = vlaneseq
        %v3727 = vshrl.u32 %v3726, 7
        %v3728 = vsub.s32 %v3725, %v3727
        %v3729 = vrot.slane %v3715, %v3728
        %v3730 = vcombine.low %v3722, %v3729
        %v3732 = vunpack.c.l.s4 1966171168
        %v3733 = vunpack.c.0.s8 %v3732
        %v3734 = vlaneseq
        %v3735 = vshrl.u32 %v3734, 7
        %v3736 = vsub.s32 %v3733, %v3735
        %v3737 = vrot.slane %v3730, %v3736
        %3739 = vst.msk [vmem:[%s329] sm:$0xf] %vm3414, %v3737
        %v3740 = vadd.f32 %v446, %v450
        %v3741 = vadd.f32 %v3740, %v454
        %v3742 = vadd.f32 %v3741, %v458
        %v3743 = vadd.f32 %v3742, %v462
        %v3744 = vadd.f32 %v3743, %v466
        %v3745 = vadd.f32 %v3744, %v470
        %v3746 = vadd.f32 %v3745, %v474
        %v3747 = vadd.f32 %v3746, %v478
        %v3748 = vadd.f32 %v3747, %v482
        %v3749 = vadd.f32 %v3748, %v486
        %v3750 = vadd.f32 %v3749, %v490
        %v3751 = vadd.f32 %v3750, %v494
        %v3752 = vadd.f32 %v3751, %v498
        %v3753 = vadd.f32 %v3752, %v502
        %v3754 = vadd.f32 %v3753, %v506
        %v3755 = vadd.f32 %v3754, %v510
        %v3756 = vadd.f32 %v3755, %v514
        %v3757 = vadd.f32 %v3756, %v518
        %v3758 = vadd.f32 %v3757, %v522
        %v3759 = vadd.f32 %v3758, %v526
        %v3760 = vadd.f32 %v3759, %v530
        %v3761 = vadd.f32 %v3760, %v534
        %v3762 = vadd.f32 %v3761, %v538
        %v3763 = vadd.f32 %v3762, %v542
        %v3764 = vadd.f32 %v3763, %v546
        %v3765 = vadd.f32 %v3764, %v550
        %v3766 = vadd.f32 %v3765, %v554
        %v3767 = vrot.slane %v3766, 4
        %v3768 = vadd.f32 %v3766, %v3767
        %v3769 = vrot.slane %v3768, 2
        %v3770 = vadd.f32 %v3768, %v3769
        %v3771 = vrot.slane %v3770, 1
        %v3772 = vadd.f32 %v3770, %v3771
        %v3773 = vadd.f32 %v447, %v451
        %v3774 = vadd.f32 %v3773, %v455
        %v3775 = vadd.f32 %v3774, %v459
        %v3776 = vadd.f32 %v3775, %v463
        %v3777 = vadd.f32 %v3776, %v467
        %v3778 = vadd.f32 %v3777, %v471
        %v3779 = vadd.f32 %v3778, %v475
        %v3780 = vadd.f32 %v3779, %v479
        %v3781 = vadd.f32 %v3780, %v483
        %v3782 = vadd.f32 %v3781, %v487
        %v3783 = vadd.f32 %v3782, %v491
        %v3784 = vadd.f32 %v3783, %v495
        %v3785 = vadd.f32 %v3784, %v499
        %v3786 = vadd.f32 %v3785, %v503
        %v3787 = vadd.f32 %v3786, %v507
        %v3788 = vadd.f32 %v3787, %v511
        %v3789 = vadd.f32 %v3788, %v515
        %v3790 = vadd.f32 %v3789, %v519
        %v3791 = vadd.f32 %v3790, %v523
        %v3792 = vadd.f32 %v3791, %v527
        %v3793 = vadd.f32 %v3792, %v531
        %v3794 = vadd.f32 %v3793, %v535
        %v3795 = vadd.f32 %v3794, %v539
        %v3796 = vadd.f32 %v3795, %v543
        %v3797 = vadd.f32 %v3796, %v547
        %v3798 = vadd.f32 %v3797, %v551
        %v3799 = vadd.f32 %v3798, %v555
        %v3800 = vrot.slane %v3799, 4
        %v3801 = vadd.f32 %v3799, %v3800
        %v3802 = vrot.slane %v3801, 2
        %v3803 = vadd.f32 %v3801, %v3802
        %v3804 = vrot.slane %v3803, 1
        %v3805 = vadd.f32 %v3803, %v3804
        %v3806 = vadd.f32 %v448, %v452
        %v3807 = vadd.f32 %v3806, %v456
        %v3808 = vadd.f32 %v3807, %v460
        %v3809 = vadd.f32 %v3808, %v464
        %v3810 = vadd.f32 %v3809, %v468
        %v3811 = vadd.f32 %v3810, %v472
        %v3812 = vadd.f32 %v3811, %v476
        %v3813 = vadd.f32 %v3812, %v480
        %v3814 = vadd.f32 %v3813, %v484
        %v3815 = vadd.f32 %v3814, %v488
        %v3816 = vadd.f32 %v3815, %v492
        %v3817 = vadd.f32 %v3816, %v496
        %v3818 = vadd.f32 %v3817, %v500
        %v3819 = vadd.f32 %v3818, %v504
        %v3820 = vadd.f32 %v3819, %v508
        %v3821 = vadd.f32 %v3820, %v512
        %v3822 = vadd.f32 %v3821, %v516
        %v3823 = vadd.f32 %v3822, %v520
        %v3824 = vadd.f32 %v3823, %v524
        %v3825 = vadd.f32 %v3824, %v528
        %v3826 = vadd.f32 %v3825, %v532
        %v3827 = vadd.f32 %v3826, %v536
        %v3828 = vadd.f32 %v3827, %v540
        %v3829 = vadd.f32 %v3828, %v544
        %v3830 = vadd.f32 %v3829, %v548
        %v3831 = vadd.f32 %v3830, %v552
        %v3832 = vadd.f32 %v3831, %v556
        %v3833 = vrot.slane %v3832, 4
        %v3834 = vadd.f32 %v3832, %v3833
        %v3835 = vrot.slane %v3834, 2
        %v3836 = vadd.f32 %v3834, %v3835
        %v3837 = vrot.slane %v3836, 1
        %v3838 = vadd.f32 %v3836, %v3837
        %v3839 = vadd.f32 %v449, %v453
        %v3840 = vadd.f32 %v3839, %v457
        %v3841 = vadd.f32 %v3840, %v461
        %v3842 = vadd.f32 %v3841, %v465
        %v3843 = vadd.f32 %v3842, %v469
        %v3844 = vadd.f32 %v3843, %v473
        %v3845 = vadd.f32 %v3844, %v477
        %v3846 = vadd.f32 %v3845, %v481
        %v3847 = vadd.f32 %v3846, %v485
        %v3848 = vadd.f32 %v3847, %v489
        %v3849 = vadd.f32 %v3848, %v493
        %v3850 = vadd.f32 %v3849, %v497
        %v3851 = vadd.f32 %v3850, %v501
        %v3852 = vadd.f32 %v3851, %v505
        %v3853 = vadd.f32 %v3852, %v509
        %v3854 = vadd.f32 %v3853, %v513
        %v3855 = vadd.f32 %v3854, %v517
        %v3856 = vadd.f32 %v3855, %v521
        %v3857 = vadd.f32 %v3856, %v525
        %v3858 = vadd.f32 %v3857, %v529
        %v3859 = vadd.f32 %v3858, %v533
        %v3860 = vadd.f32 %v3859, %v537
        %v3861 = vadd.f32 %v3860, %v541
        %v3862 = vadd.f32 %v3861, %v545
        %v3863 = vadd.f32 %v3862, %v549
        %v3864 = vadd.f32 %v3863, %v553
        %v3865 = vadd.f32 %v3864, %v557
        %v3866 = vrot.slane %v3865, 4
        %v3867 = vadd.f32 %v3865, %v3866
        %v3868 = vrot.slane %v3867, 2
        %v3869 = vadd.f32 %v3867, %v3868
        %v3870 = vrot.slane %v3869, 1
        %v3871 = vadd.f32 %v3869, %v3870
        %v3876 = vcombine.low %v3772, %v3805
        %v3877 = vcombine.low %v3838, %v3871
        %v3879 = vunpack.c.l.s4 1966171168
        %v3880 = vunpack.c.0.s8 %v3879
        %v3881 = vlaneseq
        %v3882 = vshrl.u32 %v3881, 7
        %v3883 = vsub.s32 %v3880, %v3882
        %v3884 = vrot.slane %v3876, %v3883
        %v3886 = vunpack.c.l.s4 1966171168
        %v3887 = vunpack.c.0.s8 %v3886
        %v3888 = vlaneseq
        %v3889 = vshrl.u32 %v3888, 7
        %v3890 = vsub.s32 %v3887, %v3889
        %v3891 = vrot.slane %v3877, %v3890
        %v3892 = vcombine.low %v3884, %v3891
        %v3894 = vunpack.c.l.s4 1966171168
        %v3895 = vunpack.c.0.s8 %v3894
        %v3896 = vlaneseq
        %v3897 = vshrl.u32 %v3896, 7
        %v3898 = vsub.s32 %v3895, %v3897
        %v3899 = vrot.slane %v3892, %v3898
        %3901 = vst.msk [vmem:[%s333] sm:$0xf] %vm3414, %v3899
      $region32: #{gen_loss.3} parent=27 // pred_fallthru
        _
      %p3902 = scmp.eq.s32.totalorder %s17, 1
      // Predicated region
      $region33: #{gen_loss.3} parent=27 // pred_check
        %p3903 = pneg %p3902
      $region34: #{gen_loss.3} parent=27 // pred_check_branch
        %3905 = sbr.rel (%p3903) target = $region36
      $region35: #{gen_loss.3} parent=27 // pred_region
        %v3906 = vlaneseq
        %v3907 = vshrl.u32 %v3906, 7
        %v3908 = vadd.s32 %v3907, 8
        %v3909 = vadd.s32 %v3907, 16
        %v3910 = vadd.s32 %v3907, 24
        %v3911 = vadd.s32 %v3907, 32
        %v3912 = vadd.s32 %v3907, 40
        %v3913 = vadd.s32 %v3907, 48
        %v3914 = vadd.s32 %v3907, 56
        %v3915 = vadd.s32 %v3907, 64
        %v3916 = vadd.s32 %v3907, 72
        %v3917 = vadd.s32 %v3907, 80
        %v3918 = vadd.s32 %v3907, 88
        %v3919 = vadd.s32 %v3907, 96
        %v3920 = vadd.s32 %v3907, 104
        %v3921 = vadd.s32 %v3907, 112
        %v3922 = vadd.s32 %v3907, 120
        %v3923 = vadd.s32 %v3907, 128
        %v3924 = vadd.s32 %v3907, 136
        %v3925 = vadd.s32 %v3907, 144
        %v3926 = vadd.s32 %v3907, 152
        %v3927 = vadd.s32 %v3907, 160
        %v3928 = vadd.s32 %v3907, 168
        %v3929 = vadd.s32 %v3907, 176
        %v3930 = vadd.s32 %v3907, 184
        %v3931 = vadd.s32 %v3907, 192
        %v3932 = vadd.s32 %v3907, 200
        %v3933 = vadd.s32 %v3907, 208
        %v3934 = vadd.s32 %v3907, 216
        %vm3935 = vcmp.lt.s32.totalorder %v3907, 10
        %vm3936 = vcmp.lt.s32.totalorder %v3908, 10
        %vm3937 = vcmp.lt.s32.totalorder %v3909, 10
        %vm3938 = vcmp.lt.s32.totalorder %v3910, 10
        %vm3939 = vcmp.lt.s32.totalorder %v3911, 10
        %vm3940 = vcmp.lt.s32.totalorder %v3912, 10
        %vm3941 = vcmp.lt.s32.totalorder %v3913, 10
        %vm3942 = vcmp.lt.s32.totalorder %v3914, 10
        %vm3943 = vcmp.lt.s32.totalorder %v3915, 10
        %vm3944 = vcmp.lt.s32.totalorder %v3916, 10
        %vm3945 = vcmp.lt.s32.totalorder %v3917, 10
        %vm3946 = vcmp.lt.s32.totalorder %v3918, 10
        %vm3947 = vcmp.lt.s32.totalorder %v3919, 10
        %vm3948 = vcmp.lt.s32.totalorder %v3920, 10
        %vm3949 = vcmp.lt.s32.totalorder %v3921, 10
        %vm3950 = vcmp.lt.s32.totalorder %v3922, 10
        %vm3951 = vcmp.lt.s32.totalorder %v3923, 10
        %vm3952 = vcmp.lt.s32.totalorder %v3924, 10
        %vm3953 = vcmp.lt.s32.totalorder %v3925, 10
        %vm3954 = vcmp.lt.s32.totalorder %v3926, 10
        %vm3955 = vcmp.lt.s32.totalorder %v3927, 10
        %vm3956 = vcmp.lt.s32.totalorder %v3928, 10
        %vm3957 = vcmp.lt.s32.totalorder %v3929, 10
        %vm3958 = vcmp.lt.s32.totalorder %v3930, 10
        %vm3959 = vcmp.lt.s32.totalorder %v3931, 10
        %vm3960 = vcmp.lt.s32.totalorder %v3932, 10
        %vm3961 = vcmp.lt.s32.totalorder %v3933, 10
        %vm3962 = vcmp.lt.s32.totalorder %v3934, 10
        %v3963 = vsel %vm3935, %v2350, 0.0
        %v3964 = vsel %vm3935, %v2351, 0.0
        %v3965 = vsel %vm3935, %v2352, 0.0
        %v3966 = vsel %vm3935, %v2353, 0.0
        %v3967 = vsel %vm3936, %v2354, 0.0
        %v3968 = vsel %vm3936, %v2355, 0.0
        %v3969 = vsel %vm3936, %v2356, 0.0
        %v3970 = vsel %vm3936, %v2357, 0.0
        %v3971 = vsel %vm3937, %v2358, 0.0
        %v3972 = vsel %vm3937, %v2359, 0.0
        %v3973 = vsel %vm3937, %v2360, 0.0
        %v3974 = vsel %vm3937, %v2361, 0.0
        %v3975 = vsel %vm3938, %v2362, 0.0
        %v3976 = vsel %vm3938, %v2363, 0.0
        %v3977 = vsel %vm3938, %v2364, 0.0
        %v3978 = vsel %vm3938, %v2365, 0.0
        %v3979 = vsel %vm3939, %v2366, 0.0
        %v3980 = vsel %vm3939, %v2367, 0.0
        %v3981 = vsel %vm3939, %v2368, 0.0
        %v3982 = vsel %vm3939, %v2369, 0.0
        %v3983 = vsel %vm3940, %v2370, 0.0
        %v3984 = vsel %vm3940, %v2371, 0.0
        %v3985 = vsel %vm3940, %v2372, 0.0
        %v3986 = vsel %vm3940, %v2373, 0.0
        %v3987 = vsel %vm3941, %v2374, 0.0
        %v3988 = vsel %vm3941, %v2375, 0.0
        %v3989 = vsel %vm3941, %v2376, 0.0
        %v3990 = vsel %vm3941, %v2377, 0.0
        %v3991 = vsel %vm3942, %v2378, 0.0
        %v3992 = vsel %vm3942, %v2379, 0.0
        %v3993 = vsel %vm3942, %v2380, 0.0
        %v3994 = vsel %vm3942, %v2381, 0.0
        %v3995 = vsel %vm3943, %v2382, 0.0
        %v3996 = vsel %vm3943, %v2383, 0.0
        %v3997 = vsel %vm3943, %v2384, 0.0
        %v3998 = vsel %vm3943, %v2385, 0.0
        %v3999 = vsel %vm3944, %v2386, 0.0
        %v4000 = vsel %vm3944, %v2387, 0.0
        %v4001 = vsel %vm3944, %v2388, 0.0
        %v4002 = vsel %vm3944, %v2389, 0.0
        %v4003 = vsel %vm3945, %v2390, 0.0
        %v4004 = vsel %vm3945, %v2391, 0.0
        %v4005 = vsel %vm3945, %v2392, 0.0
        %v4006 = vsel %vm3945, %v2393, 0.0
        %v4007 = vsel %vm3946, %v2394, 0.0
        %v4008 = vsel %vm3946, %v2395, 0.0
        %v4009 = vsel %vm3946, %v2396, 0.0
        %v4010 = vsel %vm3946, %v2397, 0.0
        %v4011 = vsel %vm3947, %v2398, 0.0
        %v4012 = vsel %vm3947, %v2399, 0.0
        %v4013 = vsel %vm3947, %v2400, 0.0
        %v4014 = vsel %vm3947, %v2401, 0.0
        %v4015 = vsel %vm3948, %v2402, 0.0
        %v4016 = vsel %vm3948, %v2403, 0.0
        %v4017 = vsel %vm3948, %v2404, 0.0
        %v4018 = vsel %vm3948, %v2405, 0.0
        %v4019 = vsel %vm3949, %v2406, 0.0
        %v4020 = vsel %vm3949, %v2407, 0.0
        %v4021 = vsel %vm3949, %v2408, 0.0
        %v4022 = vsel %vm3949, %v2409, 0.0
        %v4023 = vsel %vm3950, %v2410, 0.0
        %v4024 = vsel %vm3950, %v2411, 0.0
        %v4025 = vsel %vm3950, %v2412, 0.0
        %v4026 = vsel %vm3950, %v2413, 0.0
        %v4027 = vsel %vm3951, %v2414, 0.0
        %v4028 = vsel %vm3951, %v2415, 0.0
        %v4029 = vsel %vm3951, %v2416, 0.0
        %v4030 = vsel %vm3951, %v2417, 0.0
        %v4031 = vsel %vm3952, %v2418, 0.0
        %v4032 = vsel %vm3952, %v2419, 0.0
        %v4033 = vsel %vm3952, %v2420, 0.0
        %v4034 = vsel %vm3952, %v2421, 0.0
        %v4035 = vsel %vm3953, %v2422, 0.0
        %v4036 = vsel %vm3953, %v2423, 0.0
        %v4037 = vsel %vm3953, %v2424, 0.0
        %v4038 = vsel %vm3953, %v2425, 0.0
        %v4039 = vsel %vm3954, %v2426, 0.0
        %v4040 = vsel %vm3954, %v2427, 0.0
        %v4041 = vsel %vm3954, %v2428, 0.0
        %v4042 = vsel %vm3954, %v2429, 0.0
        %v4043 = vsel %vm3955, %v2430, 0.0
        %v4044 = vsel %vm3955, %v2431, 0.0
        %v4045 = vsel %vm3955, %v2432, 0.0
        %v4046 = vsel %vm3955, %v2433, 0.0
        %v4047 = vsel %vm3956, %v2434, 0.0
        %v4048 = vsel %vm3956, %v2435, 0.0
        %v4049 = vsel %vm3956, %v2436, 0.0
        %v4050 = vsel %vm3956, %v2437, 0.0
        %v4051 = vsel %vm3957, %v2438, 0.0
        %v4052 = vsel %vm3957, %v2439, 0.0
        %v4053 = vsel %vm3957, %v2440, 0.0
        %v4054 = vsel %vm3957, %v2441, 0.0
        %v4055 = vsel %vm3958, %v2442, 0.0
        %v4056 = vsel %vm3958, %v2443, 0.0
        %v4057 = vsel %vm3958, %v2444, 0.0
        %v4058 = vsel %vm3958, %v2445, 0.0
        %v4059 = vsel %vm3959, %v2446, 0.0
        %v4060 = vsel %vm3959, %v2447, 0.0
        %v4061 = vsel %vm3959, %v2448, 0.0
        %v4062 = vsel %vm3959, %v2449, 0.0
        %v4063 = vsel %vm3960, %v2450, 0.0
        %v4064 = vsel %vm3960, %v2451, 0.0
        %v4065 = vsel %vm3960, %v2452, 0.0
        %v4066 = vsel %vm3960, %v2453, 0.0
        %v4067 = vsel %vm3961, %v2454, 0.0
        %v4068 = vsel %vm3961, %v2455, 0.0
        %v4069 = vsel %vm3961, %v2456, 0.0
        %v4070 = vsel %vm3961, %v2457, 0.0
        %v4071 = vsel %vm3962, %v2458, 0.0
        %v4072 = vsel %vm3962, %v2459, 0.0
        %v4073 = vsel %vm3962, %v2460, 0.0
        %v4074 = vsel %vm3962, %v2461, 0.0
        %v4075 = vsel %vm3935, %v3134, 0.0
        %v4076 = vsel %vm3935, %v3135, 0.0
        %v4077 = vsel %vm3935, %v3136, 0.0
        %v4078 = vsel %vm3935, %v3137, 0.0
        %v4079 = vsel %vm3936, %v3138, 0.0
        %v4080 = vsel %vm3936, %v3139, 0.0
        %v4081 = vsel %vm3936, %v3140, 0.0
        %v4082 = vsel %vm3936, %v3141, 0.0
        %v4083 = vsel %vm3937, %v3142, 0.0
        %v4084 = vsel %vm3937, %v3143, 0.0
        %v4085 = vsel %vm3937, %v3144, 0.0
        %v4086 = vsel %vm3937, %v3145, 0.0
        %v4087 = vsel %vm3938, %v3146, 0.0
        %v4088 = vsel %vm3938, %v3147, 0.0
        %v4089 = vsel %vm3938, %v3148, 0.0
        %v4090 = vsel %vm3938, %v3149, 0.0
        %v4091 = vsel %vm3939, %v3150, 0.0
        %v4092 = vsel %vm3939, %v3151, 0.0
        %v4093 = vsel %vm3939, %v3152, 0.0
        %v4094 = vsel %vm3939, %v3153, 0.0
        %v4095 = vsel %vm3940, %v3154, 0.0
        %v4096 = vsel %vm3940, %v3155, 0.0
        %v4097 = vsel %vm3940, %v3156, 0.0
        %v4098 = vsel %vm3940, %v3157, 0.0
        %v4099 = vsel %vm3941, %v3158, 0.0
        %v4100 = vsel %vm3941, %v3159, 0.0
        %v4101 = vsel %vm3941, %v3160, 0.0
        %v4102 = vsel %vm3941, %v3161, 0.0
        %v4103 = vsel %vm3942, %v3162, 0.0
        %v4104 = vsel %vm3942, %v3163, 0.0
        %v4105 = vsel %vm3942, %v3164, 0.0
        %v4106 = vsel %vm3942, %v3165, 0.0
        %v4107 = vsel %vm3943, %v3166, 0.0
        %v4108 = vsel %vm3943, %v3167, 0.0
        %v4109 = vsel %vm3943, %v3168, 0.0
        %v4110 = vsel %vm3943, %v3169, 0.0
        %v4111 = vsel %vm3944, %v3170, 0.0
        %v4112 = vsel %vm3944, %v3171, 0.0
        %v4113 = vsel %vm3944, %v3172, 0.0
        %v4114 = vsel %vm3944, %v3173, 0.0
        %v4115 = vsel %vm3945, %v3174, 0.0
        %v4116 = vsel %vm3945, %v3175, 0.0
        %v4117 = vsel %vm3945, %v3176, 0.0
        %v4118 = vsel %vm3945, %v3177, 0.0
        %v4119 = vsel %vm3946, %v3178, 0.0
        %v4120 = vsel %vm3946, %v3179, 0.0
        %v4121 = vsel %vm3946, %v3180, 0.0
        %v4122 = vsel %vm3946, %v3181, 0.0
        %v4123 = vsel %vm3947, %v3182, 0.0
        %v4124 = vsel %vm3947, %v3183, 0.0
        %v4125 = vsel %vm3947, %v3184, 0.0
        %v4126 = vsel %vm3947, %v3185, 0.0
        %v4127 = vsel %vm3948, %v3186, 0.0
        %v4128 = vsel %vm3948, %v3187, 0.0
        %v4129 = vsel %vm3948, %v3188, 0.0
        %v4130 = vsel %vm3948, %v3189, 0.0
        %v4131 = vsel %vm3949, %v3190, 0.0
        %v4132 = vsel %vm3949, %v3191, 0.0
        %v4133 = vsel %vm3949, %v3192, 0.0
        %v4134 = vsel %vm3949, %v3193, 0.0
        %v4135 = vsel %vm3950, %v3194, 0.0
        %v4136 = vsel %vm3950, %v3195, 0.0
        %v4137 = vsel %vm3950, %v3196, 0.0
        %v4138 = vsel %vm3950, %v3197, 0.0
        %v4139 = vsel %vm3951, %v3198, 0.0
        %v4140 = vsel %vm3951, %v3199, 0.0
        %v4141 = vsel %vm3951, %v3200, 0.0
        %v4142 = vsel %vm3951, %v3201, 0.0
        %v4143 = vsel %vm3952, %v3202, 0.0
        %v4144 = vsel %vm3952, %v3203, 0.0
        %v4145 = vsel %vm3952, %v3204, 0.0
        %v4146 = vsel %vm3952, %v3205, 0.0
        %v4147 = vsel %vm3953, %v3206, 0.0
        %v4148 = vsel %vm3953, %v3207, 0.0
        %v4149 = vsel %vm3953, %v3208, 0.0
        %v4150 = vsel %vm3953, %v3209, 0.0
        %v4151 = vsel %vm3954, %v3210, 0.0
        %v4152 = vsel %vm3954, %v3211, 0.0
        %v4153 = vsel %vm3954, %v3212, 0.0
        %v4154 = vsel %vm3954, %v3213, 0.0
        %v4155 = vsel %vm3955, %v3214, 0.0
        %v4156 = vsel %vm3955, %v3215, 0.0
        %v4157 = vsel %vm3955, %v3216, 0.0
        %v4158 = vsel %vm3955, %v3217, 0.0
        %v4159 = vsel %vm3956, %v3218, 0.0
        %v4160 = vsel %vm3956, %v3219, 0.0
        %v4161 = vsel %vm3956, %v3220, 0.0
        %v4162 = vsel %vm3956, %v3221, 0.0
        %v4163 = vsel %vm3957, %v3222, 0.0
        %v4164 = vsel %vm3957, %v3223, 0.0
        %v4165 = vsel %vm3957, %v3224, 0.0
        %v4166 = vsel %vm3957, %v3225, 0.0
        %v4167 = vsel %vm3958, %v3226, 0.0
        %v4168 = vsel %vm3958, %v3227, 0.0
        %v4169 = vsel %vm3958, %v3228, 0.0
        %v4170 = vsel %vm3958, %v3229, 0.0
        %v4171 = vsel %vm3959, %v3230, 0.0
        %v4172 = vsel %vm3959, %v3231, 0.0
        %v4173 = vsel %vm3959, %v3232, 0.0
        %v4174 = vsel %vm3959, %v3233, 0.0
        %v4175 = vsel %vm3960, %v3234, 0.0
        %v4176 = vsel %vm3960, %v3235, 0.0
        %v4177 = vsel %vm3960, %v3236, 0.0
        %v4178 = vsel %vm3960, %v3237, 0.0
        %v4179 = vsel %vm3961, %v3238, 0.0
        %v4180 = vsel %vm3961, %v3239, 0.0
        %v4181 = vsel %vm3961, %v3240, 0.0
        %v4182 = vsel %vm3961, %v3241, 0.0
        %v4183 = vsel %vm3962, %v3242, 0.0
        %v4184 = vsel %vm3962, %v3243, 0.0
        %v4185 = vsel %vm3962, %v3244, 0.0
        %v4186 = vsel %vm3962, %v3245, 0.0
        %v4187 = vsel %vm3935, %v3022, 0.0
        %v4188 = vsel %vm3935, %v3023, 0.0
        %v4189 = vsel %vm3935, %v3024, 0.0
        %v4190 = vsel %vm3935, %v3025, 0.0
        %v4191 = vsel %vm3936, %v3026, 0.0
        %v4192 = vsel %vm3936, %v3027, 0.0
        %v4193 = vsel %vm3936, %v3028, 0.0
        %v4194 = vsel %vm3936, %v3029, 0.0
        %v4195 = vsel %vm3937, %v3030, 0.0
        %v4196 = vsel %vm3937, %v3031, 0.0
        %v4197 = vsel %vm3937, %v3032, 0.0
        %v4198 = vsel %vm3937, %v3033, 0.0
        %v4199 = vsel %vm3938, %v3034, 0.0
        %v4200 = vsel %vm3938, %v3035, 0.0
        %v4201 = vsel %vm3938, %v3036, 0.0
        %v4202 = vsel %vm3938, %v3037, 0.0
        %v4203 = vsel %vm3939, %v3038, 0.0
        %v4204 = vsel %vm3939, %v3039, 0.0
        %v4205 = vsel %vm3939, %v3040, 0.0
        %v4206 = vsel %vm3939, %v3041, 0.0
        %v4207 = vsel %vm3940, %v3042, 0.0
        %v4208 = vsel %vm3940, %v3043, 0.0
        %v4209 = vsel %vm3940, %v3044, 0.0
        %v4210 = vsel %vm3940, %v3045, 0.0
        %v4211 = vsel %vm3941, %v3046, 0.0
        %v4212 = vsel %vm3941, %v3047, 0.0
        %v4213 = vsel %vm3941, %v3048, 0.0
        %v4214 = vsel %vm3941, %v3049, 0.0
        %v4215 = vsel %vm3942, %v3050, 0.0
        %v4216 = vsel %vm3942, %v3051, 0.0
        %v4217 = vsel %vm3942, %v3052, 0.0
        %v4218 = vsel %vm3942, %v3053, 0.0
        %v4219 = vsel %vm3943, %v3054, 0.0
        %v4220 = vsel %vm3943, %v3055, 0.0
        %v4221 = vsel %vm3943, %v3056, 0.0
        %v4222 = vsel %vm3943, %v3057, 0.0
        %v4223 = vsel %vm3944, %v3058, 0.0
        %v4224 = vsel %vm3944, %v3059, 0.0
        %v4225 = vsel %vm3944, %v3060, 0.0
        %v4226 = vsel %vm3944, %v3061, 0.0
        %v4227 = vsel %vm3945, %v3062, 0.0
        %v4228 = vsel %vm3945, %v3063, 0.0
        %v4229 = vsel %vm3945, %v3064, 0.0
        %v4230 = vsel %vm3945, %v3065, 0.0
        %v4231 = vsel %vm3946, %v3066, 0.0
        %v4232 = vsel %vm3946, %v3067, 0.0
        %v4233 = vsel %vm3946, %v3068, 0.0
        %v4234 = vsel %vm3946, %v3069, 0.0
        %v4235 = vsel %vm3947, %v3070, 0.0
        %v4236 = vsel %vm3947, %v3071, 0.0
        %v4237 = vsel %vm3947, %v3072, 0.0
        %v4238 = vsel %vm3947, %v3073, 0.0
        %v4239 = vsel %vm3948, %v3074, 0.0
        %v4240 = vsel %vm3948, %v3075, 0.0
        %v4241 = vsel %vm3948, %v3076, 0.0
        %v4242 = vsel %vm3948, %v3077, 0.0
        %v4243 = vsel %vm3949, %v3078, 0.0
        %v4244 = vsel %vm3949, %v3079, 0.0
        %v4245 = vsel %vm3949, %v3080, 0.0
        %v4246 = vsel %vm3949, %v3081, 0.0
        %v4247 = vsel %vm3950, %v3082, 0.0
        %v4248 = vsel %vm3950, %v3083, 0.0
        %v4249 = vsel %vm3950, %v3084, 0.0
        %v4250 = vsel %vm3950, %v3085, 0.0
        %v4251 = vsel %vm3951, %v3086, 0.0
        %v4252 = vsel %vm3951, %v3087, 0.0
        %v4253 = vsel %vm3951, %v3088, 0.0
        %v4254 = vsel %vm3951, %v3089, 0.0
        %v4255 = vsel %vm3952, %v3090, 0.0
        %v4256 = vsel %vm3952, %v3091, 0.0
        %v4257 = vsel %vm3952, %v3092, 0.0
        %v4258 = vsel %vm3952, %v3093, 0.0
        %v4259 = vsel %vm3953, %v3094, 0.0
        %v4260 = vsel %vm3953, %v3095, 0.0
        %v4261 = vsel %vm3953, %v3096, 0.0
        %v4262 = vsel %vm3953, %v3097, 0.0
        %v4263 = vsel %vm3954, %v3098, 0.0
        %v4264 = vsel %vm3954, %v3099, 0.0
        %v4265 = vsel %vm3954, %v3100, 0.0
        %v4266 = vsel %vm3954, %v3101, 0.0
        %v4267 = vsel %vm3955, %v3102, 0.0
        %v4268 = vsel %vm3955, %v3103, 0.0
        %v4269 = vsel %vm3955, %v3104, 0.0
        %v4270 = vsel %vm3955, %v3105, 0.0
        %v4271 = vsel %vm3956, %v3106, 0.0
        %v4272 = vsel %vm3956, %v3107, 0.0
        %v4273 = vsel %vm3956, %v3108, 0.0
        %v4274 = vsel %vm3956, %v3109, 0.0
        %v4275 = vsel %vm3957, %v3110, 0.0
        %v4276 = vsel %vm3957, %v3111, 0.0
        %v4277 = vsel %vm3957, %v3112, 0.0
        %v4278 = vsel %vm3957, %v3113, 0.0
        %v4279 = vsel %vm3958, %v3114, 0.0
        %v4280 = vsel %vm3958, %v3115, 0.0
        %v4281 = vsel %vm3958, %v3116, 0.0
        %v4282 = vsel %vm3958, %v3117, 0.0
        %v4283 = vsel %vm3959, %v3118, 0.0
        %v4284 = vsel %vm3959, %v3119, 0.0
        %v4285 = vsel %vm3959, %v3120, 0.0
        %v4286 = vsel %vm3959, %v3121, 0.0
        %v4287 = vsel %vm3960, %v3122, 0.0
        %v4288 = vsel %vm3960, %v3123, 0.0
        %v4289 = vsel %vm3960, %v3124, 0.0
        %v4290 = vsel %vm3960, %v3125, 0.0
        %v4291 = vsel %vm3961, %v3126, 0.0
        %v4292 = vsel %vm3961, %v3127, 0.0
        %v4293 = vsel %vm3961, %v3128, 0.0
        %v4294 = vsel %vm3961, %v3129, 0.0
        %v4295 = vsel %vm3962, %v3130, 0.0
        %v4296 = vsel %vm3962, %v3131, 0.0
        %v4297 = vsel %vm3962, %v3132, 0.0
        %v4298 = vsel %vm3962, %v3133, 0.0
        %v4299 = vsel %vm3935, %v446, 0.0
        %v4300 = vsel %vm3935, %v447, 0.0
        %v4301 = vsel %vm3935, %v448, 0.0
        %v4302 = vsel %vm3935, %v449, 0.0
        %v4303 = vsel %vm3936, %v450, 0.0
        %v4304 = vsel %vm3936, %v451, 0.0
        %v4305 = vsel %vm3936, %v452, 0.0
        %v4306 = vsel %vm3936, %v453, 0.0
        %v4307 = vsel %vm3937, %v454, 0.0
        %v4308 = vsel %vm3937, %v455, 0.0
        %v4309 = vsel %vm3937, %v456, 0.0
        %v4310 = vsel %vm3937, %v457, 0.0
        %v4311 = vsel %vm3938, %v458, 0.0
        %v4312 = vsel %vm3938, %v459, 0.0
        %v4313 = vsel %vm3938, %v460, 0.0
        %v4314 = vsel %vm3938, %v461, 0.0
        %v4315 = vsel %vm3939, %v462, 0.0
        %v4316 = vsel %vm3939, %v463, 0.0
        %v4317 = vsel %vm3939, %v464, 0.0
        %v4318 = vsel %vm3939, %v465, 0.0
        %v4319 = vsel %vm3940, %v466, 0.0
        %v4320 = vsel %vm3940, %v467, 0.0
        %v4321 = vsel %vm3940, %v468, 0.0
        %v4322 = vsel %vm3940, %v469, 0.0
        %v4323 = vsel %vm3941, %v470, 0.0
        %v4324 = vsel %vm3941, %v471, 0.0
        %v4325 = vsel %vm3941, %v472, 0.0
        %v4326 = vsel %vm3941, %v473, 0.0
        %v4327 = vsel %vm3942, %v474, 0.0
        %v4328 = vsel %vm3942, %v475, 0.0
        %v4329 = vsel %vm3942, %v476, 0.0
        %v4330 = vsel %vm3942, %v477, 0.0
        %v4331 = vsel %vm3943, %v478, 0.0
        %v4332 = vsel %vm3943, %v479, 0.0
        %v4333 = vsel %vm3943, %v480, 0.0
        %v4334 = vsel %vm3943, %v481, 0.0
        %v4335 = vsel %vm3944, %v482, 0.0
        %v4336 = vsel %vm3944, %v483, 0.0
        %v4337 = vsel %vm3944, %v484, 0.0
        %v4338 = vsel %vm3944, %v485, 0.0
        %v4339 = vsel %vm3945, %v486, 0.0
        %v4340 = vsel %vm3945, %v487, 0.0
        %v4341 = vsel %vm3945, %v488, 0.0
        %v4342 = vsel %vm3945, %v489, 0.0
        %v4343 = vsel %vm3946, %v490, 0.0
        %v4344 = vsel %vm3946, %v491, 0.0
        %v4345 = vsel %vm3946, %v492, 0.0
        %v4346 = vsel %vm3946, %v493, 0.0
        %v4347 = vsel %vm3947, %v494, 0.0
        %v4348 = vsel %vm3947, %v495, 0.0
        %v4349 = vsel %vm3947, %v496, 0.0
        %v4350 = vsel %vm3947, %v497, 0.0
        %v4351 = vsel %vm3948, %v498, 0.0
        %v4352 = vsel %vm3948, %v499, 0.0
        %v4353 = vsel %vm3948, %v500, 0.0
        %v4354 = vsel %vm3948, %v501, 0.0
        %v4355 = vsel %vm3949, %v502, 0.0
        %v4356 = vsel %vm3949, %v503, 0.0
        %v4357 = vsel %vm3949, %v504, 0.0
        %v4358 = vsel %vm3949, %v505, 0.0
        %v4359 = vsel %vm3950, %v506, 0.0
        %v4360 = vsel %vm3950, %v507, 0.0
        %v4361 = vsel %vm3950, %v508, 0.0
        %v4362 = vsel %vm3950, %v509, 0.0
        %v4363 = vsel %vm3951, %v510, 0.0
        %v4364 = vsel %vm3951, %v511, 0.0
        %v4365 = vsel %vm3951, %v512, 0.0
        %v4366 = vsel %vm3951, %v513, 0.0
        %v4367 = vsel %vm3952, %v514, 0.0
        %v4368 = vsel %vm3952, %v515, 0.0
        %v4369 = vsel %vm3952, %v516, 0.0
        %v4370 = vsel %vm3952, %v517, 0.0
        %v4371 = vsel %vm3953, %v518, 0.0
        %v4372 = vsel %vm3953, %v519, 0.0
        %v4373 = vsel %vm3953, %v520, 0.0
        %v4374 = vsel %vm3953, %v521, 0.0
        %v4375 = vsel %vm3954, %v522, 0.0
        %v4376 = vsel %vm3954, %v523, 0.0
        %v4377 = vsel %vm3954, %v524, 0.0
        %v4378 = vsel %vm3954, %v525, 0.0
        %v4379 = vsel %vm3955, %v526, 0.0
        %v4380 = vsel %vm3955, %v527, 0.0
        %v4381 = vsel %vm3955, %v528, 0.0
        %v4382 = vsel %vm3955, %v529, 0.0
        %v4383 = vsel %vm3956, %v530, 0.0
        %v4384 = vsel %vm3956, %v531, 0.0
        %v4385 = vsel %vm3956, %v532, 0.0
        %v4386 = vsel %vm3956, %v533, 0.0
        %v4387 = vsel %vm3957, %v534, 0.0
        %v4388 = vsel %vm3957, %v535, 0.0
        %v4389 = vsel %vm3957, %v536, 0.0
        %v4390 = vsel %vm3957, %v537, 0.0
        %v4391 = vsel %vm3958, %v538, 0.0
        %v4392 = vsel %vm3958, %v539, 0.0
        %v4393 = vsel %vm3958, %v540, 0.0
        %v4394 = vsel %vm3958, %v541, 0.0
        %v4395 = vsel %vm3959, %v542, 0.0
        %v4396 = vsel %vm3959, %v543, 0.0
        %v4397 = vsel %vm3959, %v544, 0.0
        %v4398 = vsel %vm3959, %v545, 0.0
        %v4399 = vsel %vm3960, %v546, 0.0
        %v4400 = vsel %vm3960, %v547, 0.0
        %v4401 = vsel %vm3960, %v548, 0.0
        %v4402 = vsel %vm3960, %v549, 0.0
        %v4403 = vsel %vm3961, %v550, 0.0
        %v4404 = vsel %vm3961, %v551, 0.0
        %v4405 = vsel %vm3961, %v552, 0.0
        %v4406 = vsel %vm3961, %v553, 0.0
        %v4407 = vsel %vm3962, %v554, 0.0
        %v4408 = vsel %vm3962, %v555, 0.0
        %v4409 = vsel %vm3962, %v556, 0.0
        %v4410 = vsel %vm3962, %v557, 0.0
        %v4411 = vadd.f32 %v3963, %v3967
        %v4412 = vadd.f32 %v4411, %v3971
        %v4413 = vadd.f32 %v4412, %v3975
        %v4414 = vadd.f32 %v4413, %v3979
        %v4415 = vadd.f32 %v4414, %v3983
        %v4416 = vadd.f32 %v4415, %v3987
        %v4417 = vadd.f32 %v4416, %v3991
        %v4418 = vadd.f32 %v4417, %v3995
        %v4419 = vadd.f32 %v4418, %v3999
        %v4420 = vadd.f32 %v4419, %v4003
        %v4421 = vadd.f32 %v4420, %v4007
        %v4422 = vadd.f32 %v4421, %v4011
        %v4423 = vadd.f32 %v4422, %v4015
        %v4424 = vadd.f32 %v4423, %v4019
        %v4425 = vadd.f32 %v4424, %v4023
        %v4426 = vadd.f32 %v4425, %v4027
        %v4427 = vadd.f32 %v4426, %v4031
        %v4428 = vadd.f32 %v4427, %v4035
        %v4429 = vadd.f32 %v4428, %v4039
        %v4430 = vadd.f32 %v4429, %v4043
        %v4431 = vadd.f32 %v4430, %v4047
        %v4432 = vadd.f32 %v4431, %v4051
        %v4433 = vadd.f32 %v4432, %v4055
        %v4434 = vadd.f32 %v4433, %v4059
        %v4435 = vadd.f32 %v4434, %v4063
        %v4436 = vadd.f32 %v4435, %v4067
        %v4437 = vadd.f32 %v4436, %v4071
        %v4438 = vrot.slane %v4437, 4
        %v4439 = vadd.f32 %v4437, %v4438
        %v4440 = vrot.slane %v4439, 2
        %v4441 = vadd.f32 %v4439, %v4440
        %v4442 = vrot.slane %v4441, 1
        %v4443 = vadd.f32 %v4441, %v4442
        %v4444 = vadd.f32 %v3964, %v3968
        %v4445 = vadd.f32 %v4444, %v3972
        %v4446 = vadd.f32 %v4445, %v3976
        %v4447 = vadd.f32 %v4446, %v3980
        %v4448 = vadd.f32 %v4447, %v3984
        %v4449 = vadd.f32 %v4448, %v3988
        %v4450 = vadd.f32 %v4449, %v3992
        %v4451 = vadd.f32 %v4450, %v3996
        %v4452 = vadd.f32 %v4451, %v4000
        %v4453 = vadd.f32 %v4452, %v4004
        %v4454 = vadd.f32 %v4453, %v4008
        %v4455 = vadd.f32 %v4454, %v4012
        %v4456 = vadd.f32 %v4455, %v4016
        %v4457 = vadd.f32 %v4456, %v4020
        %v4458 = vadd.f32 %v4457, %v4024
        %v4459 = vadd.f32 %v4458, %v4028
        %v4460 = vadd.f32 %v4459, %v4032
        %v4461 = vadd.f32 %v4460, %v4036
        %v4462 = vadd.f32 %v4461, %v4040
        %v4463 = vadd.f32 %v4462, %v4044
        %v4464 = vadd.f32 %v4463, %v4048
        %v4465 = vadd.f32 %v4464, %v4052
        %v4466 = vadd.f32 %v4465, %v4056
        %v4467 = vadd.f32 %v4466, %v4060
        %v4468 = vadd.f32 %v4467, %v4064
        %v4469 = vadd.f32 %v4468, %v4068
        %v4470 = vadd.f32 %v4469, %v4072
        %v4471 = vrot.slane %v4470, 4
        %v4472 = vadd.f32 %v4470, %v4471
        %v4473 = vrot.slane %v4472, 2
        %v4474 = vadd.f32 %v4472, %v4473
        %v4475 = vrot.slane %v4474, 1
        %v4476 = vadd.f32 %v4474, %v4475
        %v4477 = vadd.f32 %v3965, %v3969
        %v4478 = vadd.f32 %v4477, %v3973
        %v4479 = vadd.f32 %v4478, %v3977
        %v4480 = vadd.f32 %v4479, %v3981
        %v4481 = vadd.f32 %v4480, %v3985
        %v4482 = vadd.f32 %v4481, %v3989
        %v4483 = vadd.f32 %v4482, %v3993
        %v4484 = vadd.f32 %v4483, %v3997
        %v4485 = vadd.f32 %v4484, %v4001
        %v4486 = vadd.f32 %v4485, %v4005
        %v4487 = vadd.f32 %v4486, %v4009
        %v4488 = vadd.f32 %v4487, %v4013
        %v4489 = vadd.f32 %v4488, %v4017
        %v4490 = vadd.f32 %v4489, %v4021
        %v4491 = vadd.f32 %v4490, %v4025
        %v4492 = vadd.f32 %v4491, %v4029
        %v4493 = vadd.f32 %v4492, %v4033
        %v4494 = vadd.f32 %v4493, %v4037
        %v4495 = vadd.f32 %v4494, %v4041
        %v4496 = vadd.f32 %v4495, %v4045
        %v4497 = vadd.f32 %v4496, %v4049
        %v4498 = vadd.f32 %v4497, %v4053
        %v4499 = vadd.f32 %v4498, %v4057
        %v4500 = vadd.f32 %v4499, %v4061
        %v4501 = vadd.f32 %v4500, %v4065
        %v4502 = vadd.f32 %v4501, %v4069
        %v4503 = vadd.f32 %v4502, %v4073
        %v4504 = vrot.slane %v4503, 4
        %v4505 = vadd.f32 %v4503, %v4504
        %v4506 = vrot.slane %v4505, 2
        %v4507 = vadd.f32 %v4505, %v4506
        %v4508 = vrot.slane %v4507, 1
        %v4509 = vadd.f32 %v4507, %v4508
        %v4510 = vadd.f32 %v3966, %v3970
        %v4511 = vadd.f32 %v4510, %v3974
        %v4512 = vadd.f32 %v4511, %v3978
        %v4513 = vadd.f32 %v4512, %v3982
        %v4514 = vadd.f32 %v4513, %v3986
        %v4515 = vadd.f32 %v4514, %v3990
        %v4516 = vadd.f32 %v4515, %v3994
        %v4517 = vadd.f32 %v4516, %v3998
        %v4518 = vadd.f32 %v4517, %v4002
        %v4519 = vadd.f32 %v4518, %v4006
        %v4520 = vadd.f32 %v4519, %v4010
        %v4521 = vadd.f32 %v4520, %v4014
        %v4522 = vadd.f32 %v4521, %v4018
        %v4523 = vadd.f32 %v4522, %v4022
        %v4524 = vadd.f32 %v4523, %v4026
        %v4525 = vadd.f32 %v4524, %v4030
        %v4526 = vadd.f32 %v4525, %v4034
        %v4527 = vadd.f32 %v4526, %v4038
        %v4528 = vadd.f32 %v4527, %v4042
        %v4529 = vadd.f32 %v4528, %v4046
        %v4530 = vadd.f32 %v4529, %v4050
        %v4531 = vadd.f32 %v4530, %v4054
        %v4532 = vadd.f32 %v4531, %v4058
        %v4533 = vadd.f32 %v4532, %v4062
        %v4534 = vadd.f32 %v4533, %v4066
        %v4535 = vadd.f32 %v4534, %v4070
        %v4536 = vadd.f32 %v4535, %v4074
        %v4537 = vrot.slane %v4536, 4
        %v4538 = vadd.f32 %v4536, %v4537
        %v4539 = vrot.slane %v4538, 2
        %v4540 = vadd.f32 %v4538, %v4539
        %v4541 = vrot.slane %v4540, 1
        %v4542 = vadd.f32 %v4540, %v4541
        %v4547 = vcombine.low %v4443, %v4476
        %v4548 = vcombine.low %v4509, %v4542
        %v4550 = vunpack.c.l.s4 1966171168
        %v4551 = vunpack.c.0.s8 %v4550
        %v4552 = vlaneseq
        %v4553 = vshrl.u32 %v4552, 7
        %v4554 = vsub.s32 %v4551, %v4553
        %v4555 = vrot.slane %v4547, %v4554
        %v4557 = vunpack.c.l.s4 1966171168
        %v4558 = vunpack.c.0.s8 %v4557
        %v4559 = vlaneseq
        %v4560 = vshrl.u32 %v4559, 7
        %v4561 = vsub.s32 %v4558, %v4560
        %v4562 = vrot.slane %v4548, %v4561
        %v4563 = vcombine.low %v4555, %v4562
        %v4565 = vunpack.c.l.s4 1966171168
        %v4566 = vunpack.c.0.s8 %v4565
        %v4567 = vlaneseq
        %v4568 = vshrl.u32 %v4567, 7
        %v4569 = vsub.s32 %v4566, %v4568
        %v4570 = vrot.slane %v4563, %v4569
        %v4572 = vlaneseq
        %vm4573 = vcmp.ge.s32.totalorder %v4572, 0
        %vm4574 = vcmp.lt.s32.totalorder %v4572, 512
        %vm4575 = vmand %vm4573, %vm4574
        %4576 = vst.msk [vmem:[%s321] sm:$0xf] %vm4575, %v4570
        %v4577 = vadd.f32 %v4075, %v4079
        %v4578 = vadd.f32 %v4577, %v4083
        %v4579 = vadd.f32 %v4578, %v4087
        %v4580 = vadd.f32 %v4579, %v4091
        %v4581 = vadd.f32 %v4580, %v4095
        %v4582 = vadd.f32 %v4581, %v4099
        %v4583 = vadd.f32 %v4582, %v4103
        %v4584 = vadd.f32 %v4583, %v4107
        %v4585 = vadd.f32 %v4584, %v4111
        %v4586 = vadd.f32 %v4585, %v4115
        %v4587 = vadd.f32 %v4586, %v4119
        %v4588 = vadd.f32 %v4587, %v4123
        %v4589 = vadd.f32 %v4588, %v4127
        %v4590 = vadd.f32 %v4589, %v4131
        %v4591 = vadd.f32 %v4590, %v4135
        %v4592 = vadd.f32 %v4591, %v4139
        %v4593 = vadd.f32 %v4592, %v4143
        %v4594 = vadd.f32 %v4593, %v4147
        %v4595 = vadd.f32 %v4594, %v4151
        %v4596 = vadd.f32 %v4595, %v4155
        %v4597 = vadd.f32 %v4596, %v4159
        %v4598 = vadd.f32 %v4597, %v4163
        %v4599 = vadd.f32 %v4598, %v4167
        %v4600 = vadd.f32 %v4599, %v4171
        %v4601 = vadd.f32 %v4600, %v4175
        %v4602 = vadd.f32 %v4601, %v4179
        %v4603 = vadd.f32 %v4602, %v4183
        %v4604 = vrot.slane %v4603, 4
        %v4605 = vadd.f32 %v4603, %v4604
        %v4606 = vrot.slane %v4605, 2
        %v4607 = vadd.f32 %v4605, %v4606
        %v4608 = vrot.slane %v4607, 1
        %v4609 = vadd.f32 %v4607, %v4608
        %v4610 = vadd.f32 %v4076, %v4080
        %v4611 = vadd.f32 %v4610, %v4084
        %v4612 = vadd.f32 %v4611, %v4088
        %v4613 = vadd.f32 %v4612, %v4092
        %v4614 = vadd.f32 %v4613, %v4096
        %v4615 = vadd.f32 %v4614, %v4100
        %v4616 = vadd.f32 %v4615, %v4104
        %v4617 = vadd.f32 %v4616, %v4108
        %v4618 = vadd.f32 %v4617, %v4112
        %v4619 = vadd.f32 %v4618, %v4116
        %v4620 = vadd.f32 %v4619, %v4120
        %v4621 = vadd.f32 %v4620, %v4124
        %v4622 = vadd.f32 %v4621, %v4128
        %v4623 = vadd.f32 %v4622, %v4132
        %v4624 = vadd.f32 %v4623, %v4136
        %v4625 = vadd.f32 %v4624, %v4140
        %v4626 = vadd.f32 %v4625, %v4144
        %v4627 = vadd.f32 %v4626, %v4148
        %v4628 = vadd.f32 %v4627, %v4152
        %v4629 = vadd.f32 %v4628, %v4156
        %v4630 = vadd.f32 %v4629, %v4160
        %v4631 = vadd.f32 %v4630, %v4164
        %v4632 = vadd.f32 %v4631, %v4168
        %v4633 = vadd.f32 %v4632, %v4172
        %v4634 = vadd.f32 %v4633, %v4176
        %v4635 = vadd.f32 %v4634, %v4180
        %v4636 = vadd.f32 %v4635, %v4184
        %v4637 = vrot.slane %v4636, 4
        %v4638 = vadd.f32 %v4636, %v4637
        %v4639 = vrot.slane %v4638, 2
        %v4640 = vadd.f32 %v4638, %v4639
        %v4641 = vrot.slane %v4640, 1
        %v4642 = vadd.f32 %v4640, %v4641
        %v4643 = vadd.f32 %v4077, %v4081
        %v4644 = vadd.f32 %v4643, %v4085
        %v4645 = vadd.f32 %v4644, %v4089
        %v4646 = vadd.f32 %v4645, %v4093
        %v4647 = vadd.f32 %v4646, %v4097
        %v4648 = vadd.f32 %v4647, %v4101
        %v4649 = vadd.f32 %v4648, %v4105
        %v4650 = vadd.f32 %v4649, %v4109
        %v4651 = vadd.f32 %v4650, %v4113
        %v4652 = vadd.f32 %v4651, %v4117
        %v4653 = vadd.f32 %v4652, %v4121
        %v4654 = vadd.f32 %v4653, %v4125
        %v4655 = vadd.f32 %v4654, %v4129
        %v4656 = vadd.f32 %v4655, %v4133
        %v4657 = vadd.f32 %v4656, %v4137
        %v4658 = vadd.f32 %v4657, %v4141
        %v4659 = vadd.f32 %v4658, %v4145
        %v4660 = vadd.f32 %v4659, %v4149
        %v4661 = vadd.f32 %v4660, %v4153
        %v4662 = vadd.f32 %v4661, %v4157
        %v4663 = vadd.f32 %v4662, %v4161
        %v4664 = vadd.f32 %v4663, %v4165
        %v4665 = vadd.f32 %v4664, %v4169
        %v4666 = vadd.f32 %v4665, %v4173
        %v4667 = vadd.f32 %v4666, %v4177
        %v4668 = vadd.f32 %v4667, %v4181
        %v4669 = vadd.f32 %v4668, %v4185
        %v4670 = vrot.slane %v4669, 4
        %v4671 = vadd.f32 %v4669, %v4670
        %v4672 = vrot.slane %v4671, 2
        %v4673 = vadd.f32 %v4671, %v4672
        %v4674 = vrot.slane %v4673, 1
        %v4675 = vadd.f32 %v4673, %v4674
        %v4676 = vadd.f32 %v4078, %v4082
        %v4677 = vadd.f32 %v4676, %v4086
        %v4678 = vadd.f32 %v4677, %v4090
        %v4679 = vadd.f32 %v4678, %v4094
        %v4680 = vadd.f32 %v4679, %v4098
        %v4681 = vadd.f32 %v4680, %v4102
        %v4682 = vadd.f32 %v4681, %v4106
        %v4683 = vadd.f32 %v4682, %v4110
        %v4684 = vadd.f32 %v4683, %v4114
        %v4685 = vadd.f32 %v4684, %v4118
        %v4686 = vadd.f32 %v4685, %v4122
        %v4687 = vadd.f32 %v4686, %v4126
        %v4688 = vadd.f32 %v4687, %v4130
        %v4689 = vadd.f32 %v4688, %v4134
        %v4690 = vadd.f32 %v4689, %v4138
        %v4691 = vadd.f32 %v4690, %v4142
        %v4692 = vadd.f32 %v4691, %v4146
        %v4693 = vadd.f32 %v4692, %v4150
        %v4694 = vadd.f32 %v4693, %v4154
        %v4695 = vadd.f32 %v4694, %v4158
        %v4696 = vadd.f32 %v4695, %v4162
        %v4697 = vadd.f32 %v4696, %v4166
        %v4698 = vadd.f32 %v4697, %v4170
        %v4699 = vadd.f32 %v4698, %v4174
        %v4700 = vadd.f32 %v4699, %v4178
        %v4701 = vadd.f32 %v4700, %v4182
        %v4702 = vadd.f32 %v4701, %v4186
        %v4703 = vrot.slane %v4702, 4
        %v4704 = vadd.f32 %v4702, %v4703
        %v4705 = vrot.slane %v4704, 2
        %v4706 = vadd.f32 %v4704, %v4705
        %v4707 = vrot.slane %v4706, 1
        %v4708 = vadd.f32 %v4706, %v4707
        %v4713 = vcombine.low %v4609, %v4642
        %v4714 = vcombine.low %v4675, %v4708
        %v4716 = vunpack.c.l.s4 1966171168
        %v4717 = vunpack.c.0.s8 %v4716
        %v4718 = vlaneseq
        %v4719 = vshrl.u32 %v4718, 7
        %v4720 = vsub.s32 %v4717, %v4719
        %v4721 = vrot.slane %v4713, %v4720
        %v4723 = vunpack.c.l.s4 1966171168
        %v4724 = vunpack.c.0.s8 %v4723
        %v4725 = vlaneseq
        %v4726 = vshrl.u32 %v4725, 7
        %v4727 = vsub.s32 %v4724, %v4726
        %v4728 = vrot.slane %v4714, %v4727
        %v4729 = vcombine.low %v4721, %v4728
        %v4731 = vunpack.c.l.s4 1966171168
        %v4732 = vunpack.c.0.s8 %v4731
        %v4733 = vlaneseq
        %v4734 = vshrl.u32 %v4733, 7
        %v4735 = vsub.s32 %v4732, %v4734
        %v4736 = vrot.slane %v4729, %v4735
        %4738 = vst.msk [vmem:[%s325] sm:$0xf] %vm4575, %v4736
        %v4739 = vadd.f32 %v4187, %v4191
        %v4740 = vadd.f32 %v4739, %v4195
        %v4741 = vadd.f32 %v4740, %v4199
        %v4742 = vadd.f32 %v4741, %v4203
        %v4743 = vadd.f32 %v4742, %v4207
        %v4744 = vadd.f32 %v4743, %v4211
        %v4745 = vadd.f32 %v4744, %v4215
        %v4746 = vadd.f32 %v4745, %v4219
        %v4747 = vadd.f32 %v4746, %v4223
        %v4748 = vadd.f32 %v4747, %v4227
        %v4749 = vadd.f32 %v4748, %v4231
        %v4750 = vadd.f32 %v4749, %v4235
        %v4751 = vadd.f32 %v4750, %v4239
        %v4752 = vadd.f32 %v4751, %v4243
        %v4753 = vadd.f32 %v4752, %v4247
        %v4754 = vadd.f32 %v4753, %v4251
        %v4755 = vadd.f32 %v4754, %v4255
        %v4756 = vadd.f32 %v4755, %v4259
        %v4757 = vadd.f32 %v4756, %v4263
        %v4758 = vadd.f32 %v4757, %v4267
        %v4759 = vadd.f32 %v4758, %v4271
        %v4760 = vadd.f32 %v4759, %v4275
        %v4761 = vadd.f32 %v4760, %v4279
        %v4762 = vadd.f32 %v4761, %v4283
        %v4763 = vadd.f32 %v4762, %v4287
        %v4764 = vadd.f32 %v4763, %v4291
        %v4765 = vadd.f32 %v4764, %v4295
        %v4766 = vrot.slane %v4765, 4
        %v4767 = vadd.f32 %v4765, %v4766
        %v4768 = vrot.slane %v4767, 2
        %v4769 = vadd.f32 %v4767, %v4768
        %v4770 = vrot.slane %v4769, 1
        %v4771 = vadd.f32 %v4769, %v4770
        %v4772 = vadd.f32 %v4188, %v4192
        %v4773 = vadd.f32 %v4772, %v4196
        %v4774 = vadd.f32 %v4773, %v4200
        %v4775 = vadd.f32 %v4774, %v4204
        %v4776 = vadd.f32 %v4775, %v4208
        %v4777 = vadd.f32 %v4776, %v4212
        %v4778 = vadd.f32 %v4777, %v4216
        %v4779 = vadd.f32 %v4778, %v4220
        %v4780 = vadd.f32 %v4779, %v4224
        %v4781 = vadd.f32 %v4780, %v4228
        %v4782 = vadd.f32 %v4781, %v4232
        %v4783 = vadd.f32 %v4782, %v4236
        %v4784 = vadd.f32 %v4783, %v4240
        %v4785 = vadd.f32 %v4784, %v4244
        %v4786 = vadd.f32 %v4785, %v4248
        %v4787 = vadd.f32 %v4786, %v4252
        %v4788 = vadd.f32 %v4787, %v4256
        %v4789 = vadd.f32 %v4788, %v4260
        %v4790 = vadd.f32 %v4789, %v4264
        %v4791 = vadd.f32 %v4790, %v4268
        %v4792 = vadd.f32 %v4791, %v4272
        %v4793 = vadd.f32 %v4792, %v4276
        %v4794 = vadd.f32 %v4793, %v4280
        %v4795 = vadd.f32 %v4794, %v4284
        %v4796 = vadd.f32 %v4795, %v4288
        %v4797 = vadd.f32 %v4796, %v4292
        %v4798 = vadd.f32 %v4797, %v4296
        %v4799 = vrot.slane %v4798, 4
        %v4800 = vadd.f32 %v4798, %v4799
        %v4801 = vrot.slane %v4800, 2
        %v4802 = vadd.f32 %v4800, %v4801
        %v4803 = vrot.slane %v4802, 1
        %v4804 = vadd.f32 %v4802, %v4803
        %v4805 = vadd.f32 %v4189, %v4193
        %v4806 = vadd.f32 %v4805, %v4197
        %v4807 = vadd.f32 %v4806, %v4201
        %v4808 = vadd.f32 %v4807, %v4205
        %v4809 = vadd.f32 %v4808, %v4209
        %v4810 = vadd.f32 %v4809, %v4213
        %v4811 = vadd.f32 %v4810, %v4217
        %v4812 = vadd.f32 %v4811, %v4221
        %v4813 = vadd.f32 %v4812, %v4225
        %v4814 = vadd.f32 %v4813, %v4229
        %v4815 = vadd.f32 %v4814, %v4233
        %v4816 = vadd.f32 %v4815, %v4237
        %v4817 = vadd.f32 %v4816, %v4241
        %v4818 = vadd.f32 %v4817, %v4245
        %v4819 = vadd.f32 %v4818, %v4249
        %v4820 = vadd.f32 %v4819, %v4253
        %v4821 = vadd.f32 %v4820, %v4257
        %v4822 = vadd.f32 %v4821, %v4261
        %v4823 = vadd.f32 %v4822, %v4265
        %v4824 = vadd.f32 %v4823, %v4269
        %v4825 = vadd.f32 %v4824, %v4273
        %v4826 = vadd.f32 %v4825, %v4277
        %v4827 = vadd.f32 %v4826, %v4281
        %v4828 = vadd.f32 %v4827, %v4285
        %v4829 = vadd.f32 %v4828, %v4289
        %v4830 = vadd.f32 %v4829, %v4293
        %v4831 = vadd.f32 %v4830, %v4297
        %v4832 = vrot.slane %v4831, 4
        %v4833 = vadd.f32 %v4831, %v4832
        %v4834 = vrot.slane %v4833, 2
        %v4835 = vadd.f32 %v4833, %v4834
        %v4836 = vrot.slane %v4835, 1
        %v4837 = vadd.f32 %v4835, %v4836
        %v4838 = vadd.f32 %v4190, %v4194
        %v4839 = vadd.f32 %v4838, %v4198
        %v4840 = vadd.f32 %v4839, %v4202
        %v4841 = vadd.f32 %v4840, %v4206
        %v4842 = vadd.f32 %v4841, %v4210
        %v4843 = vadd.f32 %v4842, %v4214
        %v4844 = vadd.f32 %v4843, %v4218
        %v4845 = vadd.f32 %v4844, %v4222
        %v4846 = vadd.f32 %v4845, %v4226
        %v4847 = vadd.f32 %v4846, %v4230
        %v4848 = vadd.f32 %v4847, %v4234
        %v4849 = vadd.f32 %v4848, %v4238
        %v4850 = vadd.f32 %v4849, %v4242
        %v4851 = vadd.f32 %v4850, %v4246
        %v4852 = vadd.f32 %v4851, %v4250
        %v4853 = vadd.f32 %v4852, %v4254
        %v4854 = vadd.f32 %v4853, %v4258
        %v4855 = vadd.f32 %v4854, %v4262
        %v4856 = vadd.f32 %v4855, %v4266
        %v4857 = vadd.f32 %v4856, %v4270
        %v4858 = vadd.f32 %v4857, %v4274
        %v4859 = vadd.f32 %v4858, %v4278
        %v4860 = vadd.f32 %v4859, %v4282
        %v4861 = vadd.f32 %v4860, %v4286
        %v4862 = vadd.f32 %v4861, %v4290
        %v4863 = vadd.f32 %v4862, %v4294
        %v4864 = vadd.f32 %v4863, %v4298
        %v4865 = vrot.slane %v4864, 4
        %v4866 = vadd.f32 %v4864, %v4865
        %v4867 = vrot.slane %v4866, 2
        %v4868 = vadd.f32 %v4866, %v4867
        %v4869 = vrot.slane %v4868, 1
        %v4870 = vadd.f32 %v4868, %v4869
        %v4875 = vcombine.low %v4771, %v4804
        %v4876 = vcombine.low %v4837, %v4870
        %v4878 = vunpack.c.l.s4 1966171168
        %v4879 = vunpack.c.0.s8 %v4878
        %v4880 = vlaneseq
        %v4881 = vshrl.u32 %v4880, 7
        %v4882 = vsub.s32 %v4879, %v4881
        %v4883 = vrot.slane %v4875, %v4882
        %v4885 = vunpack.c.l.s4 1966171168
        %v4886 = vunpack.c.0.s8 %v4885
        %v4887 = vlaneseq
        %v4888 = vshrl.u32 %v4887, 7
        %v4889 = vsub.s32 %v4886, %v4888
        %v4890 = vrot.slane %v4876, %v4889
        %v4891 = vcombine.low %v4883, %v4890
        %v4893 = vunpack.c.l.s4 1966171168
        %v4894 = vunpack.c.0.s8 %v4893
        %v4895 = vlaneseq
        %v4896 = vshrl.u32 %v4895, 7
        %v4897 = vsub.s32 %v4894, %v4896
        %v4898 = vrot.slane %v4891, %v4897
        %4900 = vst.msk [vmem:[%s329] sm:$0xf] %vm4575, %v4898
        %v4901 = vadd.f32 %v4299, %v4303
        %v4902 = vadd.f32 %v4901, %v4307
        %v4903 = vadd.f32 %v4902, %v4311
        %v4904 = vadd.f32 %v4903, %v4315
        %v4905 = vadd.f32 %v4904, %v4319
        %v4906 = vadd.f32 %v4905, %v4323
        %v4907 = vadd.f32 %v4906, %v4327
        %v4908 = vadd.f32 %v4907, %v4331
        %v4909 = vadd.f32 %v4908, %v4335
        %v4910 = vadd.f32 %v4909, %v4339
        %v4911 = vadd.f32 %v4910, %v4343
        %v4912 = vadd.f32 %v4911, %v4347
        %v4913 = vadd.f32 %v4912, %v4351
        %v4914 = vadd.f32 %v4913, %v4355
        %v4915 = vadd.f32 %v4914, %v4359
        %v4916 = vadd.f32 %v4915, %v4363
        %v4917 = vadd.f32 %v4916, %v4367
        %v4918 = vadd.f32 %v4917, %v4371
        %v4919 = vadd.f32 %v4918, %v4375
        %v4920 = vadd.f32 %v4919, %v4379
        %v4921 = vadd.f32 %v4920, %v4383
        %v4922 = vadd.f32 %v4921, %v4387
        %v4923 = vadd.f32 %v4922, %v4391
        %v4924 = vadd.f32 %v4923, %v4395
        %v4925 = vadd.f32 %v4924, %v4399
        %v4926 = vadd.f32 %v4925, %v4403
        %v4927 = vadd.f32 %v4926, %v4407
        %v4928 = vrot.slane %v4927, 4
        %v4929 = vadd.f32 %v4927, %v4928
        %v4930 = vrot.slane %v4929, 2
        %v4931 = vadd.f32 %v4929, %v4930
        %v4932 = vrot.slane %v4931, 1
        %v4933 = vadd.f32 %v4931, %v4932
        %v4934 = vadd.f32 %v4300, %v4304
        %v4935 = vadd.f32 %v4934, %v4308
        %v4936 = vadd.f32 %v4935, %v4312
        %v4937 = vadd.f32 %v4936, %v4316
        %v4938 = vadd.f32 %v4937, %v4320
        %v4939 = vadd.f32 %v4938, %v4324
        %v4940 = vadd.f32 %v4939, %v4328
        %v4941 = vadd.f32 %v4940, %v4332
        %v4942 = vadd.f32 %v4941, %v4336
        %v4943 = vadd.f32 %v4942, %v4340
        %v4944 = vadd.f32 %v4943, %v4344
        %v4945 = vadd.f32 %v4944, %v4348
        %v4946 = vadd.f32 %v4945, %v4352
        %v4947 = vadd.f32 %v4946, %v4356
        %v4948 = vadd.f32 %v4947, %v4360
        %v4949 = vadd.f32 %v4948, %v4364
        %v4950 = vadd.f32 %v4949, %v4368
        %v4951 = vadd.f32 %v4950, %v4372
        %v4952 = vadd.f32 %v4951, %v4376
        %v4953 = vadd.f32 %v4952, %v4380
        %v4954 = vadd.f32 %v4953, %v4384
        %v4955 = vadd.f32 %v4954, %v4388
        %v4956 = vadd.f32 %v4955, %v4392
        %v4957 = vadd.f32 %v4956, %v4396
        %v4958 = vadd.f32 %v4957, %v4400
        %v4959 = vadd.f32 %v4958, %v4404
        %v4960 = vadd.f32 %v4959, %v4408
        %v4961 = vrot.slane %v4960, 4
        %v4962 = vadd.f32 %v4960, %v4961
        %v4963 = vrot.slane %v4962, 2
        %v4964 = vadd.f32 %v4962, %v4963
        %v4965 = vrot.slane %v4964, 1
        %v4966 = vadd.f32 %v4964, %v4965
        %v4967 = vadd.f32 %v4301, %v4305
        %v4968 = vadd.f32 %v4967, %v4309
        %v4969 = vadd.f32 %v4968, %v4313
        %v4970 = vadd.f32 %v4969, %v4317
        %v4971 = vadd.f32 %v4970, %v4321
        %v4972 = vadd.f32 %v4971, %v4325
        %v4973 = vadd.f32 %v4972, %v4329
        %v4974 = vadd.f32 %v4973, %v4333
        %v4975 = vadd.f32 %v4974, %v4337
        %v4976 = vadd.f32 %v4975, %v4341
        %v4977 = vadd.f32 %v4976, %v4345
        %v4978 = vadd.f32 %v4977, %v4349
        %v4979 = vadd.f32 %v4978, %v4353
        %v4980 = vadd.f32 %v4979, %v4357
        %v4981 = vadd.f32 %v4980, %v4361
        %v4982 = vadd.f32 %v4981, %v4365
        %v4983 = vadd.f32 %v4982, %v4369
        %v4984 = vadd.f32 %v4983, %v4373
        %v4985 = vadd.f32 %v4984, %v4377
        %v4986 = vadd.f32 %v4985, %v4381
        %v4987 = vadd.f32 %v4986, %v4385
        %v4988 = vadd.f32 %v4987, %v4389
        %v4989 = vadd.f32 %v4988, %v4393
        %v4990 = vadd.f32 %v4989, %v4397
        %v4991 = vadd.f32 %v4990, %v4401
        %v4992 = vadd.f32 %v4991, %v4405
        %v4993 = vadd.f32 %v4992, %v4409
        %v4994 = vrot.slane %v4993, 4
        %v4995 = vadd.f32 %v4993, %v4994
        %v4996 = vrot.slane %v4995, 2
        %v4997 = vadd.f32 %v4995, %v4996
        %v4998 = vrot.slane %v4997, 1
        %v4999 = vadd.f32 %v4997, %v4998
        %v5000 = vadd.f32 %v4302, %v4306
        %v5001 = vadd.f32 %v5000, %v4310
        %v5002 = vadd.f32 %v5001, %v4314
        %v5003 = vadd.f32 %v5002, %v4318
        %v5004 = vadd.f32 %v5003, %v4322
        %v5005 = vadd.f32 %v5004, %v4326
        %v5006 = vadd.f32 %v5005, %v4330
        %v5007 = vadd.f32 %v5006, %v4334
        %v5008 = vadd.f32 %v5007, %v4338
        %v5009 = vadd.f32 %v5008, %v4342
        %v5010 = vadd.f32 %v5009, %v4346
        %v5011 = vadd.f32 %v5010, %v4350
        %v5012 = vadd.f32 %v5011, %v4354
        %v5013 = vadd.f32 %v5012, %v4358
        %v5014 = vadd.f32 %v5013, %v4362
        %v5015 = vadd.f32 %v5014, %v4366
        %v5016 = vadd.f32 %v5015, %v4370
        %v5017 = vadd.f32 %v5016, %v4374
        %v5018 = vadd.f32 %v5017, %v4378
        %v5019 = vadd.f32 %v5018, %v4382
        %v5020 = vadd.f32 %v5019, %v4386
        %v5021 = vadd.f32 %v5020, %v4390
        %v5022 = vadd.f32 %v5021, %v4394
        %v5023 = vadd.f32 %v5022, %v4398
        %v5024 = vadd.f32 %v5023, %v4402
        %v5025 = vadd.f32 %v5024, %v4406
        %v5026 = vadd.f32 %v5025, %v4410
        %v5027 = vrot.slane %v5026, 4
        %v5028 = vadd.f32 %v5026, %v5027
        %v5029 = vrot.slane %v5028, 2
        %v5030 = vadd.f32 %v5028, %v5029
        %v5031 = vrot.slane %v5030, 1
        %v5032 = vadd.f32 %v5030, %v5031
        %v5037 = vcombine.low %v4933, %v4966
        %v5038 = vcombine.low %v4999, %v5032
        %v5040 = vunpack.c.l.s4 1966171168
        %v5041 = vunpack.c.0.s8 %v5040
        %v5042 = vlaneseq
        %v5043 = vshrl.u32 %v5042, 7
        %v5044 = vsub.s32 %v5041, %v5043
        %v5045 = vrot.slane %v5037, %v5044
        %v5047 = vunpack.c.l.s4 1966171168
        %v5048 = vunpack.c.0.s8 %v5047
        %v5049 = vlaneseq
        %v5050 = vshrl.u32 %v5049, 7
        %v5051 = vsub.s32 %v5048, %v5050
        %v5052 = vrot.slane %v5038, %v5051
        %v5053 = vcombine.low %v5045, %v5052
        %v5055 = vunpack.c.l.s4 1966171168
        %v5056 = vunpack.c.0.s8 %v5055
        %v5057 = vlaneseq
        %v5058 = vshrl.u32 %v5057, 7
        %v5059 = vsub.s32 %v5056, %v5058
        %v5060 = vrot.slane %v5053, %v5059
        %5062 = vst.msk [vmem:[%s333] sm:$0xf] %vm4575, %v5060
      $region36: #{gen_loss.3} parent=27 // pred_fallthru
        _
      %p5063 = scmp.lt.s32.totalorder %s17, 1
      %s5064 = scalar_select %p5063, %s17, 1
      %s5065 = smul.addr %s5064, 4
      %s5066 = scalar_lea.vmem %s2, %s5065
      %p5067 = scmp.lt.s32.totalorder %s17, 1
      %s5068 = scalar_select %p5067, %s17, 1
      %s5069 = smul.addr %s5068, 4
      %s5070 = scalar_lea.vmem %s3, %s5069
      %p5071 = scmp.lt.s32.totalorder %s17, 1
      %s5072 = scalar_select %p5071, %s17, 1
      %s5073 = smul.addr %s5072, 4
      %s5074 = scalar_lea.vmem %s4, %s5073
      %p5075 = scmp.lt.s32.totalorder %s17, 1
      %s5076 = scalar_select %p5075, %s17, 1
      %s5077 = smul.addr %s5076, 4
      %s5078 = scalar_lea.vmem %s5, %s5077
      // Predicated region
      $region37: #{gen_loss.3} parent=27 // pred_check
        %p5079 = pneg %p87
      $region38: #{gen_loss.3} parent=27 // pred_check_branch
        %5081 = sbr.rel (%p5079) target = $region40
      $region39: #{gen_loss.3} parent=27 // pred_region
        _
      $region40: #{gen_loss.3} parent=27 // pred_fallthru
        _
      // Predicated region
      $region41: #{gen_loss.3} parent=27 // pred_check
        %p5082 = pneg %p113
      $region42: #{gen_loss.3} parent=27 // pred_check_branch
        %5084 = sbr.rel (%p5082) target = $region44
      $region43: #{gen_loss.3} parent=27 // pred_region
        _
      $region44: #{gen_loss.3} parent=27 // pred_fallthru
        _
      // Predicated region
      $region45: #{gen_loss.3} parent=27 // pred_check
        %p5085 = pneg %p139
      $region46: #{gen_loss.3} parent=27 // pred_check_branch
        %5087 = sbr.rel (%p5085) target = $region48
      $region47: #{gen_loss.3} parent=27 // pred_region
        _
      $region48: #{gen_loss.3} parent=27 // pred_fallthru
        _
      // Predicated region
      $region49: #{gen_loss.3} parent=27 // pred_check
        %p5088 = pneg %p165
      $region50: #{gen_loss.3} parent=27 // pred_check_branch
        %5090 = sbr.rel (%p5088) target = $region52
      $region51: #{gen_loss.3} parent=27 // pred_region
        _
      $region52: #{gen_loss.3} parent=27 // pred_fallthru
        _
    $region28: #{gen_loss.3} parent=5 // pred_fallthru
      _
    %p5091 = scmp.le.s32.totalorder 2, %s12
    // Predicated region
    $region53: #{gen_loss.3} parent=5 // pred_check
      %p5092 = pneg %p5091
    $region54: #{gen_loss.3} parent=5 // pred_check_branch
      %5094 = sbr.rel (%p5092) target = $region56
    $region55: #{gen_loss.3} parent=5 // pred_region
      %s5095 = ssub.s32 %s12, 2
      // Predicated region
      $region57: #{gen_loss.3} parent=55 // pred_check
        %p5096 = pneg %p93
      $region58: #{gen_loss.3} parent=55 // pred_check_branch
        %5098 = sbr.rel (%p5096) target = $region60
      $region59: #{gen_loss.3} parent=55 // pred_region
        %p5099 = scmp.lt.s32.totalorder %s18, 1
        %s5100 = scalar_select %p5099, %s18, 1
        %s5101 = smul.addr %s5100, 4
        %s5102 = scalar_lea.vmem %s2, %s5101
      $region60: #{gen_loss.3} parent=55 // pred_fallthru
        _
      // Predicated region
      $region61: #{gen_loss.3} parent=55 // pred_check
        %p5103 = pneg %p119
      $region62: #{gen_loss.3} parent=55 // pred_check_branch
        %5105 = sbr.rel (%p5103) target = $region64
      $region63: #{gen_loss.3} parent=55 // pred_region
        %p5106 = scmp.lt.s32.totalorder %s18, 1
        %s5107 = scalar_select %p5106, %s18, 1
        %s5108 = smul.addr %s5107, 4
        %s5109 = scalar_lea.vmem %s3, %s5108
      $region64: #{gen_loss.3} parent=55 // pred_fallthru
        _
      // Predicated region
      $region65: #{gen_loss.3} parent=55 // pred_check
        %p5110 = pneg %p145
      $region66: #{gen_loss.3} parent=55 // pred_check_branch
        %5112 = sbr.rel (%p5110) target = $region68
      $region67: #{gen_loss.3} parent=55 // pred_region
        %p5113 = scmp.lt.s32.totalorder %s18, 1
        %s5114 = scalar_select %p5113, %s18, 1
        %s5115 = smul.addr %s5114, 4
        %s5116 = scalar_lea.vmem %s4, %s5115
      $region68: #{gen_loss.3} parent=55 // pred_fallthru
        _
      // Predicated region
      $region69: #{gen_loss.3} parent=55 // pred_check
        %p5117 = pneg %p171
      $region70: #{gen_loss.3} parent=55 // pred_check_branch
        %5119 = sbr.rel (%p5117) target = $region72
      $region71: #{gen_loss.3} parent=55 // pred_region
        %p5120 = scmp.lt.s32.totalorder %s18, 1
        %s5121 = scalar_select %p5120, %s18, 1
        %s5122 = smul.addr %s5121, 4
        %s5123 = scalar_lea.vmem %s5, %s5122
      $region72: #{gen_loss.3} parent=55 // pred_fallthru
        _
    $region56: #{gen_loss.3} parent=5 // pred_fallthru
      _
  $region6: #{gen_loss.3} parent=0 // loop_footer
    %s16 = sadd.s32 1, %s12
  $region7: #{gen_loss.3} parent=0 // loop_footer_branch
    %11 = sbr.rel target = $region3
  $region8: #{gen_loss.3} parent=0 // loop_exit
    _

</llo_original>
